<compile_context>
chip_gen: v6e
topology: v6e:2x2x1
jax: 0.10.0
libtpu: 0.0.40
codegen_flags: <defaults>
</compile_context>

<pallas_src>
import math

import jax
import jax.numpy as jnp
from jax import lax
from jax.experimental import pallas as pl
from jax.experimental.pallas import tpu as pltpu

_BN_EPS = 1e-5


def _bn_rows(y, g, b):
    """Training-mode batch norm over the row axis of an (M, C) tile.

    One-pass statistics: var = E[y^2] - mean^2 (single reduction sweep).
    """
    mean = jnp.mean(y, axis=0, keepdims=True)
    mean_sq = jnp.mean(y * y, axis=0, keepdims=True)
    var = mean_sq - mean * mean
    return (y - mean) * lax.rsqrt(var + _BN_EPS) * g + b


def bottleneck_kernel(x_ref, w1_ref, b1_ref, g1_ref, be1_ref,
                      w2_ref, b2_ref, g2_ref, be2_ref,
                      w3_ref, b3_ref, g3_ref, be3_ref,
                      o_ref, a1pad_ref):
    """Fused Bottleneck forward on (M, C)-flattened NHWC rows.

    x_ref:     (M, Cin)           input rows (also the residual identity)
    w1_ref:    (Cin, C)           1x1 conv1 weight
    w2_ref:    (9, C, C)          3x3 conv2 weight, tap-major (t = dy*3 + dx)
    w3_ref:    (C, 4C)            1x1 conv3 weight
    b*/g*/be*: (1, C*)            conv biases / BN gammas / BN betas
    o_ref:     (M, 4C)            output rows
    a1pad_ref: (N, H+2, W+2, C)   VMEM scratch: halo-padded conv1 activation
    """
    n, hp2, wp2, c = a1pad_ref.shape
    h, w = hp2 - 2, wp2 - 2
    m = n * h * w

    x = x_ref[...]

    # --- conv1 (1x1) + bn1 + relu: a plain (M, Cin) x (Cin, C) matmul. -------
    y1 = jnp.dot(x, w1_ref[...], preferred_element_type=jnp.float32) + b1_ref[...]
    a1 = jnp.maximum(_bn_rows(y1, g1_ref[...], be1_ref[...]), 0.0)

    # --- conv2 (3x3, pad=1): halo-padded VMEM scratch + 9 shifted tap matmuls.
    a1pad_ref[...] = jnp.zeros(a1pad_ref.shape, jnp.float32)
    a1pad_ref[:, 1:h + 1, 1:w + 1, :] = a1.reshape(n, h, w, c)
    acc = jnp.zeros((m, c), jnp.float32)
    for t in range(9):                       # static unroll: 9 taps
        dy, dx = t // 3, t % 3
        tap = a1pad_ref[:, dy:dy + h, dx:dx + w, :].reshape(m, c)
        acc = acc + jnp.dot(tap, w2_ref[t], preferred_element_type=jnp.float32)
    y2 = acc + b2_ref[...]
    a2 = jnp.maximum(_bn_rows(y2, g2_ref[...], be2_ref[...]), 0.0)

    # --- conv3 (1x1) + bn3 + residual add + relu. ----------------------------
    y3 = jnp.dot(a2, w3_ref[...], preferred_element_type=jnp.float32) + b3_ref[...]
    y3 = _bn_rows(y3, g3_ref[...], be3_ref[...])
    o_ref[...] = jnp.maximum(y3 + x, 0.0)


def bottleneck_forward(x, w1, b1, g1, be1, w2, b2, g2, be2, w3, b3, g3, be3):
    """x: (N, H, W, Cin) NHWC; conv weights HWIO; BN/bias params (C,)."""
    N, H, W, Cin = x.shape
    C = w1.shape[-1]
    Cout = w3.shape[-1]
    assert Cout == Cin, "i_downsample=None requires in_channels == out_channels*4"
    M = N * H * W
    f32 = jnp.float32

    args = (
        x.reshape(M, Cin).astype(f32),
        w1.reshape(Cin, C).astype(f32), b1.reshape(1, C).astype(f32),
        g1.reshape(1, C).astype(f32), be1.reshape(1, C).astype(f32),
        w2.reshape(9, C, C).astype(f32), b2.reshape(1, C).astype(f32),
        g2.reshape(1, C).astype(f32), be2.reshape(1, C).astype(f32),
        w3.reshape(C, Cout).astype(f32), b3.reshape(1, Cout).astype(f32),
        g3.reshape(1, Cout).astype(f32), be3.reshape(1, Cout).astype(f32),
    )

    vmem = pl.BlockSpec(memory_space=pltpu.MemorySpace.VMEM)
    out2d = pl.pallas_call(
        bottleneck_kernel,
        out_shape=jax.ShapeDtypeStruct((M, Cout), f32),
        in_specs=[vmem] * len(args),
        out_specs=vmem,
        scratch_shapes=[pltpu.VMEM((N, H + 2, W + 2, C), f32)],
    )(*args)
    return out2d.reshape(N, H, W, Cout)


def ref_forward(x, w1, b1, g1, be1, w2, b2, g2, be2, w3, b3, g3, be3):
    """Pure-JAX reference of the PyTorch Bottleneck forward (NHWC)."""
    def conv(z, wgt, bias, pad):
        y = lax.conv_general_dilated(
            z, wgt, window_strides=(1, 1), padding=pad,
            dimension_numbers=("NHWC", "HWIO", "NHWC"))
        return y + bias.reshape(1, 1, 1, -1)

    def bn(y, g, be):
        m = jnp.mean(y, axis=(0, 1, 2), keepdims=True)
        v = jnp.mean((y - m) ** 2, axis=(0, 1, 2), keepdims=True)
        return ((y - m) / jnp.sqrt(v + _BN_EPS) * g.reshape(1, 1, 1, -1)
                + be.reshape(1, 1, 1, -1))

    a = jnp.maximum(bn(conv(x, w1, b1, "VALID"), g1, be1), 0.0)
    a = jnp.maximum(bn(conv(a, w2, b2, "SAME"), g2, be2), 0.0)
    y = bn(conv(a, w3, b3, "VALID"), g3, be3)
    return jnp.maximum(y + x, 0.0)


if __name__ == "__main__":
    # Small shapes consistent with the module: batch=2, out_channels=4,
    # in_channels = 4*expansion = 16 (so the i_downsample=None residual fits),
    # spatial 16x16.  Input is NHWC (NCHW equivalent: (2, 16, 16, 16)).
    N, H, W = 2, 16, 16
    C = 4
    Cin = C * 4

    key = jax.random.PRNGKey(0)
    ks = jax.random.split(key, 13)
    x = jax.random.normal(ks[0], (N, H, W, Cin), jnp.float32)

    def conv_init(kw, kb, shape):  # shape = (kh, kw, cin, cout), HWIO
        fan_in = shape[0] * shape[1] * shape[2]
        bound = 1.0 / math.sqrt(fan_in)
        wgt = jax.random.uniform(kw, shape, jnp.float32, -bound, bound)
        bias = jax.random.uniform(kb, (shape[3],), jnp.float32, -bound, bound)
        return wgt, bias

    w1, b1 = conv_init(ks[1], ks[2], (1, 1, Cin, C))
    w2, b2 = conv_init(ks[3], ks[4], (3, 3, C, C))
    w3, b3 = conv_init(ks[5], ks[6], (1, 1, C, Cin))
    g1 = jax.random.uniform(ks[7], (C,), jnp.float32, 0.5, 1.5)
    be1 = jax.random.uniform(ks[8], (C,), jnp.float32, -0.5, 0.5)
    g2 = jax.random.uniform(ks[9], (C,), jnp.float32, 0.5, 1.5)
    be2 = jax.random.uniform(ks[10], (C,), jnp.float32, -0.5, 0.5)
    g3 = jax.random.uniform(ks[11], (Cin,), jnp.float32, 0.5, 1.5)
    be3 = jax.random.uniform(ks[12], (Cin,), jnp.float32, -0.5, 0.5)

    params = (w1, b1, g1, be1, w2, b2, g2, be2, w3, b3, g3, be3)

    out = bottleneck_forward(x, *params)
    jax.block_until_ready(out)

    ref = ref_forward(x, *params)
    assert out.shape == (N, H, W, Cin)
    assert jnp.allclose(out, ref, atol=2e-4, rtol=2e-4), "mismatch vs. JAX reference"

    print("KERNEL_OK")
</pallas_src>

<mosaic_0001>
module attributes {stable_mosaic.version = 11 : i64} {
  func.func @bottleneck_kernel(%arg0: memref<512x16xf32, #tpu.memory_space<vmem>>, %arg1: memref<16x4xf32, #tpu.memory_space<vmem>>, %arg2: memref<1x4xf32, #tpu.memory_space<vmem>>, %arg3: memref<1x4xf32, #tpu.memory_space<vmem>>, %arg4: memref<1x4xf32, #tpu.memory_space<vmem>>, %arg5: memref<9x4x4xf32, #tpu.memory_space<vmem>>, %arg6: memref<1x4xf32, #tpu.memory_space<vmem>>, %arg7: memref<1x4xf32, #tpu.memory_space<vmem>>, %arg8: memref<1x4xf32, #tpu.memory_space<vmem>>, %arg9: memref<4x16xf32, #tpu.memory_space<vmem>>, %arg10: memref<1x16xf32, #tpu.memory_space<vmem>>, %arg11: memref<1x16xf32, #tpu.memory_space<vmem>>, %arg12: memref<1x16xf32, #tpu.memory_space<vmem>>, %arg13: memref<512x16xf32, #tpu.memory_space<vmem>>, %arg14: memref<2x18x18x4xf32, #tpu.memory_space<vmem>>) attributes {dimension_semantics = [], scalar_prefetch = 0 : i64, scratch_operands = 1 : i64, tpu.core_type = #tpu.core_type<tc>} {
    %c0 = arith.constant 0 : index
    %c0_0 = arith.constant 0 : index
    %0 = vector.load %arg0[%c0, %c0_0] : memref<512x16xf32, #tpu.memory_space<vmem>>, vector<512x16xf32>
    %c0_1 = arith.constant 0 : index
    %c0_2 = arith.constant 0 : index
    %1 = vector.load %arg1[%c0_1, %c0_2] : memref<16x4xf32, #tpu.memory_space<vmem>>, vector<16x4xf32>
    %cst = arith.constant dense<0.000000e+00> : vector<512x4xf32>
    %2 = tpu.matmul %0, %1, %cst {dimension_numbers = #tpu.dot_dimension_numbers<[1], [0], [0], [1], [0, 0, 1, 1], [], []>} : vector<512x16xf32>, vector<16x4xf32>, vector<512x4xf32> -> vector<512x4xf32>
    %c0_3 = arith.constant 0 : index
    %c0_4 = arith.constant 0 : index
    %3 = vector.load %arg2[%c0_3, %c0_4] : memref<1x4xf32, #tpu.memory_space<vmem>>, vector<1x4xf32>
    %4 = vector.broadcast %3 : vector<1x4xf32> to vector<512x4xf32>
    %5 = arith.addf %2, %4 : vector<512x4xf32>
    %c0_5 = arith.constant 0 : index
    %c0_6 = arith.constant 0 : index
    %6 = vector.load %arg3[%c0_5, %c0_6] : memref<1x4xf32, #tpu.memory_space<vmem>>, vector<1x4xf32>
    %c0_7 = arith.constant 0 : index
    %c0_8 = arith.constant 0 : index
    %7 = vector.load %arg4[%c0_7, %c0_8] : memref<1x4xf32, #tpu.memory_space<vmem>>, vector<1x4xf32>
    %cst_9 = arith.constant dense<0.000000e+00> : vector<4xf32>
    %8 = vector.multi_reduction <add>, %5, %cst_9 [0] : vector<512x4xf32> to vector<4xf32>
    %9 = vector.shape_cast %8 : vector<4xf32> to vector<1x4xf32>
    %cst_10 = arith.constant 5.120000e+02 : f32
    %10 = vector.broadcast %cst_10 : f32 to vector<1x4xf32>
    %11 = arith.divf %9, %10 : vector<1x4xf32>
    %12 = arith.mulf %5, %5 : vector<512x4xf32>
    %cst_11 = arith.constant dense<0.000000e+00> : vector<4xf32>
    %13 = vector.multi_reduction <add>, %12, %cst_11 [0] : vector<512x4xf32> to vector<4xf32>
    %14 = vector.shape_cast %13 : vector<4xf32> to vector<1x4xf32>
    %cst_12 = arith.constant 5.120000e+02 : f32
    %15 = vector.broadcast %cst_12 : f32 to vector<1x4xf32>
    %16 = arith.divf %14, %15 : vector<1x4xf32>
    %17 = arith.mulf %11, %11 : vector<1x4xf32>
    %18 = arith.subf %16, %17 : vector<1x4xf32>
    %19 = vector.broadcast %11 : vector<1x4xf32> to vector<512x4xf32>
    %20 = arith.subf %5, %19 : vector<512x4xf32>
    %cst_13 = arith.constant 9.99999974E-6 : f32
    %21 = vector.broadcast %cst_13 : f32 to vector<1x4xf32>
    %22 = arith.addf %18, %21 : vector<1x4xf32>
    %23 = math.rsqrt %22 : vector<1x4xf32>
    %24 = vector.broadcast %23 : vector<1x4xf32> to vector<512x4xf32>
    %25 = arith.mulf %20, %24 : vector<512x4xf32>
    %26 = vector.broadcast %6 : vector<1x4xf32> to vector<512x4xf32>
    %27 = arith.mulf %25, %26 : vector<512x4xf32>
    %28 = vector.broadcast %7 : vector<1x4xf32> to vector<512x4xf32>
    %29 = arith.addf %27, %28 : vector<512x4xf32>
    %cst_14 = arith.constant 0.000000e+00 : f32
    %30 = vector.broadcast %cst_14 : f32 to vector<512x4xf32>
    %31 = arith.maximumf %29, %30 : vector<512x4xf32>
    %cst_15 = arith.constant 0.000000e+00 : f32
    %32 = vector.broadcast %cst_15 : f32 to vector<2x18x18x4xf32>
    %c0_16 = arith.constant 0 : index
    %c0_17 = arith.constant 0 : index
    %c0_18 = arith.constant 0 : index
    %c0_19 = arith.constant 0 : index
    %33 = vector.load %arg14[%c0_16, %c0_17, %c0_18, %c0_19] : memref<2x18x18x4xf32, #tpu.memory_space<vmem>>, vector<2x18x18x4xf32>
    tpu.vector_store %arg14[%c0_16, %c0_17, %c0_18, %c0_19], %32 {strides = array<i32>} : memref<2x18x18x4xf32, #tpu.memory_space<vmem>>, vector<2x18x18x4xf32>,
    %34 = vector.shape_cast %31 : vector<512x4xf32> to vector<2x16x16x4xf32>
    %c0_20 = arith.constant 0 : index
    %c1 = arith.constant 1 : index
    %c1_21 = arith.constant 1 : index
    %c0_22 = arith.constant 0 : index
    %35 = vector.load %arg14[%c0_20, %c1, %c1_21, %c0_22] : memref<2x18x18x4xf32, #tpu.memory_space<vmem>>, vector<2x16x16x4xf32>
    tpu.vector_store %arg14[%c0_20, %c1, %c1_21, %c0_22], %34 {strides = array<i32>} : memref<2x18x18x4xf32, #tpu.memory_space<vmem>>, vector<2x16x16x4xf32>,
    %cst_23 = arith.constant 0.000000e+00 : f32
    %36 = vector.broadcast %cst_23 : f32 to vector<512x4xf32>
    %c0_24 = arith.constant 0 : index
    %c0_25 = arith.constant 0 : index
    %c0_26 = arith.constant 0 : index
    %c0_27 = arith.constant 0 : index
    %37 = vector.load %arg14[%c0_24, %c0_25, %c0_26, %c0_27] : memref<2x18x18x4xf32, #tpu.memory_space<vmem>>, vector<2x16x16x4xf32>
    %38 = vector.shape_cast %37 : vector<2x16x16x4xf32> to vector<512x4xf32>
    %c0_28 = arith.constant 0 : index
    %c0_29 = arith.constant 0 : index
    %c0_30 = arith.constant 0 : index
    %39 = vector.load %arg5[%c0_28, %c0_29, %c0_30] : memref<9x4x4xf32, #tpu.memory_space<vmem>>, vector<1x4x4xf32>
    %40 = vector.shape_cast %39 : vector<1x4x4xf32> to vector<4x4xf32>
    %cst_31 = arith.constant dense<0.000000e+00> : vector<512x4xf32>
    %41 = tpu.matmul %38, %40, %cst_31 {dimension_numbers = #tpu.dot_dimension_numbers<[1], [0], [0], [1], [0, 0, 1, 1], [], []>} : vector<512x4xf32>, vector<4x4xf32>, vector<512x4xf32> -> vector<512x4xf32>
    %42 = arith.addf %36, %41 : vector<512x4xf32>
    %c0_32 = arith.constant 0 : index
    %c0_33 = arith.constant 0 : index
    %c1_34 = arith.constant 1 : index
    %c0_35 = arith.constant 0 : index
    %43 = vector.load %arg14[%c0_32, %c0_33, %c1_34, %c0_35] : memref<2x18x18x4xf32, #tpu.memory_space<vmem>>, vector<2x16x16x4xf32>
    %44 = vector.shape_cast %43 : vector<2x16x16x4xf32> to vector<512x4xf32>
    %c1_36 = arith.constant 1 : index
    %c0_37 = arith.constant 0 : index
    %c0_38 = arith.constant 0 : index
    %45 = vector.load %arg5[%c1_36, %c0_37, %c0_38] : memref<9x4x4xf32, #tpu.memory_space<vmem>>, vector<1x4x4xf32>
    %46 = vector.shape_cast %45 : vector<1x4x4xf32> to vector<4x4xf32>
    %cst_39 = arith.constant dense<0.000000e+00> : vector<512x4xf32>
    %47 = tpu.matmul %44, %46, %cst_39 {dimension_numbers = #tpu.dot_dimension_numbers<[1], [0], [0], [1], [0, 0, 1, 1], [], []>} : vector<512x4xf32>, vector<4x4xf32>, vector<512x4xf32> -> vector<512x4xf32>
    %48 = arith.addf %42, %47 : vector<512x4xf32>
    %c0_40 = arith.constant 0 : index
    %c0_41 = arith.constant 0 : index
    %c2 = arith.constant 2 : index
    %c0_42 = arith.constant 0 : index
    %49 = vector.load %arg14[%c0_40, %c0_41, %c2, %c0_42] : memref<2x18x18x4xf32, #tpu.memory_space<vmem>>, vector<2x16x16x4xf32>
    %50 = vector.shape_cast %49 : vector<2x16x16x4xf32> to vector<512x4xf32>
    %c2_43 = arith.constant 2 : index
    %c0_44 = arith.constant 0 : index
    %c0_45 = arith.constant 0 : index
    %51 = vector.load %arg5[%c2_43, %c0_44, %c0_45] : memref<9x4x4xf32, #tpu.memory_space<vmem>>, vector<1x4x4xf32>
    %52 = vector.shape_cast %51 : vector<1x4x4xf32> to vector<4x4xf32>
    %cst_46 = arith.constant dense<0.000000e+00> : vector<512x4xf32>
    %53 = tpu.matmul %50, %52, %cst_46 {dimension_numbers = #tpu.dot_dimension_numbers<[1], [0], [0], [1], [0, 0, 1, 1], [], []>} : vector<512x4xf32>, vector<4x4xf32>, vector<512x4xf32> -> vector<512x4xf32>
    %54 = arith.addf %48, %53 : vector<512x4xf32>
    %c0_47 = arith.constant 0 : index
    %c1_48 = arith.constant 1 : index
    %c0_49 = arith.constant 0 : index
    %c0_50 = arith.constant 0 : index
    %55 = vector.load %arg14[%c0_47, %c1_48, %c0_49, %c0_50] : memref<2x18x18x4xf32, #tpu.memory_space<vmem>>, vector<2x16x16x4xf32>
    %56 = vector.shape_cast %55 : vector<2x16x16x4xf32> to vector<512x4xf32>
    %c3 = arith.constant 3 : index
    %c0_51 = arith.constant 0 : index
    %c0_52 = arith.constant 0 : index
    %57 = vector.load %arg5[%c3, %c0_51, %c0_52] : memref<9x4x4xf32, #tpu.memory_space<vmem>>, vector<1x4x4xf32>
    %58 = vector.shape_cast %57 : vector<1x4x4xf32> to vector<4x4xf32>
    %cst_53 = arith.constant dense<0.000000e+00> : vector<512x4xf32>
    %59 = tpu.matmul %56, %58, %cst_53 {dimension_numbers = #tpu.dot_dimension_numbers<[1], [0], [0], [1], [0, 0, 1, 1], [], []>} : vector<512x4xf32>, vector<4x4xf32>, vector<512x4xf32> -> vector<512x4xf32>
    %60 = arith.addf %54, %59 : vector<512x4xf32>
    %c0_54 = arith.constant 0 : index
    %c1_55 = arith.constant 1 : index
    %c1_56 = arith.constant 1 : index
    %c0_57 = arith.constant 0 : index
    %61 = vector.load %arg14[%c0_54, %c1_55, %c1_56, %c0_57] : memref<2x18x18x4xf32, #tpu.memory_space<vmem>>, vector<2x16x16x4xf32>
    %62 = vector.shape_cast %61 : vector<2x16x16x4xf32> to vector<512x4xf32>
    %c4 = arith.constant 4 : index
    %c0_58 = arith.constant 0 : index
    %c0_59 = arith.constant 0 : index
    %63 = vector.load %arg5[%c4, %c0_58, %c0_59] : memref<9x4x4xf32, #tpu.memory_space<vmem>>, vector<1x4x4xf32>
    %64 = vector.shape_cast %63 : vector<1x4x4xf32> to vector<4x4xf32>
    %cst_60 = arith.constant dense<0.000000e+00> : vector<512x4xf32>
    %65 = tpu.matmul %62, %64, %cst_60 {dimension_numbers = #tpu.dot_dimension_numbers<[1], [0], [0], [1], [0, 0, 1, 1], [], []>} : vector<512x4xf32>, vector<4x4xf32>, vector<512x4xf32> -> vector<512x4xf32>
    %66 = arith.addf %60, %65 : vector<512x4xf32>
    %c0_61 = arith.constant 0 : index
    %c1_62 = arith.constant 1 : index
    %c2_63 = arith.constant 2 : index
    %c0_64 = arith.constant 0 : index
    %67 = vector.load %arg14[%c0_61, %c1_62, %c2_63, %c0_64] : memref<2x18x18x4xf32, #tpu.memory_space<vmem>>, vector<2x16x16x4xf32>
    %68 = vector.shape_cast %67 : vector<2x16x16x4xf32> to vector<512x4xf32>
    %c5 = arith.constant 5 : index
    %c0_65 = arith.constant 0 : index
    %c0_66 = arith.constant 0 : index
    %69 = vector.load %arg5[%c5, %c0_65, %c0_66] : memref<9x4x4xf32, #tpu.memory_space<vmem>>, vector<1x4x4xf32>
    %70 = vector.shape_cast %69 : vector<1x4x4xf32> to vector<4x4xf32>
    %cst_67 = arith.constant dense<0.000000e+00> : vector<512x4xf32>
    %71 = tpu.matmul %68, %70, %cst_67 {dimension_numbers = #tpu.dot_dimension_numbers<[1], [0], [0], [1], [0, 0, 1, 1], [], []>} : vector<512x4xf32>, vector<4x4xf32>, vector<512x4xf32> -> vector<512x4xf32>
    %72 = arith.addf %66, %71 : vector<512x4xf32>
    %c0_68 = arith.constant 0 : index
    %c2_69 = arith.constant 2 : index
    %c0_70 = arith.constant 0 : index
    %c0_71 = arith.constant 0 : index
    %73 = vector.load %arg14[%c0_68, %c2_69, %c0_70, %c0_71] : memref<2x18x18x4xf32, #tpu.memory_space<vmem>>, vector<2x16x16x4xf32>
    %74 = vector.shape_cast %73 : vector<2x16x16x4xf32> to vector<512x4xf32>
    %c6 = arith.constant 6 : index
    %c0_72 = arith.constant 0 : index
    %c0_73 = arith.constant 0 : index
    %75 = vector.load %arg5[%c6, %c0_72, %c0_73] : memref<9x4x4xf32, #tpu.memory_space<vmem>>, vector<1x4x4xf32>
    %76 = vector.shape_cast %75 : vector<1x4x4xf32> to vector<4x4xf32>
    %cst_74 = arith.constant dense<0.000000e+00> : vector<512x4xf32>
    %77 = tpu.matmul %74, %76, %cst_74 {dimension_numbers = #tpu.dot_dimension_numbers<[1], [0], [0], [1], [0, 0, 1, 1], [], []>} : vector<512x4xf32>, vector<4x4xf32>, vector<512x4xf32> -> vector<512x4xf32>
    %78 = arith.addf %72, %77 : vector<512x4xf32>
    %c0_75 = arith.constant 0 : index
    %c2_76 = arith.constant 2 : index
    %c1_77 = arith.constant 1 : index
    %c0_78 = arith.constant 0 : index
    %79 = vector.load %arg14[%c0_75, %c2_76, %c1_77, %c0_78] : memref<2x18x18x4xf32, #tpu.memory_space<vmem>>, vector<2x16x16x4xf32>
    %80 = vector.shape_cast %79 : vector<2x16x16x4xf32> to vector<512x4xf32>
    %c7 = arith.constant 7 : index
    %c0_79 = arith.constant 0 : index
    %c0_80 = arith.constant 0 : index
    %81 = vector.load %arg5[%c7, %c0_79, %c0_80] : memref<9x4x4xf32, #tpu.memory_space<vmem>>, vector<1x4x4xf32>
    %82 = vector.shape_cast %81 : vector<1x4x4xf32> to vector<4x4xf32>
    %cst_81 = arith.constant dense<0.000000e+00> : vector<512x4xf32>
    %83 = tpu.matmul %80, %82, %cst_81 {dimension_numbers = #tpu.dot_dimension_numbers<[1], [0], [0], [1], [0, 0, 1, 1], [], []>} : vector<512x4xf32>, vector<4x4xf32>, vector<512x4xf32> -> vector<512x4xf32>
    %84 = arith.addf %78, %83 : vector<512x4xf32>
    %c0_82 = arith.constant 0 : index
    %c2_83 = arith.constant 2 : index
    %c2_84 = arith.constant 2 : index
    %c0_85 = arith.constant 0 : index
    %85 = vector.load %arg14[%c0_82, %c2_83, %c2_84, %c0_85] : memref<2x18x18x4xf32, #tpu.memory_space<vmem>>, vector<2x16x16x4xf32>
    %86 = vector.shape_cast %85 : vector<2x16x16x4xf32> to vector<512x4xf32>
    %c8 = arith.constant 8 : index
    %c0_86 = arith.constant 0 : index
    %c0_87 = arith.constant 0 : index
    %87 = vector.load %arg5[%c8, %c0_86, %c0_87] : memref<9x4x4xf32, #tpu.memory_space<vmem>>, vector<1x4x4xf32>
    %88 = vector.shape_cast %87 : vector<1x4x4xf32> to vector<4x4xf32>
    %cst_88 = arith.constant dense<0.000000e+00> : vector<512x4xf32>
    %89 = tpu.matmul %86, %88, %cst_88 {dimension_numbers = #tpu.dot_dimension_numbers<[1], [0], [0], [1], [0, 0, 1, 1], [], []>} : vector<512x4xf32>, vector<4x4xf32>, vector<512x4xf32> -> vector<512x4xf32>
    %90 = arith.addf %84, %89 : vector<512x4xf32>
    %c0_89 = arith.constant 0 : index
    %c0_90 = arith.constant 0 : index
    %91 = vector.load %arg6[%c0_89, %c0_90] : memref<1x4xf32, #tpu.memory_space<vmem>>, vector<1x4xf32>
    %92 = vector.broadcast %91 : vector<1x4xf32> to vector<512x4xf32>
    %93 = arith.addf %90, %92 : vector<512x4xf32>
    %c0_91 = arith.constant 0 : index
    %c0_92 = arith.constant 0 : index
    %94 = vector.load %arg7[%c0_91, %c0_92] : memref<1x4xf32, #tpu.memory_space<vmem>>, vector<1x4xf32>
    %c0_93 = arith.constant 0 : index
    %c0_94 = arith.constant 0 : index
    %95 = vector.load %arg8[%c0_93, %c0_94] : memref<1x4xf32, #tpu.memory_space<vmem>>, vector<1x4xf32>
    %cst_95 = arith.constant dense<0.000000e+00> : vector<4xf32>
    %96 = vector.multi_reduction <add>, %93, %cst_95 [0] : vector<512x4xf32> to vector<4xf32>
    %97 = vector.shape_cast %96 : vector<4xf32> to vector<1x4xf32>
    %cst_96 = arith.constant 5.120000e+02 : f32
    %98 = vector.broadcast %cst_96 : f32 to vector<1x4xf32>
    %99 = arith.divf %97, %98 : vector<1x4xf32>
    %100 = arith.mulf %93, %93 : vector<512x4xf32>
    %cst_97 = arith.constant dense<0.000000e+00> : vector<4xf32>
    %101 = vector.multi_reduction <add>, %100, %cst_97 [0] : vector<512x4xf32> to vector<4xf32>
    %102 = vector.shape_cast %101 : vector<4xf32> to vector<1x4xf32>
    %cst_98 = arith.constant 5.120000e+02 : f32
    %103 = vector.broadcast %cst_98 : f32 to vector<1x4xf32>
    %104 = arith.divf %102, %103 : vector<1x4xf32>
    %105 = arith.mulf %99, %99 : vector<1x4xf32>
    %106 = arith.subf %104, %105 : vector<1x4xf32>
    %107 = vector.broadcast %99 : vector<1x4xf32> to vector<512x4xf32>
    %108 = arith.subf %93, %107 : vector<512x4xf32>
    %cst_99 = arith.constant 9.99999974E-6 : f32
    %109 = vector.broadcast %cst_99 : f32 to vector<1x4xf32>
    %110 = arith.addf %106, %109 : vector<1x4xf32>
    %111 = math.rsqrt %110 : vector<1x4xf32>
    %112 = vector.broadcast %111 : vector<1x4xf32> to vector<512x4xf32>
    %113 = arith.mulf %108, %112 : vector<512x4xf32>
    %114 = vector.broadcast %94 : vector<1x4xf32> to vector<512x4xf32>
    %115 = arith.mulf %113, %114 : vector<512x4xf32>
    %116 = vector.broadcast %95 : vector<1x4xf32> to vector<512x4xf32>
    %117 = arith.addf %115, %116 : vector<512x4xf32>
    %cst_100 = arith.constant 0.000000e+00 : f32
    %118 = vector.broadcast %cst_100 : f32 to vector<512x4xf32>
    %119 = arith.maximumf %117, %118 : vector<512x4xf32>
    %c0_101 = arith.constant 0 : index
    %c0_102 = arith.constant 0 : index
    %120 = vector.load %arg9[%c0_101, %c0_102] : memref<4x16xf32, #tpu.memory_space<vmem>>, vector<4x16xf32>
    %cst_103 = arith.constant dense<0.000000e+00> : vector<512x16xf32>
    %121 = tpu.matmul %119, %120, %cst_103 {dimension_numbers = #tpu.dot_dimension_numbers<[1], [0], [0], [1], [0, 0, 1, 1], [], []>} : vector<512x4xf32>, vector<4x16xf32>, vector<512x16xf32> -> vector<512x16xf32>
    %c0_104 = arith.constant 0 : index
    %c0_105 = arith.constant 0 : index
    %122 = vector.load %arg10[%c0_104, %c0_105] : memref<1x16xf32, #tpu.memory_space<vmem>>, vector<1x16xf32>
    %123 = vector.broadcast %122 : vector<1x16xf32> to vector<512x16xf32>
    %124 = arith.addf %121, %123 : vector<512x16xf32>
    %c0_106 = arith.constant 0 : index
    %c0_107 = arith.constant 0 : index
    %125 = vector.load %arg11[%c0_106, %c0_107] : memref<1x16xf32, #tpu.memory_space<vmem>>, vector<1x16xf32>
    %c0_108 = arith.constant 0 : index
    %c0_109 = arith.constant 0 : index
    %126 = vector.load %arg12[%c0_108, %c0_109] : memref<1x16xf32, #tpu.memory_space<vmem>>, vector<1x16xf32>
    %cst_110 = arith.constant dense<0.000000e+00> : vector<16xf32>
    %127 = vector.multi_reduction <add>, %124, %cst_110 [0] : vector<512x16xf32> to vector<16xf32>
    %128 = vector.shape_cast %127 : vector<16xf32> to vector<1x16xf32>
    %cst_111 = arith.constant 5.120000e+02 : f32
    %129 = vector.broadcast %cst_111 : f32 to vector<1x16xf32>
    %130 = arith.divf %128, %129 : vector<1x16xf32>
    %131 = arith.mulf %124, %124 : vector<512x16xf32>
    %cst_112 = arith.constant dense<0.000000e+00> : vector<16xf32>
    %132 = vector.multi_reduction <add>, %131, %cst_112 [0] : vector<512x16xf32> to vector<16xf32>
    %133 = vector.shape_cast %132 : vector<16xf32> to vector<1x16xf32>
    %cst_113 = arith.constant 5.120000e+02 : f32
    %134 = vector.broadcast %cst_113 : f32 to vector<1x16xf32>
    %135 = arith.divf %133, %134 : vector<1x16xf32>
    %136 = arith.mulf %130, %130 : vector<1x16xf32>
    %137 = arith.subf %135, %136 : vector<1x16xf32>
    %138 = vector.broadcast %130 : vector<1x16xf32> to vector<512x16xf32>
    %139 = arith.subf %124, %138 : vector<512x16xf32>
    %cst_114 = arith.constant 9.99999974E-6 : f32
    %140 = vector.broadcast %cst_114 : f32 to vector<1x16xf32>
    %141 = arith.addf %137, %140 : vector<1x16xf32>
    %142 = math.rsqrt %141 : vector<1x16xf32>
    %143 = vector.broadcast %142 : vector<1x16xf32> to vector<512x16xf32>
    %144 = arith.mulf %139, %143 : vector<512x16xf32>
    %145 = vector.broadcast %125 : vector<1x16xf32> to vector<512x16xf32>
    %146 = arith.mulf %144, %145 : vector<512x16xf32>
    %147 = vector.broadcast %126 : vector<1x16xf32> to vector<512x16xf32>
    %148 = arith.addf %146, %147 : vector<512x16xf32>
    %149 = arith.addf %148, %0 : vector<512x16xf32>
    %cst_115 = arith.constant 0.000000e+00 : f32
    %150 = vector.broadcast %cst_115 : f32 to vector<512x16xf32>
    %151 = arith.maximumf %149, %150 : vector<512x16xf32>
    %c0_116 = arith.constant 0 : index
    %c0_117 = arith.constant 0 : index
    %152 = vector.load %arg13[%c0_116, %c0_117] : memref<512x16xf32, #tpu.memory_space<vmem>>, vector<512x16xf32>
    tpu.vector_store %arg13[%c0_116, %c0_117], %151 {strides = array<i32>} : memref<512x16xf32, #tpu.memory_space<vmem>>, vector<512x16xf32>,
    return
  }
}

</mosaic_0001>

<llo_original>
// kernel: tpu_custom_call.1
$region0: #{tpu_custom_call.1}
  #allocation0 [shape = 'u32[]', space=smem, size = 0x4, offset = 0x4, fixed_abs, tag = 'smem constant byte address 0x4 - core index']
  #allocation1 [shape = 'u32[144,128]{1,0:T(1,128)}', space=vmem, size = 0x12000, scoped, tag = 'internal scratch']
  #allocation2 [shape = 'f32[2,18,18,4]{3,2,1,0:T(8,128)}', space=vmem, size = 0x6c000, scoped, tag = 'scratch operand']
  %s0 = inlined_call_operand.vmem [shape: f32[512,16], index: 0, kind: input, shape index: {}]
  %s1 = inlined_call_operand.vmem [shape: f32[16,4], index: 1, kind: input, shape index: {}]
  %s2 = inlined_call_operand.vmem [shape: f32[1,4], index: 2, kind: input, shape index: {}]
  %s3 = inlined_call_operand.vmem [shape: f32[1,4], index: 3, kind: input, shape index: {}]
  %s4 = inlined_call_operand.vmem [shape: f32[1,4], index: 4, kind: input, shape index: {}]
  %s5 = inlined_call_operand.vmem [shape: f32[9,4,4], index: 5, kind: input, shape index: {}]
  %s6 = inlined_call_operand.vmem [shape: f32[1,4], index: 6, kind: input, shape index: {}]
  %s7 = inlined_call_operand.vmem [shape: f32[1,4], index: 7, kind: input, shape index: {}]
  %s8 = inlined_call_operand.vmem [shape: f32[1,4], index: 8, kind: input, shape index: {}]
  %s9 = inlined_call_operand.vmem [shape: f32[4,16], index: 9, kind: input, shape index: {}]
  %s10 = inlined_call_operand.vmem [shape: f32[1,16], index: 10, kind: input, shape index: {}]
  %s11 = inlined_call_operand.vmem [shape: f32[1,16], index: 11, kind: input, shape index: {}]
  %s12 = inlined_call_operand.vmem [shape: f32[1,16], index: 12, kind: input, shape index: {}]
  %s13 = inlined_call_operand.vmem [shape: f32[512,16], index: 13, kind: output, shape index: {}]
  %s14 = sld [smem:[#allocation0]]
  $region62: #{tpu_custom_call.1} parent=0
    _
  %s16 = ssub.s32 1, %s14
  %s17 = scalar_select 0, %s16, %s14
  // Predicated region
  $region2: #{tpu_custom_call.1} parent=0 // pred_check
    _
  $region3: #{tpu_custom_call.1} parent=0 // pred_check_branch
    %19 = sbr.rel (0) target = $region5
  $region4: #{tpu_custom_call.1} parent=0 // pred_region
    _
  $region5: #{tpu_custom_call.1} parent=0 // pred_fallthru
    _
  // Predicated region
  $region6: #{tpu_custom_call.1} parent=0 // pred_check
    _
  $region7: #{tpu_custom_call.1} parent=0 // pred_check_branch
    %21 = sbr.rel (0) target = $region9
  $region8: #{tpu_custom_call.1} parent=0 // pred_region
    _
  $region9: #{tpu_custom_call.1} parent=0 // pred_fallthru
    _
  // Predicated region
  $region10: #{tpu_custom_call.1} parent=0 // pred_check
    _
  $region11: #{tpu_custom_call.1} parent=0 // pred_check_branch
    %23 = sbr.rel (0) target = $region13
  $region12: #{tpu_custom_call.1} parent=0 // pred_region
    _
  $region13: #{tpu_custom_call.1} parent=0 // pred_fallthru
    _
  // Predicated region
  $region14: #{tpu_custom_call.1} parent=0 // pred_check
    _
  $region15: #{tpu_custom_call.1} parent=0 // pred_check_branch
    %25 = sbr.rel (0) target = $region17
  $region16: #{tpu_custom_call.1} parent=0 // pred_region
    _
  $region17: #{tpu_custom_call.1} parent=0 // pred_fallthru
    _
  // Predicated region
  $region18: #{tpu_custom_call.1} parent=0 // pred_check
    _
  $region19: #{tpu_custom_call.1} parent=0 // pred_check_branch
    %27 = sbr.rel (0) target = $region21
  $region20: #{tpu_custom_call.1} parent=0 // pred_region
    _
  $region21: #{tpu_custom_call.1} parent=0 // pred_fallthru
    _
  // Predicated region
  $region22: #{tpu_custom_call.1} parent=0 // pred_check
    _
  $region23: #{tpu_custom_call.1} parent=0 // pred_check_branch
    %29 = sbr.rel (0) target = $region25
  $region24: #{tpu_custom_call.1} parent=0 // pred_region
    _
  $region25: #{tpu_custom_call.1} parent=0 // pred_fallthru
    _
  // Predicated region
  $region26: #{tpu_custom_call.1} parent=0 // pred_check
    _
  $region27: #{tpu_custom_call.1} parent=0 // pred_check_branch
    %31 = sbr.rel (0) target = $region29
  $region28: #{tpu_custom_call.1} parent=0 // pred_region
    _
  $region29: #{tpu_custom_call.1} parent=0 // pred_fallthru
    _
  // Predicated region
  $region30: #{tpu_custom_call.1} parent=0 // pred_check
    _
  $region31: #{tpu_custom_call.1} parent=0 // pred_check_branch
    %33 = sbr.rel (0) target = $region33
  $region32: #{tpu_custom_call.1} parent=0 // pred_region
    _
  $region33: #{tpu_custom_call.1} parent=0 // pred_fallthru
    _
  // Predicated region
  $region34: #{tpu_custom_call.1} parent=0 // pred_check
    _
  $region35: #{tpu_custom_call.1} parent=0 // pred_check_branch
    %35 = sbr.rel (0) target = $region37
  $region36: #{tpu_custom_call.1} parent=0 // pred_region
    _
  $region37: #{tpu_custom_call.1} parent=0 // pred_fallthru
    _
  // Predicated region
  $region38: #{tpu_custom_call.1} parent=0 // pred_check
    _
  $region39: #{tpu_custom_call.1} parent=0 // pred_check_branch
    %37 = sbr.rel (0) target = $region41
  $region40: #{tpu_custom_call.1} parent=0 // pred_region
    _
  $region41: #{tpu_custom_call.1} parent=0 // pred_fallthru
    _
  // Predicated region
  $region42: #{tpu_custom_call.1} parent=0 // pred_check
    _
  $region43: #{tpu_custom_call.1} parent=0 // pred_check_branch
    %39 = sbr.rel (0) target = $region45
  $region44: #{tpu_custom_call.1} parent=0 // pred_region
    _
  $region45: #{tpu_custom_call.1} parent=0 // pred_fallthru
    _
  // Predicated region
  $region46: #{tpu_custom_call.1} parent=0 // pred_check
    _
  $region47: #{tpu_custom_call.1} parent=0 // pred_check_branch
    %41 = sbr.rel (0) target = $region49
  $region48: #{tpu_custom_call.1} parent=0 // pred_region
    _
  $region49: #{tpu_custom_call.1} parent=0 // pred_fallthru
    _
  // Predicated region
  $region50: #{tpu_custom_call.1} parent=0 // pred_check
    _
  $region51: #{tpu_custom_call.1} parent=0 // pred_check_branch
    %43 = sbr.rel (0) target = $region53
  $region52: #{tpu_custom_call.1} parent=0 // pred_region
    _
  $region53: #{tpu_custom_call.1} parent=0 // pred_fallthru
    _
  %v44 = vld [vmem:[%s0] sm:$0xff]
  %v45 = vld [vmem:[%s0 + $0x8] sm:$0xff]
  %v46 = vld [vmem:[%s0 + $0x10] sm:$0xff]
  %v47 = vld [vmem:[%s0 + $0x18] sm:$0xff]
  %v48 = vld [vmem:[%s0 + $0x20] sm:$0xff]
  %v49 = vld [vmem:[%s0 + $0x28] sm:$0xff]
  %v50 = vld [vmem:[%s0 + $0x30] sm:$0xff]
  %v51 = vld [vmem:[%s0 + $0x38] sm:$0xff]
  %v52 = vld [vmem:[%s0 + $0x40] sm:$0xff]
  %v53 = vld [vmem:[%s0 + $0x48] sm:$0xff]
  %v54 = vld [vmem:[%s0 + $0x50] sm:$0xff]
  %v55 = vld [vmem:[%s0 + $0x58] sm:$0xff]
  %v56 = vld [vmem:[%s0 + $0x60] sm:$0xff]
  %v57 = vld [vmem:[%s0 + $0x68] sm:$0xff]
  %v58 = vld [vmem:[%s0 + $0x70] sm:$0xff]
  %v59 = vld [vmem:[%s0 + $0x78] sm:$0xff]
  %v60 = vld [vmem:[%s0 + $0x80] sm:$0xff]
  %v61 = vld [vmem:[%s0 + $0x88] sm:$0xff]
  %v62 = vld [vmem:[%s0 + $0x90] sm:$0xff]
  %v63 = vld [vmem:[%s0 + $0x98] sm:$0xff]
  %v64 = vld [vmem:[%s0 + $0xa0] sm:$0xff]
  %v65 = vld [vmem:[%s0 + $0xa8] sm:$0xff]
  %v66 = vld [vmem:[%s0 + $0xb0] sm:$0xff]
  %v67 = vld [vmem:[%s0 + $0xb8] sm:$0xff]
  %v68 = vld [vmem:[%s0 + $0xc0] sm:$0xff]
  %v69 = vld [vmem:[%s0 + $0xc8] sm:$0xff]
  %v70 = vld [vmem:[%s0 + $0xd0] sm:$0xff]
  %v71 = vld [vmem:[%s0 + $0xd8] sm:$0xff]
  %v72 = vld [vmem:[%s0 + $0xe0] sm:$0xff]
  %v73 = vld [vmem:[%s0 + $0xe8] sm:$0xff]
  %v74 = vld [vmem:[%s0 + $0xf0] sm:$0xff]
  %v75 = vld [vmem:[%s0 + $0xf8] sm:$0xff]
  %v76 = vld [vmem:[%s0 + $0x100] sm:$0xff]
  %v77 = vld [vmem:[%s0 + $0x108] sm:$0xff]
  %v78 = vld [vmem:[%s0 + $0x110] sm:$0xff]
  %v79 = vld [vmem:[%s0 + $0x118] sm:$0xff]
  %v80 = vld [vmem:[%s0 + $0x120] sm:$0xff]
  %v81 = vld [vmem:[%s0 + $0x128] sm:$0xff]
  %v82 = vld [vmem:[%s0 + $0x130] sm:$0xff]
  %v83 = vld [vmem:[%s0 + $0x138] sm:$0xff]
  %v84 = vld [vmem:[%s0 + $0x140] sm:$0xff]
  %v85 = vld [vmem:[%s0 + $0x148] sm:$0xff]
  %v86 = vld [vmem:[%s0 + $0x150] sm:$0xff]
  %v87 = vld [vmem:[%s0 + $0x158] sm:$0xff]
  %v88 = vld [vmem:[%s0 + $0x160] sm:$0xff]
  %v89 = vld [vmem:[%s0 + $0x168] sm:$0xff]
  %v90 = vld [vmem:[%s0 + $0x170] sm:$0xff]
  %v91 = vld [vmem:[%s0 + $0x178] sm:$0xff]
  %v92 = vld [vmem:[%s0 + $0x180] sm:$0xff]
  %v93 = vld [vmem:[%s0 + $0x188] sm:$0xff]
  %v94 = vld [vmem:[%s0 + $0x190] sm:$0xff]
  %v95 = vld [vmem:[%s0 + $0x198] sm:$0xff]
  %v96 = vld [vmem:[%s0 + $0x1a0] sm:$0xff]
  %v97 = vld [vmem:[%s0 + $0x1a8] sm:$0xff]
  %v98 = vld [vmem:[%s0 + $0x1b0] sm:$0xff]
  %v99 = vld [vmem:[%s0 + $0x1b8] sm:$0xff]
  %v100 = vld [vmem:[%s0 + $0x1c0] sm:$0xff]
  %v101 = vld [vmem:[%s0 + $0x1c8] sm:$0xff]
  %v102 = vld [vmem:[%s0 + $0x1d0] sm:$0xff]
  %v103 = vld [vmem:[%s0 + $0x1d8] sm:$0xff]
  %v104 = vld [vmem:[%s0 + $0x1e0] sm:$0xff]
  %v105 = vld [vmem:[%s0 + $0x1e8] sm:$0xff]
  %v106 = vld [vmem:[%s0 + $0x1f0] sm:$0xff]
  %v107 = vld [vmem:[%s0 + $0x1f8] sm:$0xff]
  %v108 = vld [vmem:[%s1] sm:$0xff]
  %v109 = vld [vmem:[%s1 + $0x8] sm:$0xff]
  %v110 = vld [vmem:[%s2] sm:$0x1]
  %v112 = vlaneseq
  %v113 = vshrl.u32 %v112, 7
  %v114 = vsub.s32 0, %v113
  %v115 = vrot.slane %v110, %v114
  %vm117 = vcmask 130048
  %v119 = vsel %vm117, %v44, 0
  %v122 = vsel %vm117, %v45, 0
  %v125 = vsel %vm117, %v46, 0
  %v128 = vsel %vm117, %v47, 0
  %v131 = vsel %vm117, %v48, 0
  %v134 = vsel %vm117, %v49, 0
  %v137 = vsel %vm117, %v50, 0
  %v140 = vsel %vm117, %v51, 0
  %v143 = vsel %vm117, %v52, 0
  %v146 = vsel %vm117, %v53, 0
  %v149 = vsel %vm117, %v54, 0
  %v152 = vsel %vm117, %v55, 0
  %v155 = vsel %vm117, %v56, 0
  %v158 = vsel %vm117, %v57, 0
  %v161 = vsel %vm117, %v58, 0
  %v164 = vsel %vm117, %v59, 0
  %v167 = vsel %vm117, %v60, 0
  %v170 = vsel %vm117, %v61, 0
  %v173 = vsel %vm117, %v62, 0
  %v176 = vsel %vm117, %v63, 0
  %v179 = vsel %vm117, %v64, 0
  %v182 = vsel %vm117, %v65, 0
  %v185 = vsel %vm117, %v66, 0
  %v188 = vsel %vm117, %v67, 0
  %v191 = vsel %vm117, %v68, 0
  %v194 = vsel %vm117, %v69, 0
  %v197 = vsel %vm117, %v70, 0
  %v200 = vsel %vm117, %v71, 0
  %v203 = vsel %vm117, %v72, 0
  %v206 = vsel %vm117, %v73, 0
  %v209 = vsel %vm117, %v74, 0
  %v212 = vsel %vm117, %v75, 0
  %v215 = vsel %vm117, %v76, 0
  %v218 = vsel %vm117, %v77, 0
  %v221 = vsel %vm117, %v78, 0
  %v224 = vsel %vm117, %v79, 0
  %v227 = vsel %vm117, %v80, 0
  %v230 = vsel %vm117, %v81, 0
  %v233 = vsel %vm117, %v82, 0
  %v236 = vsel %vm117, %v83, 0
  %v239 = vsel %vm117, %v84, 0
  %v242 = vsel %vm117, %v85, 0
  %v245 = vsel %vm117, %v86, 0
  %v248 = vsel %vm117, %v87, 0
  %v251 = vsel %vm117, %v88, 0
  %v254 = vsel %vm117, %v89, 0
  %v257 = vsel %vm117, %v90, 0
  %v260 = vsel %vm117, %v91, 0
  %v263 = vsel %vm117, %v92, 0
  %v266 = vsel %vm117, %v93, 0
  %v269 = vsel %vm117, %v94, 0
  %v272 = vsel %vm117, %v95, 0
  %v275 = vsel %vm117, %v96, 0
  %v278 = vsel %vm117, %v97, 0
  %v281 = vsel %vm117, %v98, 0
  %v284 = vsel %vm117, %v99, 0
  %v287 = vsel %vm117, %v100, 0
  %v290 = vsel %vm117, %v101, 0
  %v293 = vsel %vm117, %v102, 0
  %v296 = vsel %vm117, %v103, 0
  %v299 = vsel %vm117, %v104, 0
  %v302 = vsel %vm117, %v105, 0
  %v305 = vsel %vm117, %v106, 0
  %v308 = vsel %vm117, %v107, 0
  %310 = vmatprep.subr.mxu0 0.0
  %311 = vmatpush1.msra.mxu0 0.0
  %312 = vmatprep.subr.mxu0 0.0
  %313 = vmatpush1.msra.mxu0 0.0
  %314 = vmatprep.subr.mxu0 0.0
  %315 = vmatpush1.msra.mxu0 0.0
  %316 = vmatprep.subr.mxu0 0.0
  %317 = vmatpush1.msra.mxu0 0.0
  %318 = vmatprep.subr.mxu0 0.0
  %319 = vmatpush1.msra.mxu0 0.0
  %320 = vmatprep.subr.mxu0 0.0
  %321 = vmatpush1.msra.mxu0 0.0
  %322 = vmatprep.subr.mxu0 0.0
  %323 = vmatpush1.msra.mxu0 0.0
  %324 = vmatprep.subr.mxu0 0.0
  %325 = vmatpush1.msra.mxu0 0.0
  %326 = vmatprep.subr.mxu0 0.0
  %327 = vmatpush1.msra.mxu0 0.0
  %328 = vmatprep.subr.mxu0 0.0
  %329 = vmatpush1.msra.mxu0 0.0
  %330 = vmatprep.subr.mxu0 0.0
  %331 = vmatpush1.msra.mxu0 0.0
  %332 = vmatprep.subr.mxu0 0.0
  %333 = vmatpush1.msra.mxu0 0.0
  %334 = vmatprep.subr.mxu0 0.0
  %335 = vmatpush1.msra.mxu0 0.0
  %336 = vmatprep.subr.mxu0 0.0
  %337 = vmatpush1.msra.mxu0 0.0
  %338 = vmatprep.subr.mxu0 0.0
  %339 = vmatpush1.msra.mxu0 %v109
  %340 = vmatprep.subr.mxu0 0.0
  %341 = vmatpush1.msra.mxu0 %v108
  %342 = vmatprep.subr.mxu0 0.0
  %343 = vmatpush2.msra.mxu0 0.0
  %344 = vmatprep.subr.mxu0 0.0
  %345 = vmatpush2.msra.mxu0 0.0
  %346 = vmatprep.subr.mxu0 0.0
  %347 = vmatpush2.msra.mxu0 0.0
  %348 = vmatprep.subr.mxu0 0.0
  %349 = vmatpush2.msra.mxu0 0.0
  %350 = vmatprep.subr.mxu0 0.0
  %351 = vmatpush2.msra.mxu0 0.0
  %352 = vmatprep.subr.mxu0 0.0
  %353 = vmatpush2.msra.mxu0 0.0
  %354 = vmatprep.subr.mxu0 0.0
  %355 = vmatpush2.msra.mxu0 0.0
  %356 = vmatprep.subr.mxu0 0.0
  %357 = vmatpush2.msra.mxu0 0.0
  %358 = vmatprep.subr.mxu0 0.0
  %359 = vmatpush2.msra.mxu0 0.0
  %360 = vmatprep.subr.mxu0 0.0
  %361 = vmatpush2.msra.mxu0 0.0
  %362 = vmatprep.subr.mxu0 0.0
  %363 = vmatpush2.msra.mxu0 0.0
  %364 = vmatprep.subr.mxu0 0.0
  %365 = vmatpush2.msra.mxu0 0.0
  %366 = vmatprep.subr.mxu0 0.0
  %367 = vmatpush2.msra.mxu0 0.0
  %368 = vmatprep.subr.mxu0 0.0
  %369 = vmatpush2.msra.mxu0 0.0
  %370 = vmatprep.subr.mxu0 0.0
  %371 = vmatpush2.msra.mxu0 0.0
  %372 = vmatprep.subr.mxu0 0.0
  %373 = vmatpush2.msra.mxu0 0.0
  %374 = vmatprep.mubr.f32.mxu0 0.0
  %375 = vmatmul.mubr.f32.gmra.mxu0 %v119
  %v376 = vpop.f32.mrf.mxu0
  %v377 = vadd.f32 %v115, %v376
  %v378 = vpop.f32.mrf.mxu0
  %379 = vmatprep.mubr.f32.mxu0 0.0
  %380 = vmatmul.mubr.f32.gmra.mxu0 %v122
  %v381 = vpop.f32.mrf.mxu0
  %v382 = vadd.f32 %v115, %v381
  %v383 = vpop.f32.mrf.mxu0
  %384 = vmatprep.mubr.f32.mxu0 0.0
  %385 = vmatmul.mubr.f32.gmra.mxu0 %v125
  %v386 = vpop.f32.mrf.mxu0
  %v387 = vadd.f32 %v115, %v386
  %v388 = vpop.f32.mrf.mxu0
  %389 = vmatprep.mubr.f32.mxu0 0.0
  %390 = vmatmul.mubr.f32.gmra.mxu0 %v128
  %v391 = vpop.f32.mrf.mxu0
  %v392 = vadd.f32 %v115, %v391
  %v393 = vpop.f32.mrf.mxu0
  %394 = vmatprep.mubr.f32.mxu0 0.0
  %395 = vmatmul.mubr.f32.gmra.mxu0 %v131
  %v396 = vpop.f32.mrf.mxu0
  %v397 = vadd.f32 %v115, %v396
  %v398 = vpop.f32.mrf.mxu0
  %399 = vmatprep.mubr.f32.mxu0 0.0
  %400 = vmatmul.mubr.f32.gmra.mxu0 %v134
  %v401 = vpop.f32.mrf.mxu0
  %v402 = vadd.f32 %v115, %v401
  %v403 = vpop.f32.mrf.mxu0
  %404 = vmatprep.mubr.f32.mxu0 0.0
  %405 = vmatmul.mubr.f32.gmra.mxu0 %v137
  %v406 = vpop.f32.mrf.mxu0
  %v407 = vadd.f32 %v115, %v406
  %v408 = vpop.f32.mrf.mxu0
  %409 = vmatprep.mubr.f32.mxu0 0.0
  %410 = vmatmul.mubr.f32.gmra.mxu0 %v140
  %v411 = vpop.f32.mrf.mxu0
  %v412 = vadd.f32 %v115, %v411
  %v413 = vpop.f32.mrf.mxu0
  %414 = vmatprep.mubr.f32.mxu0 0.0
  %415 = vmatmul.mubr.f32.gmra.mxu0 %v143
  %v416 = vpop.f32.mrf.mxu0
  %v417 = vadd.f32 %v115, %v416
  %v418 = vpop.f32.mrf.mxu0
  %419 = vmatprep.mubr.f32.mxu0 0.0
  %420 = vmatmul.mubr.f32.gmra.mxu0 %v146
  %v421 = vpop.f32.mrf.mxu0
  %v422 = vadd.f32 %v115, %v421
  %v423 = vpop.f32.mrf.mxu0
  %424 = vmatprep.mubr.f32.mxu0 0.0
  %425 = vmatmul.mubr.f32.gmra.mxu0 %v149
  %v426 = vpop.f32.mrf.mxu0
  %v427 = vadd.f32 %v115, %v426
  %v428 = vpop.f32.mrf.mxu0
  %429 = vmatprep.mubr.f32.mxu0 0.0
  %430 = vmatmul.mubr.f32.gmra.mxu0 %v152
  %v431 = vpop.f32.mrf.mxu0
  %v432 = vadd.f32 %v115, %v431
  %v433 = vpop.f32.mrf.mxu0
  %434 = vmatprep.mubr.f32.mxu0 0.0
  %435 = vmatmul.mubr.f32.gmra.mxu0 %v155
  %v436 = vpop.f32.mrf.mxu0
  %v437 = vadd.f32 %v115, %v436
  %v438 = vpop.f32.mrf.mxu0
  %439 = vmatprep.mubr.f32.mxu0 0.0
  %440 = vmatmul.mubr.f32.gmra.mxu0 %v158
  %v441 = vpop.f32.mrf.mxu0
  %v442 = vadd.f32 %v115, %v441
  %v443 = vpop.f32.mrf.mxu0
  %444 = vmatprep.mubr.f32.mxu0 0.0
  %445 = vmatmul.mubr.f32.gmra.mxu0 %v161
  %v446 = vpop.f32.mrf.mxu0
  %v447 = vadd.f32 %v115, %v446
  %v448 = vpop.f32.mrf.mxu0
  %449 = vmatprep.mubr.f32.mxu0 0.0
  %450 = vmatmul.mubr.f32.gmra.mxu0 %v164
  %v451 = vpop.f32.mrf.mxu0
  %v452 = vadd.f32 %v115, %v451
  %v453 = vpop.f32.mrf.mxu0
  %454 = vmatprep.mubr.f32.mxu0 0.0
  %455 = vmatmul.mubr.f32.gmra.mxu0 %v167
  %v456 = vpop.f32.mrf.mxu0
  %v457 = vadd.f32 %v115, %v456
  %v458 = vpop.f32.mrf.mxu0
  %459 = vmatprep.mubr.f32.mxu0 0.0
  %460 = vmatmul.mubr.f32.gmra.mxu0 %v170
  %v461 = vpop.f32.mrf.mxu0
  %v462 = vadd.f32 %v115, %v461
  %v463 = vpop.f32.mrf.mxu0
  %464 = vmatprep.mubr.f32.mxu0 0.0
  %465 = vmatmul.mubr.f32.gmra.mxu0 %v173
  %v466 = vpop.f32.mrf.mxu0
  %v467 = vadd.f32 %v115, %v466
  %v468 = vpop.f32.mrf.mxu0
  %469 = vmatprep.mubr.f32.mxu0 0.0
  %470 = vmatmul.mubr.f32.gmra.mxu0 %v176
  %v471 = vpop.f32.mrf.mxu0
  %v472 = vadd.f32 %v115, %v471
  %v473 = vpop.f32.mrf.mxu0
  %474 = vmatprep.mubr.f32.mxu0 0.0
  %475 = vmatmul.mubr.f32.gmra.mxu0 %v179
  %v476 = vpop.f32.mrf.mxu0
  %v477 = vadd.f32 %v115, %v476
  %v478 = vpop.f32.mrf.mxu0
  %479 = vmatprep.mubr.f32.mxu0 0.0
  %480 = vmatmul.mubr.f32.gmra.mxu0 %v182
  %v481 = vpop.f32.mrf.mxu0
  %v482 = vadd.f32 %v115, %v481
  %v483 = vpop.f32.mrf.mxu0
  %484 = vmatprep.mubr.f32.mxu0 0.0
  %485 = vmatmul.mubr.f32.gmra.mxu0 %v185
  %v486 = vpop.f32.mrf.mxu0
  %v487 = vadd.f32 %v115, %v486
  %v488 = vpop.f32.mrf.mxu0
  %489 = vmatprep.mubr.f32.mxu0 0.0
  %490 = vmatmul.mubr.f32.gmra.mxu0 %v188
  %v491 = vpop.f32.mrf.mxu0
  %v492 = vadd.f32 %v115, %v491
  %v493 = vpop.f32.mrf.mxu0
  %494 = vmatprep.mubr.f32.mxu0 0.0
  %495 = vmatmul.mubr.f32.gmra.mxu0 %v191
  %v496 = vpop.f32.mrf.mxu0
  %v497 = vadd.f32 %v115, %v496
  %v498 = vpop.f32.mrf.mxu0
  %499 = vmatprep.mubr.f32.mxu0 0.0
  %500 = vmatmul.mubr.f32.gmra.mxu0 %v194
  %v501 = vpop.f32.mrf.mxu0
  %v502 = vadd.f32 %v115, %v501
  %v503 = vpop.f32.mrf.mxu0
  %504 = vmatprep.mubr.f32.mxu0 0.0
  %505 = vmatmul.mubr.f32.gmra.mxu0 %v197
  %v506 = vpop.f32.mrf.mxu0
  %v507 = vadd.f32 %v115, %v506
  %v508 = vpop.f32.mrf.mxu0
  %509 = vmatprep.mubr.f32.mxu0 0.0
  %510 = vmatmul.mubr.f32.gmra.mxu0 %v200
  %v511 = vpop.f32.mrf.mxu0
  %v512 = vadd.f32 %v115, %v511
  %v513 = vpop.f32.mrf.mxu0
  %514 = vmatprep.mubr.f32.mxu0 0.0
  %515 = vmatmul.mubr.f32.gmra.mxu0 %v203
  %v516 = vpop.f32.mrf.mxu0
  %v517 = vadd.f32 %v115, %v516
  %v518 = vpop.f32.mrf.mxu0
  %519 = vmatprep.mubr.f32.mxu0 0.0
  %520 = vmatmul.mubr.f32.gmra.mxu0 %v206
  %v521 = vpop.f32.mrf.mxu0
  %v522 = vadd.f32 %v115, %v521
  %v523 = vpop.f32.mrf.mxu0
  %524 = vmatprep.mubr.f32.mxu0 0.0
  %525 = vmatmul.mubr.f32.gmra.mxu0 %v209
  %v526 = vpop.f32.mrf.mxu0
  %v527 = vadd.f32 %v115, %v526
  %v528 = vpop.f32.mrf.mxu0
  %529 = vmatprep.mubr.f32.mxu0 0.0
  %530 = vmatmul.mubr.f32.gmra.mxu0 %v212
  %v531 = vpop.f32.mrf.mxu0
  %v532 = vadd.f32 %v115, %v531
  %v533 = vpop.f32.mrf.mxu0
  %534 = vmatprep.mubr.f32.mxu0 0.0
  %535 = vmatmul.mubr.f32.gmra.mxu0 %v215
  %v536 = vpop.f32.mrf.mxu0
  %v537 = vadd.f32 %v115, %v536
  %v538 = vpop.f32.mrf.mxu0
  %539 = vmatprep.mubr.f32.mxu0 0.0
  %540 = vmatmul.mubr.f32.gmra.mxu0 %v218
  %v541 = vpop.f32.mrf.mxu0
  %v542 = vadd.f32 %v115, %v541
  %v543 = vpop.f32.mrf.mxu0
  %544 = vmatprep.mubr.f32.mxu0 0.0
  %545 = vmatmul.mubr.f32.gmra.mxu0 %v221
  %v546 = vpop.f32.mrf.mxu0
  %v547 = vadd.f32 %v115, %v546
  %v548 = vpop.f32.mrf.mxu0
  %549 = vmatprep.mubr.f32.mxu0 0.0
  %550 = vmatmul.mubr.f32.gmra.mxu0 %v224
  %v551 = vpop.f32.mrf.mxu0
  %v552 = vadd.f32 %v115, %v551
  %v553 = vpop.f32.mrf.mxu0
  %554 = vmatprep.mubr.f32.mxu0 0.0
  %555 = vmatmul.mubr.f32.gmra.mxu0 %v227
  %v556 = vpop.f32.mrf.mxu0
  %v557 = vadd.f32 %v115, %v556
  %v558 = vpop.f32.mrf.mxu0
  %559 = vmatprep.mubr.f32.mxu0 0.0
  %560 = vmatmul.mubr.f32.gmra.mxu0 %v230
  %v561 = vpop.f32.mrf.mxu0
  %v562 = vadd.f32 %v115, %v561
  %v563 = vpop.f32.mrf.mxu0
  %564 = vmatprep.mubr.f32.mxu0 0.0
  %565 = vmatmul.mubr.f32.gmra.mxu0 %v233
  %v566 = vpop.f32.mrf.mxu0
  %v567 = vadd.f32 %v115, %v566
  %v568 = vpop.f32.mrf.mxu0
  %569 = vmatprep.mubr.f32.mxu0 0.0
  %570 = vmatmul.mubr.f32.gmra.mxu0 %v236
  %v571 = vpop.f32.mrf.mxu0
  %v572 = vadd.f32 %v115, %v571
  %v573 = vpop.f32.mrf.mxu0
  %574 = vmatprep.mubr.f32.mxu0 0.0
  %575 = vmatmul.mubr.f32.gmra.mxu0 %v239
  %v576 = vpop.f32.mrf.mxu0
  %v577 = vadd.f32 %v115, %v576
  %v578 = vpop.f32.mrf.mxu0
  %579 = vmatprep.mubr.f32.mxu0 0.0
  %580 = vmatmul.mubr.f32.gmra.mxu0 %v242
  %v581 = vpop.f32.mrf.mxu0
  %v582 = vadd.f32 %v115, %v581
  %v583 = vpop.f32.mrf.mxu0
  %584 = vmatprep.mubr.f32.mxu0 0.0
  %585 = vmatmul.mubr.f32.gmra.mxu0 %v245
  %v586 = vpop.f32.mrf.mxu0
  %v587 = vadd.f32 %v115, %v586
  %v588 = vpop.f32.mrf.mxu0
  %589 = vmatprep.mubr.f32.mxu0 0.0
  %590 = vmatmul.mubr.f32.gmra.mxu0 %v248
  %v591 = vpop.f32.mrf.mxu0
  %v592 = vadd.f32 %v115, %v591
  %v593 = vpop.f32.mrf.mxu0
  %594 = vmatprep.mubr.f32.mxu0 0.0
  %595 = vmatmul.mubr.f32.gmra.mxu0 %v251
  %v596 = vpop.f32.mrf.mxu0
  %v597 = vadd.f32 %v115, %v596
  %v598 = vpop.f32.mrf.mxu0
  %599 = vmatprep.mubr.f32.mxu0 0.0
  %600 = vmatmul.mubr.f32.gmra.mxu0 %v254
  %v601 = vpop.f32.mrf.mxu0
  %v602 = vadd.f32 %v115, %v601
  %v603 = vpop.f32.mrf.mxu0
  %604 = vmatprep.mubr.f32.mxu0 0.0
  %605 = vmatmul.mubr.f32.gmra.mxu0 %v257
  %v606 = vpop.f32.mrf.mxu0
  %v607 = vadd.f32 %v115, %v606
  %v608 = vpop.f32.mrf.mxu0
  %609 = vmatprep.mubr.f32.mxu0 0.0
  %610 = vmatmul.mubr.f32.gmra.mxu0 %v260
  %v611 = vpop.f32.mrf.mxu0
  %v612 = vadd.f32 %v115, %v611
  %v613 = vpop.f32.mrf.mxu0
  %614 = vmatprep.mubr.f32.mxu0 0.0
  %615 = vmatmul.mubr.f32.gmra.mxu0 %v263
  %v616 = vpop.f32.mrf.mxu0
  %v617 = vadd.f32 %v115, %v616
  %v618 = vpop.f32.mrf.mxu0
  %619 = vmatprep.mubr.f32.mxu0 0.0
  %620 = vmatmul.mubr.f32.gmra.mxu0 %v266
  %v621 = vpop.f32.mrf.mxu0
  %v622 = vadd.f32 %v115, %v621
  %v623 = vpop.f32.mrf.mxu0
  %624 = vmatprep.mubr.f32.mxu0 0.0
  %625 = vmatmul.mubr.f32.gmra.mxu0 %v269
  %v626 = vpop.f32.mrf.mxu0
  %v627 = vadd.f32 %v115, %v626
  %v628 = vpop.f32.mrf.mxu0
  %629 = vmatprep.mubr.f32.mxu0 0.0
  %630 = vmatmul.mubr.f32.gmra.mxu0 %v272
  %v631 = vpop.f32.mrf.mxu0
  %v632 = vadd.f32 %v115, %v631
  %v633 = vpop.f32.mrf.mxu0
  %634 = vmatprep.mubr.f32.mxu0 0.0
  %635 = vmatmul.mubr.f32.gmra.mxu0 %v275
  %v636 = vpop.f32.mrf.mxu0
  %v637 = vadd.f32 %v115, %v636
  %v638 = vpop.f32.mrf.mxu0
  %639 = vmatprep.mubr.f32.mxu0 0.0
  %640 = vmatmul.mubr.f32.gmra.mxu0 %v278
  %v641 = vpop.f32.mrf.mxu0
  %v642 = vadd.f32 %v115, %v641
  %v643 = vpop.f32.mrf.mxu0
  %644 = vmatprep.mubr.f32.mxu0 0.0
  %645 = vmatmul.mubr.f32.gmra.mxu0 %v281
  %v646 = vpop.f32.mrf.mxu0
  %v647 = vadd.f32 %v115, %v646
  %v648 = vpop.f32.mrf.mxu0
  %649 = vmatprep.mubr.f32.mxu0 0.0
  %650 = vmatmul.mubr.f32.gmra.mxu0 %v284
  %v651 = vpop.f32.mrf.mxu0
  %v652 = vadd.f32 %v115, %v651
  %v653 = vpop.f32.mrf.mxu0
  %654 = vmatprep.mubr.f32.mxu0 0.0
  %655 = vmatmul.mubr.f32.gmra.mxu0 %v287
  %v656 = vpop.f32.mrf.mxu0
  %v657 = vadd.f32 %v115, %v656
  %v658 = vpop.f32.mrf.mxu0
  %659 = vmatprep.mubr.f32.mxu0 0.0
  %660 = vmatmul.mubr.f32.gmra.mxu0 %v290
  %v661 = vpop.f32.mrf.mxu0
  %v662 = vadd.f32 %v115, %v661
  %v663 = vpop.f32.mrf.mxu0
  %664 = vmatprep.mubr.f32.mxu0 0.0
  %665 = vmatmul.mubr.f32.gmra.mxu0 %v293
  %v666 = vpop.f32.mrf.mxu0
  %v667 = vadd.f32 %v115, %v666
  %v668 = vpop.f32.mrf.mxu0
  %669 = vmatprep.mubr.f32.mxu0 0.0
  %670 = vmatmul.mubr.f32.gmra.mxu0 %v296
  %v671 = vpop.f32.mrf.mxu0
  %v672 = vadd.f32 %v115, %v671
  %v673 = vpop.f32.mrf.mxu0
  %674 = vmatprep.mubr.f32.mxu0 0.0
  %675 = vmatmul.mubr.f32.gmra.mxu0 %v299
  %v676 = vpop.f32.mrf.mxu0
  %v677 = vadd.f32 %v115, %v676
  %v678 = vpop.f32.mrf.mxu0
  %679 = vmatprep.mubr.f32.mxu0 0.0
  %680 = vmatmul.mubr.f32.gmra.mxu0 %v302
  %v681 = vpop.f32.mrf.mxu0
  %v682 = vadd.f32 %v115, %v681
  %v683 = vpop.f32.mrf.mxu0
  %684 = vmatprep.mubr.f32.mxu0 0.0
  %685 = vmatmul.mubr.f32.gmra.mxu0 %v305
  %v686 = vpop.f32.mrf.mxu0
  %v687 = vadd.f32 %v115, %v686
  %v688 = vpop.f32.mrf.mxu0
  %689 = vmatprep.mubr.f32.mxu0 0.0
  %690 = vmatmul.mubr.f32.gmra.mxu0 %v308
  %v691 = vpop.f32.mrf.mxu0
  %v692 = vadd.f32 %v115, %v691
  %v693 = vpop.f32.mrf.mxu0
  %694 = vdwg.mxu0
  %v695 = vld [vmem:[%s3] sm:$0x1]
  %v696 = vld [vmem:[%s4] sm:$0x1]
  %vm697 = vcmask 31744
  %v698 = vsel %vm697, %v377, 0.0
  %v699 = vsel %vm697, %v382, 0.0
  %v700 = vadd.f32 %v698, %v699
  %v701 = vsel %vm697, %v387, 0.0
  %v702 = vadd.f32 %v700, %v701
  %v703 = vsel %vm697, %v392, 0.0
  %v704 = vadd.f32 %v702, %v703
  %v705 = vsel %vm697, %v397, 0.0
  %v706 = vadd.f32 %v704, %v705
  %v707 = vsel %vm697, %v402, 0.0
  %v708 = vadd.f32 %v706, %v707
  %v709 = vsel %vm697, %v407, 0.0
  %v710 = vadd.f32 %v708, %v709
  %v711 = vsel %vm697, %v412, 0.0
  %v712 = vadd.f32 %v710, %v711
  %v713 = vsel %vm697, %v417, 0.0
  %v714 = vadd.f32 %v712, %v713
  %v715 = vsel %vm697, %v422, 0.0
  %v716 = vadd.f32 %v714, %v715
  %v717 = vsel %vm697, %v427, 0.0
  %v718 = vadd.f32 %v716, %v717
  %v719 = vsel %vm697, %v432, 0.0
  %v720 = vadd.f32 %v718, %v719
  %v721 = vsel %vm697, %v437, 0.0
  %v722 = vadd.f32 %v720, %v721
  %v723 = vsel %vm697, %v442, 0.0
  %v724 = vadd.f32 %v722, %v723
  %v725 = vsel %vm697, %v447, 0.0
  %v726 = vadd.f32 %v724, %v725
  %v727 = vsel %vm697, %v452, 0.0
  %v728 = vadd.f32 %v726, %v727
  %v729 = vsel %vm697, %v457, 0.0
  %v730 = vadd.f32 %v728, %v729
  %v731 = vsel %vm697, %v462, 0.0
  %v732 = vadd.f32 %v730, %v731
  %v733 = vsel %vm697, %v467, 0.0
  %v734 = vadd.f32 %v732, %v733
  %v735 = vsel %vm697, %v472, 0.0
  %v736 = vadd.f32 %v734, %v735
  %v737 = vsel %vm697, %v477, 0.0
  %v738 = vadd.f32 %v736, %v737
  %v739 = vsel %vm697, %v482, 0.0
  %v740 = vadd.f32 %v738, %v739
  %v741 = vsel %vm697, %v487, 0.0
  %v742 = vadd.f32 %v740, %v741
  %v743 = vsel %vm697, %v492, 0.0
  %v744 = vadd.f32 %v742, %v743
  %v745 = vsel %vm697, %v497, 0.0
  %v746 = vadd.f32 %v744, %v745
  %v747 = vsel %vm697, %v502, 0.0
  %v748 = vadd.f32 %v746, %v747
  %v749 = vsel %vm697, %v507, 0.0
  %v750 = vadd.f32 %v748, %v749
  %v751 = vsel %vm697, %v512, 0.0
  %v752 = vadd.f32 %v750, %v751
  %v753 = vsel %vm697, %v517, 0.0
  %v754 = vadd.f32 %v752, %v753
  %v755 = vsel %vm697, %v522, 0.0
  %v756 = vadd.f32 %v754, %v755
  %v757 = vsel %vm697, %v527, 0.0
  %v758 = vadd.f32 %v756, %v757
  %v759 = vsel %vm697, %v532, 0.0
  %v760 = vadd.f32 %v758, %v759
  %v761 = vsel %vm697, %v537, 0.0
  %v762 = vadd.f32 %v760, %v761
  %v763 = vsel %vm697, %v542, 0.0
  %v764 = vadd.f32 %v762, %v763
  %v765 = vsel %vm697, %v547, 0.0
  %v766 = vadd.f32 %v764, %v765
  %v767 = vsel %vm697, %v552, 0.0
  %v768 = vadd.f32 %v766, %v767
  %v769 = vsel %vm697, %v557, 0.0
  %v770 = vadd.f32 %v768, %v769
  %v771 = vsel %vm697, %v562, 0.0
  %v772 = vadd.f32 %v770, %v771
  %v773 = vsel %vm697, %v567, 0.0
  %v774 = vadd.f32 %v772, %v773
  %v775 = vsel %vm697, %v572, 0.0
  %v776 = vadd.f32 %v774, %v775
  %v777 = vsel %vm697, %v577, 0.0
  %v778 = vadd.f32 %v776, %v777
  %v779 = vsel %vm697, %v582, 0.0
  %v780 = vadd.f32 %v778, %v779
  %v781 = vsel %vm697, %v587, 0.0
  %v782 = vadd.f32 %v780, %v781
  %v783 = vsel %vm697, %v592, 0.0
  %v784 = vadd.f32 %v782, %v783
  %v785 = vsel %vm697, %v597, 0.0
  %v786 = vadd.f32 %v784, %v785
  %v787 = vsel %vm697, %v602, 0.0
  %v788 = vadd.f32 %v786, %v787
  %v789 = vsel %vm697, %v607, 0.0
  %v790 = vadd.f32 %v788, %v789
  %v791 = vsel %vm697, %v612, 0.0
  %v792 = vadd.f32 %v790, %v791
  %v793 = vsel %vm697, %v617, 0.0
  %v794 = vadd.f32 %v792, %v793
  %v795 = vsel %vm697, %v622, 0.0
  %v796 = vadd.f32 %v794, %v795
  %v797 = vsel %vm697, %v627, 0.0
  %v798 = vadd.f32 %v796, %v797
  %v799 = vsel %vm697, %v632, 0.0
  %v800 = vadd.f32 %v798, %v799
  %v801 = vsel %vm697, %v637, 0.0
  %v802 = vadd.f32 %v800, %v801
  %v803 = vsel %vm697, %v642, 0.0
  %v804 = vadd.f32 %v802, %v803
  %v805 = vsel %vm697, %v647, 0.0
  %v806 = vadd.f32 %v804, %v805
  %v807 = vsel %vm697, %v652, 0.0
  %v808 = vadd.f32 %v806, %v807
  %v809 = vsel %vm697, %v657, 0.0
  %v810 = vadd.f32 %v808, %v809
  %v811 = vsel %vm697, %v662, 0.0
  %v812 = vadd.f32 %v810, %v811
  %v813 = vsel %vm697, %v667, 0.0
  %v814 = vadd.f32 %v812, %v813
  %v815 = vsel %vm697, %v672, 0.0
  %v816 = vadd.f32 %v814, %v815
  %v817 = vsel %vm697, %v677, 0.0
  %v818 = vadd.f32 %v816, %v817
  %v819 = vsel %vm697, %v682, 0.0
  %v820 = vadd.f32 %v818, %v819
  %v821 = vsel %vm697, %v687, 0.0
  %v822 = vadd.f32 %v820, %v821
  %v823 = vsel %vm697, %v692, 0.0
  %v824 = vadd.f32 %v822, %v823
  %v825 = vrot.slane %v824, 4
  %v826 = vadd.f32 %v824, %v825
  %v827 = vrot.slane %v826, 2
  %v828 = vadd.f32 %v826, %v827
  %v829 = vrot.slane %v828, 1
  %v830 = vadd.f32 %v828, %v829
  %v831 = vrcp.pop 512.0
  %v832 = vmul.f32 %v830, %v831
  %v833 = vmul.f32 %v377, %v377
  %v834 = vmul.f32 %v382, %v382
  %v835 = vmul.f32 %v387, %v387
  %v836 = vmul.f32 %v392, %v392
  %v837 = vmul.f32 %v397, %v397
  %v838 = vmul.f32 %v402, %v402
  %v839 = vmul.f32 %v407, %v407
  %v840 = vmul.f32 %v412, %v412
  %v841 = vmul.f32 %v417, %v417
  %v842 = vmul.f32 %v422, %v422
  %v843 = vmul.f32 %v427, %v427
  %v844 = vmul.f32 %v432, %v432
  %v845 = vmul.f32 %v437, %v437
  %v846 = vmul.f32 %v442, %v442
  %v847 = vmul.f32 %v447, %v447
  %v848 = vmul.f32 %v452, %v452
  %v849 = vmul.f32 %v457, %v457
  %v850 = vmul.f32 %v462, %v462
  %v851 = vmul.f32 %v467, %v467
  %v852 = vmul.f32 %v472, %v472
  %v853 = vmul.f32 %v477, %v477
  %v854 = vmul.f32 %v482, %v482
  %v855 = vmul.f32 %v487, %v487
  %v856 = vmul.f32 %v492, %v492
  %v857 = vmul.f32 %v497, %v497
  %v858 = vmul.f32 %v502, %v502
  %v859 = vmul.f32 %v507, %v507
  %v860 = vmul.f32 %v512, %v512
  %v861 = vmul.f32 %v517, %v517
  %v862 = vmul.f32 %v522, %v522
  %v863 = vmul.f32 %v527, %v527
  %v864 = vmul.f32 %v532, %v532
  %v865 = vmul.f32 %v537, %v537
  %v866 = vmul.f32 %v542, %v542
  %v867 = vmul.f32 %v547, %v547
  %v868 = vmul.f32 %v552, %v552
  %v869 = vmul.f32 %v557, %v557
  %v870 = vmul.f32 %v562, %v562
  %v871 = vmul.f32 %v567, %v567
  %v872 = vmul.f32 %v572, %v572
  %v873 = vmul.f32 %v577, %v577
  %v874 = vmul.f32 %v582, %v582
  %v875 = vmul.f32 %v587, %v587
  %v876 = vmul.f32 %v592, %v592
  %v877 = vmul.f32 %v597, %v597
  %v878 = vmul.f32 %v602, %v602
  %v879 = vmul.f32 %v607, %v607
  %v880 = vmul.f32 %v612, %v612
  %v881 = vmul.f32 %v617, %v617
  %v882 = vmul.f32 %v622, %v622
  %v883 = vmul.f32 %v627, %v627
  %v884 = vmul.f32 %v632, %v632
  %v885 = vmul.f32 %v637, %v637
  %v886 = vmul.f32 %v642, %v642
  %v887 = vmul.f32 %v647, %v647
  %v888 = vmul.f32 %v652, %v652
  %v889 = vmul.f32 %v657, %v657
  %v890 = vmul.f32 %v662, %v662
  %v891 = vmul.f32 %v667, %v667
  %v892 = vmul.f32 %v672, %v672
  %v893 = vmul.f32 %v677, %v677
  %v894 = vmul.f32 %v682, %v682
  %v895 = vmul.f32 %v687, %v687
  %v896 = vmul.f32 %v692, %v692
  %v897 = vsel %vm697, %v833, 0.0
  %v898 = vsel %vm697, %v834, 0.0
  %v899 = vadd.f32 %v897, %v898
  %v900 = vsel %vm697, %v835, 0.0
  %v901 = vadd.f32 %v899, %v900
  %v902 = vsel %vm697, %v836, 0.0
  %v903 = vadd.f32 %v901, %v902
  %v904 = vsel %vm697, %v837, 0.0
  %v905 = vadd.f32 %v903, %v904
  %v906 = vsel %vm697, %v838, 0.0
  %v907 = vadd.f32 %v905, %v906
  %v908 = vsel %vm697, %v839, 0.0
  %v909 = vadd.f32 %v907, %v908
  %v910 = vsel %vm697, %v840, 0.0
  %v911 = vadd.f32 %v909, %v910
  %v912 = vsel %vm697, %v841, 0.0
  %v913 = vadd.f32 %v911, %v912
  %v914 = vsel %vm697, %v842, 0.0
  %v915 = vadd.f32 %v913, %v914
  %v916 = vsel %vm697, %v843, 0.0
  %v917 = vadd.f32 %v915, %v916
  %v918 = vsel %vm697, %v844, 0.0
  %v919 = vadd.f32 %v917, %v918
  %v920 = vsel %vm697, %v845, 0.0
  %v921 = vadd.f32 %v919, %v920
  %v922 = vsel %vm697, %v846, 0.0
  %v923 = vadd.f32 %v921, %v922
  %v924 = vsel %vm697, %v847, 0.0
  %v925 = vadd.f32 %v923, %v924
  %v926 = vsel %vm697, %v848, 0.0
  %v927 = vadd.f32 %v925, %v926
  %v928 = vsel %vm697, %v849, 0.0
  %v929 = vadd.f32 %v927, %v928
  %v930 = vsel %vm697, %v850, 0.0
  %v931 = vadd.f32 %v929, %v930
  %v932 = vsel %vm697, %v851, 0.0
  %v933 = vadd.f32 %v931, %v932
  %v934 = vsel %vm697, %v852, 0.0
  %v935 = vadd.f32 %v933, %v934
  %v936 = vsel %vm697, %v853, 0.0
  %v937 = vadd.f32 %v935, %v936
  %v938 = vsel %vm697, %v854, 0.0
  %v939 = vadd.f32 %v937, %v938
  %v940 = vsel %vm697, %v855, 0.0
  %v941 = vadd.f32 %v939, %v940
  %v942 = vsel %vm697, %v856, 0.0
  %v943 = vadd.f32 %v941, %v942
  %v944 = vsel %vm697, %v857, 0.0
  %v945 = vadd.f32 %v943, %v944
  %v946 = vsel %vm697, %v858, 0.0
  %v947 = vadd.f32 %v945, %v946
  %v948 = vsel %vm697, %v859, 0.0
  %v949 = vadd.f32 %v947, %v948
  %v950 = vsel %vm697, %v860, 0.0
  %v951 = vadd.f32 %v949, %v950
  %v952 = vsel %vm697, %v861, 0.0
  %v953 = vadd.f32 %v951, %v952
  %v954 = vsel %vm697, %v862, 0.0
  %v955 = vadd.f32 %v953, %v954
  %v956 = vsel %vm697, %v863, 0.0
  %v957 = vadd.f32 %v955, %v956
  %v958 = vsel %vm697, %v864, 0.0
  %v959 = vadd.f32 %v957, %v958
  %v960 = vsel %vm697, %v865, 0.0
  %v961 = vadd.f32 %v959, %v960
  %v962 = vsel %vm697, %v866, 0.0
  %v963 = vadd.f32 %v961, %v962
  %v964 = vsel %vm697, %v867, 0.0
  %v965 = vadd.f32 %v963, %v964
  %v966 = vsel %vm697, %v868, 0.0
  %v967 = vadd.f32 %v965, %v966
  %v968 = vsel %vm697, %v869, 0.0
  %v969 = vadd.f32 %v967, %v968
  %v970 = vsel %vm697, %v870, 0.0
  %v971 = vadd.f32 %v969, %v970
  %v972 = vsel %vm697, %v871, 0.0
  %v973 = vadd.f32 %v971, %v972
  %v974 = vsel %vm697, %v872, 0.0
  %v975 = vadd.f32 %v973, %v974
  %v976 = vsel %vm697, %v873, 0.0
  %v977 = vadd.f32 %v975, %v976
  %v978 = vsel %vm697, %v874, 0.0
  %v979 = vadd.f32 %v977, %v978
  %v980 = vsel %vm697, %v875, 0.0
  %v981 = vadd.f32 %v979, %v980
  %v982 = vsel %vm697, %v876, 0.0
  %v983 = vadd.f32 %v981, %v982
  %v984 = vsel %vm697, %v877, 0.0
  %v985 = vadd.f32 %v983, %v984
  %v986 = vsel %vm697, %v878, 0.0
  %v987 = vadd.f32 %v985, %v986
  %v988 = vsel %vm697, %v879, 0.0
  %v989 = vadd.f32 %v987, %v988
  %v990 = vsel %vm697, %v880, 0.0
  %v991 = vadd.f32 %v989, %v990
  %v992 = vsel %vm697, %v881, 0.0
  %v993 = vadd.f32 %v991, %v992
  %v994 = vsel %vm697, %v882, 0.0
  %v995 = vadd.f32 %v993, %v994
  %v996 = vsel %vm697, %v883, 0.0
  %v997 = vadd.f32 %v995, %v996
  %v998 = vsel %vm697, %v884, 0.0
  %v999 = vadd.f32 %v997, %v998
  %v1000 = vsel %vm697, %v885, 0.0
  %v1001 = vadd.f32 %v999, %v1000
  %v1002 = vsel %vm697, %v886, 0.0
  %v1003 = vadd.f32 %v1001, %v1002
  %v1004 = vsel %vm697, %v887, 0.0
  %v1005 = vadd.f32 %v1003, %v1004
  %v1006 = vsel %vm697, %v888, 0.0
  %v1007 = vadd.f32 %v1005, %v1006
  %v1008 = vsel %vm697, %v889, 0.0
  %v1009 = vadd.f32 %v1007, %v1008
  %v1010 = vsel %vm697, %v890, 0.0
  %v1011 = vadd.f32 %v1009, %v1010
  %v1012 = vsel %vm697, %v891, 0.0
  %v1013 = vadd.f32 %v1011, %v1012
  %v1014 = vsel %vm697, %v892, 0.0
  %v1015 = vadd.f32 %v1013, %v1014
  %v1016 = vsel %vm697, %v893, 0.0
  %v1017 = vadd.f32 %v1015, %v1016
  %v1018 = vsel %vm697, %v894, 0.0
  %v1019 = vadd.f32 %v1017, %v1018
  %v1020 = vsel %vm697, %v895, 0.0
  %v1021 = vadd.f32 %v1019, %v1020
  %v1022 = vsel %vm697, %v896, 0.0
  %v1023 = vadd.f32 %v1021, %v1022
  %v1024 = vrot.slane %v1023, 4
  %v1025 = vadd.f32 %v1023, %v1024
  %v1026 = vrot.slane %v1025, 2
  %v1027 = vadd.f32 %v1025, %v1026
  %v1028 = vrot.slane %v1027, 1
  %v1029 = vadd.f32 %v1027, %v1028
  %v1030 = vmul.f32 %v1029, %v831
  %v1031 = vmul.f32 %v832, %v832
  %v1032 = vsub.f32 %v1030, %v1031
  %v1033 = vsub.f32 %v377, %v832
  %v1034 = vsub.f32 %v382, %v832
  %v1035 = vsub.f32 %v387, %v832
  %v1036 = vsub.f32 %v392, %v832
  %v1037 = vsub.f32 %v397, %v832
  %v1038 = vsub.f32 %v402, %v832
  %v1039 = vsub.f32 %v407, %v832
  %v1040 = vsub.f32 %v412, %v832
  %v1041 = vsub.f32 %v417, %v832
  %v1042 = vsub.f32 %v422, %v832
  %v1043 = vsub.f32 %v427, %v832
  %v1044 = vsub.f32 %v432, %v832
  %v1045 = vsub.f32 %v437, %v832
  %v1046 = vsub.f32 %v442, %v832
  %v1047 = vsub.f32 %v447, %v832
  %v1048 = vsub.f32 %v452, %v832
  %v1049 = vsub.f32 %v457, %v832
  %v1050 = vsub.f32 %v462, %v832
  %v1051 = vsub.f32 %v467, %v832
  %v1052 = vsub.f32 %v472, %v832
  %v1053 = vsub.f32 %v477, %v832
  %v1054 = vsub.f32 %v482, %v832
  %v1055 = vsub.f32 %v487, %v832
  %v1056 = vsub.f32 %v492, %v832
  %v1057 = vsub.f32 %v497, %v832
  %v1058 = vsub.f32 %v502, %v832
  %v1059 = vsub.f32 %v507, %v832
  %v1060 = vsub.f32 %v512, %v832
  %v1061 = vsub.f32 %v517, %v832
  %v1062 = vsub.f32 %v522, %v832
  %v1063 = vsub.f32 %v527, %v832
  %v1064 = vsub.f32 %v532, %v832
  %v1065 = vsub.f32 %v537, %v832
  %v1066 = vsub.f32 %v542, %v832
  %v1067 = vsub.f32 %v547, %v832
  %v1068 = vsub.f32 %v552, %v832
  %v1069 = vsub.f32 %v557, %v832
  %v1070 = vsub.f32 %v562, %v832
  %v1071 = vsub.f32 %v567, %v832
  %v1072 = vsub.f32 %v572, %v832
  %v1073 = vsub.f32 %v577, %v832
  %v1074 = vsub.f32 %v582, %v832
  %v1075 = vsub.f32 %v587, %v832
  %v1076 = vsub.f32 %v592, %v832
  %v1077 = vsub.f32 %v597, %v832
  %v1078 = vsub.f32 %v602, %v832
  %v1079 = vsub.f32 %v607, %v832
  %v1080 = vsub.f32 %v612, %v832
  %v1081 = vsub.f32 %v617, %v832
  %v1082 = vsub.f32 %v622, %v832
  %v1083 = vsub.f32 %v627, %v832
  %v1084 = vsub.f32 %v632, %v832
  %v1085 = vsub.f32 %v637, %v832
  %v1086 = vsub.f32 %v642, %v832
  %v1087 = vsub.f32 %v647, %v832
  %v1088 = vsub.f32 %v652, %v832
  %v1089 = vsub.f32 %v657, %v832
  %v1090 = vsub.f32 %v662, %v832
  %v1091 = vsub.f32 %v667, %v832
  %v1092 = vsub.f32 %v672, %v832
  %v1093 = vsub.f32 %v677, %v832
  %v1094 = vsub.f32 %v682, %v832
  %v1095 = vsub.f32 %v687, %v832
  %v1096 = vsub.f32 %v692, %v832
  %v1097 = vadd.f32 %v1032, 1e-05
  %v1098 = vrsqrt.pop %v1097
  %v1099 = vmul.f32 %v1033, %v1098
  %v1100 = vmul.f32 %v1034, %v1098
  %v1101 = vmul.f32 %v1035, %v1098
  %v1102 = vmul.f32 %v1036, %v1098
  %v1103 = vmul.f32 %v1037, %v1098
  %v1104 = vmul.f32 %v1038, %v1098
  %v1105 = vmul.f32 %v1039, %v1098
  %v1106 = vmul.f32 %v1040, %v1098
  %v1107 = vmul.f32 %v1041, %v1098
  %v1108 = vmul.f32 %v1042, %v1098
  %v1109 = vmul.f32 %v1043, %v1098
  %v1110 = vmul.f32 %v1044, %v1098
  %v1111 = vmul.f32 %v1045, %v1098
  %v1112 = vmul.f32 %v1046, %v1098
  %v1113 = vmul.f32 %v1047, %v1098
  %v1114 = vmul.f32 %v1048, %v1098
  %v1115 = vmul.f32 %v1049, %v1098
  %v1116 = vmul.f32 %v1050, %v1098
  %v1117 = vmul.f32 %v1051, %v1098
  %v1118 = vmul.f32 %v1052, %v1098
  %v1119 = vmul.f32 %v1053, %v1098
  %v1120 = vmul.f32 %v1054, %v1098
  %v1121 = vmul.f32 %v1055, %v1098
  %v1122 = vmul.f32 %v1056, %v1098
  %v1123 = vmul.f32 %v1057, %v1098
  %v1124 = vmul.f32 %v1058, %v1098
  %v1125 = vmul.f32 %v1059, %v1098
  %v1126 = vmul.f32 %v1060, %v1098
  %v1127 = vmul.f32 %v1061, %v1098
  %v1128 = vmul.f32 %v1062, %v1098
  %v1129 = vmul.f32 %v1063, %v1098
  %v1130 = vmul.f32 %v1064, %v1098
  %v1131 = vmul.f32 %v1065, %v1098
  %v1132 = vmul.f32 %v1066, %v1098
  %v1133 = vmul.f32 %v1067, %v1098
  %v1134 = vmul.f32 %v1068, %v1098
  %v1135 = vmul.f32 %v1069, %v1098
  %v1136 = vmul.f32 %v1070, %v1098
  %v1137 = vmul.f32 %v1071, %v1098
  %v1138 = vmul.f32 %v1072, %v1098
  %v1139 = vmul.f32 %v1073, %v1098
  %v1140 = vmul.f32 %v1074, %v1098
  %v1141 = vmul.f32 %v1075, %v1098
  %v1142 = vmul.f32 %v1076, %v1098
  %v1143 = vmul.f32 %v1077, %v1098
  %v1144 = vmul.f32 %v1078, %v1098
  %v1145 = vmul.f32 %v1079, %v1098
  %v1146 = vmul.f32 %v1080, %v1098
  %v1147 = vmul.f32 %v1081, %v1098
  %v1148 = vmul.f32 %v1082, %v1098
  %v1149 = vmul.f32 %v1083, %v1098
  %v1150 = vmul.f32 %v1084, %v1098
  %v1151 = vmul.f32 %v1085, %v1098
  %v1152 = vmul.f32 %v1086, %v1098
  %v1153 = vmul.f32 %v1087, %v1098
  %v1154 = vmul.f32 %v1088, %v1098
  %v1155 = vmul.f32 %v1089, %v1098
  %v1156 = vmul.f32 %v1090, %v1098
  %v1157 = vmul.f32 %v1091, %v1098
  %v1158 = vmul.f32 %v1092, %v1098
  %v1159 = vmul.f32 %v1093, %v1098
  %v1160 = vmul.f32 %v1094, %v1098
  %v1161 = vmul.f32 %v1095, %v1098
  %v1162 = vmul.f32 %v1096, %v1098
  %v1164 = vlaneseq
  %v1165 = vshrl.u32 %v1164, 7
  %v1166 = vsub.s32 0, %v1165
  %v1167 = vrot.slane %v695, %v1166
  %v1169 = vmul.f32 %v1099, %v1167
  %v1170 = vmul.f32 %v1100, %v1167
  %v1171 = vmul.f32 %v1101, %v1167
  %v1172 = vmul.f32 %v1102, %v1167
  %v1173 = vmul.f32 %v1103, %v1167
  %v1174 = vmul.f32 %v1104, %v1167
  %v1175 = vmul.f32 %v1105, %v1167
  %v1176 = vmul.f32 %v1106, %v1167
  %v1177 = vmul.f32 %v1107, %v1167
  %v1178 = vmul.f32 %v1108, %v1167
  %v1179 = vmul.f32 %v1109, %v1167
  %v1180 = vmul.f32 %v1110, %v1167
  %v1181 = vmul.f32 %v1111, %v1167
  %v1182 = vmul.f32 %v1112, %v1167
  %v1183 = vmul.f32 %v1113, %v1167
  %v1184 = vmul.f32 %v1114, %v1167
  %v1185 = vmul.f32 %v1115, %v1167
  %v1186 = vmul.f32 %v1116, %v1167
  %v1187 = vmul.f32 %v1117, %v1167
  %v1188 = vmul.f32 %v1118, %v1167
  %v1189 = vmul.f32 %v1119, %v1167
  %v1190 = vmul.f32 %v1120, %v1167
  %v1191 = vmul.f32 %v1121, %v1167
  %v1192 = vmul.f32 %v1122, %v1167
  %v1193 = vmul.f32 %v1123, %v1167
  %v1194 = vmul.f32 %v1124, %v1167
  %v1195 = vmul.f32 %v1125, %v1167
  %v1196 = vmul.f32 %v1126, %v1167
  %v1197 = vmul.f32 %v1127, %v1167
  %v1198 = vmul.f32 %v1128, %v1167
  %v1199 = vmul.f32 %v1129, %v1167
  %v1200 = vmul.f32 %v1130, %v1167
  %v1201 = vmul.f32 %v1131, %v1167
  %v1202 = vmul.f32 %v1132, %v1167
  %v1203 = vmul.f32 %v1133, %v1167
  %v1204 = vmul.f32 %v1134, %v1167
  %v1205 = vmul.f32 %v1135, %v1167
  %v1206 = vmul.f32 %v1136, %v1167
  %v1207 = vmul.f32 %v1137, %v1167
  %v1208 = vmul.f32 %v1138, %v1167
  %v1209 = vmul.f32 %v1139, %v1167
  %v1210 = vmul.f32 %v1140, %v1167
  %v1211 = vmul.f32 %v1141, %v1167
  %v1212 = vmul.f32 %v1142, %v1167
  %v1213 = vmul.f32 %v1143, %v1167
  %v1214 = vmul.f32 %v1144, %v1167
  %v1215 = vmul.f32 %v1145, %v1167
  %v1216 = vmul.f32 %v1146, %v1167
  %v1217 = vmul.f32 %v1147, %v1167
  %v1218 = vmul.f32 %v1148, %v1167
  %v1219 = vmul.f32 %v1149, %v1167
  %v1220 = vmul.f32 %v1150, %v1167
  %v1221 = vmul.f32 %v1151, %v1167
  %v1222 = vmul.f32 %v1152, %v1167
  %v1223 = vmul.f32 %v1153, %v1167
  %v1224 = vmul.f32 %v1154, %v1167
  %v1225 = vmul.f32 %v1155, %v1167
  %v1226 = vmul.f32 %v1156, %v1167
  %v1227 = vmul.f32 %v1157, %v1167
  %v1228 = vmul.f32 %v1158, %v1167
  %v1229 = vmul.f32 %v1159, %v1167
  %v1230 = vmul.f32 %v1160, %v1167
  %v1231 = vmul.f32 %v1161, %v1167
  %v1232 = vmul.f32 %v1162, %v1167
  %v1234 = vlaneseq
  %v1235 = vshrl.u32 %v1234, 7
  %v1236 = vsub.s32 0, %v1235
  %v1237 = vrot.slane %v696, %v1236
  %v1239 = vadd.f32 %v1169, %v1237
  %v1240 = vadd.f32 %v1170, %v1237
  %v1241 = vadd.f32 %v1171, %v1237
  %v1242 = vadd.f32 %v1172, %v1237
  %v1243 = vadd.f32 %v1173, %v1237
  %v1244 = vadd.f32 %v1174, %v1237
  %v1245 = vadd.f32 %v1175, %v1237
  %v1246 = vadd.f32 %v1176, %v1237
  %v1247 = vadd.f32 %v1177, %v1237
  %v1248 = vadd.f32 %v1178, %v1237
  %v1249 = vadd.f32 %v1179, %v1237
  %v1250 = vadd.f32 %v1180, %v1237
  %v1251 = vadd.f32 %v1181, %v1237
  %v1252 = vadd.f32 %v1182, %v1237
  %v1253 = vadd.f32 %v1183, %v1237
  %v1254 = vadd.f32 %v1184, %v1237
  %v1255 = vadd.f32 %v1185, %v1237
  %v1256 = vadd.f32 %v1186, %v1237
  %v1257 = vadd.f32 %v1187, %v1237
  %v1258 = vadd.f32 %v1188, %v1237
  %v1259 = vadd.f32 %v1189, %v1237
  %v1260 = vadd.f32 %v1190, %v1237
  %v1261 = vadd.f32 %v1191, %v1237
  %v1262 = vadd.f32 %v1192, %v1237
  %v1263 = vadd.f32 %v1193, %v1237
  %v1264 = vadd.f32 %v1194, %v1237
  %v1265 = vadd.f32 %v1195, %v1237
  %v1266 = vadd.f32 %v1196, %v1237
  %v1267 = vadd.f32 %v1197, %v1237
  %v1268 = vadd.f32 %v1198, %v1237
  %v1269 = vadd.f32 %v1199, %v1237
  %v1270 = vadd.f32 %v1200, %v1237
  %v1271 = vadd.f32 %v1201, %v1237
  %v1272 = vadd.f32 %v1202, %v1237
  %v1273 = vadd.f32 %v1203, %v1237
  %v1274 = vadd.f32 %v1204, %v1237
  %v1275 = vadd.f32 %v1205, %v1237
  %v1276 = vadd.f32 %v1206, %v1237
  %v1277 = vadd.f32 %v1207, %v1237
  %v1278 = vadd.f32 %v1208, %v1237
  %v1279 = vadd.f32 %v1209, %v1237
  %v1280 = vadd.f32 %v1210, %v1237
  %v1281 = vadd.f32 %v1211, %v1237
  %v1282 = vadd.f32 %v1212, %v1237
  %v1283 = vadd.f32 %v1213, %v1237
  %v1284 = vadd.f32 %v1214, %v1237
  %v1285 = vadd.f32 %v1215, %v1237
  %v1286 = vadd.f32 %v1216, %v1237
  %v1287 = vadd.f32 %v1217, %v1237
  %v1288 = vadd.f32 %v1218, %v1237
  %v1289 = vadd.f32 %v1219, %v1237
  %v1290 = vadd.f32 %v1220, %v1237
  %v1291 = vadd.f32 %v1221, %v1237
  %v1292 = vadd.f32 %v1222, %v1237
  %v1293 = vadd.f32 %v1223, %v1237
  %v1294 = vadd.f32 %v1224, %v1237
  %v1295 = vadd.f32 %v1225, %v1237
  %v1296 = vadd.f32 %v1226, %v1237
  %v1297 = vadd.f32 %v1227, %v1237
  %v1298 = vadd.f32 %v1228, %v1237
  %v1299 = vadd.f32 %v1229, %v1237
  %v1300 = vadd.f32 %v1230, %v1237
  %v1301 = vadd.f32 %v1231, %v1237
  %v1302 = vadd.f32 %v1232, %v1237
  %v1303 = vmax.f32 %v1239, 0.0
  %v1304 = vmax.f32 %v1240, 0.0
  %v1305 = vmax.f32 %v1241, 0.0
  %v1306 = vmax.f32 %v1242, 0.0
  %v1307 = vmax.f32 %v1243, 0.0
  %v1308 = vmax.f32 %v1244, 0.0
  %v1309 = vmax.f32 %v1245, 0.0
  %v1310 = vmax.f32 %v1246, 0.0
  %v1311 = vmax.f32 %v1247, 0.0
  %v1312 = vmax.f32 %v1248, 0.0
  %v1313 = vmax.f32 %v1249, 0.0
  %v1314 = vmax.f32 %v1250, 0.0
  %v1315 = vmax.f32 %v1251, 0.0
  %v1316 = vmax.f32 %v1252, 0.0
  %v1317 = vmax.f32 %v1253, 0.0
  %v1318 = vmax.f32 %v1254, 0.0
  %v1319 = vmax.f32 %v1255, 0.0
  %v1320 = vmax.f32 %v1256, 0.0
  %v1321 = vmax.f32 %v1257, 0.0
  %v1322 = vmax.f32 %v1258, 0.0
  %v1323 = vmax.f32 %v1259, 0.0
  %v1324 = vmax.f32 %v1260, 0.0
  %v1325 = vmax.f32 %v1261, 0.0
  %v1326 = vmax.f32 %v1262, 0.0
  %v1327 = vmax.f32 %v1263, 0.0
  %v1328 = vmax.f32 %v1264, 0.0
  %v1329 = vmax.f32 %v1265, 0.0
  %v1330 = vmax.f32 %v1266, 0.0
  %v1331 = vmax.f32 %v1267, 0.0
  %v1332 = vmax.f32 %v1268, 0.0
  %v1333 = vmax.f32 %v1269, 0.0
  %v1334 = vmax.f32 %v1270, 0.0
  %v1335 = vmax.f32 %v1271, 0.0
  %v1336 = vmax.f32 %v1272, 0.0
  %v1337 = vmax.f32 %v1273, 0.0
  %v1338 = vmax.f32 %v1274, 0.0
  %v1339 = vmax.f32 %v1275, 0.0
  %v1340 = vmax.f32 %v1276, 0.0
  %v1341 = vmax.f32 %v1277, 0.0
  %v1342 = vmax.f32 %v1278, 0.0
  %v1343 = vmax.f32 %v1279, 0.0
  %v1344 = vmax.f32 %v1280, 0.0
  %v1345 = vmax.f32 %v1281, 0.0
  %v1346 = vmax.f32 %v1282, 0.0
  %v1347 = vmax.f32 %v1283, 0.0
  %v1348 = vmax.f32 %v1284, 0.0
  %v1349 = vmax.f32 %v1285, 0.0
  %v1350 = vmax.f32 %v1286, 0.0
  %v1351 = vmax.f32 %v1287, 0.0
  %v1352 = vmax.f32 %v1288, 0.0
  %v1353 = vmax.f32 %v1289, 0.0
  %v1354 = vmax.f32 %v1290, 0.0
  %v1355 = vmax.f32 %v1291, 0.0
  %v1356 = vmax.f32 %v1292, 0.0
  %v1357 = vmax.f32 %v1293, 0.0
  %v1358 = vmax.f32 %v1294, 0.0
  %v1359 = vmax.f32 %v1295, 0.0
  %v1360 = vmax.f32 %v1296, 0.0
  %v1361 = vmax.f32 %v1297, 0.0
  %v1362 = vmax.f32 %v1298, 0.0
  %v1363 = vmax.f32 %v1299, 0.0
  %v1364 = vmax.f32 %v1300, 0.0
  %v1365 = vmax.f32 %v1301, 0.0
  %v1366 = vmax.f32 %v1302, 0.0
  %1367 = vst.msk [vmem:[#allocation2] sm:$0xff] %vm697, 0.0
  %1368 = vst.msk [vmem:[#allocation2 + $0x8] sm:$0xff] %vm697, 0.0
  %vm1369 = vcmask 25600
  %1370 = vst.msk [vmem:[#allocation2 + $0x10] sm:$0x3] %vm1369, 0.0
  %1371 = vst.msk [vmem:[#allocation2 + $0x18] sm:$0xff] %vm697, 0.0
  %1372 = vst.msk [vmem:[#allocation2 + $0x20] sm:$0xff] %vm697, 0.0
  %1373 = vst.msk [vmem:[#allocation2 + $0x28] sm:$0x3] %vm1369, 0.0
  %1374 = vst.msk [vmem:[#allocation2 + $0x30] sm:$0xff] %vm697, 0.0
  %1375 = vst.msk [vmem:[#allocation2 + $0x38] sm:$0xff] %vm697, 0.0
  %1376 = vst.msk [vmem:[#allocation2 + $0x40] sm:$0x3] %vm1369, 0.0
  %1377 = vst.msk [vmem:[#allocation2 + $0x48] sm:$0xff] %vm697, 0.0
  %1378 = vst.msk [vmem:[#allocation2 + $0x50] sm:$0xff] %vm697, 0.0
  %1379 = vst.msk [vmem:[#allocation2 + $0x58] sm:$0x3] %vm1369, 0.0
  %1380 = vst.msk [vmem:[#allocation2 + $0x60] sm:$0xff] %vm697, 0.0
  %1381 = vst.msk [vmem:[#allocation2 + $0x68] sm:$0xff] %vm697, 0.0
  %1382 = vst.msk [vmem:[#allocation2 + $0x70] sm:$0x3] %vm1369, 0.0
  %1383 = vst.msk [vmem:[#allocation2 + $0x78] sm:$0xff] %vm697, 0.0
  %1384 = vst.msk [vmem:[#allocation2 + $0x80] sm:$0xff] %vm697, 0.0
  %1385 = vst.msk [vmem:[#allocation2 + $0x88] sm:$0x3] %vm1369, 0.0
  %1386 = vst.msk [vmem:[#allocation2 + $0x90] sm:$0xff] %vm697, 0.0
  %1387 = vst.msk [vmem:[#allocation2 + $0x98] sm:$0xff] %vm697, 0.0
  %1388 = vst.msk [vmem:[#allocation2 + $0xa0] sm:$0x3] %vm1369, 0.0
  %1389 = vst.msk [vmem:[#allocation2 + $0xa8] sm:$0xff] %vm697, 0.0
  %1390 = vst.msk [vmem:[#allocation2 + $0xb0] sm:$0xff] %vm697, 0.0
  %1391 = vst.msk [vmem:[#allocation2 + $0xb8] sm:$0x3] %vm1369, 0.0
  %1392 = vst.msk [vmem:[#allocation2 + $0xc0] sm:$0xff] %vm697, 0.0
  %1393 = vst.msk [vmem:[#allocation2 + $0xc8] sm:$0xff] %vm697, 0.0
  %1394 = vst.msk [vmem:[#allocation2 + $0xd0] sm:$0x3] %vm1369, 0.0
  %1395 = vst.msk [vmem:[#allocation2 + $0xd8] sm:$0xff] %vm697, 0.0
  %1396 = vst.msk [vmem:[#allocation2 + $0xe0] sm:$0xff] %vm697, 0.0
  %1397 = vst.msk [vmem:[#allocation2 + $0xe8] sm:$0x3] %vm1369, 0.0
  %1398 = vst.msk [vmem:[#allocation2 + $0xf0] sm:$0xff] %vm697, 0.0
  %1399 = vst.msk [vmem:[#allocation2 + $0xf8] sm:$0xff] %vm697, 0.0
  %1400 = vst.msk [vmem:[#allocation2 + $0x100] sm:$0x3] %vm1369, 0.0
  %1401 = vst.msk [vmem:[#allocation2 + $0x108] sm:$0xff] %vm697, 0.0
  %1402 = vst.msk [vmem:[#allocation2 + $0x110] sm:$0xff] %vm697, 0.0
  %1403 = vst.msk [vmem:[#allocation2 + $0x118] sm:$0x3] %vm1369, 0.0
  %1404 = vst.msk [vmem:[#allocation2 + $0x120] sm:$0xff] %vm697, 0.0
  %1405 = vst.msk [vmem:[#allocation2 + $0x128] sm:$0xff] %vm697, 0.0
  %1406 = vst.msk [vmem:[#allocation2 + $0x130] sm:$0x3] %vm1369, 0.0
  %1407 = vst.msk [vmem:[#allocation2 + $0x138] sm:$0xff] %vm697, 0.0
  %1408 = vst.msk [vmem:[#allocation2 + $0x140] sm:$0xff] %vm697, 0.0
  %1409 = vst.msk [vmem:[#allocation2 + $0x148] sm:$0x3] %vm1369, 0.0
  %1410 = vst.msk [vmem:[#allocation2 + $0x150] sm:$0xff] %vm697, 0.0
  %1411 = vst.msk [vmem:[#allocation2 + $0x158] sm:$0xff] %vm697, 0.0
  %1412 = vst.msk [vmem:[#allocation2 + $0x160] sm:$0x3] %vm1369, 0.0
  %1413 = vst.msk [vmem:[#allocation2 + $0x168] sm:$0xff] %vm697, 0.0
  %1414 = vst.msk [vmem:[#allocation2 + $0x170] sm:$0xff] %vm697, 0.0
  %1415 = vst.msk [vmem:[#allocation2 + $0x178] sm:$0x3] %vm1369, 0.0
  %1416 = vst.msk [vmem:[#allocation2 + $0x180] sm:$0xff] %vm697, 0.0
  %1417 = vst.msk [vmem:[#allocation2 + $0x188] sm:$0xff] %vm697, 0.0
  %1418 = vst.msk [vmem:[#allocation2 + $0x190] sm:$0x3] %vm1369, 0.0
  %1419 = vst.msk [vmem:[#allocation2 + $0x198] sm:$0xff] %vm697, 0.0
  %1420 = vst.msk [vmem:[#allocation2 + $0x1a0] sm:$0xff] %vm697, 0.0
  %1421 = vst.msk [vmem:[#allocation2 + $0x1a8] sm:$0x3] %vm1369, 0.0
  %1422 = vst.msk [vmem:[#allocation2 + $0x1b0] sm:$0xff] %vm697, 0.0
  %1423 = vst.msk [vmem:[#allocation2 + $0x1b8] sm:$0xff] %vm697, 0.0
  %1424 = vst.msk [vmem:[#allocation2 + $0x1c0] sm:$0x3] %vm1369, 0.0
  %1425 = vst.msk [vmem:[#allocation2 + $0x1c8] sm:$0xff] %vm697, 0.0
  %1426 = vst.msk [vmem:[#allocation2 + $0x1d0] sm:$0xff] %vm697, 0.0
  %1427 = vst.msk [vmem:[#allocation2 + $0x1d8] sm:$0x3] %vm1369, 0.0
  %1428 = vst.msk [vmem:[#allocation2 + $0x1e0] sm:$0xff] %vm697, 0.0
  %1429 = vst.msk [vmem:[#allocation2 + $0x1e8] sm:$0xff] %vm697, 0.0
  %1430 = vst.msk [vmem:[#allocation2 + $0x1f0] sm:$0x3] %vm1369, 0.0
  %1431 = vst.msk [vmem:[#allocation2 + $0x1f8] sm:$0xff] %vm697, 0.0
  %1432 = vst.msk [vmem:[#allocation2 + $0x200] sm:$0xff] %vm697, 0.0
  %1433 = vst.msk [vmem:[#allocation2 + $0x208] sm:$0x3] %vm1369, 0.0
  %1434 = vst.msk [vmem:[#allocation2 + $0x210] sm:$0xff] %vm697, 0.0
  %1435 = vst.msk [vmem:[#allocation2 + $0x218] sm:$0xff] %vm697, 0.0
  %1436 = vst.msk [vmem:[#allocation2 + $0x220] sm:$0x3] %vm1369, 0.0
  %1437 = vst.msk [vmem:[#allocation2 + $0x228] sm:$0xff] %vm697, 0.0
  %1438 = vst.msk [vmem:[#allocation2 + $0x230] sm:$0xff] %vm697, 0.0
  %1439 = vst.msk [vmem:[#allocation2 + $0x238] sm:$0x3] %vm1369, 0.0
  %1440 = vst.msk [vmem:[#allocation2 + $0x240] sm:$0xff] %vm697, 0.0
  %1441 = vst.msk [vmem:[#allocation2 + $0x248] sm:$0xff] %vm697, 0.0
  %1442 = vst.msk [vmem:[#allocation2 + $0x250] sm:$0x3] %vm1369, 0.0
  %1443 = vst.msk [vmem:[#allocation2 + $0x258] sm:$0xff] %vm697, 0.0
  %1444 = vst.msk [vmem:[#allocation2 + $0x260] sm:$0xff] %vm697, 0.0
  %1445 = vst.msk [vmem:[#allocation2 + $0x268] sm:$0x3] %vm1369, 0.0
  %1446 = vst.msk [vmem:[#allocation2 + $0x270] sm:$0xff] %vm697, 0.0
  %1447 = vst.msk [vmem:[#allocation2 + $0x278] sm:$0xff] %vm697, 0.0
  %1448 = vst.msk [vmem:[#allocation2 + $0x280] sm:$0x3] %vm1369, 0.0
  %1449 = vst.msk [vmem:[#allocation2 + $0x288] sm:$0xff] %vm697, 0.0
  %1450 = vst.msk [vmem:[#allocation2 + $0x290] sm:$0xff] %vm697, 0.0
  %1451 = vst.msk [vmem:[#allocation2 + $0x298] sm:$0x3] %vm1369, 0.0
  %1452 = vst.msk [vmem:[#allocation2 + $0x2a0] sm:$0xff] %vm697, 0.0
  %1453 = vst.msk [vmem:[#allocation2 + $0x2a8] sm:$0xff] %vm697, 0.0
  %1454 = vst.msk [vmem:[#allocation2 + $0x2b0] sm:$0x3] %vm1369, 0.0
  %1455 = vst.msk [vmem:[#allocation2 + $0x2b8] sm:$0xff] %vm697, 0.0
  %1456 = vst.msk [vmem:[#allocation2 + $0x2c0] sm:$0xff] %vm697, 0.0
  %1457 = vst.msk [vmem:[#allocation2 + $0x2c8] sm:$0x3] %vm1369, 0.0
  %1458 = vst.msk [vmem:[#allocation2 + $0x2d0] sm:$0xff] %vm697, 0.0
  %1459 = vst.msk [vmem:[#allocation2 + $0x2d8] sm:$0xff] %vm697, 0.0
  %1460 = vst.msk [vmem:[#allocation2 + $0x2e0] sm:$0x3] %vm1369, 0.0
  %1461 = vst.msk [vmem:[#allocation2 + $0x2e8] sm:$0xff] %vm697, 0.0
  %1462 = vst.msk [vmem:[#allocation2 + $0x2f0] sm:$0xff] %vm697, 0.0
  %1463 = vst.msk [vmem:[#allocation2 + $0x2f8] sm:$0x3] %vm1369, 0.0
  %1464 = vst.msk [vmem:[#allocation2 + $0x300] sm:$0xff] %vm697, 0.0
  %1465 = vst.msk [vmem:[#allocation2 + $0x308] sm:$0xff] %vm697, 0.0
  %1466 = vst.msk [vmem:[#allocation2 + $0x310] sm:$0x3] %vm1369, 0.0
  %1467 = vst.msk [vmem:[#allocation2 + $0x318] sm:$0xff] %vm697, 0.0
  %1468 = vst.msk [vmem:[#allocation2 + $0x320] sm:$0xff] %vm697, 0.0
  %1469 = vst.msk [vmem:[#allocation2 + $0x328] sm:$0x3] %vm1369, 0.0
  %1470 = vst.msk [vmem:[#allocation2 + $0x330] sm:$0xff] %vm697, 0.0
  %1471 = vst.msk [vmem:[#allocation2 + $0x338] sm:$0xff] %vm697, 0.0
  %1472 = vst.msk [vmem:[#allocation2 + $0x340] sm:$0x3] %vm1369, 0.0
  %1473 = vst.msk [vmem:[#allocation2 + $0x348] sm:$0xff] %vm697, 0.0
  %1474 = vst.msk [vmem:[#allocation2 + $0x350] sm:$0xff] %vm697, 0.0
  %1475 = vst.msk [vmem:[#allocation2 + $0x358] sm:$0x3] %vm1369, 0.0
  %s1476 = scalar_lea.vmem [#allocation2], 24
  %1477 = vst.msk [vmem:[%s1476 + $0x1] sm:$0xff] %vm697, %v1303
  %1478 = vst.msk [vmem:[%s1476 + $0x9] sm:$0xff] %vm697, %v1304
  %1479 = vst.msk [vmem:[%s1476 + $0x19] sm:$0xff] %vm697, %v1305
  %1480 = vst.msk [vmem:[%s1476 + $0x21] sm:$0xff] %vm697, %v1306
  %1481 = vst.msk [vmem:[%s1476 + $0x31] sm:$0xff] %vm697, %v1307
  %1482 = vst.msk [vmem:[%s1476 + $0x39] sm:$0xff] %vm697, %v1308
  %1483 = vst.msk [vmem:[%s1476 + $0x49] sm:$0xff] %vm697, %v1309
  %1484 = vst.msk [vmem:[%s1476 + $0x51] sm:$0xff] %vm697, %v1310
  %1485 = vst.msk [vmem:[%s1476 + $0x61] sm:$0xff] %vm697, %v1311
  %1486 = vst.msk [vmem:[%s1476 + $0x69] sm:$0xff] %vm697, %v1312
  %1487 = vst.msk [vmem:[%s1476 + $0x79] sm:$0xff] %vm697, %v1313
  %1488 = vst.msk [vmem:[%s1476 + $0x81] sm:$0xff] %vm697, %v1314
  %1489 = vst.msk [vmem:[%s1476 + $0x91] sm:$0xff] %vm697, %v1315
  %1490 = vst.msk [vmem:[%s1476 + $0x99] sm:$0xff] %vm697, %v1316
  %1491 = vst.msk [vmem:[%s1476 + $0xa9] sm:$0xff] %vm697, %v1317
  %1492 = vst.msk [vmem:[%s1476 + $0xb1] sm:$0xff] %vm697, %v1318
  %1493 = vst.msk [vmem:[%s1476 + $0xc1] sm:$0xff] %vm697, %v1319
  %1494 = vst.msk [vmem:[%s1476 + $0xc9] sm:$0xff] %vm697, %v1320
  %1495 = vst.msk [vmem:[%s1476 + $0xd9] sm:$0xff] %vm697, %v1321
  %1496 = vst.msk [vmem:[%s1476 + $0xe1] sm:$0xff] %vm697, %v1322
  %1497 = vst.msk [vmem:[%s1476 + $0xf1] sm:$0xff] %vm697, %v1323
  %1498 = vst.msk [vmem:[%s1476 + $0xf9] sm:$0xff] %vm697, %v1324
  %1499 = vst.msk [vmem:[%s1476 + $0x109] sm:$0xff] %vm697, %v1325
  %1500 = vst.msk [vmem:[%s1476 + $0x111] sm:$0xff] %vm697, %v1326
  %1501 = vst.msk [vmem:[%s1476 + $0x121] sm:$0xff] %vm697, %v1327
  %1502 = vst.msk [vmem:[%s1476 + $0x129] sm:$0xff] %vm697, %v1328
  %1503 = vst.msk [vmem:[%s1476 + $0x139] sm:$0xff] %vm697, %v1329
  %1504 = vst.msk [vmem:[%s1476 + $0x141] sm:$0xff] %vm697, %v1330
  %1505 = vst.msk [vmem:[%s1476 + $0x151] sm:$0xff] %vm697, %v1331
  %1506 = vst.msk [vmem:[%s1476 + $0x159] sm:$0xff] %vm697, %v1332
  %1507 = vst.msk [vmem:[%s1476 + $0x169] sm:$0xff] %vm697, %v1333
  %1508 = vst.msk [vmem:[%s1476 + $0x171] sm:$0xff] %vm697, %v1334
  %1509 = vst.msk [vmem:[%s1476 + $0x1b1] sm:$0xff] %vm697, %v1335
  %1510 = vst.msk [vmem:[%s1476 + $0x1b9] sm:$0xff] %vm697, %v1336
  %1511 = vst.msk [vmem:[%s1476 + $0x1c9] sm:$0xff] %vm697, %v1337
  %1512 = vst.msk [vmem:[%s1476 + $0x1d1] sm:$0xff] %vm697, %v1338
  %1513 = vst.msk [vmem:[%s1476 + $0x1e1] sm:$0xff] %vm697, %v1339
  %1514 = vst.msk [vmem:[%s1476 + $0x1e9] sm:$0xff] %vm697, %v1340
  %1515 = vst.msk [vmem:[%s1476 + $0x1f9] sm:$0xff] %vm697, %v1341
  %1516 = vst.msk [vmem:[%s1476 + $0x201] sm:$0xff] %vm697, %v1342
  %1517 = vst.msk [vmem:[%s1476 + $0x211] sm:$0xff] %vm697, %v1343
  %1518 = vst.msk [vmem:[%s1476 + $0x219] sm:$0xff] %vm697, %v1344
  %1519 = vst.msk [vmem:[%s1476 + $0x229] sm:$0xff] %vm697, %v1345
  %1520 = vst.msk [vmem:[%s1476 + $0x231] sm:$0xff] %vm697, %v1346
  %1521 = vst.msk [vmem:[%s1476 + $0x241] sm:$0xff] %vm697, %v1347
  %1522 = vst.msk [vmem:[%s1476 + $0x249] sm:$0xff] %vm697, %v1348
  %1523 = vst.msk [vmem:[%s1476 + $0x259] sm:$0xff] %vm697, %v1349
  %1524 = vst.msk [vmem:[%s1476 + $0x261] sm:$0xff] %vm697, %v1350
  %1525 = vst.msk [vmem:[%s1476 + $0x271] sm:$0xff] %vm697, %v1351
  %1526 = vst.msk [vmem:[%s1476 + $0x279] sm:$0xff] %vm697, %v1352
  %1527 = vst.msk [vmem:[%s1476 + $0x289] sm:$0xff] %vm697, %v1353
  %1528 = vst.msk [vmem:[%s1476 + $0x291] sm:$0xff] %vm697, %v1354
  %1529 = vst.msk [vmem:[%s1476 + $0x2a1] sm:$0xff] %vm697, %v1355
  %1530 = vst.msk [vmem:[%s1476 + $0x2a9] sm:$0xff] %vm697, %v1356
  %1531 = vst.msk [vmem:[%s1476 + $0x2b9] sm:$0xff] %vm697, %v1357
  %1532 = vst.msk [vmem:[%s1476 + $0x2c1] sm:$0xff] %vm697, %v1358
  %1533 = vst.msk [vmem:[%s1476 + $0x2d1] sm:$0xff] %vm697, %v1359
  %1534 = vst.msk [vmem:[%s1476 + $0x2d9] sm:$0xff] %vm697, %v1360
  %1535 = vst.msk [vmem:[%s1476 + $0x2e9] sm:$0xff] %vm697, %v1361
  %1536 = vst.msk [vmem:[%s1476 + $0x2f1] sm:$0xff] %vm697, %v1362
  %1537 = vst.msk [vmem:[%s1476 + $0x301] sm:$0xff] %vm697, %v1363
  %1538 = vst.msk [vmem:[%s1476 + $0x309] sm:$0xff] %vm697, %v1364
  %1539 = vst.msk [vmem:[%s1476 + $0x319] sm:$0xff] %vm697, %v1365
  %1540 = vst.msk [vmem:[%s1476 + $0x321] sm:$0xff] %vm697, %v1366
  %v1541 = vld [vmem:[#allocation2] sm:$0xff]
  %v1542 = vld [vmem:[#allocation2 + $0x8] sm:$0xff]
  %v1543 = vld [vmem:[#allocation2 + $0x18] sm:$0xff]
  %v1544 = vld [vmem:[#allocation2 + $0x20] sm:$0xff]
  %v1545 = vld [vmem:[#allocation2 + $0x30] sm:$0xff]
  %v1546 = vld [vmem:[#allocation2 + $0x38] sm:$0xff]
  %v1547 = vld [vmem:[#allocation2 + $0x48] sm:$0xff]
  %v1548 = vld [vmem:[#allocation2 + $0x50] sm:$0xff]
  %v1549 = vld [vmem:[#allocation2 + $0x60] sm:$0xff]
  %v1550 = vld [vmem:[#allocation2 + $0x68] sm:$0xff]
  %v1551 = vld [vmem:[#allocation2 + $0x78] sm:$0xff]
  %v1552 = vld [vmem:[#allocation2 + $0x80] sm:$0xff]
  %v1553 = vld [vmem:[#allocation2 + $0x90] sm:$0xff]
  %v1554 = vld [vmem:[#allocation2 + $0x98] sm:$0xff]
  %v1555 = vld [vmem:[#allocation2 + $0xa8] sm:$0xff]
  %v1556 = vld [vmem:[#allocation2 + $0xb0] sm:$0xff]
  %v1557 = vld [vmem:[#allocation2 + $0xc0] sm:$0xff]
  %v1558 = vld [vmem:[#allocation2 + $0xc8] sm:$0xff]
  %v1559 = vld [vmem:[#allocation2 + $0xd8] sm:$0xff]
  %v1560 = vld [vmem:[#allocation2 + $0xe0] sm:$0xff]
  %v1561 = vld [vmem:[#allocation2 + $0xf0] sm:$0xff]
  %v1562 = vld [vmem:[#allocation2 + $0xf8] sm:$0xff]
  %v1563 = vld [vmem:[#allocation2 + $0x108] sm:$0xff]
  %v1564 = vld [vmem:[#allocation2 + $0x110] sm:$0xff]
  %v1565 = vld [vmem:[#allocation2 + $0x120] sm:$0xff]
  %v1566 = vld [vmem:[#allocation2 + $0x128] sm:$0xff]
  %v1567 = vld [vmem:[#allocation2 + $0x138] sm:$0xff]
  %v1568 = vld [vmem:[#allocation2 + $0x140] sm:$0xff]
  %v1569 = vld [vmem:[#allocation2 + $0x150] sm:$0xff]
  %v1570 = vld [vmem:[#allocation2 + $0x158] sm:$0xff]
  %v1571 = vld [vmem:[#allocation2 + $0x168] sm:$0xff]
  %v1572 = vld [vmem:[#allocation2 + $0x170] sm:$0xff]
  %v1573 = vld [vmem:[#allocation2 + $0x1b0] sm:$0xff]
  %v1574 = vld [vmem:[#allocation2 + $0x1b8] sm:$0xff]
  %v1575 = vld [vmem:[#allocation2 + $0x1c8] sm:$0xff]
  %v1576 = vld [vmem:[#allocation2 + $0x1d0] sm:$0xff]
  %v1577 = vld [vmem:[#allocation2 + $0x1e0] sm:$0xff]
  %v1578 = vld [vmem:[#allocation2 + $0x1e8] sm:$0xff]
  %v1579 = vld [vmem:[#allocation2 + $0x1f8] sm:$0xff]
  %v1580 = vld [vmem:[#allocation2 + $0x200] sm:$0xff]
  %v1581 = vld [vmem:[#allocation2 + $0x210] sm:$0xff]
  %v1582 = vld [vmem:[#allocation2 + $0x218] sm:$0xff]
  %v1583 = vld [vmem:[#allocation2 + $0x228] sm:$0xff]
  %v1584 = vld [vmem:[#allocation2 + $0x230] sm:$0xff]
  %v1585 = vld [vmem:[#allocation2 + $0x240] sm:$0xff]
  %v1586 = vld [vmem:[#allocation2 + $0x248] sm:$0xff]
  %v1587 = vld [vmem:[#allocation2 + $0x258] sm:$0xff]
  %v1588 = vld [vmem:[#allocation2 + $0x260] sm:$0xff]
  %v1589 = vld [vmem:[#allocation2 + $0x270] sm:$0xff]
  %v1590 = vld [vmem:[#allocation2 + $0x278] sm:$0xff]
  %v1591 = vld [vmem:[#allocation2 + $0x288] sm:$0xff]
  %v1592 = vld [vmem:[#allocation2 + $0x290] sm:$0xff]
  %v1593 = vld [vmem:[#allocation2 + $0x2a0] sm:$0xff]
  %v1594 = vld [vmem:[#allocation2 + $0x2a8] sm:$0xff]
  %v1595 = vld [vmem:[#allocation2 + $0x2b8] sm:$0xff]
  %v1596 = vld [vmem:[#allocation2 + $0x2c0] sm:$0xff]
  %v1597 = vld [vmem:[#allocation2 + $0x2d0] sm:$0xff]
  %v1598 = vld [vmem:[#allocation2 + $0x2d8] sm:$0xff]
  %v1599 = vld [vmem:[#allocation2 + $0x2e8] sm:$0xff]
  %v1600 = vld [vmem:[#allocation2 + $0x2f0] sm:$0xff]
  %v1601 = vld [vmem:[#allocation2 + $0x300] sm:$0xff]
  %v1602 = vld [vmem:[#allocation2 + $0x308] sm:$0xff]
  %v1603 = vld [vmem:[#allocation2 + $0x318] sm:$0xff]
  %v1604 = vld [vmem:[#allocation2 + $0x320] sm:$0xff]
  %v1605 = vld [vmem:[%s5] sm:$0xf]
  %v1606 = vld [vmem:[#allocation2 + $0x1] sm:$0xff]
  %v1607 = vld [vmem:[#allocation2 + $0x9] sm:$0xff]
  %v1608 = vld [vmem:[#allocation2 + $0x19] sm:$0xff]
  %v1609 = vld [vmem:[#allocation2 + $0x21] sm:$0xff]
  %v1610 = vld [vmem:[#allocation2 + $0x31] sm:$0xff]
  %v1611 = vld [vmem:[#allocation2 + $0x39] sm:$0xff]
  %v1612 = vld [vmem:[#allocation2 + $0x49] sm:$0xff]
  %v1613 = vld [vmem:[#allocation2 + $0x51] sm:$0xff]
  %v1614 = vld [vmem:[#allocation2 + $0x61] sm:$0xff]
  %v1615 = vld [vmem:[#allocation2 + $0x69] sm:$0xff]
  %v1616 = vld [vmem:[#allocation2 + $0x79] sm:$0xff]
  %v1617 = vld [vmem:[#allocation2 + $0x81] sm:$0xff]
  %v1618 = vld [vmem:[#allocation2 + $0x91] sm:$0xff]
  %v1619 = vld [vmem:[#allocation2 + $0x99] sm:$0xff]
  %v1620 = vld [vmem:[#allocation2 + $0xa9] sm:$0xff]
  %v1621 = vld [vmem:[#allocation2 + $0xb1] sm:$0xff]
  %v1622 = vld [vmem:[#allocation2 + $0xc1] sm:$0xff]
  %v1623 = vld [vmem:[#allocation2 + $0xc9] sm:$0xff]
  %v1624 = vld [vmem:[#allocation2 + $0xd9] sm:$0xff]
  %v1625 = vld [vmem:[#allocation2 + $0xe1] sm:$0xff]
  %v1626 = vld [vmem:[#allocation2 + $0xf1] sm:$0xff]
  %v1627 = vld [vmem:[#allocation2 + $0xf9] sm:$0xff]
  %v1628 = vld [vmem:[#allocation2 + $0x109] sm:$0xff]
  %v1629 = vld [vmem:[#allocation2 + $0x111] sm:$0xff]
  %v1630 = vld [vmem:[#allocation2 + $0x121] sm:$0xff]
  %v1631 = vld [vmem:[#allocation2 + $0x129] sm:$0xff]
  %v1632 = vld [vmem:[#allocation2 + $0x139] sm:$0xff]
  %v1633 = vld [vmem:[#allocation2 + $0x141] sm:$0xff]
  %v1634 = vld [vmem:[#allocation2 + $0x151] sm:$0xff]
  %v1635 = vld [vmem:[#allocation2 + $0x159] sm:$0xff]
  %v1636 = vld [vmem:[#allocation2 + $0x169] sm:$0xff]
  %v1637 = vld [vmem:[#allocation2 + $0x171] sm:$0xff]
  %v1638 = vld [vmem:[#allocation2 + $0x1b1] sm:$0xff]
  %v1639 = vld [vmem:[#allocation2 + $0x1b9] sm:$0xff]
  %v1640 = vld [vmem:[#allocation2 + $0x1c9] sm:$0xff]
  %v1641 = vld [vmem:[#allocation2 + $0x1d1] sm:$0xff]
  %v1642 = vld [vmem:[#allocation2 + $0x1e1] sm:$0xff]
  %v1643 = vld [vmem:[#allocation2 + $0x1e9] sm:$0xff]
  %v1644 = vld [vmem:[#allocation2 + $0x1f9] sm:$0xff]
  %v1645 = vld [vmem:[#allocation2 + $0x201] sm:$0xff]
  %v1646 = vld [vmem:[#allocation2 + $0x211] sm:$0xff]
  %v1647 = vld [vmem:[#allocation2 + $0x219] sm:$0xff]
  %v1648 = vld [vmem:[#allocation2 + $0x229] sm:$0xff]
  %v1649 = vld [vmem:[#allocation2 + $0x231] sm:$0xff]
  %v1650 = vld [vmem:[#allocation2 + $0x241] sm:$0xff]
  %v1651 = vld [vmem:[#allocation2 + $0x249] sm:$0xff]
  %v1652 = vld [vmem:[#allocation2 + $0x259] sm:$0xff]
  %v1653 = vld [vmem:[#allocation2 + $0x261] sm:$0xff]
  %v1654 = vld [vmem:[#allocation2 + $0x271] sm:$0xff]
  %v1655 = vld [vmem:[#allocation2 + $0x279] sm:$0xff]
  %v1656 = vld [vmem:[#allocation2 + $0x289] sm:$0xff]
  %v1657 = vld [vmem:[#allocation2 + $0x291] sm:$0xff]
  %v1658 = vld [vmem:[#allocation2 + $0x2a1] sm:$0xff]
  %v1659 = vld [vmem:[#allocation2 + $0x2a9] sm:$0xff]
  %v1660 = vld [vmem:[#allocation2 + $0x2b9] sm:$0xff]
  %v1661 = vld [vmem:[#allocation2 + $0x2c1] sm:$0xff]
  %v1662 = vld [vmem:[#allocation2 + $0x2d1] sm:$0xff]
  %v1663 = vld [vmem:[#allocation2 + $0x2d9] sm:$0xff]
  %v1664 = vld [vmem:[#allocation2 + $0x2e9] sm:$0xff]
  %v1665 = vld [vmem:[#allocation2 + $0x2f1] sm:$0xff]
  %v1666 = vld [vmem:[#allocation2 + $0x301] sm:$0xff]
  %v1667 = vld [vmem:[#allocation2 + $0x309] sm:$0xff]
  %v1668 = vld [vmem:[#allocation2 + $0x319] sm:$0xff]
  %v1669 = vld [vmem:[#allocation2 + $0x321] sm:$0xff]
  %s1670 = scalar_lea.vmem %s5, 4
  %v1671 = vld [vmem:[%s1670] sm:$0xf]
  %v1673 = vsel %vm697, %v1606, 0
  %v1676 = vsel %vm697, %v1607, 0
  %v1679 = vsel %vm697, %v1608, 0
  %v1682 = vsel %vm697, %v1609, 0
  %v1685 = vsel %vm697, %v1610, 0
  %v1688 = vsel %vm697, %v1611, 0
  %v1691 = vsel %vm697, %v1612, 0
  %v1694 = vsel %vm697, %v1613, 0
  %v1697 = vsel %vm697, %v1614, 0
  %v1700 = vsel %vm697, %v1615, 0
  %v1703 = vsel %vm697, %v1616, 0
  %v1706 = vsel %vm697, %v1617, 0
  %v1709 = vsel %vm697, %v1618, 0
  %v1712 = vsel %vm697, %v1619, 0
  %v1715 = vsel %vm697, %v1620, 0
  %v1718 = vsel %vm697, %v1621, 0
  %v1721 = vsel %vm697, %v1622, 0
  %v1724 = vsel %vm697, %v1623, 0
  %v1727 = vsel %vm697, %v1624, 0
  %v1730 = vsel %vm697, %v1625, 0
  %v1733 = vsel %vm697, %v1626, 0
  %v1736 = vsel %vm697, %v1627, 0
  %v1739 = vsel %vm697, %v1628, 0
  %v1742 = vsel %vm697, %v1629, 0
  %v1745 = vsel %vm697, %v1630, 0
  %v1748 = vsel %vm697, %v1631, 0
  %v1751 = vsel %vm697, %v1632, 0
  %v1754 = vsel %vm697, %v1633, 0
  %v1757 = vsel %vm697, %v1634, 0
  %v1760 = vsel %vm697, %v1635, 0
  %v1763 = vsel %vm697, %v1636, 0
  %v1766 = vsel %vm697, %v1637, 0
  %v1769 = vsel %vm697, %v1638, 0
  %v1772 = vsel %vm697, %v1639, 0
  %v1775 = vsel %vm697, %v1640, 0
  %v1778 = vsel %vm697, %v1641, 0
  %v1781 = vsel %vm697, %v1642, 0
  %v1784 = vsel %vm697, %v1643, 0
  %v1787 = vsel %vm697, %v1644, 0
  %v1790 = vsel %vm697, %v1645, 0
  %v1793 = vsel %vm697, %v1646, 0
  %v1796 = vsel %vm697, %v1647, 0
  %v1799 = vsel %vm697, %v1648, 0
  %v1802 = vsel %vm697, %v1649, 0
  %v1805 = vsel %vm697, %v1650, 0
  %v1808 = vsel %vm697, %v1651, 0
  %v1811 = vsel %vm697, %v1652, 0
  %v1814 = vsel %vm697, %v1653, 0
  %v1817 = vsel %vm697, %v1654, 0
  %v1820 = vsel %vm697, %v1655, 0
  %v1823 = vsel %vm697, %v1656, 0
  %v1826 = vsel %vm697, %v1657, 0
  %v1829 = vsel %vm697, %v1658, 0
  %v1832 = vsel %vm697, %v1659, 0
  %v1835 = vsel %vm697, %v1660, 0
  %v1838 = vsel %vm697, %v1661, 0
  %v1841 = vsel %vm697, %v1662, 0
  %v1844 = vsel %vm697, %v1663, 0
  %v1847 = vsel %vm697, %v1664, 0
  %v1850 = vsel %vm697, %v1665, 0
  %v1853 = vsel %vm697, %v1666, 0
  %v1856 = vsel %vm697, %v1667, 0
  %v1859 = vsel %vm697, %v1668, 0
  %v1862 = vsel %vm697, %v1669, 0
  %vm1864 = vcmask 1043456
  %v1866 = vsel %vm1864, %v1671, 0
  %1868 = vmatprep.subr.mxu0 0.0
  %1869 = vmatpush1.msra.mxu0 0.0
  %1870 = vmatprep.subr.mxu0 0.0
  %1871 = vmatpush1.msra.mxu0 0.0
  %1872 = vmatprep.subr.mxu0 0.0
  %1873 = vmatpush1.msra.mxu0 0.0
  %1874 = vmatprep.subr.mxu0 0.0
  %1875 = vmatpush1.msra.mxu0 0.0
  %1876 = vmatprep.subr.mxu0 0.0
  %1877 = vmatpush1.msra.mxu0 0.0
  %1878 = vmatprep.subr.mxu0 0.0
  %1879 = vmatpush1.msra.mxu0 0.0
  %1880 = vmatprep.subr.mxu0 0.0
  %1881 = vmatpush1.msra.mxu0 0.0
  %1882 = vmatprep.subr.mxu0 0.0
  %1883 = vmatpush1.msra.mxu0 0.0
  %1884 = vmatprep.subr.mxu0 0.0
  %1885 = vmatpush1.msra.mxu0 0.0
  %1886 = vmatprep.subr.mxu0 0.0
  %1887 = vmatpush1.msra.mxu0 0.0
  %1888 = vmatprep.subr.mxu0 0.0
  %1889 = vmatpush1.msra.mxu0 0.0
  %1890 = vmatprep.subr.mxu0 0.0
  %1891 = vmatpush1.msra.mxu0 0.0
  %1892 = vmatprep.subr.mxu0 0.0
  %1893 = vmatpush1.msra.mxu0 0.0
  %1894 = vmatprep.subr.mxu0 0.0
  %1895 = vmatpush1.msra.mxu0 0.0
  %1896 = vmatprep.subr.mxu0 0.0
  %1897 = vmatpush1.msra.mxu0 0.0
  %1898 = vmatprep.subr.mxu0 0.0
  %1899 = vmatpush1.msra.mxu0 %v1866
  %1900 = vmatprep.subr.mxu0 0.0
  %1901 = vmatpush2.msra.mxu0 0.0
  %1902 = vmatprep.subr.mxu0 0.0
  %1903 = vmatpush2.msra.mxu0 0.0
  %1904 = vmatprep.subr.mxu0 0.0
  %1905 = vmatpush2.msra.mxu0 0.0
  %1906 = vmatprep.subr.mxu0 0.0
  %1907 = vmatpush2.msra.mxu0 0.0
  %1908 = vmatprep.subr.mxu0 0.0
  %1909 = vmatpush2.msra.mxu0 0.0
  %1910 = vmatprep.subr.mxu0 0.0
  %1911 = vmatpush2.msra.mxu0 0.0
  %1912 = vmatprep.subr.mxu0 0.0
  %1913 = vmatpush2.msra.mxu0 0.0
  %1914 = vmatprep.subr.mxu0 0.0
  %1915 = vmatpush2.msra.mxu0 0.0
  %1916 = vmatprep.subr.mxu0 0.0
  %1917 = vmatpush2.msra.mxu0 0.0
  %1918 = vmatprep.subr.mxu0 0.0
  %1919 = vmatpush2.msra.mxu0 0.0
  %1920 = vmatprep.subr.mxu0 0.0
  %1921 = vmatpush2.msra.mxu0 0.0
  %1922 = vmatprep.subr.mxu0 0.0
  %1923 = vmatpush2.msra.mxu0 0.0
  %1924 = vmatprep.subr.mxu0 0.0
  %1925 = vmatpush2.msra.mxu0 0.0
  %1926 = vmatprep.subr.mxu0 0.0
  %1927 = vmatpush2.msra.mxu0 0.0
  %1928 = vmatprep.subr.mxu0 0.0
  %1929 = vmatpush2.msra.mxu0 0.0
  %1930 = vmatprep.subr.mxu0 0.0
  %1931 = vmatpush2.msra.mxu0 0.0
  %1932 = vmatprep.mubr.f32.mxu0 0.0
  %1933 = vmatmul.mubr.f32.gmra.mxu0 %v1673
  %v1934 = vpop.f32.mrf.mxu0
  %v1935 = vadd.f32 0.0, %v1934
  %v1936 = vpop.f32.mrf.mxu0
  %1937 = vmatprep.mubr.f32.mxu0 0.0
  %1938 = vmatmul.mubr.f32.gmra.mxu0 %v1676
  %v1939 = vpop.f32.mrf.mxu0
  %v1940 = vadd.f32 0.0, %v1939
  %v1941 = vpop.f32.mrf.mxu0
  %1942 = vmatprep.mubr.f32.mxu0 0.0
  %1943 = vmatmul.mubr.f32.gmra.mxu0 %v1679
  %v1944 = vpop.f32.mrf.mxu0
  %v1945 = vadd.f32 0.0, %v1944
  %v1946 = vpop.f32.mrf.mxu0
  %1947 = vmatprep.mubr.f32.mxu0 0.0
  %1948 = vmatmul.mubr.f32.gmra.mxu0 %v1682
  %v1949 = vpop.f32.mrf.mxu0
  %v1950 = vadd.f32 0.0, %v1949
  %v1951 = vpop.f32.mrf.mxu0
  %1952 = vmatprep.mubr.f32.mxu0 0.0
  %1953 = vmatmul.mubr.f32.gmra.mxu0 %v1685
  %v1954 = vpop.f32.mrf.mxu0
  %v1955 = vadd.f32 0.0, %v1954
  %v1956 = vpop.f32.mrf.mxu0
  %1957 = vmatprep.mubr.f32.mxu0 0.0
  %1958 = vmatmul.mubr.f32.gmra.mxu0 %v1688
  %v1959 = vpop.f32.mrf.mxu0
  %v1960 = vadd.f32 0.0, %v1959
  %v1961 = vpop.f32.mrf.mxu0
  %1962 = vmatprep.mubr.f32.mxu0 0.0
  %1963 = vmatmul.mubr.f32.gmra.mxu0 %v1691
  %v1964 = vpop.f32.mrf.mxu0
  %v1965 = vadd.f32 0.0, %v1964
  %v1966 = vpop.f32.mrf.mxu0
  %1967 = vmatprep.mubr.f32.mxu0 0.0
  %1968 = vmatmul.mubr.f32.gmra.mxu0 %v1694
  %v1969 = vpop.f32.mrf.mxu0
  %v1970 = vadd.f32 0.0, %v1969
  %v1971 = vpop.f32.mrf.mxu0
  %1972 = vmatprep.mubr.f32.mxu0 0.0
  %1973 = vmatmul.mubr.f32.gmra.mxu0 %v1697
  %v1974 = vpop.f32.mrf.mxu0
  %v1975 = vadd.f32 0.0, %v1974
  %v1976 = vpop.f32.mrf.mxu0
  %1977 = vmatprep.mubr.f32.mxu0 0.0
  %1978 = vmatmul.mubr.f32.gmra.mxu0 %v1700
  %v1979 = vpop.f32.mrf.mxu0
  %v1980 = vadd.f32 0.0, %v1979
  %v1981 = vpop.f32.mrf.mxu0
  %1982 = vmatprep.mubr.f32.mxu0 0.0
  %1983 = vmatmul.mubr.f32.gmra.mxu0 %v1703
  %v1984 = vpop.f32.mrf.mxu0
  %v1985 = vadd.f32 0.0, %v1984
  %v1986 = vpop.f32.mrf.mxu0
  %1987 = vmatprep.mubr.f32.mxu0 0.0
  %1988 = vmatmul.mubr.f32.gmra.mxu0 %v1706
  %v1989 = vpop.f32.mrf.mxu0
  %v1990 = vadd.f32 0.0, %v1989
  %v1991 = vpop.f32.mrf.mxu0
  %1992 = vmatprep.mubr.f32.mxu0 0.0
  %1993 = vmatmul.mubr.f32.gmra.mxu0 %v1709
  %v1994 = vpop.f32.mrf.mxu0
  %v1995 = vadd.f32 0.0, %v1994
  %v1996 = vpop.f32.mrf.mxu0
  %1997 = vmatprep.mubr.f32.mxu0 0.0
  %1998 = vmatmul.mubr.f32.gmra.mxu0 %v1712
  %v1999 = vpop.f32.mrf.mxu0
  %v2000 = vadd.f32 0.0, %v1999
  %v2001 = vpop.f32.mrf.mxu0
  %2002 = vmatprep.mubr.f32.mxu0 0.0
  %2003 = vmatmul.mubr.f32.gmra.mxu0 %v1715
  %v2004 = vpop.f32.mrf.mxu0
  %v2005 = vadd.f32 0.0, %v2004
  %v2006 = vpop.f32.mrf.mxu0
  %2007 = vmatprep.mubr.f32.mxu0 0.0
  %2008 = vmatmul.mubr.f32.gmra.mxu0 %v1718
  %v2009 = vpop.f32.mrf.mxu0
  %v2010 = vadd.f32 0.0, %v2009
  %v2011 = vpop.f32.mrf.mxu0
  %2012 = vmatprep.mubr.f32.mxu0 0.0
  %2013 = vmatmul.mubr.f32.gmra.mxu0 %v1721
  %v2014 = vpop.f32.mrf.mxu0
  %v2015 = vadd.f32 0.0, %v2014
  %v2016 = vpop.f32.mrf.mxu0
  %2017 = vmatprep.mubr.f32.mxu0 0.0
  %2018 = vmatmul.mubr.f32.gmra.mxu0 %v1724
  %v2019 = vpop.f32.mrf.mxu0
  %v2020 = vadd.f32 0.0, %v2019
  %v2021 = vpop.f32.mrf.mxu0
  %2022 = vmatprep.mubr.f32.mxu0 0.0
  %2023 = vmatmul.mubr.f32.gmra.mxu0 %v1727
  %v2024 = vpop.f32.mrf.mxu0
  %v2025 = vadd.f32 0.0, %v2024
  %v2026 = vpop.f32.mrf.mxu0
  %2027 = vmatprep.mubr.f32.mxu0 0.0
  %2028 = vmatmul.mubr.f32.gmra.mxu0 %v1730
  %v2029 = vpop.f32.mrf.mxu0
  %v2030 = vadd.f32 0.0, %v2029
  %v2031 = vpop.f32.mrf.mxu0
  %2032 = vmatprep.mubr.f32.mxu0 0.0
  %2033 = vmatmul.mubr.f32.gmra.mxu0 %v1733
  %v2034 = vpop.f32.mrf.mxu0
  %v2035 = vadd.f32 0.0, %v2034
  %v2036 = vpop.f32.mrf.mxu0
  %2037 = vmatprep.mubr.f32.mxu0 0.0
  %2038 = vmatmul.mubr.f32.gmra.mxu0 %v1736
  %v2039 = vpop.f32.mrf.mxu0
  %v2040 = vadd.f32 0.0, %v2039
  %v2041 = vpop.f32.mrf.mxu0
  %2042 = vmatprep.mubr.f32.mxu0 0.0
  %2043 = vmatmul.mubr.f32.gmra.mxu0 %v1739
  %v2044 = vpop.f32.mrf.mxu0
  %v2045 = vadd.f32 0.0, %v2044
  %v2046 = vpop.f32.mrf.mxu0
  %2047 = vmatprep.mubr.f32.mxu0 0.0
  %2048 = vmatmul.mubr.f32.gmra.mxu0 %v1742
  %v2049 = vpop.f32.mrf.mxu0
  %v2050 = vadd.f32 0.0, %v2049
  %v2051 = vpop.f32.mrf.mxu0
  %2052 = vmatprep.mubr.f32.mxu0 0.0
  %2053 = vmatmul.mubr.f32.gmra.mxu0 %v1745
  %v2054 = vpop.f32.mrf.mxu0
  %v2055 = vadd.f32 0.0, %v2054
  %v2056 = vpop.f32.mrf.mxu0
  %2057 = vmatprep.mubr.f32.mxu0 0.0
  %2058 = vmatmul.mubr.f32.gmra.mxu0 %v1748
  %v2059 = vpop.f32.mrf.mxu0
  %v2060 = vadd.f32 0.0, %v2059
  %v2061 = vpop.f32.mrf.mxu0
  %2062 = vmatprep.mubr.f32.mxu0 0.0
  %2063 = vmatmul.mubr.f32.gmra.mxu0 %v1751
  %v2064 = vpop.f32.mrf.mxu0
  %v2065 = vadd.f32 0.0, %v2064
  %v2066 = vpop.f32.mrf.mxu0
  %2067 = vmatprep.mubr.f32.mxu0 0.0
  %2068 = vmatmul.mubr.f32.gmra.mxu0 %v1754
  %v2069 = vpop.f32.mrf.mxu0
  %v2070 = vadd.f32 0.0, %v2069
  %v2071 = vpop.f32.mrf.mxu0
  %2072 = vmatprep.mubr.f32.mxu0 0.0
  %2073 = vmatmul.mubr.f32.gmra.mxu0 %v1757
  %v2074 = vpop.f32.mrf.mxu0
  %v2075 = vadd.f32 0.0, %v2074
  %v2076 = vpop.f32.mrf.mxu0
  %2077 = vmatprep.mubr.f32.mxu0 0.0
  %2078 = vmatmul.mubr.f32.gmra.mxu0 %v1760
  %v2079 = vpop.f32.mrf.mxu0
  %v2080 = vadd.f32 0.0, %v2079
  %v2081 = vpop.f32.mrf.mxu0
  %2082 = vmatprep.mubr.f32.mxu0 0.0
  %2083 = vmatmul.mubr.f32.gmra.mxu0 %v1763
  %v2084 = vpop.f32.mrf.mxu0
  %v2085 = vadd.f32 0.0, %v2084
  %v2086 = vpop.f32.mrf.mxu0
  %2087 = vmatprep.mubr.f32.mxu0 0.0
  %2088 = vmatmul.mubr.f32.gmra.mxu0 %v1766
  %v2089 = vpop.f32.mrf.mxu0
  %v2090 = vadd.f32 0.0, %v2089
  %v2091 = vpop.f32.mrf.mxu0
  %2092 = vmatprep.mubr.f32.mxu0 0.0
  %2093 = vmatmul.mubr.f32.gmra.mxu0 %v1769
  %v2094 = vpop.f32.mrf.mxu0
  %v2095 = vadd.f32 0.0, %v2094
  %v2096 = vpop.f32.mrf.mxu0
  %2097 = vmatprep.mubr.f32.mxu0 0.0
  %2098 = vmatmul.mubr.f32.gmra.mxu0 %v1772
  %v2099 = vpop.f32.mrf.mxu0
  %v2100 = vadd.f32 0.0, %v2099
  %v2101 = vpop.f32.mrf.mxu0
  %2102 = vmatprep.mubr.f32.mxu0 0.0
  %2103 = vmatmul.mubr.f32.gmra.mxu0 %v1775
  %v2104 = vpop.f32.mrf.mxu0
  %v2105 = vadd.f32 0.0, %v2104
  %v2106 = vpop.f32.mrf.mxu0
  %2107 = vmatprep.mubr.f32.mxu0 0.0
  %2108 = vmatmul.mubr.f32.gmra.mxu0 %v1778
  %v2109 = vpop.f32.mrf.mxu0
  %v2110 = vadd.f32 0.0, %v2109
  %v2111 = vpop.f32.mrf.mxu0
  %2112 = vmatprep.mubr.f32.mxu0 0.0
  %2113 = vmatmul.mubr.f32.gmra.mxu0 %v1781
  %v2114 = vpop.f32.mrf.mxu0
  %v2115 = vadd.f32 0.0, %v2114
  %v2116 = vpop.f32.mrf.mxu0
  %2117 = vmatprep.mubr.f32.mxu0 0.0
  %2118 = vmatmul.mubr.f32.gmra.mxu0 %v1784
  %v2119 = vpop.f32.mrf.mxu0
  %v2120 = vadd.f32 0.0, %v2119
  %v2121 = vpop.f32.mrf.mxu0
  %2122 = vmatprep.mubr.f32.mxu0 0.0
  %2123 = vmatmul.mubr.f32.gmra.mxu0 %v1787
  %v2124 = vpop.f32.mrf.mxu0
  %v2125 = vadd.f32 0.0, %v2124
  %v2126 = vpop.f32.mrf.mxu0
  %2127 = vmatprep.mubr.f32.mxu0 0.0
  %2128 = vmatmul.mubr.f32.gmra.mxu0 %v1790
  %v2129 = vpop.f32.mrf.mxu0
  %v2130 = vadd.f32 0.0, %v2129
  %v2131 = vpop.f32.mrf.mxu0
  %2132 = vmatprep.mubr.f32.mxu0 0.0
  %2133 = vmatmul.mubr.f32.gmra.mxu0 %v1793
  %v2134 = vpop.f32.mrf.mxu0
  %v2135 = vadd.f32 0.0, %v2134
  %v2136 = vpop.f32.mrf.mxu0
  %2137 = vmatprep.mubr.f32.mxu0 0.0
  %2138 = vmatmul.mubr.f32.gmra.mxu0 %v1796
  %v2139 = vpop.f32.mrf.mxu0
  %v2140 = vadd.f32 0.0, %v2139
  %v2141 = vpop.f32.mrf.mxu0
  %2142 = vmatprep.mubr.f32.mxu0 0.0
  %2143 = vmatmul.mubr.f32.gmra.mxu0 %v1799
  %v2144 = vpop.f32.mrf.mxu0
  %v2145 = vadd.f32 0.0, %v2144
  %v2146 = vpop.f32.mrf.mxu0
  %2147 = vmatprep.mubr.f32.mxu0 0.0
  %2148 = vmatmul.mubr.f32.gmra.mxu0 %v1802
  %v2149 = vpop.f32.mrf.mxu0
  %v2150 = vadd.f32 0.0, %v2149
  %v2151 = vpop.f32.mrf.mxu0
  %2152 = vmatprep.mubr.f32.mxu0 0.0
  %2153 = vmatmul.mubr.f32.gmra.mxu0 %v1805
  %v2154 = vpop.f32.mrf.mxu0
  %v2155 = vadd.f32 0.0, %v2154
  %v2156 = vpop.f32.mrf.mxu0
  %2157 = vmatprep.mubr.f32.mxu0 0.0
  %2158 = vmatmul.mubr.f32.gmra.mxu0 %v1808
  %v2159 = vpop.f32.mrf.mxu0
  %v2160 = vadd.f32 0.0, %v2159
  %v2161 = vpop.f32.mrf.mxu0
  %2162 = vmatprep.mubr.f32.mxu0 0.0
  %2163 = vmatmul.mubr.f32.gmra.mxu0 %v1811
  %v2164 = vpop.f32.mrf.mxu0
  %v2165 = vadd.f32 0.0, %v2164
  %v2166 = vpop.f32.mrf.mxu0
  %2167 = vmatprep.mubr.f32.mxu0 0.0
  %2168 = vmatmul.mubr.f32.gmra.mxu0 %v1814
  %v2169 = vpop.f32.mrf.mxu0
  %v2170 = vadd.f32 0.0, %v2169
  %v2171 = vpop.f32.mrf.mxu0
  %2172 = vmatprep.mubr.f32.mxu0 0.0
  %2173 = vmatmul.mubr.f32.gmra.mxu0 %v1817
  %v2174 = vpop.f32.mrf.mxu0
  %v2175 = vadd.f32 0.0, %v2174
  %v2176 = vpop.f32.mrf.mxu0
  %2177 = vmatprep.mubr.f32.mxu0 0.0
  %2178 = vmatmul.mubr.f32.gmra.mxu0 %v1820
  %v2179 = vpop.f32.mrf.mxu0
  %v2180 = vadd.f32 0.0, %v2179
  %v2181 = vpop.f32.mrf.mxu0
  %2182 = vmatprep.mubr.f32.mxu0 0.0
  %2183 = vmatmul.mubr.f32.gmra.mxu0 %v1823
  %v2184 = vpop.f32.mrf.mxu0
  %v2185 = vadd.f32 0.0, %v2184
  %v2186 = vpop.f32.mrf.mxu0
  %2187 = vmatprep.mubr.f32.mxu0 0.0
  %2188 = vmatmul.mubr.f32.gmra.mxu0 %v1826
  %v2189 = vpop.f32.mrf.mxu0
  %v2190 = vadd.f32 0.0, %v2189
  %v2191 = vpop.f32.mrf.mxu0
  %2192 = vmatprep.mubr.f32.mxu0 0.0
  %2193 = vmatmul.mubr.f32.gmra.mxu0 %v1829
  %v2194 = vpop.f32.mrf.mxu0
  %v2195 = vadd.f32 0.0, %v2194
  %v2196 = vpop.f32.mrf.mxu0
  %2197 = vmatprep.mubr.f32.mxu0 0.0
  %2198 = vmatmul.mubr.f32.gmra.mxu0 %v1832
  %v2199 = vpop.f32.mrf.mxu0
  %v2200 = vadd.f32 0.0, %v2199
  %v2201 = vpop.f32.mrf.mxu0
  %2202 = vmatprep.mubr.f32.mxu0 0.0
  %2203 = vmatmul.mubr.f32.gmra.mxu0 %v1835
  %v2204 = vpop.f32.mrf.mxu0
  %v2205 = vadd.f32 0.0, %v2204
  %v2206 = vpop.f32.mrf.mxu0
  %2207 = vmatprep.mubr.f32.mxu0 0.0
  %2208 = vmatmul.mubr.f32.gmra.mxu0 %v1838
  %v2209 = vpop.f32.mrf.mxu0
  %v2210 = vadd.f32 0.0, %v2209
  %v2211 = vpop.f32.mrf.mxu0
  %2212 = vmatprep.mubr.f32.mxu0 0.0
  %2213 = vmatmul.mubr.f32.gmra.mxu0 %v1841
  %v2214 = vpop.f32.mrf.mxu0
  %v2215 = vadd.f32 0.0, %v2214
  %v2216 = vpop.f32.mrf.mxu0
  %2217 = vmatprep.mubr.f32.mxu0 0.0
  %2218 = vmatmul.mubr.f32.gmra.mxu0 %v1844
  %v2219 = vpop.f32.mrf.mxu0
  %v2220 = vadd.f32 0.0, %v2219
  %v2221 = vpop.f32.mrf.mxu0
  %2222 = vmatprep.mubr.f32.mxu0 0.0
  %2223 = vmatmul.mubr.f32.gmra.mxu0 %v1847
  %v2224 = vpop.f32.mrf.mxu0
  %v2225 = vadd.f32 0.0, %v2224
  %v2226 = vpop.f32.mrf.mxu0
  %2227 = vmatprep.mubr.f32.mxu0 0.0
  %2228 = vmatmul.mubr.f32.gmra.mxu0 %v1850
  %v2229 = vpop.f32.mrf.mxu0
  %v2230 = vadd.f32 0.0, %v2229
  %v2231 = vpop.f32.mrf.mxu0
  %2232 = vmatprep.mubr.f32.mxu0 0.0
  %2233 = vmatmul.mubr.f32.gmra.mxu0 %v1853
  %v2234 = vpop.f32.mrf.mxu0
  %v2235 = vadd.f32 0.0, %v2234
  %v2236 = vpop.f32.mrf.mxu0
  %2237 = vmatprep.mubr.f32.mxu0 0.0
  %2238 = vmatmul.mubr.f32.gmra.mxu0 %v1856
  %v2239 = vpop.f32.mrf.mxu0
  %v2240 = vadd.f32 0.0, %v2239
  %v2241 = vpop.f32.mrf.mxu0
  %2242 = vmatprep.mubr.f32.mxu0 0.0
  %2243 = vmatmul.mubr.f32.gmra.mxu0 %v1859
  %v2244 = vpop.f32.mrf.mxu0
  %v2245 = vadd.f32 0.0, %v2244
  %v2246 = vpop.f32.mrf.mxu0
  %2247 = vmatprep.mubr.f32.mxu0 0.0
  %2248 = vmatmul.mubr.f32.gmra.mxu0 %v1862
  %v2249 = vpop.f32.mrf.mxu0
  %v2250 = vadd.f32 0.0, %v2249
  %v2251 = vpop.f32.mrf.mxu0
  %2252 = vdwg.mxu0
  %v2254 = vsel %vm697, %v1541, 0
  %v2257 = vsel %vm697, %v1542, 0
  %v2260 = vsel %vm697, %v1543, 0
  %v2263 = vsel %vm697, %v1544, 0
  %v2266 = vsel %vm697, %v1545, 0
  %v2269 = vsel %vm697, %v1546, 0
  %v2272 = vsel %vm697, %v1547, 0
  %v2275 = vsel %vm697, %v1548, 0
  %v2278 = vsel %vm697, %v1549, 0
  %v2281 = vsel %vm697, %v1550, 0
  %v2284 = vsel %vm697, %v1551, 0
  %v2287 = vsel %vm697, %v1552, 0
  %v2290 = vsel %vm697, %v1553, 0
  %v2293 = vsel %vm697, %v1554, 0
  %v2296 = vsel %vm697, %v1555, 0
  %v2299 = vsel %vm697, %v1556, 0
  %v2302 = vsel %vm697, %v1557, 0
  %v2305 = vsel %vm697, %v1558, 0
  %v2308 = vsel %vm697, %v1559, 0
  %v2311 = vsel %vm697, %v1560, 0
  %v2314 = vsel %vm697, %v1561, 0
  %v2317 = vsel %vm697, %v1562, 0
  %v2320 = vsel %vm697, %v1563, 0
  %v2323 = vsel %vm697, %v1564, 0
  %v2326 = vsel %vm697, %v1565, 0
  %v2329 = vsel %vm697, %v1566, 0
  %v2332 = vsel %vm697, %v1567, 0
  %v2335 = vsel %vm697, %v1568, 0
  %v2338 = vsel %vm697, %v1569, 0
  %v2341 = vsel %vm697, %v1570, 0
  %v2344 = vsel %vm697, %v1571, 0
  %v2347 = vsel %vm697, %v1572, 0
  %v2350 = vsel %vm697, %v1573, 0
  %v2353 = vsel %vm697, %v1574, 0
  %v2356 = vsel %vm697, %v1575, 0
  %v2359 = vsel %vm697, %v1576, 0
  %v2362 = vsel %vm697, %v1577, 0
  %v2365 = vsel %vm697, %v1578, 0
  %v2368 = vsel %vm697, %v1579, 0
  %v2371 = vsel %vm697, %v1580, 0
  %v2374 = vsel %vm697, %v1581, 0
  %v2377 = vsel %vm697, %v1582, 0
  %v2380 = vsel %vm697, %v1583, 0
  %v2383 = vsel %vm697, %v1584, 0
  %v2386 = vsel %vm697, %v1585, 0
  %v2389 = vsel %vm697, %v1586, 0
  %v2392 = vsel %vm697, %v1587, 0
  %v2395 = vsel %vm697, %v1588, 0
  %v2398 = vsel %vm697, %v1589, 0
  %v2401 = vsel %vm697, %v1590, 0
  %v2404 = vsel %vm697, %v1591, 0
  %v2407 = vsel %vm697, %v1592, 0
  %v2410 = vsel %vm697, %v1593, 0
  %v2413 = vsel %vm697, %v1594, 0
  %v2416 = vsel %vm697, %v1595, 0
  %v2419 = vsel %vm697, %v1596, 0
  %v2422 = vsel %vm697, %v1597, 0
  %v2425 = vsel %vm697, %v1598, 0
  %v2428 = vsel %vm697, %v1599, 0
  %v2431 = vsel %vm697, %v1600, 0
  %v2434 = vsel %vm697, %v1601, 0
  %v2437 = vsel %vm697, %v1602, 0
  %v2440 = vsel %vm697, %v1603, 0
  %v2443 = vsel %vm697, %v1604, 0
  %v2446 = vsel %vm1864, %v1605, 0
  %2448 = vmatprep.subr.mxu0 0.0
  %2449 = vmatpush1.msra.mxu0 0.0
  %2450 = vmatprep.subr.mxu0 0.0
  %2451 = vmatpush1.msra.mxu0 0.0
  %2452 = vmatprep.subr.mxu0 0.0
  %2453 = vmatpush1.msra.mxu0 0.0
  %2454 = vmatprep.subr.mxu0 0.0
  %2455 = vmatpush1.msra.mxu0 0.0
  %2456 = vmatprep.subr.mxu0 0.0
  %2457 = vmatpush1.msra.mxu0 0.0
  %2458 = vmatprep.subr.mxu0 0.0
  %2459 = vmatpush1.msra.mxu0 0.0
  %2460 = vmatprep.subr.mxu0 0.0
  %2461 = vmatpush1.msra.mxu0 0.0
  %2462 = vmatprep.subr.mxu0 0.0
  %2463 = vmatpush1.msra.mxu0 0.0
  %2464 = vmatprep.subr.mxu0 0.0
  %2465 = vmatpush1.msra.mxu0 0.0
  %2466 = vmatprep.subr.mxu0 0.0
  %2467 = vmatpush1.msra.mxu0 0.0
  %2468 = vmatprep.subr.mxu0 0.0
  %2469 = vmatpush1.msra.mxu0 0.0
  %2470 = vmatprep.subr.mxu0 0.0
  %2471 = vmatpush1.msra.mxu0 0.0
  %2472 = vmatprep.subr.mxu0 0.0
  %2473 = vmatpush1.msra.mxu0 0.0
  %2474 = vmatprep.subr.mxu0 0.0
  %2475 = vmatpush1.msra.mxu0 0.0
  %2476 = vmatprep.subr.mxu0 0.0
  %2477 = vmatpush1.msra.mxu0 0.0
  %2478 = vmatprep.subr.mxu0 0.0
  %2479 = vmatpush1.msra.mxu0 %v2446
  %2480 = vmatprep.subr.mxu0 0.0
  %2481 = vmatpush2.msra.mxu0 0.0
  %2482 = vmatprep.subr.mxu0 0.0
  %2483 = vmatpush2.msra.mxu0 0.0
  %2484 = vmatprep.subr.mxu0 0.0
  %2485 = vmatpush2.msra.mxu0 0.0
  %2486 = vmatprep.subr.mxu0 0.0
  %2487 = vmatpush2.msra.mxu0 0.0
  %2488 = vmatprep.subr.mxu0 0.0
  %2489 = vmatpush2.msra.mxu0 0.0
  %2490 = vmatprep.subr.mxu0 0.0
  %2491 = vmatpush2.msra.mxu0 0.0
  %2492 = vmatprep.subr.mxu0 0.0
  %2493 = vmatpush2.msra.mxu0 0.0
  %2494 = vmatprep.subr.mxu0 0.0
  %2495 = vmatpush2.msra.mxu0 0.0
  %2496 = vmatprep.subr.mxu0 0.0
  %2497 = vmatpush2.msra.mxu0 0.0
  %2498 = vmatprep.subr.mxu0 0.0
  %2499 = vmatpush2.msra.mxu0 0.0
  %2500 = vmatprep.subr.mxu0 0.0
  %2501 = vmatpush2.msra.mxu0 0.0
  %2502 = vmatprep.subr.mxu0 0.0
  %2503 = vmatpush2.msra.mxu0 0.0
  %2504 = vmatprep.subr.mxu0 0.0
  %2505 = vmatpush2.msra.mxu0 0.0
  %2506 = vmatprep.subr.mxu0 0.0
  %2507 = vmatpush2.msra.mxu0 0.0
  %2508 = vmatprep.subr.mxu0 0.0
  %2509 = vmatpush2.msra.mxu0 0.0
  %2510 = vmatprep.subr.mxu0 0.0
  %2511 = vmatpush2.msra.mxu0 0.0
  %2512 = vmatprep.mubr.f32.mxu0 0.0
  %2513 = vmatmul.mubr.f32.gmra.mxu0 %v2254
  %v2514 = vpop.f32.mrf.mxu0
  %v2515 = vadd.f32 %v1935, %v2514
  %v2516 = vpop.f32.mrf.mxu0
  %2517 = vmatprep.mubr.f32.mxu0 0.0
  %2518 = vmatmul.mubr.f32.gmra.mxu0 %v2257
  %v2519 = vpop.f32.mrf.mxu0
  %v2520 = vadd.f32 %v1940, %v2519
  %v2521 = vpop.f32.mrf.mxu0
  %2522 = vmatprep.mubr.f32.mxu0 0.0
  %2523 = vmatmul.mubr.f32.gmra.mxu0 %v2260
  %v2524 = vpop.f32.mrf.mxu0
  %v2525 = vadd.f32 %v1945, %v2524
  %v2526 = vpop.f32.mrf.mxu0
  %2527 = vmatprep.mubr.f32.mxu0 0.0
  %2528 = vmatmul.mubr.f32.gmra.mxu0 %v2263
  %v2529 = vpop.f32.mrf.mxu0
  %v2530 = vadd.f32 %v1950, %v2529
  %v2531 = vpop.f32.mrf.mxu0
  %2532 = vmatprep.mubr.f32.mxu0 0.0
  %2533 = vmatmul.mubr.f32.gmra.mxu0 %v2266
  %v2534 = vpop.f32.mrf.mxu0
  %v2535 = vadd.f32 %v1955, %v2534
  %v2536 = vpop.f32.mrf.mxu0
  %2537 = vmatprep.mubr.f32.mxu0 0.0
  %2538 = vmatmul.mubr.f32.gmra.mxu0 %v2269
  %v2539 = vpop.f32.mrf.mxu0
  %v2540 = vadd.f32 %v1960, %v2539
  %v2541 = vpop.f32.mrf.mxu0
  %2542 = vmatprep.mubr.f32.mxu0 0.0
  %2543 = vmatmul.mubr.f32.gmra.mxu0 %v2272
  %v2544 = vpop.f32.mrf.mxu0
  %v2545 = vadd.f32 %v1965, %v2544
  %v2546 = vpop.f32.mrf.mxu0
  %2547 = vmatprep.mubr.f32.mxu0 0.0
  %2548 = vmatmul.mubr.f32.gmra.mxu0 %v2275
  %v2549 = vpop.f32.mrf.mxu0
  %v2550 = vadd.f32 %v1970, %v2549
  %v2551 = vpop.f32.mrf.mxu0
  %2552 = vmatprep.mubr.f32.mxu0 0.0
  %2553 = vmatmul.mubr.f32.gmra.mxu0 %v2278
  %v2554 = vpop.f32.mrf.mxu0
  %v2555 = vadd.f32 %v1975, %v2554
  %v2556 = vpop.f32.mrf.mxu0
  %2557 = vmatprep.mubr.f32.mxu0 0.0
  %2558 = vmatmul.mubr.f32.gmra.mxu0 %v2281
  %v2559 = vpop.f32.mrf.mxu0
  %v2560 = vadd.f32 %v1980, %v2559
  %v2561 = vpop.f32.mrf.mxu0
  %2562 = vmatprep.mubr.f32.mxu0 0.0
  %2563 = vmatmul.mubr.f32.gmra.mxu0 %v2284
  %v2564 = vpop.f32.mrf.mxu0
  %v2565 = vadd.f32 %v1985, %v2564
  %v2566 = vpop.f32.mrf.mxu0
  %2567 = vmatprep.mubr.f32.mxu0 0.0
  %2568 = vmatmul.mubr.f32.gmra.mxu0 %v2287
  %v2569 = vpop.f32.mrf.mxu0
  %v2570 = vadd.f32 %v1990, %v2569
  %v2571 = vpop.f32.mrf.mxu0
  %2572 = vmatprep.mubr.f32.mxu0 0.0
  %2573 = vmatmul.mubr.f32.gmra.mxu0 %v2290
  %v2574 = vpop.f32.mrf.mxu0
  %v2575 = vadd.f32 %v1995, %v2574
  %v2576 = vpop.f32.mrf.mxu0
  %2577 = vmatprep.mubr.f32.mxu0 0.0
  %2578 = vmatmul.mubr.f32.gmra.mxu0 %v2293
  %v2579 = vpop.f32.mrf.mxu0
  %v2580 = vadd.f32 %v2000, %v2579
  %v2581 = vpop.f32.mrf.mxu0
  %2582 = vmatprep.mubr.f32.mxu0 0.0
  %2583 = vmatmul.mubr.f32.gmra.mxu0 %v2296
  %v2584 = vpop.f32.mrf.mxu0
  %v2585 = vadd.f32 %v2005, %v2584
  %v2586 = vpop.f32.mrf.mxu0
  %2587 = vmatprep.mubr.f32.mxu0 0.0
  %2588 = vmatmul.mubr.f32.gmra.mxu0 %v2299
  %v2589 = vpop.f32.mrf.mxu0
  %v2590 = vadd.f32 %v2010, %v2589
  %v2591 = vpop.f32.mrf.mxu0
  %2592 = vmatprep.mubr.f32.mxu0 0.0
  %2593 = vmatmul.mubr.f32.gmra.mxu0 %v2302
  %v2594 = vpop.f32.mrf.mxu0
  %v2595 = vadd.f32 %v2015, %v2594
  %v2596 = vpop.f32.mrf.mxu0
  %2597 = vmatprep.mubr.f32.mxu0 0.0
  %2598 = vmatmul.mubr.f32.gmra.mxu0 %v2305
  %v2599 = vpop.f32.mrf.mxu0
  %v2600 = vadd.f32 %v2020, %v2599
  %v2601 = vpop.f32.mrf.mxu0
  %2602 = vmatprep.mubr.f32.mxu0 0.0
  %2603 = vmatmul.mubr.f32.gmra.mxu0 %v2308
  %v2604 = vpop.f32.mrf.mxu0
  %v2605 = vadd.f32 %v2025, %v2604
  %v2606 = vpop.f32.mrf.mxu0
  %2607 = vmatprep.mubr.f32.mxu0 0.0
  %2608 = vmatmul.mubr.f32.gmra.mxu0 %v2311
  %v2609 = vpop.f32.mrf.mxu0
  %v2610 = vadd.f32 %v2030, %v2609
  %v2611 = vpop.f32.mrf.mxu0
  %2612 = vmatprep.mubr.f32.mxu0 0.0
  %2613 = vmatmul.mubr.f32.gmra.mxu0 %v2314
  %v2614 = vpop.f32.mrf.mxu0
  %v2615 = vadd.f32 %v2035, %v2614
  %v2616 = vpop.f32.mrf.mxu0
  %2617 = vmatprep.mubr.f32.mxu0 0.0
  %2618 = vmatmul.mubr.f32.gmra.mxu0 %v2317
  %v2619 = vpop.f32.mrf.mxu0
  %v2620 = vadd.f32 %v2040, %v2619
  %v2621 = vpop.f32.mrf.mxu0
  %2622 = vmatprep.mubr.f32.mxu0 0.0
  %2623 = vmatmul.mubr.f32.gmra.mxu0 %v2320
  %v2624 = vpop.f32.mrf.mxu0
  %v2625 = vadd.f32 %v2045, %v2624
  %v2626 = vpop.f32.mrf.mxu0
  %2627 = vmatprep.mubr.f32.mxu0 0.0
  %2628 = vmatmul.mubr.f32.gmra.mxu0 %v2323
  %v2629 = vpop.f32.mrf.mxu0
  %v2630 = vadd.f32 %v2050, %v2629
  %v2631 = vpop.f32.mrf.mxu0
  %2632 = vmatprep.mubr.f32.mxu0 0.0
  %2633 = vmatmul.mubr.f32.gmra.mxu0 %v2326
  %v2634 = vpop.f32.mrf.mxu0
  %v2635 = vadd.f32 %v2055, %v2634
  %v2636 = vpop.f32.mrf.mxu0
  %2637 = vmatprep.mubr.f32.mxu0 0.0
  %2638 = vmatmul.mubr.f32.gmra.mxu0 %v2329
  %v2639 = vpop.f32.mrf.mxu0
  %v2640 = vadd.f32 %v2060, %v2639
  %v2641 = vpop.f32.mrf.mxu0
  %2642 = vmatprep.mubr.f32.mxu0 0.0
  %2643 = vmatmul.mubr.f32.gmra.mxu0 %v2332
  %v2644 = vpop.f32.mrf.mxu0
  %v2645 = vadd.f32 %v2065, %v2644
  %v2646 = vpop.f32.mrf.mxu0
  %2647 = vmatprep.mubr.f32.mxu0 0.0
  %2648 = vmatmul.mubr.f32.gmra.mxu0 %v2335
  %v2649 = vpop.f32.mrf.mxu0
  %v2650 = vadd.f32 %v2070, %v2649
  %v2651 = vpop.f32.mrf.mxu0
  %2652 = vmatprep.mubr.f32.mxu0 0.0
  %2653 = vmatmul.mubr.f32.gmra.mxu0 %v2338
  %v2654 = vpop.f32.mrf.mxu0
  %v2655 = vadd.f32 %v2075, %v2654
  %v2656 = vpop.f32.mrf.mxu0
  %2657 = vmatprep.mubr.f32.mxu0 0.0
  %2658 = vmatmul.mubr.f32.gmra.mxu0 %v2341
  %v2659 = vpop.f32.mrf.mxu0
  %v2660 = vadd.f32 %v2080, %v2659
  %v2661 = vpop.f32.mrf.mxu0
  %2662 = vmatprep.mubr.f32.mxu0 0.0
  %2663 = vmatmul.mubr.f32.gmra.mxu0 %v2344
  %v2664 = vpop.f32.mrf.mxu0
  %v2665 = vadd.f32 %v2085, %v2664
  %v2666 = vpop.f32.mrf.mxu0
  %2667 = vmatprep.mubr.f32.mxu0 0.0
  %2668 = vmatmul.mubr.f32.gmra.mxu0 %v2347
  %v2669 = vpop.f32.mrf.mxu0
  %v2670 = vadd.f32 %v2090, %v2669
  %v2671 = vpop.f32.mrf.mxu0
  %2672 = vmatprep.mubr.f32.mxu0 0.0
  %2673 = vmatmul.mubr.f32.gmra.mxu0 %v2350
  %v2674 = vpop.f32.mrf.mxu0
  %v2675 = vadd.f32 %v2095, %v2674
  %v2676 = vpop.f32.mrf.mxu0
  %2677 = vmatprep.mubr.f32.mxu0 0.0
  %2678 = vmatmul.mubr.f32.gmra.mxu0 %v2353
  %v2679 = vpop.f32.mrf.mxu0
  %v2680 = vadd.f32 %v2100, %v2679
  %v2681 = vpop.f32.mrf.mxu0
  %2682 = vmatprep.mubr.f32.mxu0 0.0
  %2683 = vmatmul.mubr.f32.gmra.mxu0 %v2356
  %v2684 = vpop.f32.mrf.mxu0
  %v2685 = vadd.f32 %v2105, %v2684
  %v2686 = vpop.f32.mrf.mxu0
  %2687 = vmatprep.mubr.f32.mxu0 0.0
  %2688 = vmatmul.mubr.f32.gmra.mxu0 %v2359
  %v2689 = vpop.f32.mrf.mxu0
  %v2690 = vadd.f32 %v2110, %v2689
  %v2691 = vpop.f32.mrf.mxu0
  %2692 = vmatprep.mubr.f32.mxu0 0.0
  %2693 = vmatmul.mubr.f32.gmra.mxu0 %v2362
  %v2694 = vpop.f32.mrf.mxu0
  %v2695 = vadd.f32 %v2115, %v2694
  %v2696 = vpop.f32.mrf.mxu0
  %2697 = vmatprep.mubr.f32.mxu0 0.0
  %2698 = vmatmul.mubr.f32.gmra.mxu0 %v2365
  %v2699 = vpop.f32.mrf.mxu0
  %v2700 = vadd.f32 %v2120, %v2699
  %v2701 = vpop.f32.mrf.mxu0
  %2702 = vmatprep.mubr.f32.mxu0 0.0
  %2703 = vmatmul.mubr.f32.gmra.mxu0 %v2368
  %v2704 = vpop.f32.mrf.mxu0
  %v2705 = vadd.f32 %v2125, %v2704
  %v2706 = vpop.f32.mrf.mxu0
  %2707 = vmatprep.mubr.f32.mxu0 0.0
  %2708 = vmatmul.mubr.f32.gmra.mxu0 %v2371
  %v2709 = vpop.f32.mrf.mxu0
  %v2710 = vadd.f32 %v2130, %v2709
  %v2711 = vpop.f32.mrf.mxu0
  %2712 = vmatprep.mubr.f32.mxu0 0.0
  %2713 = vmatmul.mubr.f32.gmra.mxu0 %v2374
  %v2714 = vpop.f32.mrf.mxu0
  %v2715 = vadd.f32 %v2135, %v2714
  %v2716 = vpop.f32.mrf.mxu0
  %2717 = vmatprep.mubr.f32.mxu0 0.0
  %2718 = vmatmul.mubr.f32.gmra.mxu0 %v2377
  %v2719 = vpop.f32.mrf.mxu0
  %v2720 = vadd.f32 %v2140, %v2719
  %v2721 = vpop.f32.mrf.mxu0
  %2722 = vmatprep.mubr.f32.mxu0 0.0
  %2723 = vmatmul.mubr.f32.gmra.mxu0 %v2380
  %v2724 = vpop.f32.mrf.mxu0
  %v2725 = vadd.f32 %v2145, %v2724
  %v2726 = vpop.f32.mrf.mxu0
  %2727 = vmatprep.mubr.f32.mxu0 0.0
  %2728 = vmatmul.mubr.f32.gmra.mxu0 %v2383
  %v2729 = vpop.f32.mrf.mxu0
  %v2730 = vadd.f32 %v2150, %v2729
  %v2731 = vpop.f32.mrf.mxu0
  %2732 = vmatprep.mubr.f32.mxu0 0.0
  %2733 = vmatmul.mubr.f32.gmra.mxu0 %v2386
  %v2734 = vpop.f32.mrf.mxu0
  %v2735 = vadd.f32 %v2155, %v2734
  %v2736 = vpop.f32.mrf.mxu0
  %2737 = vmatprep.mubr.f32.mxu0 0.0
  %2738 = vmatmul.mubr.f32.gmra.mxu0 %v2389
  %v2739 = vpop.f32.mrf.mxu0
  %v2740 = vadd.f32 %v2160, %v2739
  %v2741 = vpop.f32.mrf.mxu0
  %2742 = vmatprep.mubr.f32.mxu0 0.0
  %2743 = vmatmul.mubr.f32.gmra.mxu0 %v2392
  %v2744 = vpop.f32.mrf.mxu0
  %v2745 = vadd.f32 %v2165, %v2744
  %v2746 = vpop.f32.mrf.mxu0
  %2747 = vmatprep.mubr.f32.mxu0 0.0
  %2748 = vmatmul.mubr.f32.gmra.mxu0 %v2395
  %v2749 = vpop.f32.mrf.mxu0
  %v2750 = vadd.f32 %v2170, %v2749
  %v2751 = vpop.f32.mrf.mxu0
  %2752 = vmatprep.mubr.f32.mxu0 0.0
  %2753 = vmatmul.mubr.f32.gmra.mxu0 %v2398
  %v2754 = vpop.f32.mrf.mxu0
  %v2755 = vadd.f32 %v2175, %v2754
  %v2756 = vpop.f32.mrf.mxu0
  %2757 = vmatprep.mubr.f32.mxu0 0.0
  %2758 = vmatmul.mubr.f32.gmra.mxu0 %v2401
  %v2759 = vpop.f32.mrf.mxu0
  %v2760 = vadd.f32 %v2180, %v2759
  %v2761 = vpop.f32.mrf.mxu0
  %2762 = vmatprep.mubr.f32.mxu0 0.0
  %2763 = vmatmul.mubr.f32.gmra.mxu0 %v2404
  %v2764 = vpop.f32.mrf.mxu0
  %v2765 = vadd.f32 %v2185, %v2764
  %v2766 = vpop.f32.mrf.mxu0
  %2767 = vmatprep.mubr.f32.mxu0 0.0
  %2768 = vmatmul.mubr.f32.gmra.mxu0 %v2407
  %v2769 = vpop.f32.mrf.mxu0
  %v2770 = vadd.f32 %v2190, %v2769
  %v2771 = vpop.f32.mrf.mxu0
  %2772 = vmatprep.mubr.f32.mxu0 0.0
  %2773 = vmatmul.mubr.f32.gmra.mxu0 %v2410
  %v2774 = vpop.f32.mrf.mxu0
  %v2775 = vadd.f32 %v2195, %v2774
  %v2776 = vpop.f32.mrf.mxu0
  %2777 = vmatprep.mubr.f32.mxu0 0.0
  %2778 = vmatmul.mubr.f32.gmra.mxu0 %v2413
  %v2779 = vpop.f32.mrf.mxu0
  %v2780 = vadd.f32 %v2200, %v2779
  %v2781 = vpop.f32.mrf.mxu0
  %2782 = vmatprep.mubr.f32.mxu0 0.0
  %2783 = vmatmul.mubr.f32.gmra.mxu0 %v2416
  %v2784 = vpop.f32.mrf.mxu0
  %v2785 = vadd.f32 %v2205, %v2784
  %v2786 = vpop.f32.mrf.mxu0
  %2787 = vmatprep.mubr.f32.mxu0 0.0
  %2788 = vmatmul.mubr.f32.gmra.mxu0 %v2419
  %v2789 = vpop.f32.mrf.mxu0
  %v2790 = vadd.f32 %v2210, %v2789
  %v2791 = vpop.f32.mrf.mxu0
  %2792 = vmatprep.mubr.f32.mxu0 0.0
  %2793 = vmatmul.mubr.f32.gmra.mxu0 %v2422
  %v2794 = vpop.f32.mrf.mxu0
  %v2795 = vadd.f32 %v2215, %v2794
  %v2796 = vpop.f32.mrf.mxu0
  %2797 = vmatprep.mubr.f32.mxu0 0.0
  %2798 = vmatmul.mubr.f32.gmra.mxu0 %v2425
  %v2799 = vpop.f32.mrf.mxu0
  %v2800 = vadd.f32 %v2220, %v2799
  %v2801 = vpop.f32.mrf.mxu0
  %2802 = vmatprep.mubr.f32.mxu0 0.0
  %2803 = vmatmul.mubr.f32.gmra.mxu0 %v2428
  %v2804 = vpop.f32.mrf.mxu0
  %v2805 = vadd.f32 %v2225, %v2804
  %v2806 = vpop.f32.mrf.mxu0
  %2807 = vmatprep.mubr.f32.mxu0 0.0
  %2808 = vmatmul.mubr.f32.gmra.mxu0 %v2431
  %v2809 = vpop.f32.mrf.mxu0
  %v2810 = vadd.f32 %v2230, %v2809
  %v2811 = vpop.f32.mrf.mxu0
  %2812 = vmatprep.mubr.f32.mxu0 0.0
  %2813 = vmatmul.mubr.f32.gmra.mxu0 %v2434
  %v2814 = vpop.f32.mrf.mxu0
  %v2815 = vadd.f32 %v2235, %v2814
  %v2816 = vpop.f32.mrf.mxu0
  %2817 = vmatprep.mubr.f32.mxu0 0.0
  %2818 = vmatmul.mubr.f32.gmra.mxu0 %v2437
  %v2819 = vpop.f32.mrf.mxu0
  %v2820 = vadd.f32 %v2240, %v2819
  %v2821 = vpop.f32.mrf.mxu0
  %2822 = vmatprep.mubr.f32.mxu0 0.0
  %2823 = vmatmul.mubr.f32.gmra.mxu0 %v2440
  %v2824 = vpop.f32.mrf.mxu0
  %v2825 = vadd.f32 %v2245, %v2824
  %v2826 = vpop.f32.mrf.mxu0
  %2827 = vmatprep.mubr.f32.mxu0 0.0
  %2828 = vmatmul.mubr.f32.gmra.mxu0 %v2443
  %v2829 = vpop.f32.mrf.mxu0
  %v2830 = vadd.f32 %v2250, %v2829
  %v2831 = vpop.f32.mrf.mxu0
  %2832 = vdwg.mxu0
  %v2833 = vld [vmem:[#allocation2 + $0x2] sm:$0xff]
  %v2834 = vld [vmem:[#allocation2 + $0xa] sm:$0xff]
  %v2835 = vld [vmem:[#allocation2 + $0x1a] sm:$0xff]
  %v2836 = vld [vmem:[#allocation2 + $0x22] sm:$0xff]
  %v2837 = vld [vmem:[#allocation2 + $0x32] sm:$0xff]
  %v2838 = vld [vmem:[#allocation2 + $0x3a] sm:$0xff]
  %v2839 = vld [vmem:[#allocation2 + $0x4a] sm:$0xff]
  %v2840 = vld [vmem:[#allocation2 + $0x52] sm:$0xff]
  %v2841 = vld [vmem:[#allocation2 + $0x62] sm:$0xff]
  %v2842 = vld [vmem:[#allocation2 + $0x6a] sm:$0xff]
  %v2843 = vld [vmem:[#allocation2 + $0x7a] sm:$0xff]
  %v2844 = vld [vmem:[#allocation2 + $0x82] sm:$0xff]
  %v2845 = vld [vmem:[#allocation2 + $0x92] sm:$0xff]
  %v2846 = vld [vmem:[#allocation2 + $0x9a] sm:$0xff]
  %v2847 = vld [vmem:[#allocation2 + $0xaa] sm:$0xff]
  %v2848 = vld [vmem:[#allocation2 + $0xb2] sm:$0xff]
  %v2849 = vld [vmem:[#allocation2 + $0xc2] sm:$0xff]
  %v2850 = vld [vmem:[#allocation2 + $0xca] sm:$0xff]
  %v2851 = vld [vmem:[#allocation2 + $0xda] sm:$0xff]
  %v2852 = vld [vmem:[#allocation2 + $0xe2] sm:$0xff]
  %v2853 = vld [vmem:[#allocation2 + $0xf2] sm:$0xff]
  %v2854 = vld [vmem:[#allocation2 + $0xfa] sm:$0xff]
  %v2855 = vld [vmem:[#allocation2 + $0x10a] sm:$0xff]
  %v2856 = vld [vmem:[#allocation2 + $0x112] sm:$0xff]
  %v2857 = vld [vmem:[#allocation2 + $0x122] sm:$0xff]
  %v2858 = vld [vmem:[#allocation2 + $0x12a] sm:$0xff]
  %v2859 = vld [vmem:[#allocation2 + $0x13a] sm:$0xff]
  %v2860 = vld [vmem:[#allocation2 + $0x142] sm:$0xff]
  %v2861 = vld [vmem:[#allocation2 + $0x152] sm:$0xff]
  %v2862 = vld [vmem:[#allocation2 + $0x15a] sm:$0xff]
  %v2863 = vld [vmem:[#allocation2 + $0x16a] sm:$0xff]
  %v2864 = vld [vmem:[#allocation2 + $0x172] sm:$0xff]
  %v2865 = vld [vmem:[#allocation2 + $0x1b2] sm:$0xff]
  %v2866 = vld [vmem:[#allocation2 + $0x1ba] sm:$0xff]
  %v2867 = vld [vmem:[#allocation2 + $0x1ca] sm:$0xff]
  %v2868 = vld [vmem:[#allocation2 + $0x1d2] sm:$0xff]
  %v2869 = vld [vmem:[#allocation2 + $0x1e2] sm:$0xff]
  %v2870 = vld [vmem:[#allocation2 + $0x1ea] sm:$0xff]
  %v2871 = vld [vmem:[#allocation2 + $0x1fa] sm:$0xff]
  %v2872 = vld [vmem:[#allocation2 + $0x202] sm:$0xff]
  %v2873 = vld [vmem:[#allocation2 + $0x212] sm:$0xff]
  %v2874 = vld [vmem:[#allocation2 + $0x21a] sm:$0xff]
  %v2875 = vld [vmem:[#allocation2 + $0x22a] sm:$0xff]
  %v2876 = vld [vmem:[#allocation2 + $0x232] sm:$0xff]
  %v2877 = vld [vmem:[#allocation2 + $0x242] sm:$0xff]
  %v2878 = vld [vmem:[#allocation2 + $0x24a] sm:$0xff]
  %v2879 = vld [vmem:[#allocation2 + $0x25a] sm:$0xff]
  %v2880 = vld [vmem:[#allocation2 + $0x262] sm:$0xff]
  %v2881 = vld [vmem:[#allocation2 + $0x272] sm:$0xff]
  %v2882 = vld [vmem:[#allocation2 + $0x27a] sm:$0xff]
  %v2883 = vld [vmem:[#allocation2 + $0x28a] sm:$0xff]
  %v2884 = vld [vmem:[#allocation2 + $0x292] sm:$0xff]
  %v2885 = vld [vmem:[#allocation2 + $0x2a2] sm:$0xff]
  %v2886 = vld [vmem:[#allocation2 + $0x2aa] sm:$0xff]
  %v2887 = vld [vmem:[#allocation2 + $0x2ba] sm:$0xff]
  %v2888 = vld [vmem:[#allocation2 + $0x2c2] sm:$0xff]
  %v2889 = vld [vmem:[#allocation2 + $0x2d2] sm:$0xff]
  %v2890 = vld [vmem:[#allocation2 + $0x2da] sm:$0xff]
  %v2891 = vld [vmem:[#allocation2 + $0x2ea] sm:$0xff]
  %v2892 = vld [vmem:[#allocation2 + $0x2f2] sm:$0xff]
  %v2893 = vld [vmem:[#allocation2 + $0x302] sm:$0xff]
  %v2894 = vld [vmem:[#allocation2 + $0x30a] sm:$0xff]
  %v2895 = vld [vmem:[#allocation2 + $0x31a] sm:$0xff]
  %v2896 = vld [vmem:[#allocation2 + $0x322] sm:$0xff]
  %s2897 = scalar_lea.vmem %s5, 8
  %v2898 = vld [vmem:[%s2897] sm:$0xf]
  %v2900 = vsel %vm697, %v2833, 0
  %v2903 = vsel %vm697, %v2834, 0
  %v2906 = vsel %vm697, %v2835, 0
  %v2909 = vsel %vm697, %v2836, 0
  %v2912 = vsel %vm697, %v2837, 0
  %v2915 = vsel %vm697, %v2838, 0
  %v2918 = vsel %vm697, %v2839, 0
  %v2921 = vsel %vm697, %v2840, 0
  %v2924 = vsel %vm697, %v2841, 0
  %v2927 = vsel %vm697, %v2842, 0
  %v2930 = vsel %vm697, %v2843, 0
  %v2933 = vsel %vm697, %v2844, 0
  %v2936 = vsel %vm697, %v2845, 0
  %v2939 = vsel %vm697, %v2846, 0
  %v2942 = vsel %vm697, %v2847, 0
  %v2945 = vsel %vm697, %v2848, 0
  %v2948 = vsel %vm697, %v2849, 0
  %v2951 = vsel %vm697, %v2850, 0
  %v2954 = vsel %vm697, %v2851, 0
  %v2957 = vsel %vm697, %v2852, 0
  %v2960 = vsel %vm697, %v2853, 0
  %v2963 = vsel %vm697, %v2854, 0
  %v2966 = vsel %vm697, %v2855, 0
  %v2969 = vsel %vm697, %v2856, 0
  %v2972 = vsel %vm697, %v2857, 0
  %v2975 = vsel %vm697, %v2858, 0
  %v2978 = vsel %vm697, %v2859, 0
  %v2981 = vsel %vm697, %v2860, 0
  %v2984 = vsel %vm697, %v2861, 0
  %v2987 = vsel %vm697, %v2862, 0
  %v2990 = vsel %vm697, %v2863, 0
  %v2993 = vsel %vm697, %v2864, 0
  %v2996 = vsel %vm697, %v2865, 0
  %v2999 = vsel %vm697, %v2866, 0
  %v3002 = vsel %vm697, %v2867, 0
  %v3005 = vsel %vm697, %v2868, 0
  %v3008 = vsel %vm697, %v2869, 0
  %v3011 = vsel %vm697, %v2870, 0
  %v3014 = vsel %vm697, %v2871, 0
  %v3017 = vsel %vm697, %v2872, 0
  %v3020 = vsel %vm697, %v2873, 0
  %v3023 = vsel %vm697, %v2874, 0
  %v3026 = vsel %vm697, %v2875, 0
  %v3029 = vsel %vm697, %v2876, 0
  %v3032 = vsel %vm697, %v2877, 0
  %v3035 = vsel %vm697, %v2878, 0
  %v3038 = vsel %vm697, %v2879, 0
  %v3041 = vsel %vm697, %v2880, 0
  %v3044 = vsel %vm697, %v2881, 0
  %v3047 = vsel %vm697, %v2882, 0
  %v3050 = vsel %vm697, %v2883, 0
  %v3053 = vsel %vm697, %v2884, 0
  %v3056 = vsel %vm697, %v2885, 0
  %v3059 = vsel %vm697, %v2886, 0
  %v3062 = vsel %vm697, %v2887, 0
  %v3065 = vsel %vm697, %v2888, 0
  %v3068 = vsel %vm697, %v2889, 0
  %v3071 = vsel %vm697, %v2890, 0
  %v3074 = vsel %vm697, %v2891, 0
  %v3077 = vsel %vm697, %v2892, 0
  %v3080 = vsel %vm697, %v2893, 0
  %v3083 = vsel %vm697, %v2894, 0
  %v3086 = vsel %vm697, %v2895, 0
  %v3089 = vsel %vm697, %v2896, 0
  %v3092 = vsel %vm1864, %v2898, 0
  %3094 = vmatprep.subr.mxu0 0.0
  %3095 = vmatpush1.msra.mxu0 0.0
  %3096 = vmatprep.subr.mxu0 0.0
  %3097 = vmatpush1.msra.mxu0 0.0
  %3098 = vmatprep.subr.mxu0 0.0
  %3099 = vmatpush1.msra.mxu0 0.0
  %3100 = vmatprep.subr.mxu0 0.0
  %3101 = vmatpush1.msra.mxu0 0.0
  %3102 = vmatprep.subr.mxu0 0.0
  %3103 = vmatpush1.msra.mxu0 0.0
  %3104 = vmatprep.subr.mxu0 0.0
  %3105 = vmatpush1.msra.mxu0 0.0
  %3106 = vmatprep.subr.mxu0 0.0
  %3107 = vmatpush1.msra.mxu0 0.0
  %3108 = vmatprep.subr.mxu0 0.0
  %3109 = vmatpush1.msra.mxu0 0.0
  %3110 = vmatprep.subr.mxu0 0.0
  %3111 = vmatpush1.msra.mxu0 0.0
  %3112 = vmatprep.subr.mxu0 0.0
  %3113 = vmatpush1.msra.mxu0 0.0
  %3114 = vmatprep.subr.mxu0 0.0
  %3115 = vmatpush1.msra.mxu0 0.0
  %3116 = vmatprep.subr.mxu0 0.0
  %3117 = vmatpush1.msra.mxu0 0.0
  %3118 = vmatprep.subr.mxu0 0.0
  %3119 = vmatpush1.msra.mxu0 0.0
  %3120 = vmatprep.subr.mxu0 0.0
  %3121 = vmatpush1.msra.mxu0 0.0
  %3122 = vmatprep.subr.mxu0 0.0
  %3123 = vmatpush1.msra.mxu0 0.0
  %3124 = vmatprep.subr.mxu0 0.0
  %3125 = vmatpush1.msra.mxu0 %v3092
  %3126 = vmatprep.subr.mxu0 0.0
  %3127 = vmatpush2.msra.mxu0 0.0
  %3128 = vmatprep.subr.mxu0 0.0
  %3129 = vmatpush2.msra.mxu0 0.0
  %3130 = vmatprep.subr.mxu0 0.0
  %3131 = vmatpush2.msra.mxu0 0.0
  %3132 = vmatprep.subr.mxu0 0.0
  %3133 = vmatpush2.msra.mxu0 0.0
  %3134 = vmatprep.subr.mxu0 0.0
  %3135 = vmatpush2.msra.mxu0 0.0
  %3136 = vmatprep.subr.mxu0 0.0
  %3137 = vmatpush2.msra.mxu0 0.0
  %3138 = vmatprep.subr.mxu0 0.0
  %3139 = vmatpush2.msra.mxu0 0.0
  %3140 = vmatprep.subr.mxu0 0.0
  %3141 = vmatpush2.msra.mxu0 0.0
  %3142 = vmatprep.subr.mxu0 0.0
  %3143 = vmatpush2.msra.mxu0 0.0
  %3144 = vmatprep.subr.mxu0 0.0
  %3145 = vmatpush2.msra.mxu0 0.0
  %3146 = vmatprep.subr.mxu0 0.0
  %3147 = vmatpush2.msra.mxu0 0.0
  %3148 = vmatprep.subr.mxu0 0.0
  %3149 = vmatpush2.msra.mxu0 0.0
  %3150 = vmatprep.subr.mxu0 0.0
  %3151 = vmatpush2.msra.mxu0 0.0
  %3152 = vmatprep.subr.mxu0 0.0
  %3153 = vmatpush2.msra.mxu0 0.0
  %3154 = vmatprep.subr.mxu0 0.0
  %3155 = vmatpush2.msra.mxu0 0.0
  %3156 = vmatprep.subr.mxu0 0.0
  %3157 = vmatpush2.msra.mxu0 0.0
  %3158 = vmatprep.mubr.f32.mxu0 0.0
  %3159 = vmatmul.mubr.f32.gmra.mxu0 %v2900
  %v3160 = vpop.f32.mrf.mxu0
  %v3161 = vadd.f32 0.0, %v3160
  %v3162 = vpop.f32.mrf.mxu0
  %3163 = vmatprep.mubr.f32.mxu0 0.0
  %3164 = vmatmul.mubr.f32.gmra.mxu0 %v2903
  %v3165 = vpop.f32.mrf.mxu0
  %v3166 = vadd.f32 0.0, %v3165
  %v3167 = vpop.f32.mrf.mxu0
  %3168 = vmatprep.mubr.f32.mxu0 0.0
  %3169 = vmatmul.mubr.f32.gmra.mxu0 %v2906
  %v3170 = vpop.f32.mrf.mxu0
  %v3171 = vadd.f32 0.0, %v3170
  %v3172 = vpop.f32.mrf.mxu0
  %3173 = vmatprep.mubr.f32.mxu0 0.0
  %3174 = vmatmul.mubr.f32.gmra.mxu0 %v2909
  %v3175 = vpop.f32.mrf.mxu0
  %v3176 = vadd.f32 0.0, %v3175
  %v3177 = vpop.f32.mrf.mxu0
  %3178 = vmatprep.mubr.f32.mxu0 0.0
  %3179 = vmatmul.mubr.f32.gmra.mxu0 %v2912
  %v3180 = vpop.f32.mrf.mxu0
  %v3181 = vadd.f32 0.0, %v3180
  %v3182 = vpop.f32.mrf.mxu0
  %3183 = vmatprep.mubr.f32.mxu0 0.0
  %3184 = vmatmul.mubr.f32.gmra.mxu0 %v2915
  %v3185 = vpop.f32.mrf.mxu0
  %v3186 = vadd.f32 0.0, %v3185
  %v3187 = vpop.f32.mrf.mxu0
  %3188 = vmatprep.mubr.f32.mxu0 0.0
  %3189 = vmatmul.mubr.f32.gmra.mxu0 %v2918
  %v3190 = vpop.f32.mrf.mxu0
  %v3191 = vadd.f32 0.0, %v3190
  %v3192 = vpop.f32.mrf.mxu0
  %3193 = vmatprep.mubr.f32.mxu0 0.0
  %3194 = vmatmul.mubr.f32.gmra.mxu0 %v2921
  %v3195 = vpop.f32.mrf.mxu0
  %v3196 = vadd.f32 0.0, %v3195
  %v3197 = vpop.f32.mrf.mxu0
  %3198 = vmatprep.mubr.f32.mxu0 0.0
  %3199 = vmatmul.mubr.f32.gmra.mxu0 %v2924
  %v3200 = vpop.f32.mrf.mxu0
  %v3201 = vadd.f32 0.0, %v3200
  %v3202 = vpop.f32.mrf.mxu0
  %3203 = vmatprep.mubr.f32.mxu0 0.0
  %3204 = vmatmul.mubr.f32.gmra.mxu0 %v2927
  %v3205 = vpop.f32.mrf.mxu0
  %v3206 = vadd.f32 0.0, %v3205
  %v3207 = vpop.f32.mrf.mxu0
  %3208 = vmatprep.mubr.f32.mxu0 0.0
  %3209 = vmatmul.mubr.f32.gmra.mxu0 %v2930
  %v3210 = vpop.f32.mrf.mxu0
  %v3211 = vadd.f32 0.0, %v3210
  %v3212 = vpop.f32.mrf.mxu0
  %3213 = vmatprep.mubr.f32.mxu0 0.0
  %3214 = vmatmul.mubr.f32.gmra.mxu0 %v2933
  %v3215 = vpop.f32.mrf.mxu0
  %v3216 = vadd.f32 0.0, %v3215
  %v3217 = vpop.f32.mrf.mxu0
  %3218 = vmatprep.mubr.f32.mxu0 0.0
  %3219 = vmatmul.mubr.f32.gmra.mxu0 %v2936
  %v3220 = vpop.f32.mrf.mxu0
  %v3221 = vadd.f32 0.0, %v3220
  %v3222 = vpop.f32.mrf.mxu0
  %3223 = vmatprep.mubr.f32.mxu0 0.0
  %3224 = vmatmul.mubr.f32.gmra.mxu0 %v2939
  %v3225 = vpop.f32.mrf.mxu0
  %v3226 = vadd.f32 0.0, %v3225
  %v3227 = vpop.f32.mrf.mxu0
  %3228 = vmatprep.mubr.f32.mxu0 0.0
  %3229 = vmatmul.mubr.f32.gmra.mxu0 %v2942
  %v3230 = vpop.f32.mrf.mxu0
  %v3231 = vadd.f32 0.0, %v3230
  %v3232 = vpop.f32.mrf.mxu0
  %3233 = vmatprep.mubr.f32.mxu0 0.0
  %3234 = vmatmul.mubr.f32.gmra.mxu0 %v2945
  %v3235 = vpop.f32.mrf.mxu0
  %v3236 = vadd.f32 0.0, %v3235
  %v3237 = vpop.f32.mrf.mxu0
  %3238 = vmatprep.mubr.f32.mxu0 0.0
  %3239 = vmatmul.mubr.f32.gmra.mxu0 %v2948
  %v3240 = vpop.f32.mrf.mxu0
  %v3241 = vadd.f32 0.0, %v3240
  %v3242 = vpop.f32.mrf.mxu0
  %3243 = vmatprep.mubr.f32.mxu0 0.0
  %3244 = vmatmul.mubr.f32.gmra.mxu0 %v2951
  %v3245 = vpop.f32.mrf.mxu0
  %v3246 = vadd.f32 0.0, %v3245
  %v3247 = vpop.f32.mrf.mxu0
  %3248 = vmatprep.mubr.f32.mxu0 0.0
  %3249 = vmatmul.mubr.f32.gmra.mxu0 %v2954
  %v3250 = vpop.f32.mrf.mxu0
  %v3251 = vadd.f32 0.0, %v3250
  %v3252 = vpop.f32.mrf.mxu0
  %3253 = vmatprep.mubr.f32.mxu0 0.0
  %3254 = vmatmul.mubr.f32.gmra.mxu0 %v2957
  %v3255 = vpop.f32.mrf.mxu0
  %v3256 = vadd.f32 0.0, %v3255
  %v3257 = vpop.f32.mrf.mxu0
  %3258 = vmatprep.mubr.f32.mxu0 0.0
  %3259 = vmatmul.mubr.f32.gmra.mxu0 %v2960
  %v3260 = vpop.f32.mrf.mxu0
  %v3261 = vadd.f32 0.0, %v3260
  %v3262 = vpop.f32.mrf.mxu0
  %3263 = vmatprep.mubr.f32.mxu0 0.0
  %3264 = vmatmul.mubr.f32.gmra.mxu0 %v2963
  %v3265 = vpop.f32.mrf.mxu0
  %v3266 = vadd.f32 0.0, %v3265
  %v3267 = vpop.f32.mrf.mxu0
  %3268 = vmatprep.mubr.f32.mxu0 0.0
  %3269 = vmatmul.mubr.f32.gmra.mxu0 %v2966
  %v3270 = vpop.f32.mrf.mxu0
  %v3271 = vadd.f32 0.0, %v3270
  %v3272 = vpop.f32.mrf.mxu0
  %3273 = vmatprep.mubr.f32.mxu0 0.0
  %3274 = vmatmul.mubr.f32.gmra.mxu0 %v2969
  %v3275 = vpop.f32.mrf.mxu0
  %v3276 = vadd.f32 0.0, %v3275
  %v3277 = vpop.f32.mrf.mxu0
  %3278 = vmatprep.mubr.f32.mxu0 0.0
  %3279 = vmatmul.mubr.f32.gmra.mxu0 %v2972
  %v3280 = vpop.f32.mrf.mxu0
  %v3281 = vadd.f32 0.0, %v3280
  %v3282 = vpop.f32.mrf.mxu0
  %3283 = vmatprep.mubr.f32.mxu0 0.0
  %3284 = vmatmul.mubr.f32.gmra.mxu0 %v2975
  %v3285 = vpop.f32.mrf.mxu0
  %v3286 = vadd.f32 0.0, %v3285
  %v3287 = vpop.f32.mrf.mxu0
  %3288 = vmatprep.mubr.f32.mxu0 0.0
  %3289 = vmatmul.mubr.f32.gmra.mxu0 %v2978
  %v3290 = vpop.f32.mrf.mxu0
  %v3291 = vadd.f32 0.0, %v3290
  %v3292 = vpop.f32.mrf.mxu0
  %3293 = vmatprep.mubr.f32.mxu0 0.0
  %3294 = vmatmul.mubr.f32.gmra.mxu0 %v2981
  %v3295 = vpop.f32.mrf.mxu0
  %v3296 = vadd.f32 0.0, %v3295
  %v3297 = vpop.f32.mrf.mxu0
  %3298 = vmatprep.mubr.f32.mxu0 0.0
  %3299 = vmatmul.mubr.f32.gmra.mxu0 %v2984
  %v3300 = vpop.f32.mrf.mxu0
  %v3301 = vadd.f32 0.0, %v3300
  %v3302 = vpop.f32.mrf.mxu0
  %3303 = vmatprep.mubr.f32.mxu0 0.0
  %3304 = vmatmul.mubr.f32.gmra.mxu0 %v2987
  %v3305 = vpop.f32.mrf.mxu0
  %v3306 = vadd.f32 0.0, %v3305
  %v3307 = vpop.f32.mrf.mxu0
  %3308 = vmatprep.mubr.f32.mxu0 0.0
  %3309 = vmatmul.mubr.f32.gmra.mxu0 %v2990
  %v3310 = vpop.f32.mrf.mxu0
  %v3311 = vadd.f32 0.0, %v3310
  %v3312 = vpop.f32.mrf.mxu0
  %3313 = vmatprep.mubr.f32.mxu0 0.0
  %3314 = vmatmul.mubr.f32.gmra.mxu0 %v2993
  %v3315 = vpop.f32.mrf.mxu0
  %v3316 = vadd.f32 0.0, %v3315
  %v3317 = vpop.f32.mrf.mxu0
  %3318 = vmatprep.mubr.f32.mxu0 0.0
  %3319 = vmatmul.mubr.f32.gmra.mxu0 %v2996
  %v3320 = vpop.f32.mrf.mxu0
  %v3321 = vadd.f32 0.0, %v3320
  %v3322 = vpop.f32.mrf.mxu0
  %3323 = vmatprep.mubr.f32.mxu0 0.0
  %3324 = vmatmul.mubr.f32.gmra.mxu0 %v2999
  %v3325 = vpop.f32.mrf.mxu0
  %v3326 = vadd.f32 0.0, %v3325
  %v3327 = vpop.f32.mrf.mxu0
  %3328 = vmatprep.mubr.f32.mxu0 0.0
  %3329 = vmatmul.mubr.f32.gmra.mxu0 %v3002
  %v3330 = vpop.f32.mrf.mxu0
  %v3331 = vadd.f32 0.0, %v3330
  %v3332 = vpop.f32.mrf.mxu0
  %3333 = vmatprep.mubr.f32.mxu0 0.0
  %3334 = vmatmul.mubr.f32.gmra.mxu0 %v3005
  %v3335 = vpop.f32.mrf.mxu0
  %v3336 = vadd.f32 0.0, %v3335
  %v3337 = vpop.f32.mrf.mxu0
  %3338 = vmatprep.mubr.f32.mxu0 0.0
  %3339 = vmatmul.mubr.f32.gmra.mxu0 %v3008
  %v3340 = vpop.f32.mrf.mxu0
  %v3341 = vadd.f32 0.0, %v3340
  %v3342 = vpop.f32.mrf.mxu0
  %3343 = vmatprep.mubr.f32.mxu0 0.0
  %3344 = vmatmul.mubr.f32.gmra.mxu0 %v3011
  %v3345 = vpop.f32.mrf.mxu0
  %v3346 = vadd.f32 0.0, %v3345
  %v3347 = vpop.f32.mrf.mxu0
  %3348 = vmatprep.mubr.f32.mxu0 0.0
  %3349 = vmatmul.mubr.f32.gmra.mxu0 %v3014
  %v3350 = vpop.f32.mrf.mxu0
  %v3351 = vadd.f32 0.0, %v3350
  %v3352 = vpop.f32.mrf.mxu0
  %3353 = vmatprep.mubr.f32.mxu0 0.0
  %3354 = vmatmul.mubr.f32.gmra.mxu0 %v3017
  %v3355 = vpop.f32.mrf.mxu0
  %v3356 = vadd.f32 0.0, %v3355
  %v3357 = vpop.f32.mrf.mxu0
  %3358 = vmatprep.mubr.f32.mxu0 0.0
  %3359 = vmatmul.mubr.f32.gmra.mxu0 %v3020
  %v3360 = vpop.f32.mrf.mxu0
  %v3361 = vadd.f32 0.0, %v3360
  %v3362 = vpop.f32.mrf.mxu0
  %3363 = vmatprep.mubr.f32.mxu0 0.0
  %3364 = vmatmul.mubr.f32.gmra.mxu0 %v3023
  %v3365 = vpop.f32.mrf.mxu0
  %v3366 = vadd.f32 0.0, %v3365
  %v3367 = vpop.f32.mrf.mxu0
  %3368 = vmatprep.mubr.f32.mxu0 0.0
  %3369 = vmatmul.mubr.f32.gmra.mxu0 %v3026
  %v3370 = vpop.f32.mrf.mxu0
  %v3371 = vadd.f32 0.0, %v3370
  %v3372 = vpop.f32.mrf.mxu0
  %3373 = vmatprep.mubr.f32.mxu0 0.0
  %3374 = vmatmul.mubr.f32.gmra.mxu0 %v3029
  %v3375 = vpop.f32.mrf.mxu0
  %v3376 = vadd.f32 0.0, %v3375
  %v3377 = vpop.f32.mrf.mxu0
  %3378 = vmatprep.mubr.f32.mxu0 0.0
  %3379 = vmatmul.mubr.f32.gmra.mxu0 %v3032
  %v3380 = vpop.f32.mrf.mxu0
  %v3381 = vadd.f32 0.0, %v3380
  %v3382 = vpop.f32.mrf.mxu0
  %3383 = vmatprep.mubr.f32.mxu0 0.0
  %3384 = vmatmul.mubr.f32.gmra.mxu0 %v3035
  %v3385 = vpop.f32.mrf.mxu0
  %v3386 = vadd.f32 0.0, %v3385
  %v3387 = vpop.f32.mrf.mxu0
  %3388 = vmatprep.mubr.f32.mxu0 0.0
  %3389 = vmatmul.mubr.f32.gmra.mxu0 %v3038
  %v3390 = vpop.f32.mrf.mxu0
  %v3391 = vadd.f32 0.0, %v3390
  %v3392 = vpop.f32.mrf.mxu0
  %3393 = vmatprep.mubr.f32.mxu0 0.0
  %3394 = vmatmul.mubr.f32.gmra.mxu0 %v3041
  %v3395 = vpop.f32.mrf.mxu0
  %v3396 = vadd.f32 0.0, %v3395
  %v3397 = vpop.f32.mrf.mxu0
  %3398 = vmatprep.mubr.f32.mxu0 0.0
  %3399 = vmatmul.mubr.f32.gmra.mxu0 %v3044
  %v3400 = vpop.f32.mrf.mxu0
  %v3401 = vadd.f32 0.0, %v3400
  %v3402 = vpop.f32.mrf.mxu0
  %3403 = vmatprep.mubr.f32.mxu0 0.0
  %3404 = vmatmul.mubr.f32.gmra.mxu0 %v3047
  %v3405 = vpop.f32.mrf.mxu0
  %v3406 = vadd.f32 0.0, %v3405
  %v3407 = vpop.f32.mrf.mxu0
  %3408 = vmatprep.mubr.f32.mxu0 0.0
  %3409 = vmatmul.mubr.f32.gmra.mxu0 %v3050
  %v3410 = vpop.f32.mrf.mxu0
  %v3411 = vadd.f32 0.0, %v3410
  %v3412 = vpop.f32.mrf.mxu0
  %3413 = vmatprep.mubr.f32.mxu0 0.0
  %3414 = vmatmul.mubr.f32.gmra.mxu0 %v3053
  %v3415 = vpop.f32.mrf.mxu0
  %v3416 = vadd.f32 0.0, %v3415
  %v3417 = vpop.f32.mrf.mxu0
  %3418 = vmatprep.mubr.f32.mxu0 0.0
  %3419 = vmatmul.mubr.f32.gmra.mxu0 %v3056
  %v3420 = vpop.f32.mrf.mxu0
  %v3421 = vadd.f32 0.0, %v3420
  %v3422 = vpop.f32.mrf.mxu0
  %3423 = vmatprep.mubr.f32.mxu0 0.0
  %3424 = vmatmul.mubr.f32.gmra.mxu0 %v3059
  %v3425 = vpop.f32.mrf.mxu0
  %v3426 = vadd.f32 0.0, %v3425
  %v3427 = vpop.f32.mrf.mxu0
  %3428 = vmatprep.mubr.f32.mxu0 0.0
  %3429 = vmatmul.mubr.f32.gmra.mxu0 %v3062
  %v3430 = vpop.f32.mrf.mxu0
  %v3431 = vadd.f32 0.0, %v3430
  %v3432 = vpop.f32.mrf.mxu0
  %3433 = vmatprep.mubr.f32.mxu0 0.0
  %3434 = vmatmul.mubr.f32.gmra.mxu0 %v3065
  %v3435 = vpop.f32.mrf.mxu0
  %v3436 = vadd.f32 0.0, %v3435
  %v3437 = vpop.f32.mrf.mxu0
  %3438 = vmatprep.mubr.f32.mxu0 0.0
  %3439 = vmatmul.mubr.f32.gmra.mxu0 %v3068
  %v3440 = vpop.f32.mrf.mxu0
  %v3441 = vadd.f32 0.0, %v3440
  %v3442 = vpop.f32.mrf.mxu0
  %3443 = vmatprep.mubr.f32.mxu0 0.0
  %3444 = vmatmul.mubr.f32.gmra.mxu0 %v3071
  %v3445 = vpop.f32.mrf.mxu0
  %v3446 = vadd.f32 0.0, %v3445
  %v3447 = vpop.f32.mrf.mxu0
  %3448 = vmatprep.mubr.f32.mxu0 0.0
  %3449 = vmatmul.mubr.f32.gmra.mxu0 %v3074
  %v3450 = vpop.f32.mrf.mxu0
  %v3451 = vadd.f32 0.0, %v3450
  %v3452 = vpop.f32.mrf.mxu0
  %3453 = vmatprep.mubr.f32.mxu0 0.0
  %3454 = vmatmul.mubr.f32.gmra.mxu0 %v3077
  %v3455 = vpop.f32.mrf.mxu0
  %v3456 = vadd.f32 0.0, %v3455
  %v3457 = vpop.f32.mrf.mxu0
  %3458 = vmatprep.mubr.f32.mxu0 0.0
  %3459 = vmatmul.mubr.f32.gmra.mxu0 %v3080
  %v3460 = vpop.f32.mrf.mxu0
  %v3461 = vadd.f32 0.0, %v3460
  %v3462 = vpop.f32.mrf.mxu0
  %3463 = vmatprep.mubr.f32.mxu0 0.0
  %3464 = vmatmul.mubr.f32.gmra.mxu0 %v3083
  %v3465 = vpop.f32.mrf.mxu0
  %v3466 = vadd.f32 0.0, %v3465
  %v3467 = vpop.f32.mrf.mxu0
  %3468 = vmatprep.mubr.f32.mxu0 0.0
  %3469 = vmatmul.mubr.f32.gmra.mxu0 %v3086
  %v3470 = vpop.f32.mrf.mxu0
  %v3471 = vadd.f32 0.0, %v3470
  %v3472 = vpop.f32.mrf.mxu0
  %3473 = vmatprep.mubr.f32.mxu0 0.0
  %3474 = vmatmul.mubr.f32.gmra.mxu0 %v3089
  %v3475 = vpop.f32.mrf.mxu0
  %v3476 = vadd.f32 0.0, %v3475
  %v3477 = vpop.f32.mrf.mxu0
  %3478 = vdwg.mxu0
  %v3479 = vadd.f32 %v2515, %v3161
  %v3480 = vadd.f32 %v2520, %v3166
  %v3481 = vadd.f32 %v2525, %v3171
  %v3482 = vadd.f32 %v2530, %v3176
  %v3483 = vadd.f32 %v2535, %v3181
  %v3484 = vadd.f32 %v2540, %v3186
  %v3485 = vadd.f32 %v2545, %v3191
  %v3486 = vadd.f32 %v2550, %v3196
  %v3487 = vadd.f32 %v2555, %v3201
  %v3488 = vadd.f32 %v2560, %v3206
  %v3489 = vadd.f32 %v2565, %v3211
  %v3490 = vadd.f32 %v2570, %v3216
  %v3491 = vadd.f32 %v2575, %v3221
  %v3492 = vadd.f32 %v2580, %v3226
  %v3493 = vadd.f32 %v2585, %v3231
  %v3494 = vadd.f32 %v2590, %v3236
  %v3495 = vadd.f32 %v2595, %v3241
  %v3496 = vadd.f32 %v2600, %v3246
  %v3497 = vadd.f32 %v2605, %v3251
  %v3498 = vadd.f32 %v2610, %v3256
  %v3499 = vadd.f32 %v2615, %v3261
  %v3500 = vadd.f32 %v2620, %v3266
  %v3501 = vadd.f32 %v2625, %v3271
  %v3502 = vadd.f32 %v2630, %v3276
  %v3503 = vadd.f32 %v2635, %v3281
  %v3504 = vadd.f32 %v2640, %v3286
  %v3505 = vadd.f32 %v2645, %v3291
  %v3506 = vadd.f32 %v2650, %v3296
  %v3507 = vadd.f32 %v2655, %v3301
  %v3508 = vadd.f32 %v2660, %v3306
  %v3509 = vadd.f32 %v2665, %v3311
  %v3510 = vadd.f32 %v2670, %v3316
  %v3511 = vadd.f32 %v2675, %v3321
  %v3512 = vadd.f32 %v2680, %v3326
  %v3513 = vadd.f32 %v2685, %v3331
  %v3514 = vadd.f32 %v2690, %v3336
  %v3515 = vadd.f32 %v2695, %v3341
  %v3516 = vadd.f32 %v2700, %v3346
  %v3517 = vadd.f32 %v2705, %v3351
  %v3518 = vadd.f32 %v2710, %v3356
  %v3519 = vadd.f32 %v2715, %v3361
  %v3520 = vadd.f32 %v2720, %v3366
  %v3521 = vadd.f32 %v2725, %v3371
  %v3522 = vadd.f32 %v2730, %v3376
  %v3523 = vadd.f32 %v2735, %v3381
  %v3524 = vadd.f32 %v2740, %v3386
  %v3525 = vadd.f32 %v2745, %v3391
  %v3526 = vadd.f32 %v2750, %v3396
  %v3527 = vadd.f32 %v2755, %v3401
  %v3528 = vadd.f32 %v2760, %v3406
  %v3529 = vadd.f32 %v2765, %v3411
  %v3530 = vadd.f32 %v2770, %v3416
  %v3531 = vadd.f32 %v2775, %v3421
  %v3532 = vadd.f32 %v2780, %v3426
  %v3533 = vadd.f32 %v2785, %v3431
  %v3534 = vadd.f32 %v2790, %v3436
  %v3535 = vadd.f32 %v2795, %v3441
  %v3536 = vadd.f32 %v2800, %v3446
  %v3537 = vadd.f32 %v2805, %v3451
  %v3538 = vadd.f32 %v2810, %v3456
  %v3539 = vadd.f32 %v2815, %v3461
  %v3540 = vadd.f32 %v2820, %v3466
  %v3541 = vadd.f32 %v2825, %v3471
  %v3542 = vadd.f32 %v2830, %v3476
  %v3543 = vld [vmem:[%s1476] sm:$0xff]
  %v3544 = vld [vmem:[%s1476 + $0x8] sm:$0xff]
  %v3545 = vld [vmem:[%s1476 + $0x18] sm:$0xff]
  %v3546 = vld [vmem:[%s1476 + $0x20] sm:$0xff]
  %v3547 = vld [vmem:[%s1476 + $0x30] sm:$0xff]
  %v3548 = vld [vmem:[%s1476 + $0x38] sm:$0xff]
  %v3549 = vld [vmem:[%s1476 + $0x48] sm:$0xff]
  %v3550 = vld [vmem:[%s1476 + $0x50] sm:$0xff]
  %v3551 = vld [vmem:[%s1476 + $0x60] sm:$0xff]
  %v3552 = vld [vmem:[%s1476 + $0x68] sm:$0xff]
  %v3553 = vld [vmem:[%s1476 + $0x78] sm:$0xff]
  %v3554 = vld [vmem:[%s1476 + $0x80] sm:$0xff]
  %v3555 = vld [vmem:[%s1476 + $0x90] sm:$0xff]
  %v3556 = vld [vmem:[%s1476 + $0x98] sm:$0xff]
  %v3557 = vld [vmem:[%s1476 + $0xa8] sm:$0xff]
  %v3558 = vld [vmem:[%s1476 + $0xb0] sm:$0xff]
  %v3559 = vld [vmem:[%s1476 + $0xc0] sm:$0xff]
  %v3560 = vld [vmem:[%s1476 + $0xc8] sm:$0xff]
  %v3561 = vld [vmem:[%s1476 + $0xd8] sm:$0xff]
  %v3562 = vld [vmem:[%s1476 + $0xe0] sm:$0xff]
  %v3563 = vld [vmem:[%s1476 + $0xf0] sm:$0xff]
  %v3564 = vld [vmem:[%s1476 + $0xf8] sm:$0xff]
  %v3565 = vld [vmem:[%s1476 + $0x108] sm:$0xff]
  %v3566 = vld [vmem:[%s1476 + $0x110] sm:$0xff]
  %v3567 = vld [vmem:[%s1476 + $0x120] sm:$0xff]
  %v3568 = vld [vmem:[%s1476 + $0x128] sm:$0xff]
  %v3569 = vld [vmem:[%s1476 + $0x138] sm:$0xff]
  %v3570 = vld [vmem:[%s1476 + $0x140] sm:$0xff]
  %v3571 = vld [vmem:[%s1476 + $0x150] sm:$0xff]
  %v3572 = vld [vmem:[%s1476 + $0x158] sm:$0xff]
  %v3573 = vld [vmem:[%s1476 + $0x168] sm:$0xff]
  %v3574 = vld [vmem:[%s1476 + $0x170] sm:$0xff]
  %v3575 = vld [vmem:[%s1476 + $0x1b0] sm:$0xff]
  %v3576 = vld [vmem:[%s1476 + $0x1b8] sm:$0xff]
  %v3577 = vld [vmem:[%s1476 + $0x1c8] sm:$0xff]
  %v3578 = vld [vmem:[%s1476 + $0x1d0] sm:$0xff]
  %v3579 = vld [vmem:[%s1476 + $0x1e0] sm:$0xff]
  %v3580 = vld [vmem:[%s1476 + $0x1e8] sm:$0xff]
  %v3581 = vld [vmem:[%s1476 + $0x1f8] sm:$0xff]
  %v3582 = vld [vmem:[%s1476 + $0x200] sm:$0xff]
  %v3583 = vld [vmem:[%s1476 + $0x210] sm:$0xff]
  %v3584 = vld [vmem:[%s1476 + $0x218] sm:$0xff]
  %v3585 = vld [vmem:[%s1476 + $0x228] sm:$0xff]
  %v3586 = vld [vmem:[%s1476 + $0x230] sm:$0xff]
  %v3587 = vld [vmem:[%s1476 + $0x240] sm:$0xff]
  %v3588 = vld [vmem:[%s1476 + $0x248] sm:$0xff]
  %v3589 = vld [vmem:[%s1476 + $0x258] sm:$0xff]
  %v3590 = vld [vmem:[%s1476 + $0x260] sm:$0xff]
  %v3591 = vld [vmem:[%s1476 + $0x270] sm:$0xff]
  %v3592 = vld [vmem:[%s1476 + $0x278] sm:$0xff]
  %v3593 = vld [vmem:[%s1476 + $0x288] sm:$0xff]
  %v3594 = vld [vmem:[%s1476 + $0x290] sm:$0xff]
  %v3595 = vld [vmem:[%s1476 + $0x2a0] sm:$0xff]
  %v3596 = vld [vmem:[%s1476 + $0x2a8] sm:$0xff]
  %v3597 = vld [vmem:[%s1476 + $0x2b8] sm:$0xff]
  %v3598 = vld [vmem:[%s1476 + $0x2c0] sm:$0xff]
  %v3599 = vld [vmem:[%s1476 + $0x2d0] sm:$0xff]
  %v3600 = vld [vmem:[%s1476 + $0x2d8] sm:$0xff]
  %v3601 = vld [vmem:[%s1476 + $0x2e8] sm:$0xff]
  %v3602 = vld [vmem:[%s1476 + $0x2f0] sm:$0xff]
  %v3603 = vld [vmem:[%s1476 + $0x300] sm:$0xff]
  %v3604 = vld [vmem:[%s1476 + $0x308] sm:$0xff]
  %v3605 = vld [vmem:[%s1476 + $0x318] sm:$0xff]
  %v3606 = vld [vmem:[%s1476 + $0x320] sm:$0xff]
  %s3607 = scalar_lea.vmem %s5, 12
  %v3608 = vld [vmem:[%s3607] sm:$0xf]
  %v3610 = vsel %vm697, %v3543, 0
  %v3613 = vsel %vm697, %v3544, 0
  %v3616 = vsel %vm697, %v3545, 0
  %v3619 = vsel %vm697, %v3546, 0
  %v3622 = vsel %vm697, %v3547, 0
  %v3625 = vsel %vm697, %v3548, 0
  %v3628 = vsel %vm697, %v3549, 0
  %v3631 = vsel %vm697, %v3550, 0
  %v3634 = vsel %vm697, %v3551, 0
  %v3637 = vsel %vm697, %v3552, 0
  %v3640 = vsel %vm697, %v3553, 0
  %v3643 = vsel %vm697, %v3554, 0
  %v3646 = vsel %vm697, %v3555, 0
  %v3649 = vsel %vm697, %v3556, 0
  %v3652 = vsel %vm697, %v3557, 0
  %v3655 = vsel %vm697, %v3558, 0
  %v3658 = vsel %vm697, %v3559, 0
  %v3661 = vsel %vm697, %v3560, 0
  %v3664 = vsel %vm697, %v3561, 0
  %v3667 = vsel %vm697, %v3562, 0
  %v3670 = vsel %vm697, %v3563, 0
  %v3673 = vsel %vm697, %v3564, 0
  %v3676 = vsel %vm697, %v3565, 0
  %v3679 = vsel %vm697, %v3566, 0
  %v3682 = vsel %vm697, %v3567, 0
  %v3685 = vsel %vm697, %v3568, 0
  %v3688 = vsel %vm697, %v3569, 0
  %v3691 = vsel %vm697, %v3570, 0
  %v3694 = vsel %vm697, %v3571, 0
  %v3697 = vsel %vm697, %v3572, 0
  %v3700 = vsel %vm697, %v3573, 0
  %v3703 = vsel %vm697, %v3574, 0
  %v3706 = vsel %vm697, %v3575, 0
  %v3709 = vsel %vm697, %v3576, 0
  %v3712 = vsel %vm697, %v3577, 0
  %v3715 = vsel %vm697, %v3578, 0
  %v3718 = vsel %vm697, %v3579, 0
  %v3721 = vsel %vm697, %v3580, 0
  %v3724 = vsel %vm697, %v3581, 0
  %v3727 = vsel %vm697, %v3582, 0
  %v3730 = vsel %vm697, %v3583, 0
  %v3733 = vsel %vm697, %v3584, 0
  %v3736 = vsel %vm697, %v3585, 0
  %v3739 = vsel %vm697, %v3586, 0
  %v3742 = vsel %vm697, %v3587, 0
  %v3745 = vsel %vm697, %v3588, 0
  %v3748 = vsel %vm697, %v3589, 0
  %v3751 = vsel %vm697, %v3590, 0
  %v3754 = vsel %vm697, %v3591, 0
  %v3757 = vsel %vm697, %v3592, 0
  %v3760 = vsel %vm697, %v3593, 0
  %v3763 = vsel %vm697, %v3594, 0
  %v3766 = vsel %vm697, %v3595, 0
  %v3769 = vsel %vm697, %v3596, 0
  %v3772 = vsel %vm697, %v3597, 0
  %v3775 = vsel %vm697, %v3598, 0
  %v3778 = vsel %vm697, %v3599, 0
  %v3781 = vsel %vm697, %v3600, 0
  %v3784 = vsel %vm697, %v3601, 0
  %v3787 = vsel %vm697, %v3602, 0
  %v3790 = vsel %vm697, %v3603, 0
  %v3793 = vsel %vm697, %v3604, 0
  %v3796 = vsel %vm697, %v3605, 0
  %v3799 = vsel %vm697, %v3606, 0
  %v3802 = vsel %vm1864, %v3608, 0
  %3804 = vmatprep.subr.mxu0 0.0
  %3805 = vmatpush1.msra.mxu0 0.0
  %3806 = vmatprep.subr.mxu0 0.0
  %3807 = vmatpush1.msra.mxu0 0.0
  %3808 = vmatprep.subr.mxu0 0.0
  %3809 = vmatpush1.msra.mxu0 0.0
  %3810 = vmatprep.subr.mxu0 0.0
  %3811 = vmatpush1.msra.mxu0 0.0
  %3812 = vmatprep.subr.mxu0 0.0
  %3813 = vmatpush1.msra.mxu0 0.0
  %3814 = vmatprep.subr.mxu0 0.0
  %3815 = vmatpush1.msra.mxu0 0.0
  %3816 = vmatprep.subr.mxu0 0.0
  %3817 = vmatpush1.msra.mxu0 0.0
  %3818 = vmatprep.subr.mxu0 0.0
  %3819 = vmatpush1.msra.mxu0 0.0
  %3820 = vmatprep.subr.mxu0 0.0
  %3821 = vmatpush1.msra.mxu0 0.0
  %3822 = vmatprep.subr.mxu0 0.0
  %3823 = vmatpush1.msra.mxu0 0.0
  %3824 = vmatprep.subr.mxu0 0.0
  %3825 = vmatpush1.msra.mxu0 0.0
  %3826 = vmatprep.subr.mxu0 0.0
  %3827 = vmatpush1.msra.mxu0 0.0
  %3828 = vmatprep.subr.mxu0 0.0
  %3829 = vmatpush1.msra.mxu0 0.0
  %3830 = vmatprep.subr.mxu0 0.0
  %3831 = vmatpush1.msra.mxu0 0.0
  %3832 = vmatprep.subr.mxu0 0.0
  %3833 = vmatpush1.msra.mxu0 0.0
  %3834 = vmatprep.subr.mxu0 0.0
  %3835 = vmatpush1.msra.mxu0 %v3802
  %3836 = vmatprep.subr.mxu0 0.0
  %3837 = vmatpush2.msra.mxu0 0.0
  %3838 = vmatprep.subr.mxu0 0.0
  %3839 = vmatpush2.msra.mxu0 0.0
  %3840 = vmatprep.subr.mxu0 0.0
  %3841 = vmatpush2.msra.mxu0 0.0
  %3842 = vmatprep.subr.mxu0 0.0
  %3843 = vmatpush2.msra.mxu0 0.0
  %3844 = vmatprep.subr.mxu0 0.0
  %3845 = vmatpush2.msra.mxu0 0.0
  %3846 = vmatprep.subr.mxu0 0.0
  %3847 = vmatpush2.msra.mxu0 0.0
  %3848 = vmatprep.subr.mxu0 0.0
  %3849 = vmatpush2.msra.mxu0 0.0
  %3850 = vmatprep.subr.mxu0 0.0
  %3851 = vmatpush2.msra.mxu0 0.0
  %3852 = vmatprep.subr.mxu0 0.0
  %3853 = vmatpush2.msra.mxu0 0.0
  %3854 = vmatprep.subr.mxu0 0.0
  %3855 = vmatpush2.msra.mxu0 0.0
  %3856 = vmatprep.subr.mxu0 0.0
  %3857 = vmatpush2.msra.mxu0 0.0
  %3858 = vmatprep.subr.mxu0 0.0
  %3859 = vmatpush2.msra.mxu0 0.0
  %3860 = vmatprep.subr.mxu0 0.0
  %3861 = vmatpush2.msra.mxu0 0.0
  %3862 = vmatprep.subr.mxu0 0.0
  %3863 = vmatpush2.msra.mxu0 0.0
  %3864 = vmatprep.subr.mxu0 0.0
  %3865 = vmatpush2.msra.mxu0 0.0
  %3866 = vmatprep.subr.mxu0 0.0
  %3867 = vmatpush2.msra.mxu0 0.0
  %3868 = vmatprep.mubr.f32.mxu0 0.0
  %3869 = vmatmul.mubr.f32.gmra.mxu0 %v3610
  %v3870 = vpop.f32.mrf.mxu0
  %v3871 = vadd.f32 0.0, %v3870
  %v3872 = vpop.f32.mrf.mxu0
  %3873 = vmatprep.mubr.f32.mxu0 0.0
  %3874 = vmatmul.mubr.f32.gmra.mxu0 %v3613
  %v3875 = vpop.f32.mrf.mxu0
  %v3876 = vadd.f32 0.0, %v3875
  %v3877 = vpop.f32.mrf.mxu0
  %3878 = vmatprep.mubr.f32.mxu0 0.0
  %3879 = vmatmul.mubr.f32.gmra.mxu0 %v3616
  %v3880 = vpop.f32.mrf.mxu0
  %v3881 = vadd.f32 0.0, %v3880
  %v3882 = vpop.f32.mrf.mxu0
  %3883 = vmatprep.mubr.f32.mxu0 0.0
  %3884 = vmatmul.mubr.f32.gmra.mxu0 %v3619
  %v3885 = vpop.f32.mrf.mxu0
  %v3886 = vadd.f32 0.0, %v3885
  %v3887 = vpop.f32.mrf.mxu0
  %3888 = vmatprep.mubr.f32.mxu0 0.0
  %3889 = vmatmul.mubr.f32.gmra.mxu0 %v3622
  %v3890 = vpop.f32.mrf.mxu0
  %v3891 = vadd.f32 0.0, %v3890
  %v3892 = vpop.f32.mrf.mxu0
  %3893 = vmatprep.mubr.f32.mxu0 0.0
  %3894 = vmatmul.mubr.f32.gmra.mxu0 %v3625
  %v3895 = vpop.f32.mrf.mxu0
  %v3896 = vadd.f32 0.0, %v3895
  %v3897 = vpop.f32.mrf.mxu0
  %3898 = vmatprep.mubr.f32.mxu0 0.0
  %3899 = vmatmul.mubr.f32.gmra.mxu0 %v3628
  %v3900 = vpop.f32.mrf.mxu0
  %v3901 = vadd.f32 0.0, %v3900
  %v3902 = vpop.f32.mrf.mxu0
  %3903 = vmatprep.mubr.f32.mxu0 0.0
  %3904 = vmatmul.mubr.f32.gmra.mxu0 %v3631
  %v3905 = vpop.f32.mrf.mxu0
  %v3906 = vadd.f32 0.0, %v3905
  %v3907 = vpop.f32.mrf.mxu0
  %3908 = vmatprep.mubr.f32.mxu0 0.0
  %3909 = vmatmul.mubr.f32.gmra.mxu0 %v3634
  %v3910 = vpop.f32.mrf.mxu0
  %v3911 = vadd.f32 0.0, %v3910
  %v3912 = vpop.f32.mrf.mxu0
  %3913 = vmatprep.mubr.f32.mxu0 0.0
  %3914 = vmatmul.mubr.f32.gmra.mxu0 %v3637
  %v3915 = vpop.f32.mrf.mxu0
  %v3916 = vadd.f32 0.0, %v3915
  %v3917 = vpop.f32.mrf.mxu0
  %3918 = vmatprep.mubr.f32.mxu0 0.0
  %3919 = vmatmul.mubr.f32.gmra.mxu0 %v3640
  %v3920 = vpop.f32.mrf.mxu0
  %v3921 = vadd.f32 0.0, %v3920
  %v3922 = vpop.f32.mrf.mxu0
  %3923 = vmatprep.mubr.f32.mxu0 0.0
  %3924 = vmatmul.mubr.f32.gmra.mxu0 %v3643
  %v3925 = vpop.f32.mrf.mxu0
  %v3926 = vadd.f32 0.0, %v3925
  %v3927 = vpop.f32.mrf.mxu0
  %3928 = vmatprep.mubr.f32.mxu0 0.0
  %3929 = vmatmul.mubr.f32.gmra.mxu0 %v3646
  %v3930 = vpop.f32.mrf.mxu0
  %v3931 = vadd.f32 0.0, %v3930
  %v3932 = vpop.f32.mrf.mxu0
  %3933 = vmatprep.mubr.f32.mxu0 0.0
  %3934 = vmatmul.mubr.f32.gmra.mxu0 %v3649
  %v3935 = vpop.f32.mrf.mxu0
  %v3936 = vadd.f32 0.0, %v3935
  %v3937 = vpop.f32.mrf.mxu0
  %3938 = vmatprep.mubr.f32.mxu0 0.0
  %3939 = vmatmul.mubr.f32.gmra.mxu0 %v3652
  %v3940 = vpop.f32.mrf.mxu0
  %v3941 = vadd.f32 0.0, %v3940
  %v3942 = vpop.f32.mrf.mxu0
  %3943 = vmatprep.mubr.f32.mxu0 0.0
  %3944 = vmatmul.mubr.f32.gmra.mxu0 %v3655
  %v3945 = vpop.f32.mrf.mxu0
  %v3946 = vadd.f32 0.0, %v3945
  %v3947 = vpop.f32.mrf.mxu0
  %3948 = vmatprep.mubr.f32.mxu0 0.0
  %3949 = vmatmul.mubr.f32.gmra.mxu0 %v3658
  %v3950 = vpop.f32.mrf.mxu0
  %v3951 = vadd.f32 0.0, %v3950
  %v3952 = vpop.f32.mrf.mxu0
  %3953 = vmatprep.mubr.f32.mxu0 0.0
  %3954 = vmatmul.mubr.f32.gmra.mxu0 %v3661
  %v3955 = vpop.f32.mrf.mxu0
  %v3956 = vadd.f32 0.0, %v3955
  %v3957 = vpop.f32.mrf.mxu0
  %3958 = vmatprep.mubr.f32.mxu0 0.0
  %3959 = vmatmul.mubr.f32.gmra.mxu0 %v3664
  %v3960 = vpop.f32.mrf.mxu0
  %v3961 = vadd.f32 0.0, %v3960
  %v3962 = vpop.f32.mrf.mxu0
  %3963 = vmatprep.mubr.f32.mxu0 0.0
  %3964 = vmatmul.mubr.f32.gmra.mxu0 %v3667
  %v3965 = vpop.f32.mrf.mxu0
  %v3966 = vadd.f32 0.0, %v3965
  %v3967 = vpop.f32.mrf.mxu0
  %3968 = vmatprep.mubr.f32.mxu0 0.0
  %3969 = vmatmul.mubr.f32.gmra.mxu0 %v3670
  %v3970 = vpop.f32.mrf.mxu0
  %v3971 = vadd.f32 0.0, %v3970
  %v3972 = vpop.f32.mrf.mxu0
  %3973 = vmatprep.mubr.f32.mxu0 0.0
  %3974 = vmatmul.mubr.f32.gmra.mxu0 %v3673
  %v3975 = vpop.f32.mrf.mxu0
  %v3976 = vadd.f32 0.0, %v3975
  %v3977 = vpop.f32.mrf.mxu0
  %3978 = vmatprep.mubr.f32.mxu0 0.0
  %3979 = vmatmul.mubr.f32.gmra.mxu0 %v3676
  %v3980 = vpop.f32.mrf.mxu0
  %v3981 = vadd.f32 0.0, %v3980
  %v3982 = vpop.f32.mrf.mxu0
  %3983 = vmatprep.mubr.f32.mxu0 0.0
  %3984 = vmatmul.mubr.f32.gmra.mxu0 %v3679
  %v3985 = vpop.f32.mrf.mxu0
  %v3986 = vadd.f32 0.0, %v3985
  %v3987 = vpop.f32.mrf.mxu0
  %3988 = vmatprep.mubr.f32.mxu0 0.0
  %3989 = vmatmul.mubr.f32.gmra.mxu0 %v3682
  %v3990 = vpop.f32.mrf.mxu0
  %v3991 = vadd.f32 0.0, %v3990
  %v3992 = vpop.f32.mrf.mxu0
  %3993 = vmatprep.mubr.f32.mxu0 0.0
  %3994 = vmatmul.mubr.f32.gmra.mxu0 %v3685
  %v3995 = vpop.f32.mrf.mxu0
  %v3996 = vadd.f32 0.0, %v3995
  %v3997 = vpop.f32.mrf.mxu0
  %3998 = vmatprep.mubr.f32.mxu0 0.0
  %3999 = vmatmul.mubr.f32.gmra.mxu0 %v3688
  %v4000 = vpop.f32.mrf.mxu0
  %v4001 = vadd.f32 0.0, %v4000
  %v4002 = vpop.f32.mrf.mxu0
  %4003 = vmatprep.mubr.f32.mxu0 0.0
  %4004 = vmatmul.mubr.f32.gmra.mxu0 %v3691
  %v4005 = vpop.f32.mrf.mxu0
  %v4006 = vadd.f32 0.0, %v4005
  %v4007 = vpop.f32.mrf.mxu0
  %4008 = vmatprep.mubr.f32.mxu0 0.0
  %4009 = vmatmul.mubr.f32.gmra.mxu0 %v3694
  %v4010 = vpop.f32.mrf.mxu0
  %v4011 = vadd.f32 0.0, %v4010
  %v4012 = vpop.f32.mrf.mxu0
  %4013 = vmatprep.mubr.f32.mxu0 0.0
  %4014 = vmatmul.mubr.f32.gmra.mxu0 %v3697
  %v4015 = vpop.f32.mrf.mxu0
  %v4016 = vadd.f32 0.0, %v4015
  %v4017 = vpop.f32.mrf.mxu0
  %4018 = vmatprep.mubr.f32.mxu0 0.0
  %4019 = vmatmul.mubr.f32.gmra.mxu0 %v3700
  %v4020 = vpop.f32.mrf.mxu0
  %v4021 = vadd.f32 0.0, %v4020
  %v4022 = vpop.f32.mrf.mxu0
  %4023 = vmatprep.mubr.f32.mxu0 0.0
  %4024 = vmatmul.mubr.f32.gmra.mxu0 %v3703
  %v4025 = vpop.f32.mrf.mxu0
  %v4026 = vadd.f32 0.0, %v4025
  %v4027 = vpop.f32.mrf.mxu0
  %4028 = vmatprep.mubr.f32.mxu0 0.0
  %4029 = vmatmul.mubr.f32.gmra.mxu0 %v3706
  %v4030 = vpop.f32.mrf.mxu0
  %v4031 = vadd.f32 0.0, %v4030
  %v4032 = vpop.f32.mrf.mxu0
  %4033 = vmatprep.mubr.f32.mxu0 0.0
  %4034 = vmatmul.mubr.f32.gmra.mxu0 %v3709
  %v4035 = vpop.f32.mrf.mxu0
  %v4036 = vadd.f32 0.0, %v4035
  %v4037 = vpop.f32.mrf.mxu0
  %4038 = vmatprep.mubr.f32.mxu0 0.0
  %4039 = vmatmul.mubr.f32.gmra.mxu0 %v3712
  %v4040 = vpop.f32.mrf.mxu0
  %v4041 = vadd.f32 0.0, %v4040
  %v4042 = vpop.f32.mrf.mxu0
  %4043 = vmatprep.mubr.f32.mxu0 0.0
  %4044 = vmatmul.mubr.f32.gmra.mxu0 %v3715
  %v4045 = vpop.f32.mrf.mxu0
  %v4046 = vadd.f32 0.0, %v4045
  %v4047 = vpop.f32.mrf.mxu0
  %4048 = vmatprep.mubr.f32.mxu0 0.0
  %4049 = vmatmul.mubr.f32.gmra.mxu0 %v3718
  %v4050 = vpop.f32.mrf.mxu0
  %v4051 = vadd.f32 0.0, %v4050
  %v4052 = vpop.f32.mrf.mxu0
  %4053 = vmatprep.mubr.f32.mxu0 0.0
  %4054 = vmatmul.mubr.f32.gmra.mxu0 %v3721
  %v4055 = vpop.f32.mrf.mxu0
  %v4056 = vadd.f32 0.0, %v4055
  %v4057 = vpop.f32.mrf.mxu0
  %4058 = vmatprep.mubr.f32.mxu0 0.0
  %4059 = vmatmul.mubr.f32.gmra.mxu0 %v3724
  %v4060 = vpop.f32.mrf.mxu0
  %v4061 = vadd.f32 0.0, %v4060
  %v4062 = vpop.f32.mrf.mxu0
  %4063 = vmatprep.mubr.f32.mxu0 0.0
  %4064 = vmatmul.mubr.f32.gmra.mxu0 %v3727
  %v4065 = vpop.f32.mrf.mxu0
  %v4066 = vadd.f32 0.0, %v4065
  %v4067 = vpop.f32.mrf.mxu0
  %4068 = vmatprep.mubr.f32.mxu0 0.0
  %4069 = vmatmul.mubr.f32.gmra.mxu0 %v3730
  %v4070 = vpop.f32.mrf.mxu0
  %v4071 = vadd.f32 0.0, %v4070
  %v4072 = vpop.f32.mrf.mxu0
  %4073 = vmatprep.mubr.f32.mxu0 0.0
  %4074 = vmatmul.mubr.f32.gmra.mxu0 %v3733
  %v4075 = vpop.f32.mrf.mxu0
  %v4076 = vadd.f32 0.0, %v4075
  %v4077 = vpop.f32.mrf.mxu0
  %4078 = vmatprep.mubr.f32.mxu0 0.0
  %4079 = vmatmul.mubr.f32.gmra.mxu0 %v3736
  %v4080 = vpop.f32.mrf.mxu0
  %v4081 = vadd.f32 0.0, %v4080
  %v4082 = vpop.f32.mrf.mxu0
  %4083 = vmatprep.mubr.f32.mxu0 0.0
  %4084 = vmatmul.mubr.f32.gmra.mxu0 %v3739
  %v4085 = vpop.f32.mrf.mxu0
  %v4086 = vadd.f32 0.0, %v4085
  %v4087 = vpop.f32.mrf.mxu0
  %4088 = vmatprep.mubr.f32.mxu0 0.0
  %4089 = vmatmul.mubr.f32.gmra.mxu0 %v3742
  %v4090 = vpop.f32.mrf.mxu0
  %v4091 = vadd.f32 0.0, %v4090
  %v4092 = vpop.f32.mrf.mxu0
  %4093 = vmatprep.mubr.f32.mxu0 0.0
  %4094 = vmatmul.mubr.f32.gmra.mxu0 %v3745
  %v4095 = vpop.f32.mrf.mxu0
  %v4096 = vadd.f32 0.0, %v4095
  %v4097 = vpop.f32.mrf.mxu0
  %4098 = vmatprep.mubr.f32.mxu0 0.0
  %4099 = vmatmul.mubr.f32.gmra.mxu0 %v3748
  %v4100 = vpop.f32.mrf.mxu0
  %v4101 = vadd.f32 0.0, %v4100
  %v4102 = vpop.f32.mrf.mxu0
  %4103 = vmatprep.mubr.f32.mxu0 0.0
  %4104 = vmatmul.mubr.f32.gmra.mxu0 %v3751
  %v4105 = vpop.f32.mrf.mxu0
  %v4106 = vadd.f32 0.0, %v4105
  %v4107 = vpop.f32.mrf.mxu0
  %4108 = vmatprep.mubr.f32.mxu0 0.0
  %4109 = vmatmul.mubr.f32.gmra.mxu0 %v3754
  %v4110 = vpop.f32.mrf.mxu0
  %v4111 = vadd.f32 0.0, %v4110
  %v4112 = vpop.f32.mrf.mxu0
  %4113 = vmatprep.mubr.f32.mxu0 0.0
  %4114 = vmatmul.mubr.f32.gmra.mxu0 %v3757
  %v4115 = vpop.f32.mrf.mxu0
  %v4116 = vadd.f32 0.0, %v4115
  %v4117 = vpop.f32.mrf.mxu0
  %4118 = vmatprep.mubr.f32.mxu0 0.0
  %4119 = vmatmul.mubr.f32.gmra.mxu0 %v3760
  %v4120 = vpop.f32.mrf.mxu0
  %v4121 = vadd.f32 0.0, %v4120
  %v4122 = vpop.f32.mrf.mxu0
  %4123 = vmatprep.mubr.f32.mxu0 0.0
  %4124 = vmatmul.mubr.f32.gmra.mxu0 %v3763
  %v4125 = vpop.f32.mrf.mxu0
  %v4126 = vadd.f32 0.0, %v4125
  %v4127 = vpop.f32.mrf.mxu0
  %4128 = vmatprep.mubr.f32.mxu0 0.0
  %4129 = vmatmul.mubr.f32.gmra.mxu0 %v3766
  %v4130 = vpop.f32.mrf.mxu0
  %v4131 = vadd.f32 0.0, %v4130
  %v4132 = vpop.f32.mrf.mxu0
  %4133 = vmatprep.mubr.f32.mxu0 0.0
  %4134 = vmatmul.mubr.f32.gmra.mxu0 %v3769
  %v4135 = vpop.f32.mrf.mxu0
  %v4136 = vadd.f32 0.0, %v4135
  %v4137 = vpop.f32.mrf.mxu0
  %4138 = vmatprep.mubr.f32.mxu0 0.0
  %4139 = vmatmul.mubr.f32.gmra.mxu0 %v3772
  %v4140 = vpop.f32.mrf.mxu0
  %v4141 = vadd.f32 0.0, %v4140
  %v4142 = vpop.f32.mrf.mxu0
  %4143 = vmatprep.mubr.f32.mxu0 0.0
  %4144 = vmatmul.mubr.f32.gmra.mxu0 %v3775
  %v4145 = vpop.f32.mrf.mxu0
  %v4146 = vadd.f32 0.0, %v4145
  %v4147 = vpop.f32.mrf.mxu0
  %4148 = vmatprep.mubr.f32.mxu0 0.0
  %4149 = vmatmul.mubr.f32.gmra.mxu0 %v3778
  %v4150 = vpop.f32.mrf.mxu0
  %v4151 = vadd.f32 0.0, %v4150
  %v4152 = vpop.f32.mrf.mxu0
  %4153 = vmatprep.mubr.f32.mxu0 0.0
  %4154 = vmatmul.mubr.f32.gmra.mxu0 %v3781
  %v4155 = vpop.f32.mrf.mxu0
  %v4156 = vadd.f32 0.0, %v4155
  %v4157 = vpop.f32.mrf.mxu0
  %4158 = vmatprep.mubr.f32.mxu0 0.0
  %4159 = vmatmul.mubr.f32.gmra.mxu0 %v3784
  %v4160 = vpop.f32.mrf.mxu0
  %v4161 = vadd.f32 0.0, %v4160
  %v4162 = vpop.f32.mrf.mxu0
  %4163 = vmatprep.mubr.f32.mxu0 0.0
  %4164 = vmatmul.mubr.f32.gmra.mxu0 %v3787
  %v4165 = vpop.f32.mrf.mxu0
  %v4166 = vadd.f32 0.0, %v4165
  %v4167 = vpop.f32.mrf.mxu0
  %4168 = vmatprep.mubr.f32.mxu0 0.0
  %4169 = vmatmul.mubr.f32.gmra.mxu0 %v3790
  %v4170 = vpop.f32.mrf.mxu0
  %v4171 = vadd.f32 0.0, %v4170
  %v4172 = vpop.f32.mrf.mxu0
  %4173 = vmatprep.mubr.f32.mxu0 0.0
  %4174 = vmatmul.mubr.f32.gmra.mxu0 %v3793
  %v4175 = vpop.f32.mrf.mxu0
  %v4176 = vadd.f32 0.0, %v4175
  %v4177 = vpop.f32.mrf.mxu0
  %4178 = vmatprep.mubr.f32.mxu0 0.0
  %4179 = vmatmul.mubr.f32.gmra.mxu0 %v3796
  %v4180 = vpop.f32.mrf.mxu0
  %v4181 = vadd.f32 0.0, %v4180
  %v4182 = vpop.f32.mrf.mxu0
  %4183 = vmatprep.mubr.f32.mxu0 0.0
  %4184 = vmatmul.mubr.f32.gmra.mxu0 %v3799
  %v4185 = vpop.f32.mrf.mxu0
  %v4186 = vadd.f32 0.0, %v4185
  %v4187 = vpop.f32.mrf.mxu0
  %4188 = vdwg.mxu0
  %v4189 = vadd.f32 %v3479, %v3871
  %v4190 = vadd.f32 %v3480, %v3876
  %v4191 = vadd.f32 %v3481, %v3881
  %v4192 = vadd.f32 %v3482, %v3886
  %v4193 = vadd.f32 %v3483, %v3891
  %v4194 = vadd.f32 %v3484, %v3896
  %v4195 = vadd.f32 %v3485, %v3901
  %v4196 = vadd.f32 %v3486, %v3906
  %v4197 = vadd.f32 %v3487, %v3911
  %v4198 = vadd.f32 %v3488, %v3916
  %v4199 = vadd.f32 %v3489, %v3921
  %v4200 = vadd.f32 %v3490, %v3926
  %v4201 = vadd.f32 %v3491, %v3931
  %v4202 = vadd.f32 %v3492, %v3936
  %v4203 = vadd.f32 %v3493, %v3941
  %v4204 = vadd.f32 %v3494, %v3946
  %v4205 = vadd.f32 %v3495, %v3951
  %v4206 = vadd.f32 %v3496, %v3956
  %v4207 = vadd.f32 %v3497, %v3961
  %v4208 = vadd.f32 %v3498, %v3966
  %v4209 = vadd.f32 %v3499, %v3971
  %v4210 = vadd.f32 %v3500, %v3976
  %v4211 = vadd.f32 %v3501, %v3981
  %v4212 = vadd.f32 %v3502, %v3986
  %v4213 = vadd.f32 %v3503, %v3991
  %v4214 = vadd.f32 %v3504, %v3996
  %v4215 = vadd.f32 %v3505, %v4001
  %v4216 = vadd.f32 %v3506, %v4006
  %v4217 = vadd.f32 %v3507, %v4011
  %v4218 = vadd.f32 %v3508, %v4016
  %v4219 = vadd.f32 %v3509, %v4021
  %v4220 = vadd.f32 %v3510, %v4026
  %v4221 = vadd.f32 %v3511, %v4031
  %v4222 = vadd.f32 %v3512, %v4036
  %v4223 = vadd.f32 %v3513, %v4041
  %v4224 = vadd.f32 %v3514, %v4046
  %v4225 = vadd.f32 %v3515, %v4051
  %v4226 = vadd.f32 %v3516, %v4056
  %v4227 = vadd.f32 %v3517, %v4061
  %v4228 = vadd.f32 %v3518, %v4066
  %v4229 = vadd.f32 %v3519, %v4071
  %v4230 = vadd.f32 %v3520, %v4076
  %v4231 = vadd.f32 %v3521, %v4081
  %v4232 = vadd.f32 %v3522, %v4086
  %v4233 = vadd.f32 %v3523, %v4091
  %v4234 = vadd.f32 %v3524, %v4096
  %v4235 = vadd.f32 %v3525, %v4101
  %v4236 = vadd.f32 %v3526, %v4106
  %v4237 = vadd.f32 %v3527, %v4111
  %v4238 = vadd.f32 %v3528, %v4116
  %v4239 = vadd.f32 %v3529, %v4121
  %v4240 = vadd.f32 %v3530, %v4126
  %v4241 = vadd.f32 %v3531, %v4131
  %v4242 = vadd.f32 %v3532, %v4136
  %v4243 = vadd.f32 %v3533, %v4141
  %v4244 = vadd.f32 %v3534, %v4146
  %v4245 = vadd.f32 %v3535, %v4151
  %v4246 = vadd.f32 %v3536, %v4156
  %v4247 = vadd.f32 %v3537, %v4161
  %v4248 = vadd.f32 %v3538, %v4166
  %v4249 = vadd.f32 %v3539, %v4171
  %v4250 = vadd.f32 %v3540, %v4176
  %v4251 = vadd.f32 %v3541, %v4181
  %v4252 = vadd.f32 %v3542, %v4186
  %v4253 = vld [vmem:[%s1476 + $0x1] sm:$0xff]
  %v4254 = vld [vmem:[%s1476 + $0x9] sm:$0xff]
  %v4255 = vld [vmem:[%s1476 + $0x19] sm:$0xff]
  %v4256 = vld [vmem:[%s1476 + $0x21] sm:$0xff]
  %v4257 = vld [vmem:[%s1476 + $0x31] sm:$0xff]
  %v4258 = vld [vmem:[%s1476 + $0x39] sm:$0xff]
  %v4259 = vld [vmem:[%s1476 + $0x49] sm:$0xff]
  %v4260 = vld [vmem:[%s1476 + $0x51] sm:$0xff]
  %v4261 = vld [vmem:[%s1476 + $0x61] sm:$0xff]
  %v4262 = vld [vmem:[%s1476 + $0x69] sm:$0xff]
  %v4263 = vld [vmem:[%s1476 + $0x79] sm:$0xff]
  %v4264 = vld [vmem:[%s1476 + $0x81] sm:$0xff]
  %v4265 = vld [vmem:[%s1476 + $0x91] sm:$0xff]
  %v4266 = vld [vmem:[%s1476 + $0x99] sm:$0xff]
  %v4267 = vld [vmem:[%s1476 + $0xa9] sm:$0xff]
  %v4268 = vld [vmem:[%s1476 + $0xb1] sm:$0xff]
  %v4269 = vld [vmem:[%s1476 + $0xc1] sm:$0xff]
  %v4270 = vld [vmem:[%s1476 + $0xc9] sm:$0xff]
  %v4271 = vld [vmem:[%s1476 + $0xd9] sm:$0xff]
  %v4272 = vld [vmem:[%s1476 + $0xe1] sm:$0xff]
  %v4273 = vld [vmem:[%s1476 + $0xf1] sm:$0xff]
  %v4274 = vld [vmem:[%s1476 + $0xf9] sm:$0xff]
  %v4275 = vld [vmem:[%s1476 + $0x109] sm:$0xff]
  %v4276 = vld [vmem:[%s1476 + $0x111] sm:$0xff]
  %v4277 = vld [vmem:[%s1476 + $0x121] sm:$0xff]
  %v4278 = vld [vmem:[%s1476 + $0x129] sm:$0xff]
  %v4279 = vld [vmem:[%s1476 + $0x139] sm:$0xff]
  %v4280 = vld [vmem:[%s1476 + $0x141] sm:$0xff]
  %v4281 = vld [vmem:[%s1476 + $0x151] sm:$0xff]
  %v4282 = vld [vmem:[%s1476 + $0x159] sm:$0xff]
  %v4283 = vld [vmem:[%s1476 + $0x169] sm:$0xff]
  %v4284 = vld [vmem:[%s1476 + $0x171] sm:$0xff]
  %v4285 = vld [vmem:[%s1476 + $0x1b1] sm:$0xff]
  %v4286 = vld [vmem:[%s1476 + $0x1b9] sm:$0xff]
  %v4287 = vld [vmem:[%s1476 + $0x1c9] sm:$0xff]
  %v4288 = vld [vmem:[%s1476 + $0x1d1] sm:$0xff]
  %v4289 = vld [vmem:[%s1476 + $0x1e1] sm:$0xff]
  %v4290 = vld [vmem:[%s1476 + $0x1e9] sm:$0xff]
  %v4291 = vld [vmem:[%s1476 + $0x1f9] sm:$0xff]
  %v4292 = vld [vmem:[%s1476 + $0x201] sm:$0xff]
  %v4293 = vld [vmem:[%s1476 + $0x211] sm:$0xff]
  %v4294 = vld [vmem:[%s1476 + $0x219] sm:$0xff]
  %v4295 = vld [vmem:[%s1476 + $0x229] sm:$0xff]
  %v4296 = vld [vmem:[%s1476 + $0x231] sm:$0xff]
  %v4297 = vld [vmem:[%s1476 + $0x241] sm:$0xff]
  %v4298 = vld [vmem:[%s1476 + $0x249] sm:$0xff]
  %v4299 = vld [vmem:[%s1476 + $0x259] sm:$0xff]
  %v4300 = vld [vmem:[%s1476 + $0x261] sm:$0xff]
  %v4301 = vld [vmem:[%s1476 + $0x271] sm:$0xff]
  %v4302 = vld [vmem:[%s1476 + $0x279] sm:$0xff]
  %v4303 = vld [vmem:[%s1476 + $0x289] sm:$0xff]
  %v4304 = vld [vmem:[%s1476 + $0x291] sm:$0xff]
  %v4305 = vld [vmem:[%s1476 + $0x2a1] sm:$0xff]
  %v4306 = vld [vmem:[%s1476 + $0x2a9] sm:$0xff]
  %v4307 = vld [vmem:[%s1476 + $0x2b9] sm:$0xff]
  %v4308 = vld [vmem:[%s1476 + $0x2c1] sm:$0xff]
  %v4309 = vld [vmem:[%s1476 + $0x2d1] sm:$0xff]
  %v4310 = vld [vmem:[%s1476 + $0x2d9] sm:$0xff]
  %v4311 = vld [vmem:[%s1476 + $0x2e9] sm:$0xff]
  %v4312 = vld [vmem:[%s1476 + $0x2f1] sm:$0xff]
  %v4313 = vld [vmem:[%s1476 + $0x301] sm:$0xff]
  %v4314 = vld [vmem:[%s1476 + $0x309] sm:$0xff]
  %v4315 = vld [vmem:[%s1476 + $0x319] sm:$0xff]
  %v4316 = vld [vmem:[%s1476 + $0x321] sm:$0xff]
  %s4317 = scalar_lea.vmem %s5, 16
  %v4318 = vld [vmem:[%s4317] sm:$0xf]
  %v4320 = vsel %vm697, %v4253, 0
  %v4323 = vsel %vm697, %v4254, 0
  %v4326 = vsel %vm697, %v4255, 0
  %v4329 = vsel %vm697, %v4256, 0
  %v4332 = vsel %vm697, %v4257, 0
  %v4335 = vsel %vm697, %v4258, 0
  %v4338 = vsel %vm697, %v4259, 0
  %v4341 = vsel %vm697, %v4260, 0
  %v4344 = vsel %vm697, %v4261, 0
  %v4347 = vsel %vm697, %v4262, 0
  %v4350 = vsel %vm697, %v4263, 0
  %v4353 = vsel %vm697, %v4264, 0
  %v4356 = vsel %vm697, %v4265, 0
  %v4359 = vsel %vm697, %v4266, 0
  %v4362 = vsel %vm697, %v4267, 0
  %v4365 = vsel %vm697, %v4268, 0
  %v4368 = vsel %vm697, %v4269, 0
  %v4371 = vsel %vm697, %v4270, 0
  %v4374 = vsel %vm697, %v4271, 0
  %v4377 = vsel %vm697, %v4272, 0
  %v4380 = vsel %vm697, %v4273, 0
  %v4383 = vsel %vm697, %v4274, 0
  %v4386 = vsel %vm697, %v4275, 0
  %v4389 = vsel %vm697, %v4276, 0
  %v4392 = vsel %vm697, %v4277, 0
  %v4395 = vsel %vm697, %v4278, 0
  %v4398 = vsel %vm697, %v4279, 0
  %v4401 = vsel %vm697, %v4280, 0
  %v4404 = vsel %vm697, %v4281, 0
  %v4407 = vsel %vm697, %v4282, 0
  %v4410 = vsel %vm697, %v4283, 0
  %v4413 = vsel %vm697, %v4284, 0
  %v4416 = vsel %vm697, %v4285, 0
  %v4419 = vsel %vm697, %v4286, 0
  %v4422 = vsel %vm697, %v4287, 0
  %v4425 = vsel %vm697, %v4288, 0
  %v4428 = vsel %vm697, %v4289, 0
  %v4431 = vsel %vm697, %v4290, 0
  %v4434 = vsel %vm697, %v4291, 0
  %v4437 = vsel %vm697, %v4292, 0
  %v4440 = vsel %vm697, %v4293, 0
  %v4443 = vsel %vm697, %v4294, 0
  %v4446 = vsel %vm697, %v4295, 0
  %v4449 = vsel %vm697, %v4296, 0
  %v4452 = vsel %vm697, %v4297, 0
  %v4455 = vsel %vm697, %v4298, 0
  %v4458 = vsel %vm697, %v4299, 0
  %v4461 = vsel %vm697, %v4300, 0
  %v4464 = vsel %vm697, %v4301, 0
  %v4467 = vsel %vm697, %v4302, 0
  %v4470 = vsel %vm697, %v4303, 0
  %v4473 = vsel %vm697, %v4304, 0
  %v4476 = vsel %vm697, %v4305, 0
  %v4479 = vsel %vm697, %v4306, 0
  %v4482 = vsel %vm697, %v4307, 0
  %v4485 = vsel %vm697, %v4308, 0
  %v4488 = vsel %vm697, %v4309, 0
  %v4491 = vsel %vm697, %v4310, 0
  %v4494 = vsel %vm697, %v4311, 0
  %v4497 = vsel %vm697, %v4312, 0
  %v4500 = vsel %vm697, %v4313, 0
  %v4503 = vsel %vm697, %v4314, 0
  %v4506 = vsel %vm697, %v4315, 0
  %v4509 = vsel %vm697, %v4316, 0
  %v4512 = vsel %vm1864, %v4318, 0
  %4514 = vmatprep.subr.mxu0 0.0
  %4515 = vmatpush1.msra.mxu0 0.0
  %4516 = vmatprep.subr.mxu0 0.0
  %4517 = vmatpush1.msra.mxu0 0.0
  %4518 = vmatprep.subr.mxu0 0.0
  %4519 = vmatpush1.msra.mxu0 0.0
  %4520 = vmatprep.subr.mxu0 0.0
  %4521 = vmatpush1.msra.mxu0 0.0
  %4522 = vmatprep.subr.mxu0 0.0
  %4523 = vmatpush1.msra.mxu0 0.0
  %4524 = vmatprep.subr.mxu0 0.0
  %4525 = vmatpush1.msra.mxu0 0.0
  %4526 = vmatprep.subr.mxu0 0.0
  %4527 = vmatpush1.msra.mxu0 0.0
  %4528 = vmatprep.subr.mxu0 0.0
  %4529 = vmatpush1.msra.mxu0 0.0
  %4530 = vmatprep.subr.mxu0 0.0
  %4531 = vmatpush1.msra.mxu0 0.0
  %4532 = vmatprep.subr.mxu0 0.0
  %4533 = vmatpush1.msra.mxu0 0.0
  %4534 = vmatprep.subr.mxu0 0.0
  %4535 = vmatpush1.msra.mxu0 0.0
  %4536 = vmatprep.subr.mxu0 0.0
  %4537 = vmatpush1.msra.mxu0 0.0
  %4538 = vmatprep.subr.mxu0 0.0
  %4539 = vmatpush1.msra.mxu0 0.0
  %4540 = vmatprep.subr.mxu0 0.0
  %4541 = vmatpush1.msra.mxu0 0.0
  %4542 = vmatprep.subr.mxu0 0.0
  %4543 = vmatpush1.msra.mxu0 0.0
  %4544 = vmatprep.subr.mxu0 0.0
  %4545 = vmatpush1.msra.mxu0 %v4512
  %4546 = vmatprep.subr.mxu0 0.0
  %4547 = vmatpush2.msra.mxu0 0.0
  %4548 = vmatprep.subr.mxu0 0.0
  %4549 = vmatpush2.msra.mxu0 0.0
  %4550 = vmatprep.subr.mxu0 0.0
  %4551 = vmatpush2.msra.mxu0 0.0
  %4552 = vmatprep.subr.mxu0 0.0
  %4553 = vmatpush2.msra.mxu0 0.0
  %4554 = vmatprep.subr.mxu0 0.0
  %4555 = vmatpush2.msra.mxu0 0.0
  %4556 = vmatprep.subr.mxu0 0.0
  %4557 = vmatpush2.msra.mxu0 0.0
  %4558 = vmatprep.subr.mxu0 0.0
  %4559 = vmatpush2.msra.mxu0 0.0
  %4560 = vmatprep.subr.mxu0 0.0
  %4561 = vmatpush2.msra.mxu0 0.0
  %4562 = vmatprep.subr.mxu0 0.0
  %4563 = vmatpush2.msra.mxu0 0.0
  %4564 = vmatprep.subr.mxu0 0.0
  %4565 = vmatpush2.msra.mxu0 0.0
  %4566 = vmatprep.subr.mxu0 0.0
  %4567 = vmatpush2.msra.mxu0 0.0
  %4568 = vmatprep.subr.mxu0 0.0
  %4569 = vmatpush2.msra.mxu0 0.0
  %4570 = vmatprep.subr.mxu0 0.0
  %4571 = vmatpush2.msra.mxu0 0.0
  %4572 = vmatprep.subr.mxu0 0.0
  %4573 = vmatpush2.msra.mxu0 0.0
  %4574 = vmatprep.subr.mxu0 0.0
  %4575 = vmatpush2.msra.mxu0 0.0
  %4576 = vmatprep.subr.mxu0 0.0
  %4577 = vmatpush2.msra.mxu0 0.0
  %4578 = vmatprep.mubr.f32.mxu0 0.0
  %4579 = vmatmul.mubr.f32.gmra.mxu0 %v4320
  %v4580 = vpop.f32.mrf.mxu0
  %v4581 = vadd.f32 0.0, %v4580
  %v4582 = vpop.f32.mrf.mxu0
  %4583 = vmatprep.mubr.f32.mxu0 0.0
  %4584 = vmatmul.mubr.f32.gmra.mxu0 %v4323
  %v4585 = vpop.f32.mrf.mxu0
  %v4586 = vadd.f32 0.0, %v4585
  %v4587 = vpop.f32.mrf.mxu0
  %4588 = vmatprep.mubr.f32.mxu0 0.0
  %4589 = vmatmul.mubr.f32.gmra.mxu0 %v4326
  %v4590 = vpop.f32.mrf.mxu0
  %v4591 = vadd.f32 0.0, %v4590
  %v4592 = vpop.f32.mrf.mxu0
  %4593 = vmatprep.mubr.f32.mxu0 0.0
  %4594 = vmatmul.mubr.f32.gmra.mxu0 %v4329
  %v4595 = vpop.f32.mrf.mxu0
  %v4596 = vadd.f32 0.0, %v4595
  %v4597 = vpop.f32.mrf.mxu0
  %4598 = vmatprep.mubr.f32.mxu0 0.0
  %4599 = vmatmul.mubr.f32.gmra.mxu0 %v4332
  %v4600 = vpop.f32.mrf.mxu0
  %v4601 = vadd.f32 0.0, %v4600
  %v4602 = vpop.f32.mrf.mxu0
  %4603 = vmatprep.mubr.f32.mxu0 0.0
  %4604 = vmatmul.mubr.f32.gmra.mxu0 %v4335
  %v4605 = vpop.f32.mrf.mxu0
  %v4606 = vadd.f32 0.0, %v4605
  %v4607 = vpop.f32.mrf.mxu0
  %4608 = vmatprep.mubr.f32.mxu0 0.0
  %4609 = vmatmul.mubr.f32.gmra.mxu0 %v4338
  %v4610 = vpop.f32.mrf.mxu0
  %v4611 = vadd.f32 0.0, %v4610
  %v4612 = vpop.f32.mrf.mxu0
  %4613 = vmatprep.mubr.f32.mxu0 0.0
  %4614 = vmatmul.mubr.f32.gmra.mxu0 %v4341
  %v4615 = vpop.f32.mrf.mxu0
  %v4616 = vadd.f32 0.0, %v4615
  %v4617 = vpop.f32.mrf.mxu0
  %4618 = vmatprep.mubr.f32.mxu0 0.0
  %4619 = vmatmul.mubr.f32.gmra.mxu0 %v4344
  %v4620 = vpop.f32.mrf.mxu0
  %v4621 = vadd.f32 0.0, %v4620
  %v4622 = vpop.f32.mrf.mxu0
  %4623 = vmatprep.mubr.f32.mxu0 0.0
  %4624 = vmatmul.mubr.f32.gmra.mxu0 %v4347
  %v4625 = vpop.f32.mrf.mxu0
  %v4626 = vadd.f32 0.0, %v4625
  %v4627 = vpop.f32.mrf.mxu0
  %4628 = vmatprep.mubr.f32.mxu0 0.0
  %4629 = vmatmul.mubr.f32.gmra.mxu0 %v4350
  %v4630 = vpop.f32.mrf.mxu0
  %v4631 = vadd.f32 0.0, %v4630
  %v4632 = vpop.f32.mrf.mxu0
  %4633 = vmatprep.mubr.f32.mxu0 0.0
  %4634 = vmatmul.mubr.f32.gmra.mxu0 %v4353
  %v4635 = vpop.f32.mrf.mxu0
  %v4636 = vadd.f32 0.0, %v4635
  %v4637 = vpop.f32.mrf.mxu0
  %4638 = vmatprep.mubr.f32.mxu0 0.0
  %4639 = vmatmul.mubr.f32.gmra.mxu0 %v4356
  %v4640 = vpop.f32.mrf.mxu0
  %v4641 = vadd.f32 0.0, %v4640
  %v4642 = vpop.f32.mrf.mxu0
  %4643 = vmatprep.mubr.f32.mxu0 0.0
  %4644 = vmatmul.mubr.f32.gmra.mxu0 %v4359
  %v4645 = vpop.f32.mrf.mxu0
  %v4646 = vadd.f32 0.0, %v4645
  %v4647 = vpop.f32.mrf.mxu0
  %4648 = vmatprep.mubr.f32.mxu0 0.0
  %4649 = vmatmul.mubr.f32.gmra.mxu0 %v4362
  %v4650 = vpop.f32.mrf.mxu0
  %v4651 = vadd.f32 0.0, %v4650
  %v4652 = vpop.f32.mrf.mxu0
  %4653 = vmatprep.mubr.f32.mxu0 0.0
  %4654 = vmatmul.mubr.f32.gmra.mxu0 %v4365
  %v4655 = vpop.f32.mrf.mxu0
  %v4656 = vadd.f32 0.0, %v4655
  %v4657 = vpop.f32.mrf.mxu0
  %4658 = vmatprep.mubr.f32.mxu0 0.0
  %4659 = vmatmul.mubr.f32.gmra.mxu0 %v4368
  %v4660 = vpop.f32.mrf.mxu0
  %v4661 = vadd.f32 0.0, %v4660
  %v4662 = vpop.f32.mrf.mxu0
  %4663 = vmatprep.mubr.f32.mxu0 0.0
  %4664 = vmatmul.mubr.f32.gmra.mxu0 %v4371
  %v4665 = vpop.f32.mrf.mxu0
  %v4666 = vadd.f32 0.0, %v4665
  %v4667 = vpop.f32.mrf.mxu0
  %4668 = vmatprep.mubr.f32.mxu0 0.0
  %4669 = vmatmul.mubr.f32.gmra.mxu0 %v4374
  %v4670 = vpop.f32.mrf.mxu0
  %v4671 = vadd.f32 0.0, %v4670
  %v4672 = vpop.f32.mrf.mxu0
  %4673 = vmatprep.mubr.f32.mxu0 0.0
  %4674 = vmatmul.mubr.f32.gmra.mxu0 %v4377
  %v4675 = vpop.f32.mrf.mxu0
  %v4676 = vadd.f32 0.0, %v4675
  %v4677 = vpop.f32.mrf.mxu0
  %4678 = vmatprep.mubr.f32.mxu0 0.0
  %4679 = vmatmul.mubr.f32.gmra.mxu0 %v4380
  %v4680 = vpop.f32.mrf.mxu0
  %v4681 = vadd.f32 0.0, %v4680
  %v4682 = vpop.f32.mrf.mxu0
  %4683 = vmatprep.mubr.f32.mxu0 0.0
  %4684 = vmatmul.mubr.f32.gmra.mxu0 %v4383
  %v4685 = vpop.f32.mrf.mxu0
  %v4686 = vadd.f32 0.0, %v4685
  %v4687 = vpop.f32.mrf.mxu0
  %4688 = vmatprep.mubr.f32.mxu0 0.0
  %4689 = vmatmul.mubr.f32.gmra.mxu0 %v4386
  %v4690 = vpop.f32.mrf.mxu0
  %v4691 = vadd.f32 0.0, %v4690
  %v4692 = vpop.f32.mrf.mxu0
  %4693 = vmatprep.mubr.f32.mxu0 0.0
  %4694 = vmatmul.mubr.f32.gmra.mxu0 %v4389
  %v4695 = vpop.f32.mrf.mxu0
  %v4696 = vadd.f32 0.0, %v4695
  %v4697 = vpop.f32.mrf.mxu0
  %4698 = vmatprep.mubr.f32.mxu0 0.0
  %4699 = vmatmul.mubr.f32.gmra.mxu0 %v4392
  %v4700 = vpop.f32.mrf.mxu0
  %v4701 = vadd.f32 0.0, %v4700
  %v4702 = vpop.f32.mrf.mxu0
  %4703 = vmatprep.mubr.f32.mxu0 0.0
  %4704 = vmatmul.mubr.f32.gmra.mxu0 %v4395
  %v4705 = vpop.f32.mrf.mxu0
  %v4706 = vadd.f32 0.0, %v4705
  %v4707 = vpop.f32.mrf.mxu0
  %4708 = vmatprep.mubr.f32.mxu0 0.0
  %4709 = vmatmul.mubr.f32.gmra.mxu0 %v4398
  %v4710 = vpop.f32.mrf.mxu0
  %v4711 = vadd.f32 0.0, %v4710
  %v4712 = vpop.f32.mrf.mxu0
  %4713 = vmatprep.mubr.f32.mxu0 0.0
  %4714 = vmatmul.mubr.f32.gmra.mxu0 %v4401
  %v4715 = vpop.f32.mrf.mxu0
  %v4716 = vadd.f32 0.0, %v4715
  %v4717 = vpop.f32.mrf.mxu0
  %4718 = vmatprep.mubr.f32.mxu0 0.0
  %4719 = vmatmul.mubr.f32.gmra.mxu0 %v4404
  %v4720 = vpop.f32.mrf.mxu0
  %v4721 = vadd.f32 0.0, %v4720
  %v4722 = vpop.f32.mrf.mxu0
  %4723 = vmatprep.mubr.f32.mxu0 0.0
  %4724 = vmatmul.mubr.f32.gmra.mxu0 %v4407
  %v4725 = vpop.f32.mrf.mxu0
  %v4726 = vadd.f32 0.0, %v4725
  %v4727 = vpop.f32.mrf.mxu0
  %4728 = vmatprep.mubr.f32.mxu0 0.0
  %4729 = vmatmul.mubr.f32.gmra.mxu0 %v4410
  %v4730 = vpop.f32.mrf.mxu0
  %v4731 = vadd.f32 0.0, %v4730
  %v4732 = vpop.f32.mrf.mxu0
  %4733 = vmatprep.mubr.f32.mxu0 0.0
  %4734 = vmatmul.mubr.f32.gmra.mxu0 %v4413
  %v4735 = vpop.f32.mrf.mxu0
  %v4736 = vadd.f32 0.0, %v4735
  %v4737 = vpop.f32.mrf.mxu0
  %4738 = vmatprep.mubr.f32.mxu0 0.0
  %4739 = vmatmul.mubr.f32.gmra.mxu0 %v4416
  %v4740 = vpop.f32.mrf.mxu0
  %v4741 = vadd.f32 0.0, %v4740
  %v4742 = vpop.f32.mrf.mxu0
  %4743 = vmatprep.mubr.f32.mxu0 0.0
  %4744 = vmatmul.mubr.f32.gmra.mxu0 %v4419
  %v4745 = vpop.f32.mrf.mxu0
  %v4746 = vadd.f32 0.0, %v4745
  %v4747 = vpop.f32.mrf.mxu0
  %4748 = vmatprep.mubr.f32.mxu0 0.0
  %4749 = vmatmul.mubr.f32.gmra.mxu0 %v4422
  %v4750 = vpop.f32.mrf.mxu0
  %v4751 = vadd.f32 0.0, %v4750
  %v4752 = vpop.f32.mrf.mxu0
  %4753 = vmatprep.mubr.f32.mxu0 0.0
  %4754 = vmatmul.mubr.f32.gmra.mxu0 %v4425
  %v4755 = vpop.f32.mrf.mxu0
  %v4756 = vadd.f32 0.0, %v4755
  %v4757 = vpop.f32.mrf.mxu0
  %4758 = vmatprep.mubr.f32.mxu0 0.0
  %4759 = vmatmul.mubr.f32.gmra.mxu0 %v4428
  %v4760 = vpop.f32.mrf.mxu0
  %v4761 = vadd.f32 0.0, %v4760
  %v4762 = vpop.f32.mrf.mxu0
  %4763 = vmatprep.mubr.f32.mxu0 0.0
  %4764 = vmatmul.mubr.f32.gmra.mxu0 %v4431
  %v4765 = vpop.f32.mrf.mxu0
  %v4766 = vadd.f32 0.0, %v4765
  %v4767 = vpop.f32.mrf.mxu0
  %4768 = vmatprep.mubr.f32.mxu0 0.0
  %4769 = vmatmul.mubr.f32.gmra.mxu0 %v4434
  %v4770 = vpop.f32.mrf.mxu0
  %v4771 = vadd.f32 0.0, %v4770
  %v4772 = vpop.f32.mrf.mxu0
  %4773 = vmatprep.mubr.f32.mxu0 0.0
  %4774 = vmatmul.mubr.f32.gmra.mxu0 %v4437
  %v4775 = vpop.f32.mrf.mxu0
  %v4776 = vadd.f32 0.0, %v4775
  %v4777 = vpop.f32.mrf.mxu0
  %4778 = vmatprep.mubr.f32.mxu0 0.0
  %4779 = vmatmul.mubr.f32.gmra.mxu0 %v4440
  %v4780 = vpop.f32.mrf.mxu0
  %v4781 = vadd.f32 0.0, %v4780
  %v4782 = vpop.f32.mrf.mxu0
  %4783 = vmatprep.mubr.f32.mxu0 0.0
  %4784 = vmatmul.mubr.f32.gmra.mxu0 %v4443
  %v4785 = vpop.f32.mrf.mxu0
  %v4786 = vadd.f32 0.0, %v4785
  %v4787 = vpop.f32.mrf.mxu0
  %4788 = vmatprep.mubr.f32.mxu0 0.0
  %4789 = vmatmul.mubr.f32.gmra.mxu0 %v4446
  %v4790 = vpop.f32.mrf.mxu0
  %v4791 = vadd.f32 0.0, %v4790
  %v4792 = vpop.f32.mrf.mxu0
  %4793 = vmatprep.mubr.f32.mxu0 0.0
  %4794 = vmatmul.mubr.f32.gmra.mxu0 %v4449
  %v4795 = vpop.f32.mrf.mxu0
  %v4796 = vadd.f32 0.0, %v4795
  %v4797 = vpop.f32.mrf.mxu0
  %4798 = vmatprep.mubr.f32.mxu0 0.0
  %4799 = vmatmul.mubr.f32.gmra.mxu0 %v4452
  %v4800 = vpop.f32.mrf.mxu0
  %v4801 = vadd.f32 0.0, %v4800
  %v4802 = vpop.f32.mrf.mxu0
  %4803 = vmatprep.mubr.f32.mxu0 0.0
  %4804 = vmatmul.mubr.f32.gmra.mxu0 %v4455
  %v4805 = vpop.f32.mrf.mxu0
  %v4806 = vadd.f32 0.0, %v4805
  %v4807 = vpop.f32.mrf.mxu0
  %4808 = vmatprep.mubr.f32.mxu0 0.0
  %4809 = vmatmul.mubr.f32.gmra.mxu0 %v4458
  %v4810 = vpop.f32.mrf.mxu0
  %v4811 = vadd.f32 0.0, %v4810
  %v4812 = vpop.f32.mrf.mxu0
  %4813 = vmatprep.mubr.f32.mxu0 0.0
  %4814 = vmatmul.mubr.f32.gmra.mxu0 %v4461
  %v4815 = vpop.f32.mrf.mxu0
  %v4816 = vadd.f32 0.0, %v4815
  %v4817 = vpop.f32.mrf.mxu0
  %4818 = vmatprep.mubr.f32.mxu0 0.0
  %4819 = vmatmul.mubr.f32.gmra.mxu0 %v4464
  %v4820 = vpop.f32.mrf.mxu0
  %v4821 = vadd.f32 0.0, %v4820
  %v4822 = vpop.f32.mrf.mxu0
  %4823 = vmatprep.mubr.f32.mxu0 0.0
  %4824 = vmatmul.mubr.f32.gmra.mxu0 %v4467
  %v4825 = vpop.f32.mrf.mxu0
  %v4826 = vadd.f32 0.0, %v4825
  %v4827 = vpop.f32.mrf.mxu0
  %4828 = vmatprep.mubr.f32.mxu0 0.0
  %4829 = vmatmul.mubr.f32.gmra.mxu0 %v4470
  %v4830 = vpop.f32.mrf.mxu0
  %v4831 = vadd.f32 0.0, %v4830
  %v4832 = vpop.f32.mrf.mxu0
  %4833 = vmatprep.mubr.f32.mxu0 0.0
  %4834 = vmatmul.mubr.f32.gmra.mxu0 %v4473
  %v4835 = vpop.f32.mrf.mxu0
  %v4836 = vadd.f32 0.0, %v4835
  %v4837 = vpop.f32.mrf.mxu0
  %4838 = vmatprep.mubr.f32.mxu0 0.0
  %4839 = vmatmul.mubr.f32.gmra.mxu0 %v4476
  %v4840 = vpop.f32.mrf.mxu0
  %v4841 = vadd.f32 0.0, %v4840
  %v4842 = vpop.f32.mrf.mxu0
  %4843 = vmatprep.mubr.f32.mxu0 0.0
  %4844 = vmatmul.mubr.f32.gmra.mxu0 %v4479
  %v4845 = vpop.f32.mrf.mxu0
  %v4846 = vadd.f32 0.0, %v4845
  %v4847 = vpop.f32.mrf.mxu0
  %4848 = vmatprep.mubr.f32.mxu0 0.0
  %4849 = vmatmul.mubr.f32.gmra.mxu0 %v4482
  %v4850 = vpop.f32.mrf.mxu0
  %v4851 = vadd.f32 0.0, %v4850
  %v4852 = vpop.f32.mrf.mxu0
  %4853 = vmatprep.mubr.f32.mxu0 0.0
  %4854 = vmatmul.mubr.f32.gmra.mxu0 %v4485
  %v4855 = vpop.f32.mrf.mxu0
  %v4856 = vadd.f32 0.0, %v4855
  %v4857 = vpop.f32.mrf.mxu0
  %4858 = vmatprep.mubr.f32.mxu0 0.0
  %4859 = vmatmul.mubr.f32.gmra.mxu0 %v4488
  %v4860 = vpop.f32.mrf.mxu0
  %v4861 = vadd.f32 0.0, %v4860
  %v4862 = vpop.f32.mrf.mxu0
  %4863 = vmatprep.mubr.f32.mxu0 0.0
  %4864 = vmatmul.mubr.f32.gmra.mxu0 %v4491
  %v4865 = vpop.f32.mrf.mxu0
  %v4866 = vadd.f32 0.0, %v4865
  %v4867 = vpop.f32.mrf.mxu0
  %4868 = vmatprep.mubr.f32.mxu0 0.0
  %4869 = vmatmul.mubr.f32.gmra.mxu0 %v4494
  %v4870 = vpop.f32.mrf.mxu0
  %v4871 = vadd.f32 0.0, %v4870
  %v4872 = vpop.f32.mrf.mxu0
  %4873 = vmatprep.mubr.f32.mxu0 0.0
  %4874 = vmatmul.mubr.f32.gmra.mxu0 %v4497
  %v4875 = vpop.f32.mrf.mxu0
  %v4876 = vadd.f32 0.0, %v4875
  %v4877 = vpop.f32.mrf.mxu0
  %4878 = vmatprep.mubr.f32.mxu0 0.0
  %4879 = vmatmul.mubr.f32.gmra.mxu0 %v4500
  %v4880 = vpop.f32.mrf.mxu0
  %v4881 = vadd.f32 0.0, %v4880
  %v4882 = vpop.f32.mrf.mxu0
  %4883 = vmatprep.mubr.f32.mxu0 0.0
  %4884 = vmatmul.mubr.f32.gmra.mxu0 %v4503
  %v4885 = vpop.f32.mrf.mxu0
  %v4886 = vadd.f32 0.0, %v4885
  %v4887 = vpop.f32.mrf.mxu0
  %4888 = vmatprep.mubr.f32.mxu0 0.0
  %4889 = vmatmul.mubr.f32.gmra.mxu0 %v4506
  %v4890 = vpop.f32.mrf.mxu0
  %v4891 = vadd.f32 0.0, %v4890
  %v4892 = vpop.f32.mrf.mxu0
  %4893 = vmatprep.mubr.f32.mxu0 0.0
  %4894 = vmatmul.mubr.f32.gmra.mxu0 %v4509
  %v4895 = vpop.f32.mrf.mxu0
  %v4896 = vadd.f32 0.0, %v4895
  %v4897 = vpop.f32.mrf.mxu0
  %4898 = vdwg.mxu0
  %v4899 = vadd.f32 %v4189, %v4581
  %v4900 = vadd.f32 %v4190, %v4586
  %v4901 = vadd.f32 %v4191, %v4591
  %v4902 = vadd.f32 %v4192, %v4596
  %v4903 = vadd.f32 %v4193, %v4601
  %v4904 = vadd.f32 %v4194, %v4606
  %v4905 = vadd.f32 %v4195, %v4611
  %v4906 = vadd.f32 %v4196, %v4616
  %v4907 = vadd.f32 %v4197, %v4621
  %v4908 = vadd.f32 %v4198, %v4626
  %v4909 = vadd.f32 %v4199, %v4631
  %v4910 = vadd.f32 %v4200, %v4636
  %v4911 = vadd.f32 %v4201, %v4641
  %v4912 = vadd.f32 %v4202, %v4646
  %v4913 = vadd.f32 %v4203, %v4651
  %v4914 = vadd.f32 %v4204, %v4656
  %v4915 = vadd.f32 %v4205, %v4661
  %v4916 = vadd.f32 %v4206, %v4666
  %v4917 = vadd.f32 %v4207, %v4671
  %v4918 = vadd.f32 %v4208, %v4676
  %v4919 = vadd.f32 %v4209, %v4681
  %v4920 = vadd.f32 %v4210, %v4686
  %v4921 = vadd.f32 %v4211, %v4691
  %v4922 = vadd.f32 %v4212, %v4696
  %v4923 = vadd.f32 %v4213, %v4701
  %v4924 = vadd.f32 %v4214, %v4706
  %v4925 = vadd.f32 %v4215, %v4711
  %v4926 = vadd.f32 %v4216, %v4716
  %v4927 = vadd.f32 %v4217, %v4721
  %v4928 = vadd.f32 %v4218, %v4726
  %v4929 = vadd.f32 %v4219, %v4731
  %v4930 = vadd.f32 %v4220, %v4736
  %v4931 = vadd.f32 %v4221, %v4741
  %v4932 = vadd.f32 %v4222, %v4746
  %v4933 = vadd.f32 %v4223, %v4751
  %v4934 = vadd.f32 %v4224, %v4756
  %v4935 = vadd.f32 %v4225, %v4761
  %v4936 = vadd.f32 %v4226, %v4766
  %v4937 = vadd.f32 %v4227, %v4771
  %v4938 = vadd.f32 %v4228, %v4776
  %v4939 = vadd.f32 %v4229, %v4781
  %v4940 = vadd.f32 %v4230, %v4786
  %v4941 = vadd.f32 %v4231, %v4791
  %v4942 = vadd.f32 %v4232, %v4796
  %v4943 = vadd.f32 %v4233, %v4801
  %v4944 = vadd.f32 %v4234, %v4806
  %v4945 = vadd.f32 %v4235, %v4811
  %v4946 = vadd.f32 %v4236, %v4816
  %v4947 = vadd.f32 %v4237, %v4821
  %v4948 = vadd.f32 %v4238, %v4826
  %v4949 = vadd.f32 %v4239, %v4831
  %v4950 = vadd.f32 %v4240, %v4836
  %v4951 = vadd.f32 %v4241, %v4841
  %v4952 = vadd.f32 %v4242, %v4846
  %v4953 = vadd.f32 %v4243, %v4851
  %v4954 = vadd.f32 %v4244, %v4856
  %v4955 = vadd.f32 %v4245, %v4861
  %v4956 = vadd.f32 %v4246, %v4866
  %v4957 = vadd.f32 %v4247, %v4871
  %v4958 = vadd.f32 %v4248, %v4876
  %v4959 = vadd.f32 %v4249, %v4881
  %v4960 = vadd.f32 %v4250, %v4886
  %v4961 = vadd.f32 %v4251, %v4891
  %v4962 = vadd.f32 %v4252, %v4896
  %v4963 = vld [vmem:[%s1476 + $0x2] sm:$0xff]
  %v4964 = vld [vmem:[%s1476 + $0xa] sm:$0xff]
  %v4965 = vld [vmem:[%s1476 + $0x1a] sm:$0xff]
  %v4966 = vld [vmem:[%s1476 + $0x22] sm:$0xff]
  %v4967 = vld [vmem:[%s1476 + $0x32] sm:$0xff]
  %v4968 = vld [vmem:[%s1476 + $0x3a] sm:$0xff]
  %v4969 = vld [vmem:[%s1476 + $0x4a] sm:$0xff]
  %v4970 = vld [vmem:[%s1476 + $0x52] sm:$0xff]
  %v4971 = vld [vmem:[%s1476 + $0x62] sm:$0xff]
  %v4972 = vld [vmem:[%s1476 + $0x6a] sm:$0xff]
  %v4973 = vld [vmem:[%s1476 + $0x7a] sm:$0xff]
  %v4974 = vld [vmem:[%s1476 + $0x82] sm:$0xff]
  %v4975 = vld [vmem:[%s1476 + $0x92] sm:$0xff]
  %v4976 = vld [vmem:[%s1476 + $0x9a] sm:$0xff]
  %v4977 = vld [vmem:[%s1476 + $0xaa] sm:$0xff]
  %v4978 = vld [vmem:[%s1476 + $0xb2] sm:$0xff]
  %v4979 = vld [vmem:[%s1476 + $0xc2] sm:$0xff]
  %v4980 = vld [vmem:[%s1476 + $0xca] sm:$0xff]
  %v4981 = vld [vmem:[%s1476 + $0xda] sm:$0xff]
  %v4982 = vld [vmem:[%s1476 + $0xe2] sm:$0xff]
  %v4983 = vld [vmem:[%s1476 + $0xf2] sm:$0xff]
  %v4984 = vld [vmem:[%s1476 + $0xfa] sm:$0xff]
  %v4985 = vld [vmem:[%s1476 + $0x10a] sm:$0xff]
  %v4986 = vld [vmem:[%s1476 + $0x112] sm:$0xff]
  %v4987 = vld [vmem:[%s1476 + $0x122] sm:$0xff]
  %v4988 = vld [vmem:[%s1476 + $0x12a] sm:$0xff]
  %v4989 = vld [vmem:[%s1476 + $0x13a] sm:$0xff]
  %v4990 = vld [vmem:[%s1476 + $0x142] sm:$0xff]
  %v4991 = vld [vmem:[%s1476 + $0x152] sm:$0xff]
  %v4992 = vld [vmem:[%s1476 + $0x15a] sm:$0xff]
  %v4993 = vld [vmem:[%s1476 + $0x16a] sm:$0xff]
  %v4994 = vld [vmem:[%s1476 + $0x172] sm:$0xff]
  %v4995 = vld [vmem:[%s1476 + $0x1b2] sm:$0xff]
  %v4996 = vld [vmem:[%s1476 + $0x1ba] sm:$0xff]
  %v4997 = vld [vmem:[%s1476 + $0x1ca] sm:$0xff]
  %v4998 = vld [vmem:[%s1476 + $0x1d2] sm:$0xff]
  %v4999 = vld [vmem:[%s1476 + $0x1e2] sm:$0xff]
  %v5000 = vld [vmem:[%s1476 + $0x1ea] sm:$0xff]
  %v5001 = vld [vmem:[%s1476 + $0x1fa] sm:$0xff]
  %v5002 = vld [vmem:[%s1476 + $0x202] sm:$0xff]
  %v5003 = vld [vmem:[%s1476 + $0x212] sm:$0xff]
  %v5004 = vld [vmem:[%s1476 + $0x21a] sm:$0xff]
  %v5005 = vld [vmem:[%s1476 + $0x22a] sm:$0xff]
  %v5006 = vld [vmem:[%s1476 + $0x232] sm:$0xff]
  %v5007 = vld [vmem:[%s1476 + $0x242] sm:$0xff]
  %v5008 = vld [vmem:[%s1476 + $0x24a] sm:$0xff]
  %v5009 = vld [vmem:[%s1476 + $0x25a] sm:$0xff]
  %v5010 = vld [vmem:[%s1476 + $0x262] sm:$0xff]
  %v5011 = vld [vmem:[%s1476 + $0x272] sm:$0xff]
  %v5012 = vld [vmem:[%s1476 + $0x27a] sm:$0xff]
  %v5013 = vld [vmem:[%s1476 + $0x28a] sm:$0xff]
  %v5014 = vld [vmem:[%s1476 + $0x292] sm:$0xff]
  %v5015 = vld [vmem:[%s1476 + $0x2a2] sm:$0xff]
  %v5016 = vld [vmem:[%s1476 + $0x2aa] sm:$0xff]
  %v5017 = vld [vmem:[%s1476 + $0x2ba] sm:$0xff]
  %v5018 = vld [vmem:[%s1476 + $0x2c2] sm:$0xff]
  %v5019 = vld [vmem:[%s1476 + $0x2d2] sm:$0xff]
  %v5020 = vld [vmem:[%s1476 + $0x2da] sm:$0xff]
  %v5021 = vld [vmem:[%s1476 + $0x2ea] sm:$0xff]
  %v5022 = vld [vmem:[%s1476 + $0x2f2] sm:$0xff]
  %v5023 = vld [vmem:[%s1476 + $0x302] sm:$0xff]
  %v5024 = vld [vmem:[%s1476 + $0x30a] sm:$0xff]
  %v5025 = vld [vmem:[%s1476 + $0x31a] sm:$0xff]
  %v5026 = vld [vmem:[%s1476 + $0x322] sm:$0xff]
  %s5027 = scalar_lea.vmem %s5, 20
  %v5028 = vld [vmem:[%s5027] sm:$0xf]
  %v5030 = vsel %vm697, %v4963, 0
  %v5033 = vsel %vm697, %v4964, 0
  %v5036 = vsel %vm697, %v4965, 0
  %v5039 = vsel %vm697, %v4966, 0
  %v5042 = vsel %vm697, %v4967, 0
  %v5045 = vsel %vm697, %v4968, 0
  %v5048 = vsel %vm697, %v4969, 0
  %v5051 = vsel %vm697, %v4970, 0
  %v5054 = vsel %vm697, %v4971, 0
  %v5057 = vsel %vm697, %v4972, 0
  %v5060 = vsel %vm697, %v4973, 0
  %v5063 = vsel %vm697, %v4974, 0
  %v5066 = vsel %vm697, %v4975, 0
  %v5069 = vsel %vm697, %v4976, 0
  %v5072 = vsel %vm697, %v4977, 0
  %v5075 = vsel %vm697, %v4978, 0
  %v5078 = vsel %vm697, %v4979, 0
  %v5081 = vsel %vm697, %v4980, 0
  %v5084 = vsel %vm697, %v4981, 0
  %v5087 = vsel %vm697, %v4982, 0
  %v5090 = vsel %vm697, %v4983, 0
  %v5093 = vsel %vm697, %v4984, 0
  %v5096 = vsel %vm697, %v4985, 0
  %v5099 = vsel %vm697, %v4986, 0
  %v5102 = vsel %vm697, %v4987, 0
  %v5105 = vsel %vm697, %v4988, 0
  %v5108 = vsel %vm697, %v4989, 0
  %v5111 = vsel %vm697, %v4990, 0
  %v5114 = vsel %vm697, %v4991, 0
  %v5117 = vsel %vm697, %v4992, 0
  %v5120 = vsel %vm697, %v4993, 0
  %v5123 = vsel %vm697, %v4994, 0
  %v5126 = vsel %vm697, %v4995, 0
  %v5129 = vsel %vm697, %v4996, 0
  %v5132 = vsel %vm697, %v4997, 0
  %v5135 = vsel %vm697, %v4998, 0
  %v5138 = vsel %vm697, %v4999, 0
  %v5141 = vsel %vm697, %v5000, 0
  %v5144 = vsel %vm697, %v5001, 0
  %v5147 = vsel %vm697, %v5002, 0
  %v5150 = vsel %vm697, %v5003, 0
  %v5153 = vsel %vm697, %v5004, 0
  %v5156 = vsel %vm697, %v5005, 0
  %v5159 = vsel %vm697, %v5006, 0
  %v5162 = vsel %vm697, %v5007, 0
  %v5165 = vsel %vm697, %v5008, 0
  %v5168 = vsel %vm697, %v5009, 0
  %v5171 = vsel %vm697, %v5010, 0
  %v5174 = vsel %vm697, %v5011, 0
  %v5177 = vsel %vm697, %v5012, 0
  %v5180 = vsel %vm697, %v5013, 0
  %v5183 = vsel %vm697, %v5014, 0
  %v5186 = vsel %vm697, %v5015, 0
  %v5189 = vsel %vm697, %v5016, 0
  %v5192 = vsel %vm697, %v5017, 0
  %v5195 = vsel %vm697, %v5018, 0
  %v5198 = vsel %vm697, %v5019, 0
  %v5201 = vsel %vm697, %v5020, 0
  %v5204 = vsel %vm697, %v5021, 0
  %v5207 = vsel %vm697, %v5022, 0
  %v5210 = vsel %vm697, %v5023, 0
  %v5213 = vsel %vm697, %v5024, 0
  %v5216 = vsel %vm697, %v5025, 0
  %v5219 = vsel %vm697, %v5026, 0
  %v5222 = vsel %vm1864, %v5028, 0
  %5224 = vmatprep.subr.mxu0 0.0
  %5225 = vmatpush1.msra.mxu0 0.0
  %5226 = vmatprep.subr.mxu0 0.0
  %5227 = vmatpush1.msra.mxu0 0.0
  %5228 = vmatprep.subr.mxu0 0.0
  %5229 = vmatpush1.msra.mxu0 0.0
  %5230 = vmatprep.subr.mxu0 0.0
  %5231 = vmatpush1.msra.mxu0 0.0
  %5232 = vmatprep.subr.mxu0 0.0
  %5233 = vmatpush1.msra.mxu0 0.0
  %5234 = vmatprep.subr.mxu0 0.0
  %5235 = vmatpush1.msra.mxu0 0.0
  %5236 = vmatprep.subr.mxu0 0.0
  %5237 = vmatpush1.msra.mxu0 0.0
  %5238 = vmatprep.subr.mxu0 0.0
  %5239 = vmatpush1.msra.mxu0 0.0
  %5240 = vmatprep.subr.mxu0 0.0
  %5241 = vmatpush1.msra.mxu0 0.0
  %5242 = vmatprep.subr.mxu0 0.0
  %5243 = vmatpush1.msra.mxu0 0.0
  %5244 = vmatprep.subr.mxu0 0.0
  %5245 = vmatpush1.msra.mxu0 0.0
  %5246 = vmatprep.subr.mxu0 0.0
  %5247 = vmatpush1.msra.mxu0 0.0
  %5248 = vmatprep.subr.mxu0 0.0
  %5249 = vmatpush1.msra.mxu0 0.0
  %5250 = vmatprep.subr.mxu0 0.0
  %5251 = vmatpush1.msra.mxu0 0.0
  %5252 = vmatprep.subr.mxu0 0.0
  %5253 = vmatpush1.msra.mxu0 0.0
  %5254 = vmatprep.subr.mxu0 0.0
  %5255 = vmatpush1.msra.mxu0 %v5222
  %5256 = vmatprep.subr.mxu0 0.0
  %5257 = vmatpush2.msra.mxu0 0.0
  %5258 = vmatprep.subr.mxu0 0.0
  %5259 = vmatpush2.msra.mxu0 0.0
  %5260 = vmatprep.subr.mxu0 0.0
  %5261 = vmatpush2.msra.mxu0 0.0
  %5262 = vmatprep.subr.mxu0 0.0
  %5263 = vmatpush2.msra.mxu0 0.0
  %5264 = vmatprep.subr.mxu0 0.0
  %5265 = vmatpush2.msra.mxu0 0.0
  %5266 = vmatprep.subr.mxu0 0.0
  %5267 = vmatpush2.msra.mxu0 0.0
  %5268 = vmatprep.subr.mxu0 0.0
  %5269 = vmatpush2.msra.mxu0 0.0
  %5270 = vmatprep.subr.mxu0 0.0
  %5271 = vmatpush2.msra.mxu0 0.0
  %5272 = vmatprep.subr.mxu0 0.0
  %5273 = vmatpush2.msra.mxu0 0.0
  %5274 = vmatprep.subr.mxu0 0.0
  %5275 = vmatpush2.msra.mxu0 0.0
  %5276 = vmatprep.subr.mxu0 0.0
  %5277 = vmatpush2.msra.mxu0 0.0
  %5278 = vmatprep.subr.mxu0 0.0
  %5279 = vmatpush2.msra.mxu0 0.0
  %5280 = vmatprep.subr.mxu0 0.0
  %5281 = vmatpush2.msra.mxu0 0.0
  %5282 = vmatprep.subr.mxu0 0.0
  %5283 = vmatpush2.msra.mxu0 0.0
  %5284 = vmatprep.subr.mxu0 0.0
  %5285 = vmatpush2.msra.mxu0 0.0
  %5286 = vmatprep.subr.mxu0 0.0
  %5287 = vmatpush2.msra.mxu0 0.0
  %5288 = vmatprep.mubr.f32.mxu0 0.0
  %5289 = vmatmul.mubr.f32.gmra.mxu0 %v5030
  %v5290 = vpop.f32.mrf.mxu0
  %v5291 = vadd.f32 0.0, %v5290
  %v5292 = vpop.f32.mrf.mxu0
  %5293 = vmatprep.mubr.f32.mxu0 0.0
  %5294 = vmatmul.mubr.f32.gmra.mxu0 %v5033
  %v5295 = vpop.f32.mrf.mxu0
  %v5296 = vadd.f32 0.0, %v5295
  %v5297 = vpop.f32.mrf.mxu0
  %5298 = vmatprep.mubr.f32.mxu0 0.0
  %5299 = vmatmul.mubr.f32.gmra.mxu0 %v5036
  %v5300 = vpop.f32.mrf.mxu0
  %v5301 = vadd.f32 0.0, %v5300
  %v5302 = vpop.f32.mrf.mxu0
  %5303 = vmatprep.mubr.f32.mxu0 0.0
  %5304 = vmatmul.mubr.f32.gmra.mxu0 %v5039
  %v5305 = vpop.f32.mrf.mxu0
  %v5306 = vadd.f32 0.0, %v5305
  %v5307 = vpop.f32.mrf.mxu0
  %5308 = vmatprep.mubr.f32.mxu0 0.0
  %5309 = vmatmul.mubr.f32.gmra.mxu0 %v5042
  %v5310 = vpop.f32.mrf.mxu0
  %v5311 = vadd.f32 0.0, %v5310
  %v5312 = vpop.f32.mrf.mxu0
  %5313 = vmatprep.mubr.f32.mxu0 0.0
  %5314 = vmatmul.mubr.f32.gmra.mxu0 %v5045
  %v5315 = vpop.f32.mrf.mxu0
  %v5316 = vadd.f32 0.0, %v5315
  %v5317 = vpop.f32.mrf.mxu0
  %5318 = vmatprep.mubr.f32.mxu0 0.0
  %5319 = vmatmul.mubr.f32.gmra.mxu0 %v5048
  %v5320 = vpop.f32.mrf.mxu0
  %v5321 = vadd.f32 0.0, %v5320
  %v5322 = vpop.f32.mrf.mxu0
  %5323 = vmatprep.mubr.f32.mxu0 0.0
  %5324 = vmatmul.mubr.f32.gmra.mxu0 %v5051
  %v5325 = vpop.f32.mrf.mxu0
  %v5326 = vadd.f32 0.0, %v5325
  %v5327 = vpop.f32.mrf.mxu0
  %5328 = vmatprep.mubr.f32.mxu0 0.0
  %5329 = vmatmul.mubr.f32.gmra.mxu0 %v5054
  %v5330 = vpop.f32.mrf.mxu0
  %v5331 = vadd.f32 0.0, %v5330
  %v5332 = vpop.f32.mrf.mxu0
  %5333 = vmatprep.mubr.f32.mxu0 0.0
  %5334 = vmatmul.mubr.f32.gmra.mxu0 %v5057
  %v5335 = vpop.f32.mrf.mxu0
  %v5336 = vadd.f32 0.0, %v5335
  %v5337 = vpop.f32.mrf.mxu0
  %5338 = vmatprep.mubr.f32.mxu0 0.0
  %5339 = vmatmul.mubr.f32.gmra.mxu0 %v5060
  %v5340 = vpop.f32.mrf.mxu0
  %v5341 = vadd.f32 0.0, %v5340
  %v5342 = vpop.f32.mrf.mxu0
  %5343 = vmatprep.mubr.f32.mxu0 0.0
  %5344 = vmatmul.mubr.f32.gmra.mxu0 %v5063
  %v5345 = vpop.f32.mrf.mxu0
  %v5346 = vadd.f32 0.0, %v5345
  %v5347 = vpop.f32.mrf.mxu0
  %5348 = vmatprep.mubr.f32.mxu0 0.0
  %5349 = vmatmul.mubr.f32.gmra.mxu0 %v5066
  %v5350 = vpop.f32.mrf.mxu0
  %v5351 = vadd.f32 0.0, %v5350
  %v5352 = vpop.f32.mrf.mxu0
  %5353 = vmatprep.mubr.f32.mxu0 0.0
  %5354 = vmatmul.mubr.f32.gmra.mxu0 %v5069
  %v5355 = vpop.f32.mrf.mxu0
  %v5356 = vadd.f32 0.0, %v5355
  %v5357 = vpop.f32.mrf.mxu0
  %5358 = vmatprep.mubr.f32.mxu0 0.0
  %5359 = vmatmul.mubr.f32.gmra.mxu0 %v5072
  %v5360 = vpop.f32.mrf.mxu0
  %v5361 = vadd.f32 0.0, %v5360
  %v5362 = vpop.f32.mrf.mxu0
  %5363 = vmatprep.mubr.f32.mxu0 0.0
  %5364 = vmatmul.mubr.f32.gmra.mxu0 %v5075
  %v5365 = vpop.f32.mrf.mxu0
  %v5366 = vadd.f32 0.0, %v5365
  %v5367 = vpop.f32.mrf.mxu0
  %5368 = vmatprep.mubr.f32.mxu0 0.0
  %5369 = vmatmul.mubr.f32.gmra.mxu0 %v5078
  %v5370 = vpop.f32.mrf.mxu0
  %v5371 = vadd.f32 0.0, %v5370
  %v5372 = vpop.f32.mrf.mxu0
  %5373 = vmatprep.mubr.f32.mxu0 0.0
  %5374 = vmatmul.mubr.f32.gmra.mxu0 %v5081
  %v5375 = vpop.f32.mrf.mxu0
  %v5376 = vadd.f32 0.0, %v5375
  %v5377 = vpop.f32.mrf.mxu0
  %5378 = vmatprep.mubr.f32.mxu0 0.0
  %5379 = vmatmul.mubr.f32.gmra.mxu0 %v5084
  %v5380 = vpop.f32.mrf.mxu0
  %v5381 = vadd.f32 0.0, %v5380
  %v5382 = vpop.f32.mrf.mxu0
  %5383 = vmatprep.mubr.f32.mxu0 0.0
  %5384 = vmatmul.mubr.f32.gmra.mxu0 %v5087
  %v5385 = vpop.f32.mrf.mxu0
  %v5386 = vadd.f32 0.0, %v5385
  %v5387 = vpop.f32.mrf.mxu0
  %5388 = vmatprep.mubr.f32.mxu0 0.0
  %5389 = vmatmul.mubr.f32.gmra.mxu0 %v5090
  %v5390 = vpop.f32.mrf.mxu0
  %v5391 = vadd.f32 0.0, %v5390
  %v5392 = vpop.f32.mrf.mxu0
  %5393 = vmatprep.mubr.f32.mxu0 0.0
  %5394 = vmatmul.mubr.f32.gmra.mxu0 %v5093
  %v5395 = vpop.f32.mrf.mxu0
  %v5396 = vadd.f32 0.0, %v5395
  %v5397 = vpop.f32.mrf.mxu0
  %5398 = vmatprep.mubr.f32.mxu0 0.0
  %5399 = vmatmul.mubr.f32.gmra.mxu0 %v5096
  %v5400 = vpop.f32.mrf.mxu0
  %v5401 = vadd.f32 0.0, %v5400
  %v5402 = vpop.f32.mrf.mxu0
  %5403 = vmatprep.mubr.f32.mxu0 0.0
  %5404 = vmatmul.mubr.f32.gmra.mxu0 %v5099
  %v5405 = vpop.f32.mrf.mxu0
  %v5406 = vadd.f32 0.0, %v5405
  %v5407 = vpop.f32.mrf.mxu0
  %5408 = vmatprep.mubr.f32.mxu0 0.0
  %5409 = vmatmul.mubr.f32.gmra.mxu0 %v5102
  %v5410 = vpop.f32.mrf.mxu0
  %v5411 = vadd.f32 0.0, %v5410
  %v5412 = vpop.f32.mrf.mxu0
  %5413 = vmatprep.mubr.f32.mxu0 0.0
  %5414 = vmatmul.mubr.f32.gmra.mxu0 %v5105
  %v5415 = vpop.f32.mrf.mxu0
  %v5416 = vadd.f32 0.0, %v5415
  %v5417 = vpop.f32.mrf.mxu0
  %5418 = vmatprep.mubr.f32.mxu0 0.0
  %5419 = vmatmul.mubr.f32.gmra.mxu0 %v5108
  %v5420 = vpop.f32.mrf.mxu0
  %v5421 = vadd.f32 0.0, %v5420
  %v5422 = vpop.f32.mrf.mxu0
  %5423 = vmatprep.mubr.f32.mxu0 0.0
  %5424 = vmatmul.mubr.f32.gmra.mxu0 %v5111
  %v5425 = vpop.f32.mrf.mxu0
  %v5426 = vadd.f32 0.0, %v5425
  %v5427 = vpop.f32.mrf.mxu0
  %5428 = vmatprep.mubr.f32.mxu0 0.0
  %5429 = vmatmul.mubr.f32.gmra.mxu0 %v5114
  %v5430 = vpop.f32.mrf.mxu0
  %v5431 = vadd.f32 0.0, %v5430
  %v5432 = vpop.f32.mrf.mxu0
  %5433 = vmatprep.mubr.f32.mxu0 0.0
  %5434 = vmatmul.mubr.f32.gmra.mxu0 %v5117
  %v5435 = vpop.f32.mrf.mxu0
  %v5436 = vadd.f32 0.0, %v5435
  %v5437 = vpop.f32.mrf.mxu0
  %5438 = vmatprep.mubr.f32.mxu0 0.0
  %5439 = vmatmul.mubr.f32.gmra.mxu0 %v5120
  %v5440 = vpop.f32.mrf.mxu0
  %v5441 = vadd.f32 0.0, %v5440
  %v5442 = vpop.f32.mrf.mxu0
  %5443 = vmatprep.mubr.f32.mxu0 0.0
  %5444 = vmatmul.mubr.f32.gmra.mxu0 %v5123
  %v5445 = vpop.f32.mrf.mxu0
  %v5446 = vadd.f32 0.0, %v5445
  %v5447 = vpop.f32.mrf.mxu0
  %5448 = vmatprep.mubr.f32.mxu0 0.0
  %5449 = vmatmul.mubr.f32.gmra.mxu0 %v5126
  %v5450 = vpop.f32.mrf.mxu0
  %v5451 = vadd.f32 0.0, %v5450
  %v5452 = vpop.f32.mrf.mxu0
  %5453 = vmatprep.mubr.f32.mxu0 0.0
  %5454 = vmatmul.mubr.f32.gmra.mxu0 %v5129
  %v5455 = vpop.f32.mrf.mxu0
  %v5456 = vadd.f32 0.0, %v5455
  %v5457 = vpop.f32.mrf.mxu0
  %5458 = vmatprep.mubr.f32.mxu0 0.0
  %5459 = vmatmul.mubr.f32.gmra.mxu0 %v5132
  %v5460 = vpop.f32.mrf.mxu0
  %v5461 = vadd.f32 0.0, %v5460
  %v5462 = vpop.f32.mrf.mxu0
  %5463 = vmatprep.mubr.f32.mxu0 0.0
  %5464 = vmatmul.mubr.f32.gmra.mxu0 %v5135
  %v5465 = vpop.f32.mrf.mxu0
  %v5466 = vadd.f32 0.0, %v5465
  %v5467 = vpop.f32.mrf.mxu0
  %5468 = vmatprep.mubr.f32.mxu0 0.0
  %5469 = vmatmul.mubr.f32.gmra.mxu0 %v5138
  %v5470 = vpop.f32.mrf.mxu0
  %v5471 = vadd.f32 0.0, %v5470
  %v5472 = vpop.f32.mrf.mxu0
  %5473 = vmatprep.mubr.f32.mxu0 0.0
  %5474 = vmatmul.mubr.f32.gmra.mxu0 %v5141
  %v5475 = vpop.f32.mrf.mxu0
  %v5476 = vadd.f32 0.0, %v5475
  %v5477 = vpop.f32.mrf.mxu0
  %5478 = vmatprep.mubr.f32.mxu0 0.0
  %5479 = vmatmul.mubr.f32.gmra.mxu0 %v5144
  %v5480 = vpop.f32.mrf.mxu0
  %v5481 = vadd.f32 0.0, %v5480
  %v5482 = vpop.f32.mrf.mxu0
  %5483 = vmatprep.mubr.f32.mxu0 0.0
  %5484 = vmatmul.mubr.f32.gmra.mxu0 %v5147
  %v5485 = vpop.f32.mrf.mxu0
  %v5486 = vadd.f32 0.0, %v5485
  %v5487 = vpop.f32.mrf.mxu0
  %5488 = vmatprep.mubr.f32.mxu0 0.0
  %5489 = vmatmul.mubr.f32.gmra.mxu0 %v5150
  %v5490 = vpop.f32.mrf.mxu0
  %v5491 = vadd.f32 0.0, %v5490
  %v5492 = vpop.f32.mrf.mxu0
  %5493 = vmatprep.mubr.f32.mxu0 0.0
  %5494 = vmatmul.mubr.f32.gmra.mxu0 %v5153
  %v5495 = vpop.f32.mrf.mxu0
  %v5496 = vadd.f32 0.0, %v5495
  %v5497 = vpop.f32.mrf.mxu0
  %5498 = vmatprep.mubr.f32.mxu0 0.0
  %5499 = vmatmul.mubr.f32.gmra.mxu0 %v5156
  %v5500 = vpop.f32.mrf.mxu0
  %v5501 = vadd.f32 0.0, %v5500
  %v5502 = vpop.f32.mrf.mxu0
  %5503 = vmatprep.mubr.f32.mxu0 0.0
  %5504 = vmatmul.mubr.f32.gmra.mxu0 %v5159
  %v5505 = vpop.f32.mrf.mxu0
  %v5506 = vadd.f32 0.0, %v5505
  %v5507 = vpop.f32.mrf.mxu0
  %5508 = vmatprep.mubr.f32.mxu0 0.0
  %5509 = vmatmul.mubr.f32.gmra.mxu0 %v5162
  %v5510 = vpop.f32.mrf.mxu0
  %v5511 = vadd.f32 0.0, %v5510
  %v5512 = vpop.f32.mrf.mxu0
  %5513 = vmatprep.mubr.f32.mxu0 0.0
  %5514 = vmatmul.mubr.f32.gmra.mxu0 %v5165
  %v5515 = vpop.f32.mrf.mxu0
  %v5516 = vadd.f32 0.0, %v5515
  %v5517 = vpop.f32.mrf.mxu0
  %5518 = vmatprep.mubr.f32.mxu0 0.0
  %5519 = vmatmul.mubr.f32.gmra.mxu0 %v5168
  %v5520 = vpop.f32.mrf.mxu0
  %v5521 = vadd.f32 0.0, %v5520
  %v5522 = vpop.f32.mrf.mxu0
  %5523 = vmatprep.mubr.f32.mxu0 0.0
  %5524 = vmatmul.mubr.f32.gmra.mxu0 %v5171
  %v5525 = vpop.f32.mrf.mxu0
  %v5526 = vadd.f32 0.0, %v5525
  %v5527 = vpop.f32.mrf.mxu0
  %5528 = vmatprep.mubr.f32.mxu0 0.0
  %5529 = vmatmul.mubr.f32.gmra.mxu0 %v5174
  %v5530 = vpop.f32.mrf.mxu0
  %v5531 = vadd.f32 0.0, %v5530
  %v5532 = vpop.f32.mrf.mxu0
  %5533 = vmatprep.mubr.f32.mxu0 0.0
  %5534 = vmatmul.mubr.f32.gmra.mxu0 %v5177
  %v5535 = vpop.f32.mrf.mxu0
  %v5536 = vadd.f32 0.0, %v5535
  %v5537 = vpop.f32.mrf.mxu0
  %5538 = vmatprep.mubr.f32.mxu0 0.0
  %5539 = vmatmul.mubr.f32.gmra.mxu0 %v5180
  %v5540 = vpop.f32.mrf.mxu0
  %v5541 = vadd.f32 0.0, %v5540
  %v5542 = vpop.f32.mrf.mxu0
  %5543 = vmatprep.mubr.f32.mxu0 0.0
  %5544 = vmatmul.mubr.f32.gmra.mxu0 %v5183
  %v5545 = vpop.f32.mrf.mxu0
  %v5546 = vadd.f32 0.0, %v5545
  %v5547 = vpop.f32.mrf.mxu0
  %5548 = vmatprep.mubr.f32.mxu0 0.0
  %5549 = vmatmul.mubr.f32.gmra.mxu0 %v5186
  %v5550 = vpop.f32.mrf.mxu0
  %v5551 = vadd.f32 0.0, %v5550
  %v5552 = vpop.f32.mrf.mxu0
  %5553 = vmatprep.mubr.f32.mxu0 0.0
  %5554 = vmatmul.mubr.f32.gmra.mxu0 %v5189
  %v5555 = vpop.f32.mrf.mxu0
  %v5556 = vadd.f32 0.0, %v5555
  %v5557 = vpop.f32.mrf.mxu0
  %5558 = vmatprep.mubr.f32.mxu0 0.0
  %5559 = vmatmul.mubr.f32.gmra.mxu0 %v5192
  %v5560 = vpop.f32.mrf.mxu0
  %v5561 = vadd.f32 0.0, %v5560
  %v5562 = vpop.f32.mrf.mxu0
  %5563 = vmatprep.mubr.f32.mxu0 0.0
  %5564 = vmatmul.mubr.f32.gmra.mxu0 %v5195
  %v5565 = vpop.f32.mrf.mxu0
  %v5566 = vadd.f32 0.0, %v5565
  %v5567 = vpop.f32.mrf.mxu0
  %5568 = vmatprep.mubr.f32.mxu0 0.0
  %5569 = vmatmul.mubr.f32.gmra.mxu0 %v5198
  %v5570 = vpop.f32.mrf.mxu0
  %v5571 = vadd.f32 0.0, %v5570
  %v5572 = vpop.f32.mrf.mxu0
  %5573 = vmatprep.mubr.f32.mxu0 0.0
  %5574 = vmatmul.mubr.f32.gmra.mxu0 %v5201
  %v5575 = vpop.f32.mrf.mxu0
  %v5576 = vadd.f32 0.0, %v5575
  %v5577 = vpop.f32.mrf.mxu0
  %5578 = vmatprep.mubr.f32.mxu0 0.0
  %5579 = vmatmul.mubr.f32.gmra.mxu0 %v5204
  %v5580 = vpop.f32.mrf.mxu0
  %v5581 = vadd.f32 0.0, %v5580
  %v5582 = vpop.f32.mrf.mxu0
  %5583 = vmatprep.mubr.f32.mxu0 0.0
  %5584 = vmatmul.mubr.f32.gmra.mxu0 %v5207
  %v5585 = vpop.f32.mrf.mxu0
  %v5586 = vadd.f32 0.0, %v5585
  %v5587 = vpop.f32.mrf.mxu0
  %5588 = vmatprep.mubr.f32.mxu0 0.0
  %5589 = vmatmul.mubr.f32.gmra.mxu0 %v5210
  %v5590 = vpop.f32.mrf.mxu0
  %v5591 = vadd.f32 0.0, %v5590
  %v5592 = vpop.f32.mrf.mxu0
  %5593 = vmatprep.mubr.f32.mxu0 0.0
  %5594 = vmatmul.mubr.f32.gmra.mxu0 %v5213
  %v5595 = vpop.f32.mrf.mxu0
  %v5596 = vadd.f32 0.0, %v5595
  %v5597 = vpop.f32.mrf.mxu0
  %5598 = vmatprep.mubr.f32.mxu0 0.0
  %5599 = vmatmul.mubr.f32.gmra.mxu0 %v5216
  %v5600 = vpop.f32.mrf.mxu0
  %v5601 = vadd.f32 0.0, %v5600
  %v5602 = vpop.f32.mrf.mxu0
  %5603 = vmatprep.mubr.f32.mxu0 0.0
  %5604 = vmatmul.mubr.f32.gmra.mxu0 %v5219
  %v5605 = vpop.f32.mrf.mxu0
  %v5606 = vadd.f32 0.0, %v5605
  %v5607 = vpop.f32.mrf.mxu0
  %5608 = vdwg.mxu0
  %v5609 = vadd.f32 %v4899, %v5291
  %v5610 = vadd.f32 %v4900, %v5296
  %v5611 = vadd.f32 %v4901, %v5301
  %v5612 = vadd.f32 %v4902, %v5306
  %v5613 = vadd.f32 %v4903, %v5311
  %v5614 = vadd.f32 %v4904, %v5316
  %v5615 = vadd.f32 %v4905, %v5321
  %v5616 = vadd.f32 %v4906, %v5326
  %v5617 = vadd.f32 %v4907, %v5331
  %v5618 = vadd.f32 %v4908, %v5336
  %v5619 = vadd.f32 %v4909, %v5341
  %v5620 = vadd.f32 %v4910, %v5346
  %v5621 = vadd.f32 %v4911, %v5351
  %v5622 = vadd.f32 %v4912, %v5356
  %v5623 = vadd.f32 %v4913, %v5361
  %v5624 = vadd.f32 %v4914, %v5366
  %v5625 = vadd.f32 %v4915, %v5371
  %v5626 = vadd.f32 %v4916, %v5376
  %v5627 = vadd.f32 %v4917, %v5381
  %v5628 = vadd.f32 %v4918, %v5386
  %v5629 = vadd.f32 %v4919, %v5391
  %v5630 = vadd.f32 %v4920, %v5396
  %v5631 = vadd.f32 %v4921, %v5401
  %v5632 = vadd.f32 %v4922, %v5406
  %v5633 = vadd.f32 %v4923, %v5411
  %v5634 = vadd.f32 %v4924, %v5416
  %v5635 = vadd.f32 %v4925, %v5421
  %v5636 = vadd.f32 %v4926, %v5426
  %v5637 = vadd.f32 %v4927, %v5431
  %v5638 = vadd.f32 %v4928, %v5436
  %v5639 = vadd.f32 %v4929, %v5441
  %v5640 = vadd.f32 %v4930, %v5446
  %v5641 = vadd.f32 %v4931, %v5451
  %v5642 = vadd.f32 %v4932, %v5456
  %v5643 = vadd.f32 %v4933, %v5461
  %v5644 = vadd.f32 %v4934, %v5466
  %v5645 = vadd.f32 %v4935, %v5471
  %v5646 = vadd.f32 %v4936, %v5476
  %v5647 = vadd.f32 %v4937, %v5481
  %v5648 = vadd.f32 %v4938, %v5486
  %v5649 = vadd.f32 %v4939, %v5491
  %v5650 = vadd.f32 %v4940, %v5496
  %v5651 = vadd.f32 %v4941, %v5501
  %v5652 = vadd.f32 %v4942, %v5506
  %v5653 = vadd.f32 %v4943, %v5511
  %v5654 = vadd.f32 %v4944, %v5516
  %v5655 = vadd.f32 %v4945, %v5521
  %v5656 = vadd.f32 %v4946, %v5526
  %v5657 = vadd.f32 %v4947, %v5531
  %v5658 = vadd.f32 %v4948, %v5536
  %v5659 = vadd.f32 %v4949, %v5541
  %v5660 = vadd.f32 %v4950, %v5546
  %v5661 = vadd.f32 %v4951, %v5551
  %v5662 = vadd.f32 %v4952, %v5556
  %v5663 = vadd.f32 %v4953, %v5561
  %v5664 = vadd.f32 %v4954, %v5566
  %v5665 = vadd.f32 %v4955, %v5571
  %v5666 = vadd.f32 %v4956, %v5576
  %v5667 = vadd.f32 %v4957, %v5581
  %v5668 = vadd.f32 %v4958, %v5586
  %v5669 = vadd.f32 %v4959, %v5591
  %v5670 = vadd.f32 %v4960, %v5596
  %v5671 = vadd.f32 %v4961, %v5601
  %v5672 = vadd.f32 %v4962, %v5606
  %s5673 = scalar_lea.vmem [#allocation2], 48
  %v5674 = vld [vmem:[%s5673] sm:$0xff]
  %v5675 = vld [vmem:[%s5673 + $0x8] sm:$0xff]
  %v5676 = vld [vmem:[%s5673 + $0x18] sm:$0xff]
  %v5677 = vld [vmem:[%s5673 + $0x20] sm:$0xff]
  %v5678 = vld [vmem:[%s5673 + $0x30] sm:$0xff]
  %v5679 = vld [vmem:[%s5673 + $0x38] sm:$0xff]
  %v5680 = vld [vmem:[%s5673 + $0x48] sm:$0xff]
  %v5681 = vld [vmem:[%s5673 + $0x50] sm:$0xff]
  %v5682 = vld [vmem:[%s5673 + $0x60] sm:$0xff]
  %v5683 = vld [vmem:[%s5673 + $0x68] sm:$0xff]
  %v5684 = vld [vmem:[%s5673 + $0x78] sm:$0xff]
  %v5685 = vld [vmem:[%s5673 + $0x80] sm:$0xff]
  %v5686 = vld [vmem:[%s5673 + $0x90] sm:$0xff]
  %v5687 = vld [vmem:[%s5673 + $0x98] sm:$0xff]
  %v5688 = vld [vmem:[%s5673 + $0xa8] sm:$0xff]
  %v5689 = vld [vmem:[%s5673 + $0xb0] sm:$0xff]
  %v5690 = vld [vmem:[%s5673 + $0xc0] sm:$0xff]
  %v5691 = vld [vmem:[%s5673 + $0xc8] sm:$0xff]
  %v5692 = vld [vmem:[%s5673 + $0xd8] sm:$0xff]
  %v5693 = vld [vmem:[%s5673 + $0xe0] sm:$0xff]
  %v5694 = vld [vmem:[%s5673 + $0xf0] sm:$0xff]
  %v5695 = vld [vmem:[%s5673 + $0xf8] sm:$0xff]
  %v5696 = vld [vmem:[%s5673 + $0x108] sm:$0xff]
  %v5697 = vld [vmem:[%s5673 + $0x110] sm:$0xff]
  %v5698 = vld [vmem:[%s5673 + $0x120] sm:$0xff]
  %v5699 = vld [vmem:[%s5673 + $0x128] sm:$0xff]
  %v5700 = vld [vmem:[%s5673 + $0x138] sm:$0xff]
  %v5701 = vld [vmem:[%s5673 + $0x140] sm:$0xff]
  %v5702 = vld [vmem:[%s5673 + $0x150] sm:$0xff]
  %v5703 = vld [vmem:[%s5673 + $0x158] sm:$0xff]
  %v5704 = vld [vmem:[%s5673 + $0x168] sm:$0xff]
  %v5705 = vld [vmem:[%s5673 + $0x170] sm:$0xff]
  %v5706 = vld [vmem:[%s5673 + $0x1b0] sm:$0xff]
  %v5707 = vld [vmem:[%s5673 + $0x1b8] sm:$0xff]
  %v5708 = vld [vmem:[%s5673 + $0x1c8] sm:$0xff]
  %v5709 = vld [vmem:[%s5673 + $0x1d0] sm:$0xff]
  %v5710 = vld [vmem:[%s5673 + $0x1e0] sm:$0xff]
  %v5711 = vld [vmem:[%s5673 + $0x1e8] sm:$0xff]
  %v5712 = vld [vmem:[%s5673 + $0x1f8] sm:$0xff]
  %v5713 = vld [vmem:[%s5673 + $0x200] sm:$0xff]
  %v5714 = vld [vmem:[%s5673 + $0x210] sm:$0xff]
  %v5715 = vld [vmem:[%s5673 + $0x218] sm:$0xff]
  %v5716 = vld [vmem:[%s5673 + $0x228] sm:$0xff]
  %v5717 = vld [vmem:[%s5673 + $0x230] sm:$0xff]
  %v5718 = vld [vmem:[%s5673 + $0x240] sm:$0xff]
  %v5719 = vld [vmem:[%s5673 + $0x248] sm:$0xff]
  %v5720 = vld [vmem:[%s5673 + $0x258] sm:$0xff]
  %v5721 = vld [vmem:[%s5673 + $0x260] sm:$0xff]
  %v5722 = vld [vmem:[%s5673 + $0x270] sm:$0xff]
  %v5723 = vld [vmem:[%s5673 + $0x278] sm:$0xff]
  %v5724 = vld [vmem:[%s5673 + $0x288] sm:$0xff]
  %v5725 = vld [vmem:[%s5673 + $0x290] sm:$0xff]
  %v5726 = vld [vmem:[%s5673 + $0x2a0] sm:$0xff]
  %v5727 = vld [vmem:[%s5673 + $0x2a8] sm:$0xff]
  %v5728 = vld [vmem:[%s5673 + $0x2b8] sm:$0xff]
  %v5729 = vld [vmem:[%s5673 + $0x2c0] sm:$0xff]
  %v5730 = vld [vmem:[%s5673 + $0x2d0] sm:$0xff]
  %v5731 = vld [vmem:[%s5673 + $0x2d8] sm:$0xff]
  %v5732 = vld [vmem:[%s5673 + $0x2e8] sm:$0xff]
  %v5733 = vld [vmem:[%s5673 + $0x2f0] sm:$0xff]
  %v5734 = vld [vmem:[%s5673 + $0x300] sm:$0xff]
  %v5735 = vld [vmem:[%s5673 + $0x308] sm:$0xff]
  %v5736 = vld [vmem:[%s5673 + $0x318] sm:$0xff]
  %v5737 = vld [vmem:[%s5673 + $0x320] sm:$0xff]
  %s5738 = scalar_lea.vmem %s5, 24
  %v5739 = vld [vmem:[%s5738] sm:$0xf]
  %v5741 = vsel %vm697, %v5674, 0
  %v5744 = vsel %vm697, %v5675, 0
  %v5747 = vsel %vm697, %v5676, 0
  %v5750 = vsel %vm697, %v5677, 0
  %v5753 = vsel %vm697, %v5678, 0
  %v5756 = vsel %vm697, %v5679, 0
  %v5759 = vsel %vm697, %v5680, 0
  %v5762 = vsel %vm697, %v5681, 0
  %v5765 = vsel %vm697, %v5682, 0
  %v5768 = vsel %vm697, %v5683, 0
  %v5771 = vsel %vm697, %v5684, 0
  %v5774 = vsel %vm697, %v5685, 0
  %v5777 = vsel %vm697, %v5686, 0
  %v5780 = vsel %vm697, %v5687, 0
  %v5783 = vsel %vm697, %v5688, 0
  %v5786 = vsel %vm697, %v5689, 0
  %v5789 = vsel %vm697, %v5690, 0
  %v5792 = vsel %vm697, %v5691, 0
  %v5795 = vsel %vm697, %v5692, 0
  %v5798 = vsel %vm697, %v5693, 0
  %v5801 = vsel %vm697, %v5694, 0
  %v5804 = vsel %vm697, %v5695, 0
  %v5807 = vsel %vm697, %v5696, 0
  %v5810 = vsel %vm697, %v5697, 0
  %v5813 = vsel %vm697, %v5698, 0
  %v5816 = vsel %vm697, %v5699, 0
  %v5819 = vsel %vm697, %v5700, 0
  %v5822 = vsel %vm697, %v5701, 0
  %v5825 = vsel %vm697, %v5702, 0
  %v5828 = vsel %vm697, %v5703, 0
  %v5831 = vsel %vm697, %v5704, 0
  %v5834 = vsel %vm697, %v5705, 0
  %v5837 = vsel %vm697, %v5706, 0
  %v5840 = vsel %vm697, %v5707, 0
  %v5843 = vsel %vm697, %v5708, 0
  %v5846 = vsel %vm697, %v5709, 0
  %v5849 = vsel %vm697, %v5710, 0
  %v5852 = vsel %vm697, %v5711, 0
  %v5855 = vsel %vm697, %v5712, 0
  %v5858 = vsel %vm697, %v5713, 0
  %v5861 = vsel %vm697, %v5714, 0
  %v5864 = vsel %vm697, %v5715, 0
  %v5867 = vsel %vm697, %v5716, 0
  %v5870 = vsel %vm697, %v5717, 0
  %v5873 = vsel %vm697, %v5718, 0
  %v5876 = vsel %vm697, %v5719, 0
  %v5879 = vsel %vm697, %v5720, 0
  %v5882 = vsel %vm697, %v5721, 0
  %v5885 = vsel %vm697, %v5722, 0
  %v5888 = vsel %vm697, %v5723, 0
  %v5891 = vsel %vm697, %v5724, 0
  %v5894 = vsel %vm697, %v5725, 0
  %v5897 = vsel %vm697, %v5726, 0
  %v5900 = vsel %vm697, %v5727, 0
  %v5903 = vsel %vm697, %v5728, 0
  %v5906 = vsel %vm697, %v5729, 0
  %v5909 = vsel %vm697, %v5730, 0
  %v5912 = vsel %vm697, %v5731, 0
  %v5915 = vsel %vm697, %v5732, 0
  %v5918 = vsel %vm697, %v5733, 0
  %v5921 = vsel %vm697, %v5734, 0
  %v5924 = vsel %vm697, %v5735, 0
  %v5927 = vsel %vm697, %v5736, 0
  %v5930 = vsel %vm697, %v5737, 0
  %v5933 = vsel %vm1864, %v5739, 0
  %5935 = vmatprep.subr.mxu0 0.0
  %5936 = vmatpush1.msra.mxu0 0.0
  %5937 = vmatprep.subr.mxu0 0.0
  %5938 = vmatpush1.msra.mxu0 0.0
  %5939 = vmatprep.subr.mxu0 0.0
  %5940 = vmatpush1.msra.mxu0 0.0
  %5941 = vmatprep.subr.mxu0 0.0
  %5942 = vmatpush1.msra.mxu0 0.0
  %5943 = vmatprep.subr.mxu0 0.0
  %5944 = vmatpush1.msra.mxu0 0.0
  %5945 = vmatprep.subr.mxu0 0.0
  %5946 = vmatpush1.msra.mxu0 0.0
  %5947 = vmatprep.subr.mxu0 0.0
  %5948 = vmatpush1.msra.mxu0 0.0
  %5949 = vmatprep.subr.mxu0 0.0
  %5950 = vmatpush1.msra.mxu0 0.0
  %5951 = vmatprep.subr.mxu0 0.0
  %5952 = vmatpush1.msra.mxu0 0.0
  %5953 = vmatprep.subr.mxu0 0.0
  %5954 = vmatpush1.msra.mxu0 0.0
  %5955 = vmatprep.subr.mxu0 0.0
  %5956 = vmatpush1.msra.mxu0 0.0
  %5957 = vmatprep.subr.mxu0 0.0
  %5958 = vmatpush1.msra.mxu0 0.0
  %5959 = vmatprep.subr.mxu0 0.0
  %5960 = vmatpush1.msra.mxu0 0.0
  %5961 = vmatprep.subr.mxu0 0.0
  %5962 = vmatpush1.msra.mxu0 0.0
  %5963 = vmatprep.subr.mxu0 0.0
  %5964 = vmatpush1.msra.mxu0 0.0
  %5965 = vmatprep.subr.mxu0 0.0
  %5966 = vmatpush1.msra.mxu0 %v5933
  %5967 = vmatprep.subr.mxu0 0.0
  %5968 = vmatpush2.msra.mxu0 0.0
  %5969 = vmatprep.subr.mxu0 0.0
  %5970 = vmatpush2.msra.mxu0 0.0
  %5971 = vmatprep.subr.mxu0 0.0
  %5972 = vmatpush2.msra.mxu0 0.0
  %5973 = vmatprep.subr.mxu0 0.0
  %5974 = vmatpush2.msra.mxu0 0.0
  %5975 = vmatprep.subr.mxu0 0.0
  %5976 = vmatpush2.msra.mxu0 0.0
  %5977 = vmatprep.subr.mxu0 0.0
  %5978 = vmatpush2.msra.mxu0 0.0
  %5979 = vmatprep.subr.mxu0 0.0
  %5980 = vmatpush2.msra.mxu0 0.0
  %5981 = vmatprep.subr.mxu0 0.0
  %5982 = vmatpush2.msra.mxu0 0.0
  %5983 = vmatprep.subr.mxu0 0.0
  %5984 = vmatpush2.msra.mxu0 0.0
  %5985 = vmatprep.subr.mxu0 0.0
  %5986 = vmatpush2.msra.mxu0 0.0
  %5987 = vmatprep.subr.mxu0 0.0
  %5988 = vmatpush2.msra.mxu0 0.0
  %5989 = vmatprep.subr.mxu0 0.0
  %5990 = vmatpush2.msra.mxu0 0.0
  %5991 = vmatprep.subr.mxu0 0.0
  %5992 = vmatpush2.msra.mxu0 0.0
  %5993 = vmatprep.subr.mxu0 0.0
  %5994 = vmatpush2.msra.mxu0 0.0
  %5995 = vmatprep.subr.mxu0 0.0
  %5996 = vmatpush2.msra.mxu0 0.0
  %5997 = vmatprep.subr.mxu0 0.0
  %5998 = vmatpush2.msra.mxu0 0.0
  %5999 = vmatprep.mubr.f32.mxu0 0.0
  %6000 = vmatmul.mubr.f32.gmra.mxu0 %v5741
  %v6001 = vpop.f32.mrf.mxu0
  %v6002 = vadd.f32 0.0, %v6001
  %v6003 = vpop.f32.mrf.mxu0
  %6004 = vmatprep.mubr.f32.mxu0 0.0
  %6005 = vmatmul.mubr.f32.gmra.mxu0 %v5744
  %v6006 = vpop.f32.mrf.mxu0
  %v6007 = vadd.f32 0.0, %v6006
  %v6008 = vpop.f32.mrf.mxu0
  %6009 = vmatprep.mubr.f32.mxu0 0.0
  %6010 = vmatmul.mubr.f32.gmra.mxu0 %v5747
  %v6011 = vpop.f32.mrf.mxu0
  %v6012 = vadd.f32 0.0, %v6011
  %v6013 = vpop.f32.mrf.mxu0
  %6014 = vmatprep.mubr.f32.mxu0 0.0
  %6015 = vmatmul.mubr.f32.gmra.mxu0 %v5750
  %v6016 = vpop.f32.mrf.mxu0
  %v6017 = vadd.f32 0.0, %v6016
  %v6018 = vpop.f32.mrf.mxu0
  %6019 = vmatprep.mubr.f32.mxu0 0.0
  %6020 = vmatmul.mubr.f32.gmra.mxu0 %v5753
  %v6021 = vpop.f32.mrf.mxu0
  %v6022 = vadd.f32 0.0, %v6021
  %v6023 = vpop.f32.mrf.mxu0
  %6024 = vmatprep.mubr.f32.mxu0 0.0
  %6025 = vmatmul.mubr.f32.gmra.mxu0 %v5756
  %v6026 = vpop.f32.mrf.mxu0
  %v6027 = vadd.f32 0.0, %v6026
  %v6028 = vpop.f32.mrf.mxu0
  %6029 = vmatprep.mubr.f32.mxu0 0.0
  %6030 = vmatmul.mubr.f32.gmra.mxu0 %v5759
  %v6031 = vpop.f32.mrf.mxu0
  %v6032 = vadd.f32 0.0, %v6031
  %v6033 = vpop.f32.mrf.mxu0
  %6034 = vmatprep.mubr.f32.mxu0 0.0
  %6035 = vmatmul.mubr.f32.gmra.mxu0 %v5762
  %v6036 = vpop.f32.mrf.mxu0
  %v6037 = vadd.f32 0.0, %v6036
  %v6038 = vpop.f32.mrf.mxu0
  %6039 = vmatprep.mubr.f32.mxu0 0.0
  %6040 = vmatmul.mubr.f32.gmra.mxu0 %v5765
  %v6041 = vpop.f32.mrf.mxu0
  %v6042 = vadd.f32 0.0, %v6041
  %v6043 = vpop.f32.mrf.mxu0
  %6044 = vmatprep.mubr.f32.mxu0 0.0
  %6045 = vmatmul.mubr.f32.gmra.mxu0 %v5768
  %v6046 = vpop.f32.mrf.mxu0
  %v6047 = vadd.f32 0.0, %v6046
  %v6048 = vpop.f32.mrf.mxu0
  %6049 = vmatprep.mubr.f32.mxu0 0.0
  %6050 = vmatmul.mubr.f32.gmra.mxu0 %v5771
  %v6051 = vpop.f32.mrf.mxu0
  %v6052 = vadd.f32 0.0, %v6051
  %v6053 = vpop.f32.mrf.mxu0
  %6054 = vmatprep.mubr.f32.mxu0 0.0
  %6055 = vmatmul.mubr.f32.gmra.mxu0 %v5774
  %v6056 = vpop.f32.mrf.mxu0
  %v6057 = vadd.f32 0.0, %v6056
  %v6058 = vpop.f32.mrf.mxu0
  %6059 = vmatprep.mubr.f32.mxu0 0.0
  %6060 = vmatmul.mubr.f32.gmra.mxu0 %v5777
  %v6061 = vpop.f32.mrf.mxu0
  %v6062 = vadd.f32 0.0, %v6061
  %v6063 = vpop.f32.mrf.mxu0
  %6064 = vmatprep.mubr.f32.mxu0 0.0
  %6065 = vmatmul.mubr.f32.gmra.mxu0 %v5780
  %v6066 = vpop.f32.mrf.mxu0
  %v6067 = vadd.f32 0.0, %v6066
  %v6068 = vpop.f32.mrf.mxu0
  %6069 = vmatprep.mubr.f32.mxu0 0.0
  %6070 = vmatmul.mubr.f32.gmra.mxu0 %v5783
  %v6071 = vpop.f32.mrf.mxu0
  %v6072 = vadd.f32 0.0, %v6071
  %v6073 = vpop.f32.mrf.mxu0
  %6074 = vmatprep.mubr.f32.mxu0 0.0
  %6075 = vmatmul.mubr.f32.gmra.mxu0 %v5786
  %v6076 = vpop.f32.mrf.mxu0
  %v6077 = vadd.f32 0.0, %v6076
  %v6078 = vpop.f32.mrf.mxu0
  %6079 = vmatprep.mubr.f32.mxu0 0.0
  %6080 = vmatmul.mubr.f32.gmra.mxu0 %v5789
  %v6081 = vpop.f32.mrf.mxu0
  %v6082 = vadd.f32 0.0, %v6081
  %v6083 = vpop.f32.mrf.mxu0
  %6084 = vmatprep.mubr.f32.mxu0 0.0
  %6085 = vmatmul.mubr.f32.gmra.mxu0 %v5792
  %v6086 = vpop.f32.mrf.mxu0
  %v6087 = vadd.f32 0.0, %v6086
  %v6088 = vpop.f32.mrf.mxu0
  %6089 = vmatprep.mubr.f32.mxu0 0.0
  %6090 = vmatmul.mubr.f32.gmra.mxu0 %v5795
  %v6091 = vpop.f32.mrf.mxu0
  %v6092 = vadd.f32 0.0, %v6091
  %v6093 = vpop.f32.mrf.mxu0
  %6094 = vmatprep.mubr.f32.mxu0 0.0
  %6095 = vmatmul.mubr.f32.gmra.mxu0 %v5798
  %v6096 = vpop.f32.mrf.mxu0
  %v6097 = vadd.f32 0.0, %v6096
  %v6098 = vpop.f32.mrf.mxu0
  %6099 = vmatprep.mubr.f32.mxu0 0.0
  %6100 = vmatmul.mubr.f32.gmra.mxu0 %v5801
  %v6101 = vpop.f32.mrf.mxu0
  %v6102 = vadd.f32 0.0, %v6101
  %v6103 = vpop.f32.mrf.mxu0
  %6104 = vmatprep.mubr.f32.mxu0 0.0
  %6105 = vmatmul.mubr.f32.gmra.mxu0 %v5804
  %v6106 = vpop.f32.mrf.mxu0
  %v6107 = vadd.f32 0.0, %v6106
  %v6108 = vpop.f32.mrf.mxu0
  %6109 = vmatprep.mubr.f32.mxu0 0.0
  %6110 = vmatmul.mubr.f32.gmra.mxu0 %v5807
  %v6111 = vpop.f32.mrf.mxu0
  %v6112 = vadd.f32 0.0, %v6111
  %v6113 = vpop.f32.mrf.mxu0
  %6114 = vmatprep.mubr.f32.mxu0 0.0
  %6115 = vmatmul.mubr.f32.gmra.mxu0 %v5810
  %v6116 = vpop.f32.mrf.mxu0
  %v6117 = vadd.f32 0.0, %v6116
  %v6118 = vpop.f32.mrf.mxu0
  %6119 = vmatprep.mubr.f32.mxu0 0.0
  %6120 = vmatmul.mubr.f32.gmra.mxu0 %v5813
  %v6121 = vpop.f32.mrf.mxu0
  %v6122 = vadd.f32 0.0, %v6121
  %v6123 = vpop.f32.mrf.mxu0
  %6124 = vmatprep.mubr.f32.mxu0 0.0
  %6125 = vmatmul.mubr.f32.gmra.mxu0 %v5816
  %v6126 = vpop.f32.mrf.mxu0
  %v6127 = vadd.f32 0.0, %v6126
  %v6128 = vpop.f32.mrf.mxu0
  %6129 = vmatprep.mubr.f32.mxu0 0.0
  %6130 = vmatmul.mubr.f32.gmra.mxu0 %v5819
  %v6131 = vpop.f32.mrf.mxu0
  %v6132 = vadd.f32 0.0, %v6131
  %v6133 = vpop.f32.mrf.mxu0
  %6134 = vmatprep.mubr.f32.mxu0 0.0
  %6135 = vmatmul.mubr.f32.gmra.mxu0 %v5822
  %v6136 = vpop.f32.mrf.mxu0
  %v6137 = vadd.f32 0.0, %v6136
  %v6138 = vpop.f32.mrf.mxu0
  %6139 = vmatprep.mubr.f32.mxu0 0.0
  %6140 = vmatmul.mubr.f32.gmra.mxu0 %v5825
  %v6141 = vpop.f32.mrf.mxu0
  %v6142 = vadd.f32 0.0, %v6141
  %v6143 = vpop.f32.mrf.mxu0
  %6144 = vmatprep.mubr.f32.mxu0 0.0
  %6145 = vmatmul.mubr.f32.gmra.mxu0 %v5828
  %v6146 = vpop.f32.mrf.mxu0
  %v6147 = vadd.f32 0.0, %v6146
  %v6148 = vpop.f32.mrf.mxu0
  %6149 = vmatprep.mubr.f32.mxu0 0.0
  %6150 = vmatmul.mubr.f32.gmra.mxu0 %v5831
  %v6151 = vpop.f32.mrf.mxu0
  %v6152 = vadd.f32 0.0, %v6151
  %v6153 = vpop.f32.mrf.mxu0
  %6154 = vmatprep.mubr.f32.mxu0 0.0
  %6155 = vmatmul.mubr.f32.gmra.mxu0 %v5834
  %v6156 = vpop.f32.mrf.mxu0
  %v6157 = vadd.f32 0.0, %v6156
  %v6158 = vpop.f32.mrf.mxu0
  %6159 = vmatprep.mubr.f32.mxu0 0.0
  %6160 = vmatmul.mubr.f32.gmra.mxu0 %v5837
  %v6161 = vpop.f32.mrf.mxu0
  %v6162 = vadd.f32 0.0, %v6161
  %v6163 = vpop.f32.mrf.mxu0
  %6164 = vmatprep.mubr.f32.mxu0 0.0
  %6165 = vmatmul.mubr.f32.gmra.mxu0 %v5840
  %v6166 = vpop.f32.mrf.mxu0
  %v6167 = vadd.f32 0.0, %v6166
  %v6168 = vpop.f32.mrf.mxu0
  %6169 = vmatprep.mubr.f32.mxu0 0.0
  %6170 = vmatmul.mubr.f32.gmra.mxu0 %v5843
  %v6171 = vpop.f32.mrf.mxu0
  %v6172 = vadd.f32 0.0, %v6171
  %v6173 = vpop.f32.mrf.mxu0
  %6174 = vmatprep.mubr.f32.mxu0 0.0
  %6175 = vmatmul.mubr.f32.gmra.mxu0 %v5846
  %v6176 = vpop.f32.mrf.mxu0
  %v6177 = vadd.f32 0.0, %v6176
  %v6178 = vpop.f32.mrf.mxu0
  %6179 = vmatprep.mubr.f32.mxu0 0.0
  %6180 = vmatmul.mubr.f32.gmra.mxu0 %v5849
  %v6181 = vpop.f32.mrf.mxu0
  %v6182 = vadd.f32 0.0, %v6181
  %v6183 = vpop.f32.mrf.mxu0
  %6184 = vmatprep.mubr.f32.mxu0 0.0
  %6185 = vmatmul.mubr.f32.gmra.mxu0 %v5852
  %v6186 = vpop.f32.mrf.mxu0
  %v6187 = vadd.f32 0.0, %v6186
  %v6188 = vpop.f32.mrf.mxu0
  %6189 = vmatprep.mubr.f32.mxu0 0.0
  %6190 = vmatmul.mubr.f32.gmra.mxu0 %v5855
  %v6191 = vpop.f32.mrf.mxu0
  %v6192 = vadd.f32 0.0, %v6191
  %v6193 = vpop.f32.mrf.mxu0
  %6194 = vmatprep.mubr.f32.mxu0 0.0
  %6195 = vmatmul.mubr.f32.gmra.mxu0 %v5858
  %v6196 = vpop.f32.mrf.mxu0
  %v6197 = vadd.f32 0.0, %v6196
  %v6198 = vpop.f32.mrf.mxu0
  %6199 = vmatprep.mubr.f32.mxu0 0.0
  %6200 = vmatmul.mubr.f32.gmra.mxu0 %v5861
  %v6201 = vpop.f32.mrf.mxu0
  %v6202 = vadd.f32 0.0, %v6201
  %v6203 = vpop.f32.mrf.mxu0
  %6204 = vmatprep.mubr.f32.mxu0 0.0
  %6205 = vmatmul.mubr.f32.gmra.mxu0 %v5864
  %v6206 = vpop.f32.mrf.mxu0
  %v6207 = vadd.f32 0.0, %v6206
  %v6208 = vpop.f32.mrf.mxu0
  %6209 = vmatprep.mubr.f32.mxu0 0.0
  %6210 = vmatmul.mubr.f32.gmra.mxu0 %v5867
  %v6211 = vpop.f32.mrf.mxu0
  %v6212 = vadd.f32 0.0, %v6211
  %v6213 = vpop.f32.mrf.mxu0
  %6214 = vmatprep.mubr.f32.mxu0 0.0
  %6215 = vmatmul.mubr.f32.gmra.mxu0 %v5870
  %v6216 = vpop.f32.mrf.mxu0
  %v6217 = vadd.f32 0.0, %v6216
  %v6218 = vpop.f32.mrf.mxu0
  %6219 = vmatprep.mubr.f32.mxu0 0.0
  %6220 = vmatmul.mubr.f32.gmra.mxu0 %v5873
  %v6221 = vpop.f32.mrf.mxu0
  %v6222 = vadd.f32 0.0, %v6221
  %v6223 = vpop.f32.mrf.mxu0
  %6224 = vmatprep.mubr.f32.mxu0 0.0
  %6225 = vmatmul.mubr.f32.gmra.mxu0 %v5876
  %v6226 = vpop.f32.mrf.mxu0
  %v6227 = vadd.f32 0.0, %v6226
  %v6228 = vpop.f32.mrf.mxu0
  %6229 = vmatprep.mubr.f32.mxu0 0.0
  %6230 = vmatmul.mubr.f32.gmra.mxu0 %v5879
  %v6231 = vpop.f32.mrf.mxu0
  %v6232 = vadd.f32 0.0, %v6231
  %v6233 = vpop.f32.mrf.mxu0
  %6234 = vmatprep.mubr.f32.mxu0 0.0
  %6235 = vmatmul.mubr.f32.gmra.mxu0 %v5882
  %v6236 = vpop.f32.mrf.mxu0
  %v6237 = vadd.f32 0.0, %v6236
  %v6238 = vpop.f32.mrf.mxu0
  %6239 = vmatprep.mubr.f32.mxu0 0.0
  %6240 = vmatmul.mubr.f32.gmra.mxu0 %v5885
  %v6241 = vpop.f32.mrf.mxu0
  %v6242 = vadd.f32 0.0, %v6241
  %v6243 = vpop.f32.mrf.mxu0
  %6244 = vmatprep.mubr.f32.mxu0 0.0
  %6245 = vmatmul.mubr.f32.gmra.mxu0 %v5888
  %v6246 = vpop.f32.mrf.mxu0
  %v6247 = vadd.f32 0.0, %v6246
  %v6248 = vpop.f32.mrf.mxu0
  %6249 = vmatprep.mubr.f32.mxu0 0.0
  %6250 = vmatmul.mubr.f32.gmra.mxu0 %v5891
  %v6251 = vpop.f32.mrf.mxu0
  %v6252 = vadd.f32 0.0, %v6251
  %v6253 = vpop.f32.mrf.mxu0
  %6254 = vmatprep.mubr.f32.mxu0 0.0
  %6255 = vmatmul.mubr.f32.gmra.mxu0 %v5894
  %v6256 = vpop.f32.mrf.mxu0
  %v6257 = vadd.f32 0.0, %v6256
  %v6258 = vpop.f32.mrf.mxu0
  %6259 = vmatprep.mubr.f32.mxu0 0.0
  %6260 = vmatmul.mubr.f32.gmra.mxu0 %v5897
  %v6261 = vpop.f32.mrf.mxu0
  %v6262 = vadd.f32 0.0, %v6261
  %v6263 = vpop.f32.mrf.mxu0
  %6264 = vmatprep.mubr.f32.mxu0 0.0
  %6265 = vmatmul.mubr.f32.gmra.mxu0 %v5900
  %v6266 = vpop.f32.mrf.mxu0
  %v6267 = vadd.f32 0.0, %v6266
  %v6268 = vpop.f32.mrf.mxu0
  %6269 = vmatprep.mubr.f32.mxu0 0.0
  %6270 = vmatmul.mubr.f32.gmra.mxu0 %v5903
  %v6271 = vpop.f32.mrf.mxu0
  %v6272 = vadd.f32 0.0, %v6271
  %v6273 = vpop.f32.mrf.mxu0
  %6274 = vmatprep.mubr.f32.mxu0 0.0
  %6275 = vmatmul.mubr.f32.gmra.mxu0 %v5906
  %v6276 = vpop.f32.mrf.mxu0
  %v6277 = vadd.f32 0.0, %v6276
  %v6278 = vpop.f32.mrf.mxu0
  %6279 = vmatprep.mubr.f32.mxu0 0.0
  %6280 = vmatmul.mubr.f32.gmra.mxu0 %v5909
  %v6281 = vpop.f32.mrf.mxu0
  %v6282 = vadd.f32 0.0, %v6281
  %v6283 = vpop.f32.mrf.mxu0
  %6284 = vmatprep.mubr.f32.mxu0 0.0
  %6285 = vmatmul.mubr.f32.gmra.mxu0 %v5912
  %v6286 = vpop.f32.mrf.mxu0
  %v6287 = vadd.f32 0.0, %v6286
  %v6288 = vpop.f32.mrf.mxu0
  %6289 = vmatprep.mubr.f32.mxu0 0.0
  %6290 = vmatmul.mubr.f32.gmra.mxu0 %v5915
  %v6291 = vpop.f32.mrf.mxu0
  %v6292 = vadd.f32 0.0, %v6291
  %v6293 = vpop.f32.mrf.mxu0
  %6294 = vmatprep.mubr.f32.mxu0 0.0
  %6295 = vmatmul.mubr.f32.gmra.mxu0 %v5918
  %v6296 = vpop.f32.mrf.mxu0
  %v6297 = vadd.f32 0.0, %v6296
  %v6298 = vpop.f32.mrf.mxu0
  %6299 = vmatprep.mubr.f32.mxu0 0.0
  %6300 = vmatmul.mubr.f32.gmra.mxu0 %v5921
  %v6301 = vpop.f32.mrf.mxu0
  %v6302 = vadd.f32 0.0, %v6301
  %v6303 = vpop.f32.mrf.mxu0
  %6304 = vmatprep.mubr.f32.mxu0 0.0
  %6305 = vmatmul.mubr.f32.gmra.mxu0 %v5924
  %v6306 = vpop.f32.mrf.mxu0
  %v6307 = vadd.f32 0.0, %v6306
  %v6308 = vpop.f32.mrf.mxu0
  %6309 = vmatprep.mubr.f32.mxu0 0.0
  %6310 = vmatmul.mubr.f32.gmra.mxu0 %v5927
  %v6311 = vpop.f32.mrf.mxu0
  %v6312 = vadd.f32 0.0, %v6311
  %v6313 = vpop.f32.mrf.mxu0
  %6314 = vmatprep.mubr.f32.mxu0 0.0
  %6315 = vmatmul.mubr.f32.gmra.mxu0 %v5930
  %v6316 = vpop.f32.mrf.mxu0
  %v6317 = vadd.f32 0.0, %v6316
  %v6318 = vpop.f32.mrf.mxu0
  %6319 = vdwg.mxu0
  %v6320 = vadd.f32 %v5609, %v6002
  %v6321 = vadd.f32 %v5610, %v6007
  %v6322 = vadd.f32 %v5611, %v6012
  %v6323 = vadd.f32 %v5612, %v6017
  %v6324 = vadd.f32 %v5613, %v6022
  %v6325 = vadd.f32 %v5614, %v6027
  %v6326 = vadd.f32 %v5615, %v6032
  %v6327 = vadd.f32 %v5616, %v6037
  %v6328 = vadd.f32 %v5617, %v6042
  %v6329 = vadd.f32 %v5618, %v6047
  %v6330 = vadd.f32 %v5619, %v6052
  %v6331 = vadd.f32 %v5620, %v6057
  %v6332 = vadd.f32 %v5621, %v6062
  %v6333 = vadd.f32 %v5622, %v6067
  %v6334 = vadd.f32 %v5623, %v6072
  %v6335 = vadd.f32 %v5624, %v6077
  %v6336 = vadd.f32 %v5625, %v6082
  %v6337 = vadd.f32 %v5626, %v6087
  %v6338 = vadd.f32 %v5627, %v6092
  %v6339 = vadd.f32 %v5628, %v6097
  %v6340 = vadd.f32 %v5629, %v6102
  %v6341 = vadd.f32 %v5630, %v6107
  %v6342 = vadd.f32 %v5631, %v6112
  %v6343 = vadd.f32 %v5632, %v6117
  %v6344 = vadd.f32 %v5633, %v6122
  %v6345 = vadd.f32 %v5634, %v6127
  %v6346 = vadd.f32 %v5635, %v6132
  %v6347 = vadd.f32 %v5636, %v6137
  %v6348 = vadd.f32 %v5637, %v6142
  %v6349 = vadd.f32 %v5638, %v6147
  %v6350 = vadd.f32 %v5639, %v6152
  %v6351 = vadd.f32 %v5640, %v6157
  %v6352 = vadd.f32 %v5641, %v6162
  %v6353 = vadd.f32 %v5642, %v6167
  %v6354 = vadd.f32 %v5643, %v6172
  %v6355 = vadd.f32 %v5644, %v6177
  %v6356 = vadd.f32 %v5645, %v6182
  %v6357 = vadd.f32 %v5646, %v6187
  %v6358 = vadd.f32 %v5647, %v6192
  %v6359 = vadd.f32 %v5648, %v6197
  %v6360 = vadd.f32 %v5649, %v6202
  %v6361 = vadd.f32 %v5650, %v6207
  %v6362 = vadd.f32 %v5651, %v6212
  %v6363 = vadd.f32 %v5652, %v6217
  %v6364 = vadd.f32 %v5653, %v6222
  %v6365 = vadd.f32 %v5654, %v6227
  %v6366 = vadd.f32 %v5655, %v6232
  %v6367 = vadd.f32 %v5656, %v6237
  %v6368 = vadd.f32 %v5657, %v6242
  %v6369 = vadd.f32 %v5658, %v6247
  %v6370 = vadd.f32 %v5659, %v6252
  %v6371 = vadd.f32 %v5660, %v6257
  %v6372 = vadd.f32 %v5661, %v6262
  %v6373 = vadd.f32 %v5662, %v6267
  %v6374 = vadd.f32 %v5663, %v6272
  %v6375 = vadd.f32 %v5664, %v6277
  %v6376 = vadd.f32 %v5665, %v6282
  %v6377 = vadd.f32 %v5666, %v6287
  %v6378 = vadd.f32 %v5667, %v6292
  %v6379 = vadd.f32 %v5668, %v6297
  %v6380 = vadd.f32 %v5669, %v6302
  %v6381 = vadd.f32 %v5670, %v6307
  %v6382 = vadd.f32 %v5671, %v6312
  %v6383 = vadd.f32 %v5672, %v6317
  %v6384 = vld [vmem:[%s5673 + $0x1] sm:$0xff]
  %v6385 = vld [vmem:[%s5673 + $0x9] sm:$0xff]
  %v6386 = vld [vmem:[%s5673 + $0x19] sm:$0xff]
  %v6387 = vld [vmem:[%s5673 + $0x21] sm:$0xff]
  %v6388 = vld [vmem:[%s5673 + $0x31] sm:$0xff]
  %v6389 = vld [vmem:[%s5673 + $0x39] sm:$0xff]
  %v6390 = vld [vmem:[%s5673 + $0x49] sm:$0xff]
  %v6391 = vld [vmem:[%s5673 + $0x51] sm:$0xff]
  %v6392 = vld [vmem:[%s5673 + $0x61] sm:$0xff]
  %v6393 = vld [vmem:[%s5673 + $0x69] sm:$0xff]
  %v6394 = vld [vmem:[%s5673 + $0x79] sm:$0xff]
  %v6395 = vld [vmem:[%s5673 + $0x81] sm:$0xff]
  %v6396 = vld [vmem:[%s5673 + $0x91] sm:$0xff]
  %v6397 = vld [vmem:[%s5673 + $0x99] sm:$0xff]
  %v6398 = vld [vmem:[%s5673 + $0xa9] sm:$0xff]
  %v6399 = vld [vmem:[%s5673 + $0xb1] sm:$0xff]
  %v6400 = vld [vmem:[%s5673 + $0xc1] sm:$0xff]
  %v6401 = vld [vmem:[%s5673 + $0xc9] sm:$0xff]
  %v6402 = vld [vmem:[%s5673 + $0xd9] sm:$0xff]
  %v6403 = vld [vmem:[%s5673 + $0xe1] sm:$0xff]
  %v6404 = vld [vmem:[%s5673 + $0xf1] sm:$0xff]
  %v6405 = vld [vmem:[%s5673 + $0xf9] sm:$0xff]
  %v6406 = vld [vmem:[%s5673 + $0x109] sm:$0xff]
  %v6407 = vld [vmem:[%s5673 + $0x111] sm:$0xff]
  %v6408 = vld [vmem:[%s5673 + $0x121] sm:$0xff]
  %v6409 = vld [vmem:[%s5673 + $0x129] sm:$0xff]
  %v6410 = vld [vmem:[%s5673 + $0x139] sm:$0xff]
  %v6411 = vld [vmem:[%s5673 + $0x141] sm:$0xff]
  %v6412 = vld [vmem:[%s5673 + $0x151] sm:$0xff]
  %v6413 = vld [vmem:[%s5673 + $0x159] sm:$0xff]
  %v6414 = vld [vmem:[%s5673 + $0x169] sm:$0xff]
  %v6415 = vld [vmem:[%s5673 + $0x171] sm:$0xff]
  %v6416 = vld [vmem:[%s5673 + $0x1b1] sm:$0xff]
  %v6417 = vld [vmem:[%s5673 + $0x1b9] sm:$0xff]
  %v6418 = vld [vmem:[%s5673 + $0x1c9] sm:$0xff]
  %v6419 = vld [vmem:[%s5673 + $0x1d1] sm:$0xff]
  %v6420 = vld [vmem:[%s5673 + $0x1e1] sm:$0xff]
  %v6421 = vld [vmem:[%s5673 + $0x1e9] sm:$0xff]
  %v6422 = vld [vmem:[%s5673 + $0x1f9] sm:$0xff]
  %v6423 = vld [vmem:[%s5673 + $0x201] sm:$0xff]
  %v6424 = vld [vmem:[%s5673 + $0x211] sm:$0xff]
  %v6425 = vld [vmem:[%s5673 + $0x219] sm:$0xff]
  %v6426 = vld [vmem:[%s5673 + $0x229] sm:$0xff]
  %v6427 = vld [vmem:[%s5673 + $0x231] sm:$0xff]
  %v6428 = vld [vmem:[%s5673 + $0x241] sm:$0xff]
  %v6429 = vld [vmem:[%s5673 + $0x249] sm:$0xff]
  %v6430 = vld [vmem:[%s5673 + $0x259] sm:$0xff]
  %v6431 = vld [vmem:[%s5673 + $0x261] sm:$0xff]
  %v6432 = vld [vmem:[%s5673 + $0x271] sm:$0xff]
  %v6433 = vld [vmem:[%s5673 + $0x279] sm:$0xff]
  %v6434 = vld [vmem:[%s5673 + $0x289] sm:$0xff]
  %v6435 = vld [vmem:[%s5673 + $0x291] sm:$0xff]
  %v6436 = vld [vmem:[%s5673 + $0x2a1] sm:$0xff]
  %v6437 = vld [vmem:[%s5673 + $0x2a9] sm:$0xff]
  %v6438 = vld [vmem:[%s5673 + $0x2b9] sm:$0xff]
  %v6439 = vld [vmem:[%s5673 + $0x2c1] sm:$0xff]
  %v6440 = vld [vmem:[%s5673 + $0x2d1] sm:$0xff]
  %v6441 = vld [vmem:[%s5673 + $0x2d9] sm:$0xff]
  %v6442 = vld [vmem:[%s5673 + $0x2e9] sm:$0xff]
  %v6443 = vld [vmem:[%s5673 + $0x2f1] sm:$0xff]
  %v6444 = vld [vmem:[%s5673 + $0x301] sm:$0xff]
  %v6445 = vld [vmem:[%s5673 + $0x309] sm:$0xff]
  %v6446 = vld [vmem:[%s5673 + $0x319] sm:$0xff]
  %v6447 = vld [vmem:[%s5673 + $0x321] sm:$0xff]
  %s6448 = scalar_lea.vmem %s5, 28
  %v6449 = vld [vmem:[%s6448] sm:$0xf]
  %v6451 = vsel %vm697, %v6384, 0
  %v6454 = vsel %vm697, %v6385, 0
  %v6457 = vsel %vm697, %v6386, 0
  %v6460 = vsel %vm697, %v6387, 0
  %v6463 = vsel %vm697, %v6388, 0
  %v6466 = vsel %vm697, %v6389, 0
  %v6469 = vsel %vm697, %v6390, 0
  %v6472 = vsel %vm697, %v6391, 0
  %v6475 = vsel %vm697, %v6392, 0
  %v6478 = vsel %vm697, %v6393, 0
  %v6481 = vsel %vm697, %v6394, 0
  %v6484 = vsel %vm697, %v6395, 0
  %v6487 = vsel %vm697, %v6396, 0
  %v6490 = vsel %vm697, %v6397, 0
  %v6493 = vsel %vm697, %v6398, 0
  %v6496 = vsel %vm697, %v6399, 0
  %v6499 = vsel %vm697, %v6400, 0
  %v6502 = vsel %vm697, %v6401, 0
  %v6505 = vsel %vm697, %v6402, 0
  %v6508 = vsel %vm697, %v6403, 0
  %v6511 = vsel %vm697, %v6404, 0
  %v6514 = vsel %vm697, %v6405, 0
  %v6517 = vsel %vm697, %v6406, 0
  %v6520 = vsel %vm697, %v6407, 0
  %v6523 = vsel %vm697, %v6408, 0
  %v6526 = vsel %vm697, %v6409, 0
  %v6529 = vsel %vm697, %v6410, 0
  %v6532 = vsel %vm697, %v6411, 0
  %v6535 = vsel %vm697, %v6412, 0
  %v6538 = vsel %vm697, %v6413, 0
  %v6541 = vsel %vm697, %v6414, 0
  %v6544 = vsel %vm697, %v6415, 0
  %v6547 = vsel %vm697, %v6416, 0
  %v6550 = vsel %vm697, %v6417, 0
  %v6553 = vsel %vm697, %v6418, 0
  %v6556 = vsel %vm697, %v6419, 0
  %v6559 = vsel %vm697, %v6420, 0
  %v6562 = vsel %vm697, %v6421, 0
  %v6565 = vsel %vm697, %v6422, 0
  %v6568 = vsel %vm697, %v6423, 0
  %v6571 = vsel %vm697, %v6424, 0
  %v6574 = vsel %vm697, %v6425, 0
  %v6577 = vsel %vm697, %v6426, 0
  %v6580 = vsel %vm697, %v6427, 0
  %v6583 = vsel %vm697, %v6428, 0
  %v6586 = vsel %vm697, %v6429, 0
  %v6589 = vsel %vm697, %v6430, 0
  %v6592 = vsel %vm697, %v6431, 0
  %v6595 = vsel %vm697, %v6432, 0
  %v6598 = vsel %vm697, %v6433, 0
  %v6601 = vsel %vm697, %v6434, 0
  %v6604 = vsel %vm697, %v6435, 0
  %v6607 = vsel %vm697, %v6436, 0
  %v6610 = vsel %vm697, %v6437, 0
  %v6613 = vsel %vm697, %v6438, 0
  %v6616 = vsel %vm697, %v6439, 0
  %v6619 = vsel %vm697, %v6440, 0
  %v6622 = vsel %vm697, %v6441, 0
  %v6625 = vsel %vm697, %v6442, 0
  %v6628 = vsel %vm697, %v6443, 0
  %v6631 = vsel %vm697, %v6444, 0
  %v6634 = vsel %vm697, %v6445, 0
  %v6637 = vsel %vm697, %v6446, 0
  %v6640 = vsel %vm697, %v6447, 0
  %v6643 = vsel %vm1864, %v6449, 0
  %6645 = vmatprep.subr.mxu0 0.0
  %6646 = vmatpush1.msra.mxu0 0.0
  %6647 = vmatprep.subr.mxu0 0.0
  %6648 = vmatpush1.msra.mxu0 0.0
  %6649 = vmatprep.subr.mxu0 0.0
  %6650 = vmatpush1.msra.mxu0 0.0
  %6651 = vmatprep.subr.mxu0 0.0
  %6652 = vmatpush1.msra.mxu0 0.0
  %6653 = vmatprep.subr.mxu0 0.0
  %6654 = vmatpush1.msra.mxu0 0.0
  %6655 = vmatprep.subr.mxu0 0.0
  %6656 = vmatpush1.msra.mxu0 0.0
  %6657 = vmatprep.subr.mxu0 0.0
  %6658 = vmatpush1.msra.mxu0 0.0
  %6659 = vmatprep.subr.mxu0 0.0
  %6660 = vmatpush1.msra.mxu0 0.0
  %6661 = vmatprep.subr.mxu0 0.0
  %6662 = vmatpush1.msra.mxu0 0.0
  %6663 = vmatprep.subr.mxu0 0.0
  %6664 = vmatpush1.msra.mxu0 0.0
  %6665 = vmatprep.subr.mxu0 0.0
  %6666 = vmatpush1.msra.mxu0 0.0
  %6667 = vmatprep.subr.mxu0 0.0
  %6668 = vmatpush1.msra.mxu0 0.0
  %6669 = vmatprep.subr.mxu0 0.0
  %6670 = vmatpush1.msra.mxu0 0.0
  %6671 = vmatprep.subr.mxu0 0.0
  %6672 = vmatpush1.msra.mxu0 0.0
  %6673 = vmatprep.subr.mxu0 0.0
  %6674 = vmatpush1.msra.mxu0 0.0
  %6675 = vmatprep.subr.mxu0 0.0
  %6676 = vmatpush1.msra.mxu0 %v6643
  %6677 = vmatprep.subr.mxu0 0.0
  %6678 = vmatpush2.msra.mxu0 0.0
  %6679 = vmatprep.subr.mxu0 0.0
  %6680 = vmatpush2.msra.mxu0 0.0
  %6681 = vmatprep.subr.mxu0 0.0
  %6682 = vmatpush2.msra.mxu0 0.0
  %6683 = vmatprep.subr.mxu0 0.0
  %6684 = vmatpush2.msra.mxu0 0.0
  %6685 = vmatprep.subr.mxu0 0.0
  %6686 = vmatpush2.msra.mxu0 0.0
  %6687 = vmatprep.subr.mxu0 0.0
  %6688 = vmatpush2.msra.mxu0 0.0
  %6689 = vmatprep.subr.mxu0 0.0
  %6690 = vmatpush2.msra.mxu0 0.0
  %6691 = vmatprep.subr.mxu0 0.0
  %6692 = vmatpush2.msra.mxu0 0.0
  %6693 = vmatprep.subr.mxu0 0.0
  %6694 = vmatpush2.msra.mxu0 0.0
  %6695 = vmatprep.subr.mxu0 0.0
  %6696 = vmatpush2.msra.mxu0 0.0
  %6697 = vmatprep.subr.mxu0 0.0
  %6698 = vmatpush2.msra.mxu0 0.0
  %6699 = vmatprep.subr.mxu0 0.0
  %6700 = vmatpush2.msra.mxu0 0.0
  %6701 = vmatprep.subr.mxu0 0.0
  %6702 = vmatpush2.msra.mxu0 0.0
  %6703 = vmatprep.subr.mxu0 0.0
  %6704 = vmatpush2.msra.mxu0 0.0
  %6705 = vmatprep.subr.mxu0 0.0
  %6706 = vmatpush2.msra.mxu0 0.0
  %6707 = vmatprep.subr.mxu0 0.0
  %6708 = vmatpush2.msra.mxu0 0.0
  %6709 = vmatprep.mubr.f32.mxu0 0.0
  %6710 = vmatmul.mubr.f32.gmra.mxu0 %v6451
  %v6711 = vpop.f32.mrf.mxu0
  %v6712 = vadd.f32 0.0, %v6711
  %v6713 = vpop.f32.mrf.mxu0
  %6714 = vmatprep.mubr.f32.mxu0 0.0
  %6715 = vmatmul.mubr.f32.gmra.mxu0 %v6454
  %v6716 = vpop.f32.mrf.mxu0
  %v6717 = vadd.f32 0.0, %v6716
  %v6718 = vpop.f32.mrf.mxu0
  %6719 = vmatprep.mubr.f32.mxu0 0.0
  %6720 = vmatmul.mubr.f32.gmra.mxu0 %v6457
  %v6721 = vpop.f32.mrf.mxu0
  %v6722 = vadd.f32 0.0, %v6721
  %v6723 = vpop.f32.mrf.mxu0
  %6724 = vmatprep.mubr.f32.mxu0 0.0
  %6725 = vmatmul.mubr.f32.gmra.mxu0 %v6460
  %v6726 = vpop.f32.mrf.mxu0
  %v6727 = vadd.f32 0.0, %v6726
  %v6728 = vpop.f32.mrf.mxu0
  %6729 = vmatprep.mubr.f32.mxu0 0.0
  %6730 = vmatmul.mubr.f32.gmra.mxu0 %v6463
  %v6731 = vpop.f32.mrf.mxu0
  %v6732 = vadd.f32 0.0, %v6731
  %v6733 = vpop.f32.mrf.mxu0
  %6734 = vmatprep.mubr.f32.mxu0 0.0
  %6735 = vmatmul.mubr.f32.gmra.mxu0 %v6466
  %v6736 = vpop.f32.mrf.mxu0
  %v6737 = vadd.f32 0.0, %v6736
  %v6738 = vpop.f32.mrf.mxu0
  %6739 = vmatprep.mubr.f32.mxu0 0.0
  %6740 = vmatmul.mubr.f32.gmra.mxu0 %v6469
  %v6741 = vpop.f32.mrf.mxu0
  %v6742 = vadd.f32 0.0, %v6741
  %v6743 = vpop.f32.mrf.mxu0
  %6744 = vmatprep.mubr.f32.mxu0 0.0
  %6745 = vmatmul.mubr.f32.gmra.mxu0 %v6472
  %v6746 = vpop.f32.mrf.mxu0
  %v6747 = vadd.f32 0.0, %v6746
  %v6748 = vpop.f32.mrf.mxu0
  %6749 = vmatprep.mubr.f32.mxu0 0.0
  %6750 = vmatmul.mubr.f32.gmra.mxu0 %v6475
  %v6751 = vpop.f32.mrf.mxu0
  %v6752 = vadd.f32 0.0, %v6751
  %v6753 = vpop.f32.mrf.mxu0
  %6754 = vmatprep.mubr.f32.mxu0 0.0
  %6755 = vmatmul.mubr.f32.gmra.mxu0 %v6478
  %v6756 = vpop.f32.mrf.mxu0
  %v6757 = vadd.f32 0.0, %v6756
  %v6758 = vpop.f32.mrf.mxu0
  %6759 = vmatprep.mubr.f32.mxu0 0.0
  %6760 = vmatmul.mubr.f32.gmra.mxu0 %v6481
  %v6761 = vpop.f32.mrf.mxu0
  %v6762 = vadd.f32 0.0, %v6761
  %v6763 = vpop.f32.mrf.mxu0
  %6764 = vmatprep.mubr.f32.mxu0 0.0
  %6765 = vmatmul.mubr.f32.gmra.mxu0 %v6484
  %v6766 = vpop.f32.mrf.mxu0
  %v6767 = vadd.f32 0.0, %v6766
  %v6768 = vpop.f32.mrf.mxu0
  %6769 = vmatprep.mubr.f32.mxu0 0.0
  %6770 = vmatmul.mubr.f32.gmra.mxu0 %v6487
  %v6771 = vpop.f32.mrf.mxu0
  %v6772 = vadd.f32 0.0, %v6771
  %v6773 = vpop.f32.mrf.mxu0
  %6774 = vmatprep.mubr.f32.mxu0 0.0
  %6775 = vmatmul.mubr.f32.gmra.mxu0 %v6490
  %v6776 = vpop.f32.mrf.mxu0
  %v6777 = vadd.f32 0.0, %v6776
  %v6778 = vpop.f32.mrf.mxu0
  %6779 = vmatprep.mubr.f32.mxu0 0.0
  %6780 = vmatmul.mubr.f32.gmra.mxu0 %v6493
  %v6781 = vpop.f32.mrf.mxu0
  %v6782 = vadd.f32 0.0, %v6781
  %v6783 = vpop.f32.mrf.mxu0
  %6784 = vmatprep.mubr.f32.mxu0 0.0
  %6785 = vmatmul.mubr.f32.gmra.mxu0 %v6496
  %v6786 = vpop.f32.mrf.mxu0
  %v6787 = vadd.f32 0.0, %v6786
  %v6788 = vpop.f32.mrf.mxu0
  %6789 = vmatprep.mubr.f32.mxu0 0.0
  %6790 = vmatmul.mubr.f32.gmra.mxu0 %v6499
  %v6791 = vpop.f32.mrf.mxu0
  %v6792 = vadd.f32 0.0, %v6791
  %v6793 = vpop.f32.mrf.mxu0
  %6794 = vmatprep.mubr.f32.mxu0 0.0
  %6795 = vmatmul.mubr.f32.gmra.mxu0 %v6502
  %v6796 = vpop.f32.mrf.mxu0
  %v6797 = vadd.f32 0.0, %v6796
  %v6798 = vpop.f32.mrf.mxu0
  %6799 = vmatprep.mubr.f32.mxu0 0.0
  %6800 = vmatmul.mubr.f32.gmra.mxu0 %v6505
  %v6801 = vpop.f32.mrf.mxu0
  %v6802 = vadd.f32 0.0, %v6801
  %v6803 = vpop.f32.mrf.mxu0
  %6804 = vmatprep.mubr.f32.mxu0 0.0
  %6805 = vmatmul.mubr.f32.gmra.mxu0 %v6508
  %v6806 = vpop.f32.mrf.mxu0
  %v6807 = vadd.f32 0.0, %v6806
  %v6808 = vpop.f32.mrf.mxu0
  %6809 = vmatprep.mubr.f32.mxu0 0.0
  %6810 = vmatmul.mubr.f32.gmra.mxu0 %v6511
  %v6811 = vpop.f32.mrf.mxu0
  %v6812 = vadd.f32 0.0, %v6811
  %v6813 = vpop.f32.mrf.mxu0
  %6814 = vmatprep.mubr.f32.mxu0 0.0
  %6815 = vmatmul.mubr.f32.gmra.mxu0 %v6514
  %v6816 = vpop.f32.mrf.mxu0
  %v6817 = vadd.f32 0.0, %v6816
  %v6818 = vpop.f32.mrf.mxu0
  %6819 = vmatprep.mubr.f32.mxu0 0.0
  %6820 = vmatmul.mubr.f32.gmra.mxu0 %v6517
  %v6821 = vpop.f32.mrf.mxu0
  %v6822 = vadd.f32 0.0, %v6821
  %v6823 = vpop.f32.mrf.mxu0
  %6824 = vmatprep.mubr.f32.mxu0 0.0
  %6825 = vmatmul.mubr.f32.gmra.mxu0 %v6520
  %v6826 = vpop.f32.mrf.mxu0
  %v6827 = vadd.f32 0.0, %v6826
  %v6828 = vpop.f32.mrf.mxu0
  %6829 = vmatprep.mubr.f32.mxu0 0.0
  %6830 = vmatmul.mubr.f32.gmra.mxu0 %v6523
  %v6831 = vpop.f32.mrf.mxu0
  %v6832 = vadd.f32 0.0, %v6831
  %v6833 = vpop.f32.mrf.mxu0
  %6834 = vmatprep.mubr.f32.mxu0 0.0
  %6835 = vmatmul.mubr.f32.gmra.mxu0 %v6526
  %v6836 = vpop.f32.mrf.mxu0
  %v6837 = vadd.f32 0.0, %v6836
  %v6838 = vpop.f32.mrf.mxu0
  %6839 = vmatprep.mubr.f32.mxu0 0.0
  %6840 = vmatmul.mubr.f32.gmra.mxu0 %v6529
  %v6841 = vpop.f32.mrf.mxu0
  %v6842 = vadd.f32 0.0, %v6841
  %v6843 = vpop.f32.mrf.mxu0
  %6844 = vmatprep.mubr.f32.mxu0 0.0
  %6845 = vmatmul.mubr.f32.gmra.mxu0 %v6532
  %v6846 = vpop.f32.mrf.mxu0
  %v6847 = vadd.f32 0.0, %v6846
  %v6848 = vpop.f32.mrf.mxu0
  %6849 = vmatprep.mubr.f32.mxu0 0.0
  %6850 = vmatmul.mubr.f32.gmra.mxu0 %v6535
  %v6851 = vpop.f32.mrf.mxu0
  %v6852 = vadd.f32 0.0, %v6851
  %v6853 = vpop.f32.mrf.mxu0
  %6854 = vmatprep.mubr.f32.mxu0 0.0
  %6855 = vmatmul.mubr.f32.gmra.mxu0 %v6538
  %v6856 = vpop.f32.mrf.mxu0
  %v6857 = vadd.f32 0.0, %v6856
  %v6858 = vpop.f32.mrf.mxu0
  %6859 = vmatprep.mubr.f32.mxu0 0.0
  %6860 = vmatmul.mubr.f32.gmra.mxu0 %v6541
  %v6861 = vpop.f32.mrf.mxu0
  %v6862 = vadd.f32 0.0, %v6861
  %v6863 = vpop.f32.mrf.mxu0
  %6864 = vmatprep.mubr.f32.mxu0 0.0
  %6865 = vmatmul.mubr.f32.gmra.mxu0 %v6544
  %v6866 = vpop.f32.mrf.mxu0
  %v6867 = vadd.f32 0.0, %v6866
  %v6868 = vpop.f32.mrf.mxu0
  %6869 = vmatprep.mubr.f32.mxu0 0.0
  %6870 = vmatmul.mubr.f32.gmra.mxu0 %v6547
  %v6871 = vpop.f32.mrf.mxu0
  %v6872 = vadd.f32 0.0, %v6871
  %v6873 = vpop.f32.mrf.mxu0
  %6874 = vmatprep.mubr.f32.mxu0 0.0
  %6875 = vmatmul.mubr.f32.gmra.mxu0 %v6550
  %v6876 = vpop.f32.mrf.mxu0
  %v6877 = vadd.f32 0.0, %v6876
  %v6878 = vpop.f32.mrf.mxu0
  %6879 = vmatprep.mubr.f32.mxu0 0.0
  %6880 = vmatmul.mubr.f32.gmra.mxu0 %v6553
  %v6881 = vpop.f32.mrf.mxu0
  %v6882 = vadd.f32 0.0, %v6881
  %v6883 = vpop.f32.mrf.mxu0
  %6884 = vmatprep.mubr.f32.mxu0 0.0
  %6885 = vmatmul.mubr.f32.gmra.mxu0 %v6556
  %v6886 = vpop.f32.mrf.mxu0
  %v6887 = vadd.f32 0.0, %v6886
  %v6888 = vpop.f32.mrf.mxu0
  %6889 = vmatprep.mubr.f32.mxu0 0.0
  %6890 = vmatmul.mubr.f32.gmra.mxu0 %v6559
  %v6891 = vpop.f32.mrf.mxu0
  %v6892 = vadd.f32 0.0, %v6891
  %v6893 = vpop.f32.mrf.mxu0
  %6894 = vmatprep.mubr.f32.mxu0 0.0
  %6895 = vmatmul.mubr.f32.gmra.mxu0 %v6562
  %v6896 = vpop.f32.mrf.mxu0
  %v6897 = vadd.f32 0.0, %v6896
  %v6898 = vpop.f32.mrf.mxu0
  %6899 = vmatprep.mubr.f32.mxu0 0.0
  %6900 = vmatmul.mubr.f32.gmra.mxu0 %v6565
  %v6901 = vpop.f32.mrf.mxu0
  %v6902 = vadd.f32 0.0, %v6901
  %v6903 = vpop.f32.mrf.mxu0
  %6904 = vmatprep.mubr.f32.mxu0 0.0
  %6905 = vmatmul.mubr.f32.gmra.mxu0 %v6568
  %v6906 = vpop.f32.mrf.mxu0
  %v6907 = vadd.f32 0.0, %v6906
  %v6908 = vpop.f32.mrf.mxu0
  %6909 = vmatprep.mubr.f32.mxu0 0.0
  %6910 = vmatmul.mubr.f32.gmra.mxu0 %v6571
  %v6911 = vpop.f32.mrf.mxu0
  %v6912 = vadd.f32 0.0, %v6911
  %v6913 = vpop.f32.mrf.mxu0
  %6914 = vmatprep.mubr.f32.mxu0 0.0
  %6915 = vmatmul.mubr.f32.gmra.mxu0 %v6574
  %v6916 = vpop.f32.mrf.mxu0
  %v6917 = vadd.f32 0.0, %v6916
  %v6918 = vpop.f32.mrf.mxu0
  %6919 = vmatprep.mubr.f32.mxu0 0.0
  %6920 = vmatmul.mubr.f32.gmra.mxu0 %v6577
  %v6921 = vpop.f32.mrf.mxu0
  %v6922 = vadd.f32 0.0, %v6921
  %v6923 = vpop.f32.mrf.mxu0
  %6924 = vmatprep.mubr.f32.mxu0 0.0
  %6925 = vmatmul.mubr.f32.gmra.mxu0 %v6580
  %v6926 = vpop.f32.mrf.mxu0
  %v6927 = vadd.f32 0.0, %v6926
  %v6928 = vpop.f32.mrf.mxu0
  %6929 = vmatprep.mubr.f32.mxu0 0.0
  %6930 = vmatmul.mubr.f32.gmra.mxu0 %v6583
  %v6931 = vpop.f32.mrf.mxu0
  %v6932 = vadd.f32 0.0, %v6931
  %v6933 = vpop.f32.mrf.mxu0
  %6934 = vmatprep.mubr.f32.mxu0 0.0
  %6935 = vmatmul.mubr.f32.gmra.mxu0 %v6586
  %v6936 = vpop.f32.mrf.mxu0
  %v6937 = vadd.f32 0.0, %v6936
  %v6938 = vpop.f32.mrf.mxu0
  %6939 = vmatprep.mubr.f32.mxu0 0.0
  %6940 = vmatmul.mubr.f32.gmra.mxu0 %v6589
  %v6941 = vpop.f32.mrf.mxu0
  %v6942 = vadd.f32 0.0, %v6941
  %v6943 = vpop.f32.mrf.mxu0
  %6944 = vmatprep.mubr.f32.mxu0 0.0
  %6945 = vmatmul.mubr.f32.gmra.mxu0 %v6592
  %v6946 = vpop.f32.mrf.mxu0
  %v6947 = vadd.f32 0.0, %v6946
  %v6948 = vpop.f32.mrf.mxu0
  %6949 = vmatprep.mubr.f32.mxu0 0.0
  %6950 = vmatmul.mubr.f32.gmra.mxu0 %v6595
  %v6951 = vpop.f32.mrf.mxu0
  %v6952 = vadd.f32 0.0, %v6951
  %v6953 = vpop.f32.mrf.mxu0
  %6954 = vmatprep.mubr.f32.mxu0 0.0
  %6955 = vmatmul.mubr.f32.gmra.mxu0 %v6598
  %v6956 = vpop.f32.mrf.mxu0
  %v6957 = vadd.f32 0.0, %v6956
  %v6958 = vpop.f32.mrf.mxu0
  %6959 = vmatprep.mubr.f32.mxu0 0.0
  %6960 = vmatmul.mubr.f32.gmra.mxu0 %v6601
  %v6961 = vpop.f32.mrf.mxu0
  %v6962 = vadd.f32 0.0, %v6961
  %v6963 = vpop.f32.mrf.mxu0
  %6964 = vmatprep.mubr.f32.mxu0 0.0
  %6965 = vmatmul.mubr.f32.gmra.mxu0 %v6604
  %v6966 = vpop.f32.mrf.mxu0
  %v6967 = vadd.f32 0.0, %v6966
  %v6968 = vpop.f32.mrf.mxu0
  %6969 = vmatprep.mubr.f32.mxu0 0.0
  %6970 = vmatmul.mubr.f32.gmra.mxu0 %v6607
  %v6971 = vpop.f32.mrf.mxu0
  %v6972 = vadd.f32 0.0, %v6971
  %v6973 = vpop.f32.mrf.mxu0
  %6974 = vmatprep.mubr.f32.mxu0 0.0
  %6975 = vmatmul.mubr.f32.gmra.mxu0 %v6610
  %v6976 = vpop.f32.mrf.mxu0
  %v6977 = vadd.f32 0.0, %v6976
  %v6978 = vpop.f32.mrf.mxu0
  %6979 = vmatprep.mubr.f32.mxu0 0.0
  %6980 = vmatmul.mubr.f32.gmra.mxu0 %v6613
  %v6981 = vpop.f32.mrf.mxu0
  %v6982 = vadd.f32 0.0, %v6981
  %v6983 = vpop.f32.mrf.mxu0
  %6984 = vmatprep.mubr.f32.mxu0 0.0
  %6985 = vmatmul.mubr.f32.gmra.mxu0 %v6616
  %v6986 = vpop.f32.mrf.mxu0
  %v6987 = vadd.f32 0.0, %v6986
  %v6988 = vpop.f32.mrf.mxu0
  %6989 = vmatprep.mubr.f32.mxu0 0.0
  %6990 = vmatmul.mubr.f32.gmra.mxu0 %v6619
  %v6991 = vpop.f32.mrf.mxu0
  %v6992 = vadd.f32 0.0, %v6991
  %v6993 = vpop.f32.mrf.mxu0
  %6994 = vmatprep.mubr.f32.mxu0 0.0
  %6995 = vmatmul.mubr.f32.gmra.mxu0 %v6622
  %v6996 = vpop.f32.mrf.mxu0
  %v6997 = vadd.f32 0.0, %v6996
  %v6998 = vpop.f32.mrf.mxu0
  %6999 = vmatprep.mubr.f32.mxu0 0.0
  %7000 = vmatmul.mubr.f32.gmra.mxu0 %v6625
  %v7001 = vpop.f32.mrf.mxu0
  %v7002 = vadd.f32 0.0, %v7001
  %v7003 = vpop.f32.mrf.mxu0
  %7004 = vmatprep.mubr.f32.mxu0 0.0
  %7005 = vmatmul.mubr.f32.gmra.mxu0 %v6628
  %v7006 = vpop.f32.mrf.mxu0
  %v7007 = vadd.f32 0.0, %v7006
  %v7008 = vpop.f32.mrf.mxu0
  %7009 = vmatprep.mubr.f32.mxu0 0.0
  %7010 = vmatmul.mubr.f32.gmra.mxu0 %v6631
  %v7011 = vpop.f32.mrf.mxu0
  %v7012 = vadd.f32 0.0, %v7011
  %v7013 = vpop.f32.mrf.mxu0
  %7014 = vmatprep.mubr.f32.mxu0 0.0
  %7015 = vmatmul.mubr.f32.gmra.mxu0 %v6634
  %v7016 = vpop.f32.mrf.mxu0
  %v7017 = vadd.f32 0.0, %v7016
  %v7018 = vpop.f32.mrf.mxu0
  %7019 = vmatprep.mubr.f32.mxu0 0.0
  %7020 = vmatmul.mubr.f32.gmra.mxu0 %v6637
  %v7021 = vpop.f32.mrf.mxu0
  %v7022 = vadd.f32 0.0, %v7021
  %v7023 = vpop.f32.mrf.mxu0
  %7024 = vmatprep.mubr.f32.mxu0 0.0
  %7025 = vmatmul.mubr.f32.gmra.mxu0 %v6640
  %v7026 = vpop.f32.mrf.mxu0
  %v7027 = vadd.f32 0.0, %v7026
  %v7028 = vpop.f32.mrf.mxu0
  %7029 = vdwg.mxu0
  %v7030 = vadd.f32 %v6320, %v6712
  %v7031 = vadd.f32 %v6321, %v6717
  %v7032 = vadd.f32 %v6322, %v6722
  %v7033 = vadd.f32 %v6323, %v6727
  %v7034 = vadd.f32 %v6324, %v6732
  %v7035 = vadd.f32 %v6325, %v6737
  %v7036 = vadd.f32 %v6326, %v6742
  %v7037 = vadd.f32 %v6327, %v6747
  %v7038 = vadd.f32 %v6328, %v6752
  %v7039 = vadd.f32 %v6329, %v6757
  %v7040 = vadd.f32 %v6330, %v6762
  %v7041 = vadd.f32 %v6331, %v6767
  %v7042 = vadd.f32 %v6332, %v6772
  %v7043 = vadd.f32 %v6333, %v6777
  %v7044 = vadd.f32 %v6334, %v6782
  %v7045 = vadd.f32 %v6335, %v6787
  %v7046 = vadd.f32 %v6336, %v6792
  %v7047 = vadd.f32 %v6337, %v6797
  %v7048 = vadd.f32 %v6338, %v6802
  %v7049 = vadd.f32 %v6339, %v6807
  %v7050 = vadd.f32 %v6340, %v6812
  %v7051 = vadd.f32 %v6341, %v6817
  %v7052 = vadd.f32 %v6342, %v6822
  %v7053 = vadd.f32 %v6343, %v6827
  %v7054 = vadd.f32 %v6344, %v6832
  %v7055 = vadd.f32 %v6345, %v6837
  %v7056 = vadd.f32 %v6346, %v6842
  %v7057 = vadd.f32 %v6347, %v6847
  %v7058 = vadd.f32 %v6348, %v6852
  %v7059 = vadd.f32 %v6349, %v6857
  %v7060 = vadd.f32 %v6350, %v6862
  %v7061 = vadd.f32 %v6351, %v6867
  %v7062 = vadd.f32 %v6352, %v6872
  %v7063 = vadd.f32 %v6353, %v6877
  %v7064 = vadd.f32 %v6354, %v6882
  %v7065 = vadd.f32 %v6355, %v6887
  %v7066 = vadd.f32 %v6356, %v6892
  %v7067 = vadd.f32 %v6357, %v6897
  %v7068 = vadd.f32 %v6358, %v6902
  %v7069 = vadd.f32 %v6359, %v6907
  %v7070 = vadd.f32 %v6360, %v6912
  %v7071 = vadd.f32 %v6361, %v6917
  %v7072 = vadd.f32 %v6362, %v6922
  %v7073 = vadd.f32 %v6363, %v6927
  %v7074 = vadd.f32 %v6364, %v6932
  %v7075 = vadd.f32 %v6365, %v6937
  %v7076 = vadd.f32 %v6366, %v6942
  %v7077 = vadd.f32 %v6367, %v6947
  %v7078 = vadd.f32 %v6368, %v6952
  %v7079 = vadd.f32 %v6369, %v6957
  %v7080 = vadd.f32 %v6370, %v6962
  %v7081 = vadd.f32 %v6371, %v6967
  %v7082 = vadd.f32 %v6372, %v6972
  %v7083 = vadd.f32 %v6373, %v6977
  %v7084 = vadd.f32 %v6374, %v6982
  %v7085 = vadd.f32 %v6375, %v6987
  %v7086 = vadd.f32 %v6376, %v6992
  %v7087 = vadd.f32 %v6377, %v6997
  %v7088 = vadd.f32 %v6378, %v7002
  %v7089 = vadd.f32 %v6379, %v7007
  %v7090 = vadd.f32 %v6380, %v7012
  %v7091 = vadd.f32 %v6381, %v7017
  %v7092 = vadd.f32 %v6382, %v7022
  %v7093 = vadd.f32 %v6383, %v7027
  %v7094 = vld [vmem:[%s5673 + $0x2] sm:$0xff]
  %v7095 = vld [vmem:[%s5673 + $0xa] sm:$0xff]
  %v7096 = vld [vmem:[%s5673 + $0x1a] sm:$0xff]
  %v7097 = vld [vmem:[%s5673 + $0x22] sm:$0xff]
  %v7098 = vld [vmem:[%s5673 + $0x32] sm:$0xff]
  %v7099 = vld [vmem:[%s5673 + $0x3a] sm:$0xff]
  %v7100 = vld [vmem:[%s5673 + $0x4a] sm:$0xff]
  %v7101 = vld [vmem:[%s5673 + $0x52] sm:$0xff]
  %v7102 = vld [vmem:[%s5673 + $0x62] sm:$0xff]
  %v7103 = vld [vmem:[%s5673 + $0x6a] sm:$0xff]
  %v7104 = vld [vmem:[%s5673 + $0x7a] sm:$0xff]
  %v7105 = vld [vmem:[%s5673 + $0x82] sm:$0xff]
  %v7106 = vld [vmem:[%s5673 + $0x92] sm:$0xff]
  %v7107 = vld [vmem:[%s5673 + $0x9a] sm:$0xff]
  %v7108 = vld [vmem:[%s5673 + $0xaa] sm:$0xff]
  %v7109 = vld [vmem:[%s5673 + $0xb2] sm:$0xff]
  %v7110 = vld [vmem:[%s5673 + $0xc2] sm:$0xff]
  %v7111 = vld [vmem:[%s5673 + $0xca] sm:$0xff]
  %v7112 = vld [vmem:[%s5673 + $0xda] sm:$0xff]
  %v7113 = vld [vmem:[%s5673 + $0xe2] sm:$0xff]
  %v7114 = vld [vmem:[%s5673 + $0xf2] sm:$0xff]
  %v7115 = vld [vmem:[%s5673 + $0xfa] sm:$0xff]
  %v7116 = vld [vmem:[%s5673 + $0x10a] sm:$0xff]
  %v7117 = vld [vmem:[%s5673 + $0x112] sm:$0xff]
  %v7118 = vld [vmem:[%s5673 + $0x122] sm:$0xff]
  %v7119 = vld [vmem:[%s5673 + $0x12a] sm:$0xff]
  %v7120 = vld [vmem:[%s5673 + $0x13a] sm:$0xff]
  %v7121 = vld [vmem:[%s5673 + $0x142] sm:$0xff]
  %v7122 = vld [vmem:[%s5673 + $0x152] sm:$0xff]
  %v7123 = vld [vmem:[%s5673 + $0x15a] sm:$0xff]
  %v7124 = vld [vmem:[%s5673 + $0x16a] sm:$0xff]
  %v7125 = vld [vmem:[%s5673 + $0x172] sm:$0xff]
  %v7126 = vld [vmem:[%s5673 + $0x1b2] sm:$0xff]
  %v7127 = vld [vmem:[%s5673 + $0x1ba] sm:$0xff]
  %v7128 = vld [vmem:[%s5673 + $0x1ca] sm:$0xff]
  %v7129 = vld [vmem:[%s5673 + $0x1d2] sm:$0xff]
  %v7130 = vld [vmem:[%s5673 + $0x1e2] sm:$0xff]
  %v7131 = vld [vmem:[%s5673 + $0x1ea] sm:$0xff]
  %v7132 = vld [vmem:[%s5673 + $0x1fa] sm:$0xff]
  %v7133 = vld [vmem:[%s5673 + $0x202] sm:$0xff]
  %v7134 = vld [vmem:[%s5673 + $0x212] sm:$0xff]
  %v7135 = vld [vmem:[%s5673 + $0x21a] sm:$0xff]
  %v7136 = vld [vmem:[%s5673 + $0x22a] sm:$0xff]
  %v7137 = vld [vmem:[%s5673 + $0x232] sm:$0xff]
  %v7138 = vld [vmem:[%s5673 + $0x242] sm:$0xff]
  %v7139 = vld [vmem:[%s5673 + $0x24a] sm:$0xff]
  %v7140 = vld [vmem:[%s5673 + $0x25a] sm:$0xff]
  %v7141 = vld [vmem:[%s5673 + $0x262] sm:$0xff]
  %v7142 = vld [vmem:[%s5673 + $0x272] sm:$0xff]
  %v7143 = vld [vmem:[%s5673 + $0x27a] sm:$0xff]
  %v7144 = vld [vmem:[%s5673 + $0x28a] sm:$0xff]
  %v7145 = vld [vmem:[%s5673 + $0x292] sm:$0xff]
  %v7146 = vld [vmem:[%s5673 + $0x2a2] sm:$0xff]
  %v7147 = vld [vmem:[%s5673 + $0x2aa] sm:$0xff]
  %v7148 = vld [vmem:[%s5673 + $0x2ba] sm:$0xff]
  %v7149 = vld [vmem:[%s5673 + $0x2c2] sm:$0xff]
  %v7150 = vld [vmem:[%s5673 + $0x2d2] sm:$0xff]
  %v7151 = vld [vmem:[%s5673 + $0x2da] sm:$0xff]
  %v7152 = vld [vmem:[%s5673 + $0x2ea] sm:$0xff]
  %v7153 = vld [vmem:[%s5673 + $0x2f2] sm:$0xff]
  %v7154 = vld [vmem:[%s5673 + $0x302] sm:$0xff]
  %v7155 = vld [vmem:[%s5673 + $0x30a] sm:$0xff]
  %v7156 = vld [vmem:[%s5673 + $0x31a] sm:$0xff]
  %v7157 = vld [vmem:[%s5673 + $0x322] sm:$0xff]
  %s7158 = scalar_lea.vmem %s5, 32
  %v7159 = vld [vmem:[%s7158] sm:$0xf]
  %v7161 = vsel %vm697, %v7094, 0
  %v7164 = vsel %vm697, %v7095, 0
  %v7167 = vsel %vm697, %v7096, 0
  %v7170 = vsel %vm697, %v7097, 0
  %v7173 = vsel %vm697, %v7098, 0
  %v7176 = vsel %vm697, %v7099, 0
  %v7179 = vsel %vm697, %v7100, 0
  %v7182 = vsel %vm697, %v7101, 0
  %v7185 = vsel %vm697, %v7102, 0
  %v7188 = vsel %vm697, %v7103, 0
  %v7191 = vsel %vm697, %v7104, 0
  %v7194 = vsel %vm697, %v7105, 0
  %v7197 = vsel %vm697, %v7106, 0
  %v7200 = vsel %vm697, %v7107, 0
  %v7203 = vsel %vm697, %v7108, 0
  %v7206 = vsel %vm697, %v7109, 0
  %v7209 = vsel %vm697, %v7110, 0
  %v7212 = vsel %vm697, %v7111, 0
  %v7215 = vsel %vm697, %v7112, 0
  %v7218 = vsel %vm697, %v7113, 0
  %v7221 = vsel %vm697, %v7114, 0
  %v7224 = vsel %vm697, %v7115, 0
  %v7227 = vsel %vm697, %v7116, 0
  %v7230 = vsel %vm697, %v7117, 0
  %v7233 = vsel %vm697, %v7118, 0
  %v7236 = vsel %vm697, %v7119, 0
  %v7239 = vsel %vm697, %v7120, 0
  %v7242 = vsel %vm697, %v7121, 0
  %v7245 = vsel %vm697, %v7122, 0
  %v7248 = vsel %vm697, %v7123, 0
  %v7251 = vsel %vm697, %v7124, 0
  %v7254 = vsel %vm697, %v7125, 0
  %v7257 = vsel %vm697, %v7126, 0
  %v7260 = vsel %vm697, %v7127, 0
  %v7263 = vsel %vm697, %v7128, 0
  %v7266 = vsel %vm697, %v7129, 0
  %v7269 = vsel %vm697, %v7130, 0
  %v7272 = vsel %vm697, %v7131, 0
  %v7275 = vsel %vm697, %v7132, 0
  %v7278 = vsel %vm697, %v7133, 0
  %v7281 = vsel %vm697, %v7134, 0
  %v7284 = vsel %vm697, %v7135, 0
  %v7287 = vsel %vm697, %v7136, 0
  %v7290 = vsel %vm697, %v7137, 0
  %v7293 = vsel %vm697, %v7138, 0
  %v7296 = vsel %vm697, %v7139, 0
  %v7299 = vsel %vm697, %v7140, 0
  %v7302 = vsel %vm697, %v7141, 0
  %v7305 = vsel %vm697, %v7142, 0
  %v7308 = vsel %vm697, %v7143, 0
  %v7311 = vsel %vm697, %v7144, 0
  %v7314 = vsel %vm697, %v7145, 0
  %v7317 = vsel %vm697, %v7146, 0
  %v7320 = vsel %vm697, %v7147, 0
  %v7323 = vsel %vm697, %v7148, 0
  %v7326 = vsel %vm697, %v7149, 0
  %v7329 = vsel %vm697, %v7150, 0
  %v7332 = vsel %vm697, %v7151, 0
  %v7335 = vsel %vm697, %v7152, 0
  %v7338 = vsel %vm697, %v7153, 0
  %v7341 = vsel %vm697, %v7154, 0
  %v7344 = vsel %vm697, %v7155, 0
  %v7347 = vsel %vm697, %v7156, 0
  %v7350 = vsel %vm697, %v7157, 0
  %v7353 = vsel %vm1864, %v7159, 0
  %7355 = vmatprep.subr.mxu0 0.0
  %7356 = vmatpush1.msra.mxu0 0.0
  %7357 = vmatprep.subr.mxu0 0.0
  %7358 = vmatpush1.msra.mxu0 0.0
  %7359 = vmatprep.subr.mxu0 0.0
  %7360 = vmatpush1.msra.mxu0 0.0
  %7361 = vmatprep.subr.mxu0 0.0
  %7362 = vmatpush1.msra.mxu0 0.0
  %7363 = vmatprep.subr.mxu0 0.0
  %7364 = vmatpush1.msra.mxu0 0.0
  %7365 = vmatprep.subr.mxu0 0.0
  %7366 = vmatpush1.msra.mxu0 0.0
  %7367 = vmatprep.subr.mxu0 0.0
  %7368 = vmatpush1.msra.mxu0 0.0
  %7369 = vmatprep.subr.mxu0 0.0
  %7370 = vmatpush1.msra.mxu0 0.0
  %7371 = vmatprep.subr.mxu0 0.0
  %7372 = vmatpush1.msra.mxu0 0.0
  %7373 = vmatprep.subr.mxu0 0.0
  %7374 = vmatpush1.msra.mxu0 0.0
  %7375 = vmatprep.subr.mxu0 0.0
  %7376 = vmatpush1.msra.mxu0 0.0
  %7377 = vmatprep.subr.mxu0 0.0
  %7378 = vmatpush1.msra.mxu0 0.0
  %7379 = vmatprep.subr.mxu0 0.0
  %7380 = vmatpush1.msra.mxu0 0.0
  %7381 = vmatprep.subr.mxu0 0.0
  %7382 = vmatpush1.msra.mxu0 0.0
  %7383 = vmatprep.subr.mxu0 0.0
  %7384 = vmatpush1.msra.mxu0 0.0
  %7385 = vmatprep.subr.mxu0 0.0
  %7386 = vmatpush1.msra.mxu0 %v7353
  %7387 = vmatprep.subr.mxu0 0.0
  %7388 = vmatpush2.msra.mxu0 0.0
  %7389 = vmatprep.subr.mxu0 0.0
  %7390 = vmatpush2.msra.mxu0 0.0
  %7391 = vmatprep.subr.mxu0 0.0
  %7392 = vmatpush2.msra.mxu0 0.0
  %7393 = vmatprep.subr.mxu0 0.0
  %7394 = vmatpush2.msra.mxu0 0.0
  %7395 = vmatprep.subr.mxu0 0.0
  %7396 = vmatpush2.msra.mxu0 0.0
  %7397 = vmatprep.subr.mxu0 0.0
  %7398 = vmatpush2.msra.mxu0 0.0
  %7399 = vmatprep.subr.mxu0 0.0
  %7400 = vmatpush2.msra.mxu0 0.0
  %7401 = vmatprep.subr.mxu0 0.0
  %7402 = vmatpush2.msra.mxu0 0.0
  %7403 = vmatprep.subr.mxu0 0.0
  %7404 = vmatpush2.msra.mxu0 0.0
  %7405 = vmatprep.subr.mxu0 0.0
  %7406 = vmatpush2.msra.mxu0 0.0
  %7407 = vmatprep.subr.mxu0 0.0
  %7408 = vmatpush2.msra.mxu0 0.0
  %7409 = vmatprep.subr.mxu0 0.0
  %7410 = vmatpush2.msra.mxu0 0.0
  %7411 = vmatprep.subr.mxu0 0.0
  %7412 = vmatpush2.msra.mxu0 0.0
  %7413 = vmatprep.subr.mxu0 0.0
  %7414 = vmatpush2.msra.mxu0 0.0
  %7415 = vmatprep.subr.mxu0 0.0
  %7416 = vmatpush2.msra.mxu0 0.0
  %7417 = vmatprep.subr.mxu0 0.0
  %7418 = vmatpush2.msra.mxu0 0.0
  %7419 = vmatprep.mubr.f32.mxu0 0.0
  %7420 = vmatmul.mubr.f32.gmra.mxu0 %v7161
  %v7421 = vpop.f32.mrf.mxu0
  %v7422 = vadd.f32 0.0, %v7421
  %v7423 = vpop.f32.mrf.mxu0
  %7424 = vmatprep.mubr.f32.mxu0 0.0
  %7425 = vmatmul.mubr.f32.gmra.mxu0 %v7164
  %v7426 = vpop.f32.mrf.mxu0
  %v7427 = vadd.f32 0.0, %v7426
  %v7428 = vpop.f32.mrf.mxu0
  %7429 = vmatprep.mubr.f32.mxu0 0.0
  %7430 = vmatmul.mubr.f32.gmra.mxu0 %v7167
  %v7431 = vpop.f32.mrf.mxu0
  %v7432 = vadd.f32 0.0, %v7431
  %v7433 = vpop.f32.mrf.mxu0
  %7434 = vmatprep.mubr.f32.mxu0 0.0
  %7435 = vmatmul.mubr.f32.gmra.mxu0 %v7170
  %v7436 = vpop.f32.mrf.mxu0
  %v7437 = vadd.f32 0.0, %v7436
  %v7438 = vpop.f32.mrf.mxu0
  %7439 = vmatprep.mubr.f32.mxu0 0.0
  %7440 = vmatmul.mubr.f32.gmra.mxu0 %v7173
  %v7441 = vpop.f32.mrf.mxu0
  %v7442 = vadd.f32 0.0, %v7441
  %v7443 = vpop.f32.mrf.mxu0
  %7444 = vmatprep.mubr.f32.mxu0 0.0
  %7445 = vmatmul.mubr.f32.gmra.mxu0 %v7176
  %v7446 = vpop.f32.mrf.mxu0
  %v7447 = vadd.f32 0.0, %v7446
  %v7448 = vpop.f32.mrf.mxu0
  %7449 = vmatprep.mubr.f32.mxu0 0.0
  %7450 = vmatmul.mubr.f32.gmra.mxu0 %v7179
  %v7451 = vpop.f32.mrf.mxu0
  %v7452 = vadd.f32 0.0, %v7451
  %v7453 = vpop.f32.mrf.mxu0
  %7454 = vmatprep.mubr.f32.mxu0 0.0
  %7455 = vmatmul.mubr.f32.gmra.mxu0 %v7182
  %v7456 = vpop.f32.mrf.mxu0
  %v7457 = vadd.f32 0.0, %v7456
  %v7458 = vpop.f32.mrf.mxu0
  %7459 = vmatprep.mubr.f32.mxu0 0.0
  %7460 = vmatmul.mubr.f32.gmra.mxu0 %v7185
  %v7461 = vpop.f32.mrf.mxu0
  %v7462 = vadd.f32 0.0, %v7461
  %v7463 = vpop.f32.mrf.mxu0
  %7464 = vmatprep.mubr.f32.mxu0 0.0
  %7465 = vmatmul.mubr.f32.gmra.mxu0 %v7188
  %v7466 = vpop.f32.mrf.mxu0
  %v7467 = vadd.f32 0.0, %v7466
  %v7468 = vpop.f32.mrf.mxu0
  %7469 = vmatprep.mubr.f32.mxu0 0.0
  %7470 = vmatmul.mubr.f32.gmra.mxu0 %v7191
  %v7471 = vpop.f32.mrf.mxu0
  %v7472 = vadd.f32 0.0, %v7471
  %v7473 = vpop.f32.mrf.mxu0
  %7474 = vmatprep.mubr.f32.mxu0 0.0
  %7475 = vmatmul.mubr.f32.gmra.mxu0 %v7194
  %v7476 = vpop.f32.mrf.mxu0
  %v7477 = vadd.f32 0.0, %v7476
  %v7478 = vpop.f32.mrf.mxu0
  %7479 = vmatprep.mubr.f32.mxu0 0.0
  %7480 = vmatmul.mubr.f32.gmra.mxu0 %v7197
  %v7481 = vpop.f32.mrf.mxu0
  %v7482 = vadd.f32 0.0, %v7481
  %v7483 = vpop.f32.mrf.mxu0
  %7484 = vmatprep.mubr.f32.mxu0 0.0
  %7485 = vmatmul.mubr.f32.gmra.mxu0 %v7200
  %v7486 = vpop.f32.mrf.mxu0
  %v7487 = vadd.f32 0.0, %v7486
  %v7488 = vpop.f32.mrf.mxu0
  %7489 = vmatprep.mubr.f32.mxu0 0.0
  %7490 = vmatmul.mubr.f32.gmra.mxu0 %v7203
  %v7491 = vpop.f32.mrf.mxu0
  %v7492 = vadd.f32 0.0, %v7491
  %v7493 = vpop.f32.mrf.mxu0
  %7494 = vmatprep.mubr.f32.mxu0 0.0
  %7495 = vmatmul.mubr.f32.gmra.mxu0 %v7206
  %v7496 = vpop.f32.mrf.mxu0
  %v7497 = vadd.f32 0.0, %v7496
  %v7498 = vpop.f32.mrf.mxu0
  %7499 = vmatprep.mubr.f32.mxu0 0.0
  %7500 = vmatmul.mubr.f32.gmra.mxu0 %v7209
  %v7501 = vpop.f32.mrf.mxu0
  %v7502 = vadd.f32 0.0, %v7501
  %v7503 = vpop.f32.mrf.mxu0
  %7504 = vmatprep.mubr.f32.mxu0 0.0
  %7505 = vmatmul.mubr.f32.gmra.mxu0 %v7212
  %v7506 = vpop.f32.mrf.mxu0
  %v7507 = vadd.f32 0.0, %v7506
  %v7508 = vpop.f32.mrf.mxu0
  %7509 = vmatprep.mubr.f32.mxu0 0.0
  %7510 = vmatmul.mubr.f32.gmra.mxu0 %v7215
  %v7511 = vpop.f32.mrf.mxu0
  %v7512 = vadd.f32 0.0, %v7511
  %v7513 = vpop.f32.mrf.mxu0
  %7514 = vmatprep.mubr.f32.mxu0 0.0
  %7515 = vmatmul.mubr.f32.gmra.mxu0 %v7218
  %v7516 = vpop.f32.mrf.mxu0
  %v7517 = vadd.f32 0.0, %v7516
  %v7518 = vpop.f32.mrf.mxu0
  %7519 = vmatprep.mubr.f32.mxu0 0.0
  %7520 = vmatmul.mubr.f32.gmra.mxu0 %v7221
  %v7521 = vpop.f32.mrf.mxu0
  %v7522 = vadd.f32 0.0, %v7521
  %v7523 = vpop.f32.mrf.mxu0
  %7524 = vmatprep.mubr.f32.mxu0 0.0
  %7525 = vmatmul.mubr.f32.gmra.mxu0 %v7224
  %v7526 = vpop.f32.mrf.mxu0
  %v7527 = vadd.f32 0.0, %v7526
  %v7528 = vpop.f32.mrf.mxu0
  %7529 = vmatprep.mubr.f32.mxu0 0.0
  %7530 = vmatmul.mubr.f32.gmra.mxu0 %v7227
  %v7531 = vpop.f32.mrf.mxu0
  %v7532 = vadd.f32 0.0, %v7531
  %v7533 = vpop.f32.mrf.mxu0
  %7534 = vmatprep.mubr.f32.mxu0 0.0
  %7535 = vmatmul.mubr.f32.gmra.mxu0 %v7230
  %v7536 = vpop.f32.mrf.mxu0
  %v7537 = vadd.f32 0.0, %v7536
  %v7538 = vpop.f32.mrf.mxu0
  %7539 = vmatprep.mubr.f32.mxu0 0.0
  %7540 = vmatmul.mubr.f32.gmra.mxu0 %v7233
  %v7541 = vpop.f32.mrf.mxu0
  %v7542 = vadd.f32 0.0, %v7541
  %v7543 = vpop.f32.mrf.mxu0
  %7544 = vmatprep.mubr.f32.mxu0 0.0
  %7545 = vmatmul.mubr.f32.gmra.mxu0 %v7236
  %v7546 = vpop.f32.mrf.mxu0
  %v7547 = vadd.f32 0.0, %v7546
  %v7548 = vpop.f32.mrf.mxu0
  %7549 = vmatprep.mubr.f32.mxu0 0.0
  %7550 = vmatmul.mubr.f32.gmra.mxu0 %v7239
  %v7551 = vpop.f32.mrf.mxu0
  %v7552 = vadd.f32 0.0, %v7551
  %v7553 = vpop.f32.mrf.mxu0
  %7554 = vmatprep.mubr.f32.mxu0 0.0
  %7555 = vmatmul.mubr.f32.gmra.mxu0 %v7242
  %v7556 = vpop.f32.mrf.mxu0
  %v7557 = vadd.f32 0.0, %v7556
  %v7558 = vpop.f32.mrf.mxu0
  %7559 = vmatprep.mubr.f32.mxu0 0.0
  %7560 = vmatmul.mubr.f32.gmra.mxu0 %v7245
  %v7561 = vpop.f32.mrf.mxu0
  %v7562 = vadd.f32 0.0, %v7561
  %v7563 = vpop.f32.mrf.mxu0
  %7564 = vmatprep.mubr.f32.mxu0 0.0
  %7565 = vmatmul.mubr.f32.gmra.mxu0 %v7248
  %v7566 = vpop.f32.mrf.mxu0
  %v7567 = vadd.f32 0.0, %v7566
  %v7568 = vpop.f32.mrf.mxu0
  %7569 = vmatprep.mubr.f32.mxu0 0.0
  %7570 = vmatmul.mubr.f32.gmra.mxu0 %v7251
  %v7571 = vpop.f32.mrf.mxu0
  %v7572 = vadd.f32 0.0, %v7571
  %v7573 = vpop.f32.mrf.mxu0
  %7574 = vmatprep.mubr.f32.mxu0 0.0
  %7575 = vmatmul.mubr.f32.gmra.mxu0 %v7254
  %v7576 = vpop.f32.mrf.mxu0
  %v7577 = vadd.f32 0.0, %v7576
  %v7578 = vpop.f32.mrf.mxu0
  %7579 = vmatprep.mubr.f32.mxu0 0.0
  %7580 = vmatmul.mubr.f32.gmra.mxu0 %v7257
  %v7581 = vpop.f32.mrf.mxu0
  %v7582 = vadd.f32 0.0, %v7581
  %v7583 = vpop.f32.mrf.mxu0
  %7584 = vmatprep.mubr.f32.mxu0 0.0
  %7585 = vmatmul.mubr.f32.gmra.mxu0 %v7260
  %v7586 = vpop.f32.mrf.mxu0
  %v7587 = vadd.f32 0.0, %v7586
  %v7588 = vpop.f32.mrf.mxu0
  %7589 = vmatprep.mubr.f32.mxu0 0.0
  %7590 = vmatmul.mubr.f32.gmra.mxu0 %v7263
  %v7591 = vpop.f32.mrf.mxu0
  %v7592 = vadd.f32 0.0, %v7591
  %v7593 = vpop.f32.mrf.mxu0
  %7594 = vmatprep.mubr.f32.mxu0 0.0
  %7595 = vmatmul.mubr.f32.gmra.mxu0 %v7266
  %v7596 = vpop.f32.mrf.mxu0
  %v7597 = vadd.f32 0.0, %v7596
  %v7598 = vpop.f32.mrf.mxu0
  %7599 = vmatprep.mubr.f32.mxu0 0.0
  %7600 = vmatmul.mubr.f32.gmra.mxu0 %v7269
  %v7601 = vpop.f32.mrf.mxu0
  %v7602 = vadd.f32 0.0, %v7601
  %v7603 = vpop.f32.mrf.mxu0
  %7604 = vmatprep.mubr.f32.mxu0 0.0
  %7605 = vmatmul.mubr.f32.gmra.mxu0 %v7272
  %v7606 = vpop.f32.mrf.mxu0
  %v7607 = vadd.f32 0.0, %v7606
  %v7608 = vpop.f32.mrf.mxu0
  %7609 = vmatprep.mubr.f32.mxu0 0.0
  %7610 = vmatmul.mubr.f32.gmra.mxu0 %v7275
  %v7611 = vpop.f32.mrf.mxu0
  %v7612 = vadd.f32 0.0, %v7611
  %v7613 = vpop.f32.mrf.mxu0
  %7614 = vmatprep.mubr.f32.mxu0 0.0
  %7615 = vmatmul.mubr.f32.gmra.mxu0 %v7278
  %v7616 = vpop.f32.mrf.mxu0
  %v7617 = vadd.f32 0.0, %v7616
  %v7618 = vpop.f32.mrf.mxu0
  %7619 = vmatprep.mubr.f32.mxu0 0.0
  %7620 = vmatmul.mubr.f32.gmra.mxu0 %v7281
  %v7621 = vpop.f32.mrf.mxu0
  %v7622 = vadd.f32 0.0, %v7621
  %v7623 = vpop.f32.mrf.mxu0
  %7624 = vmatprep.mubr.f32.mxu0 0.0
  %7625 = vmatmul.mubr.f32.gmra.mxu0 %v7284
  %v7626 = vpop.f32.mrf.mxu0
  %v7627 = vadd.f32 0.0, %v7626
  %v7628 = vpop.f32.mrf.mxu0
  %7629 = vmatprep.mubr.f32.mxu0 0.0
  %7630 = vmatmul.mubr.f32.gmra.mxu0 %v7287
  %v7631 = vpop.f32.mrf.mxu0
  %v7632 = vadd.f32 0.0, %v7631
  %v7633 = vpop.f32.mrf.mxu0
  %7634 = vmatprep.mubr.f32.mxu0 0.0
  %7635 = vmatmul.mubr.f32.gmra.mxu0 %v7290
  %v7636 = vpop.f32.mrf.mxu0
  %v7637 = vadd.f32 0.0, %v7636
  %v7638 = vpop.f32.mrf.mxu0
  %7639 = vmatprep.mubr.f32.mxu0 0.0
  %7640 = vmatmul.mubr.f32.gmra.mxu0 %v7293
  %v7641 = vpop.f32.mrf.mxu0
  %v7642 = vadd.f32 0.0, %v7641
  %v7643 = vpop.f32.mrf.mxu0
  %7644 = vmatprep.mubr.f32.mxu0 0.0
  %7645 = vmatmul.mubr.f32.gmra.mxu0 %v7296
  %v7646 = vpop.f32.mrf.mxu0
  %v7647 = vadd.f32 0.0, %v7646
  %v7648 = vpop.f32.mrf.mxu0
  %7649 = vmatprep.mubr.f32.mxu0 0.0
  %7650 = vmatmul.mubr.f32.gmra.mxu0 %v7299
  %v7651 = vpop.f32.mrf.mxu0
  %v7652 = vadd.f32 0.0, %v7651
  %v7653 = vpop.f32.mrf.mxu0
  %7654 = vmatprep.mubr.f32.mxu0 0.0
  %7655 = vmatmul.mubr.f32.gmra.mxu0 %v7302
  %v7656 = vpop.f32.mrf.mxu0
  %v7657 = vadd.f32 0.0, %v7656
  %v7658 = vpop.f32.mrf.mxu0
  %7659 = vmatprep.mubr.f32.mxu0 0.0
  %7660 = vmatmul.mubr.f32.gmra.mxu0 %v7305
  %v7661 = vpop.f32.mrf.mxu0
  %v7662 = vadd.f32 0.0, %v7661
  %v7663 = vpop.f32.mrf.mxu0
  %7664 = vmatprep.mubr.f32.mxu0 0.0
  %7665 = vmatmul.mubr.f32.gmra.mxu0 %v7308
  %v7666 = vpop.f32.mrf.mxu0
  %v7667 = vadd.f32 0.0, %v7666
  %v7668 = vpop.f32.mrf.mxu0
  %7669 = vmatprep.mubr.f32.mxu0 0.0
  %7670 = vmatmul.mubr.f32.gmra.mxu0 %v7311
  %v7671 = vpop.f32.mrf.mxu0
  %v7672 = vadd.f32 0.0, %v7671
  %v7673 = vpop.f32.mrf.mxu0
  %7674 = vmatprep.mubr.f32.mxu0 0.0
  %7675 = vmatmul.mubr.f32.gmra.mxu0 %v7314
  %v7676 = vpop.f32.mrf.mxu0
  %v7677 = vadd.f32 0.0, %v7676
  %v7678 = vpop.f32.mrf.mxu0
  %7679 = vmatprep.mubr.f32.mxu0 0.0
  %7680 = vmatmul.mubr.f32.gmra.mxu0 %v7317
  %v7681 = vpop.f32.mrf.mxu0
  %v7682 = vadd.f32 0.0, %v7681
  %v7683 = vpop.f32.mrf.mxu0
  %7684 = vmatprep.mubr.f32.mxu0 0.0
  %7685 = vmatmul.mubr.f32.gmra.mxu0 %v7320
  %v7686 = vpop.f32.mrf.mxu0
  %v7687 = vadd.f32 0.0, %v7686
  %v7688 = vpop.f32.mrf.mxu0
  %7689 = vmatprep.mubr.f32.mxu0 0.0
  %7690 = vmatmul.mubr.f32.gmra.mxu0 %v7323
  %v7691 = vpop.f32.mrf.mxu0
  %v7692 = vadd.f32 0.0, %v7691
  %v7693 = vpop.f32.mrf.mxu0
  %7694 = vmatprep.mubr.f32.mxu0 0.0
  %7695 = vmatmul.mubr.f32.gmra.mxu0 %v7326
  %v7696 = vpop.f32.mrf.mxu0
  %v7697 = vadd.f32 0.0, %v7696
  %v7698 = vpop.f32.mrf.mxu0
  %7699 = vmatprep.mubr.f32.mxu0 0.0
  %7700 = vmatmul.mubr.f32.gmra.mxu0 %v7329
  %v7701 = vpop.f32.mrf.mxu0
  %v7702 = vadd.f32 0.0, %v7701
  %v7703 = vpop.f32.mrf.mxu0
  %7704 = vmatprep.mubr.f32.mxu0 0.0
  %7705 = vmatmul.mubr.f32.gmra.mxu0 %v7332
  %v7706 = vpop.f32.mrf.mxu0
  %v7707 = vadd.f32 0.0, %v7706
  %v7708 = vpop.f32.mrf.mxu0
  %7709 = vmatprep.mubr.f32.mxu0 0.0
  %7710 = vmatmul.mubr.f32.gmra.mxu0 %v7335
  %v7711 = vpop.f32.mrf.mxu0
  %v7712 = vadd.f32 0.0, %v7711
  %v7713 = vpop.f32.mrf.mxu0
  %7714 = vmatprep.mubr.f32.mxu0 0.0
  %7715 = vmatmul.mubr.f32.gmra.mxu0 %v7338
  %v7716 = vpop.f32.mrf.mxu0
  %v7717 = vadd.f32 0.0, %v7716
  %v7718 = vpop.f32.mrf.mxu0
  %7719 = vmatprep.mubr.f32.mxu0 0.0
  %7720 = vmatmul.mubr.f32.gmra.mxu0 %v7341
  %v7721 = vpop.f32.mrf.mxu0
  %v7722 = vadd.f32 0.0, %v7721
  %v7723 = vpop.f32.mrf.mxu0
  %7724 = vmatprep.mubr.f32.mxu0 0.0
  %7725 = vmatmul.mubr.f32.gmra.mxu0 %v7344
  %v7726 = vpop.f32.mrf.mxu0
  %v7727 = vadd.f32 0.0, %v7726
  %v7728 = vpop.f32.mrf.mxu0
  %7729 = vmatprep.mubr.f32.mxu0 0.0
  %7730 = vmatmul.mubr.f32.gmra.mxu0 %v7347
  %v7731 = vpop.f32.mrf.mxu0
  %v7732 = vadd.f32 0.0, %v7731
  %v7733 = vpop.f32.mrf.mxu0
  %7734 = vmatprep.mubr.f32.mxu0 0.0
  %7735 = vmatmul.mubr.f32.gmra.mxu0 %v7350
  %v7736 = vpop.f32.mrf.mxu0
  %v7737 = vadd.f32 0.0, %v7736
  %v7738 = vpop.f32.mrf.mxu0
  %7739 = vdwg.mxu0
  %v7740 = vadd.f32 %v7030, %v7422
  %v7741 = vadd.f32 %v7031, %v7427
  %v7742 = vadd.f32 %v7032, %v7432
  %v7743 = vadd.f32 %v7033, %v7437
  %v7744 = vadd.f32 %v7034, %v7442
  %v7745 = vadd.f32 %v7035, %v7447
  %v7746 = vadd.f32 %v7036, %v7452
  %v7747 = vadd.f32 %v7037, %v7457
  %v7748 = vadd.f32 %v7038, %v7462
  %v7749 = vadd.f32 %v7039, %v7467
  %v7750 = vadd.f32 %v7040, %v7472
  %v7751 = vadd.f32 %v7041, %v7477
  %v7752 = vadd.f32 %v7042, %v7482
  %v7753 = vadd.f32 %v7043, %v7487
  %v7754 = vadd.f32 %v7044, %v7492
  %v7755 = vadd.f32 %v7045, %v7497
  %v7756 = vadd.f32 %v7046, %v7502
  %v7757 = vadd.f32 %v7047, %v7507
  %v7758 = vadd.f32 %v7048, %v7512
  %v7759 = vadd.f32 %v7049, %v7517
  %v7760 = vadd.f32 %v7050, %v7522
  %v7761 = vadd.f32 %v7051, %v7527
  %v7762 = vadd.f32 %v7052, %v7532
  %v7763 = vadd.f32 %v7053, %v7537
  %v7764 = vadd.f32 %v7054, %v7542
  %v7765 = vadd.f32 %v7055, %v7547
  %v7766 = vadd.f32 %v7056, %v7552
  %v7767 = vadd.f32 %v7057, %v7557
  %v7768 = vadd.f32 %v7058, %v7562
  %v7769 = vadd.f32 %v7059, %v7567
  %v7770 = vadd.f32 %v7060, %v7572
  %v7771 = vadd.f32 %v7061, %v7577
  %v7772 = vadd.f32 %v7062, %v7582
  %v7773 = vadd.f32 %v7063, %v7587
  %v7774 = vadd.f32 %v7064, %v7592
  %v7775 = vadd.f32 %v7065, %v7597
  %v7776 = vadd.f32 %v7066, %v7602
  %v7777 = vadd.f32 %v7067, %v7607
  %v7778 = vadd.f32 %v7068, %v7612
  %v7779 = vadd.f32 %v7069, %v7617
  %v7780 = vadd.f32 %v7070, %v7622
  %v7781 = vadd.f32 %v7071, %v7627
  %v7782 = vadd.f32 %v7072, %v7632
  %v7783 = vadd.f32 %v7073, %v7637
  %v7784 = vadd.f32 %v7074, %v7642
  %v7785 = vadd.f32 %v7075, %v7647
  %v7786 = vadd.f32 %v7076, %v7652
  %v7787 = vadd.f32 %v7077, %v7657
  %v7788 = vadd.f32 %v7078, %v7662
  %v7789 = vadd.f32 %v7079, %v7667
  %v7790 = vadd.f32 %v7080, %v7672
  %v7791 = vadd.f32 %v7081, %v7677
  %v7792 = vadd.f32 %v7082, %v7682
  %v7793 = vadd.f32 %v7083, %v7687
  %v7794 = vadd.f32 %v7084, %v7692
  %v7795 = vadd.f32 %v7085, %v7697
  %v7796 = vadd.f32 %v7086, %v7702
  %v7797 = vadd.f32 %v7087, %v7707
  %v7798 = vadd.f32 %v7088, %v7712
  %v7799 = vadd.f32 %v7089, %v7717
  %v7800 = vadd.f32 %v7090, %v7722
  %v7801 = vadd.f32 %v7091, %v7727
  %v7802 = vadd.f32 %v7092, %v7732
  %v7803 = vadd.f32 %v7093, %v7737
  %v7804 = vld [vmem:[%s6] sm:$0x1]
  %v7806 = vlaneseq
  %v7807 = vshrl.u32 %v7806, 7
  %v7808 = vsub.s32 0, %v7807
  %v7809 = vrot.slane %v7804, %v7808
  %v7811 = vadd.f32 %v7740, %v7809
  %v7812 = vadd.f32 %v7741, %v7809
  %v7813 = vadd.f32 %v7742, %v7809
  %v7814 = vadd.f32 %v7743, %v7809
  %v7815 = vadd.f32 %v7744, %v7809
  %v7816 = vadd.f32 %v7745, %v7809
  %v7817 = vadd.f32 %v7746, %v7809
  %v7818 = vadd.f32 %v7747, %v7809
  %v7819 = vadd.f32 %v7748, %v7809
  %v7820 = vadd.f32 %v7749, %v7809
  %v7821 = vadd.f32 %v7750, %v7809
  %v7822 = vadd.f32 %v7751, %v7809
  %v7823 = vadd.f32 %v7752, %v7809
  %v7824 = vadd.f32 %v7753, %v7809
  %v7825 = vadd.f32 %v7754, %v7809
  %v7826 = vadd.f32 %v7755, %v7809
  %v7827 = vadd.f32 %v7756, %v7809
  %v7828 = vadd.f32 %v7757, %v7809
  %v7829 = vadd.f32 %v7758, %v7809
  %v7830 = vadd.f32 %v7759, %v7809
  %v7831 = vadd.f32 %v7760, %v7809
  %v7832 = vadd.f32 %v7761, %v7809
  %v7833 = vadd.f32 %v7762, %v7809
  %v7834 = vadd.f32 %v7763, %v7809
  %v7835 = vadd.f32 %v7764, %v7809
  %v7836 = vadd.f32 %v7765, %v7809
  %v7837 = vadd.f32 %v7766, %v7809
  %v7838 = vadd.f32 %v7767, %v7809
  %v7839 = vadd.f32 %v7768, %v7809
  %v7840 = vadd.f32 %v7769, %v7809
  %v7841 = vadd.f32 %v7770, %v7809
  %v7842 = vadd.f32 %v7771, %v7809
  %v7843 = vadd.f32 %v7772, %v7809
  %v7844 = vadd.f32 %v7773, %v7809
  %v7845 = vadd.f32 %v7774, %v7809
  %v7846 = vadd.f32 %v7775, %v7809
  %v7847 = vadd.f32 %v7776, %v7809
  %v7848 = vadd.f32 %v7777, %v7809
  %v7849 = vadd.f32 %v7778, %v7809
  %v7850 = vadd.f32 %v7779, %v7809
  %v7851 = vadd.f32 %v7780, %v7809
  %v7852 = vadd.f32 %v7781, %v7809
  %v7853 = vadd.f32 %v7782, %v7809
  %v7854 = vadd.f32 %v7783, %v7809
  %v7855 = vadd.f32 %v7784, %v7809
  %v7856 = vadd.f32 %v7785, %v7809
  %v7857 = vadd.f32 %v7786, %v7809
  %v7858 = vadd.f32 %v7787, %v7809
  %v7859 = vadd.f32 %v7788, %v7809
  %v7860 = vadd.f32 %v7789, %v7809
  %v7861 = vadd.f32 %v7790, %v7809
  %v7862 = vadd.f32 %v7791, %v7809
  %v7863 = vadd.f32 %v7792, %v7809
  %v7864 = vadd.f32 %v7793, %v7809
  %v7865 = vadd.f32 %v7794, %v7809
  %v7866 = vadd.f32 %v7795, %v7809
  %v7867 = vadd.f32 %v7796, %v7809
  %v7868 = vadd.f32 %v7797, %v7809
  %v7869 = vadd.f32 %v7798, %v7809
  %v7870 = vadd.f32 %v7799, %v7809
  %v7871 = vadd.f32 %v7800, %v7809
  %v7872 = vadd.f32 %v7801, %v7809
  %v7873 = vadd.f32 %v7802, %v7809
  %v7874 = vadd.f32 %v7803, %v7809
  %v7875 = vld [vmem:[%s7] sm:$0x1]
  %v7876 = vld [vmem:[%s8] sm:$0x1]
  %v7877 = vsel %vm697, %v7811, 0.0
  %v7878 = vsel %vm697, %v7812, 0.0
  %v7879 = vadd.f32 %v7877, %v7878
  %v7880 = vsel %vm697, %v7813, 0.0
  %v7881 = vadd.f32 %v7879, %v7880
  %v7882 = vsel %vm697, %v7814, 0.0
  %v7883 = vadd.f32 %v7881, %v7882
  %v7884 = vsel %vm697, %v7815, 0.0
  %v7885 = vadd.f32 %v7883, %v7884
  %v7886 = vsel %vm697, %v7816, 0.0
  %v7887 = vadd.f32 %v7885, %v7886
  %v7888 = vsel %vm697, %v7817, 0.0
  %v7889 = vadd.f32 %v7887, %v7888
  %v7890 = vsel %vm697, %v7818, 0.0
  %v7891 = vadd.f32 %v7889, %v7890
  %v7892 = vsel %vm697, %v7819, 0.0
  %v7893 = vadd.f32 %v7891, %v7892
  %v7894 = vsel %vm697, %v7820, 0.0
  %v7895 = vadd.f32 %v7893, %v7894
  %v7896 = vsel %vm697, %v7821, 0.0
  %v7897 = vadd.f32 %v7895, %v7896
  %v7898 = vsel %vm697, %v7822, 0.0
  %v7899 = vadd.f32 %v7897, %v7898
  %v7900 = vsel %vm697, %v7823, 0.0
  %v7901 = vadd.f32 %v7899, %v7900
  %v7902 = vsel %vm697, %v7824, 0.0
  %v7903 = vadd.f32 %v7901, %v7902
  %v7904 = vsel %vm697, %v7825, 0.0
  %v7905 = vadd.f32 %v7903, %v7904
  %v7906 = vsel %vm697, %v7826, 0.0
  %v7907 = vadd.f32 %v7905, %v7906
  %v7908 = vsel %vm697, %v7827, 0.0
  %v7909 = vadd.f32 %v7907, %v7908
  %v7910 = vsel %vm697, %v7828, 0.0
  %v7911 = vadd.f32 %v7909, %v7910
  %v7912 = vsel %vm697, %v7829, 0.0
  %v7913 = vadd.f32 %v7911, %v7912
  %v7914 = vsel %vm697, %v7830, 0.0
  %v7915 = vadd.f32 %v7913, %v7914
  %v7916 = vsel %vm697, %v7831, 0.0
  %v7917 = vadd.f32 %v7915, %v7916
  %v7918 = vsel %vm697, %v7832, 0.0
  %v7919 = vadd.f32 %v7917, %v7918
  %v7920 = vsel %vm697, %v7833, 0.0
  %v7921 = vadd.f32 %v7919, %v7920
  %v7922 = vsel %vm697, %v7834, 0.0
  %v7923 = vadd.f32 %v7921, %v7922
  %v7924 = vsel %vm697, %v7835, 0.0
  %v7925 = vadd.f32 %v7923, %v7924
  %v7926 = vsel %vm697, %v7836, 0.0
  %v7927 = vadd.f32 %v7925, %v7926
  %v7928 = vsel %vm697, %v7837, 0.0
  %v7929 = vadd.f32 %v7927, %v7928
  %v7930 = vsel %vm697, %v7838, 0.0
  %v7931 = vadd.f32 %v7929, %v7930
  %v7932 = vsel %vm697, %v7839, 0.0
  %v7933 = vadd.f32 %v7931, %v7932
  %v7934 = vsel %vm697, %v7840, 0.0
  %v7935 = vadd.f32 %v7933, %v7934
  %v7936 = vsel %vm697, %v7841, 0.0
  %v7937 = vadd.f32 %v7935, %v7936
  %v7938 = vsel %vm697, %v7842, 0.0
  %v7939 = vadd.f32 %v7937, %v7938
  %v7940 = vsel %vm697, %v7843, 0.0
  %v7941 = vadd.f32 %v7939, %v7940
  %v7942 = vsel %vm697, %v7844, 0.0
  %v7943 = vadd.f32 %v7941, %v7942
  %v7944 = vsel %vm697, %v7845, 0.0
  %v7945 = vadd.f32 %v7943, %v7944
  %v7946 = vsel %vm697, %v7846, 0.0
  %v7947 = vadd.f32 %v7945, %v7946
  %v7948 = vsel %vm697, %v7847, 0.0
  %v7949 = vadd.f32 %v7947, %v7948
  %v7950 = vsel %vm697, %v7848, 0.0
  %v7951 = vadd.f32 %v7949, %v7950
  %v7952 = vsel %vm697, %v7849, 0.0
  %v7953 = vadd.f32 %v7951, %v7952
  %v7954 = vsel %vm697, %v7850, 0.0
  %v7955 = vadd.f32 %v7953, %v7954
  %v7956 = vsel %vm697, %v7851, 0.0
  %v7957 = vadd.f32 %v7955, %v7956
  %v7958 = vsel %vm697, %v7852, 0.0
  %v7959 = vadd.f32 %v7957, %v7958
  %v7960 = vsel %vm697, %v7853, 0.0
  %v7961 = vadd.f32 %v7959, %v7960
  %v7962 = vsel %vm697, %v7854, 0.0
  %v7963 = vadd.f32 %v7961, %v7962
  %v7964 = vsel %vm697, %v7855, 0.0
  %v7965 = vadd.f32 %v7963, %v7964
  %v7966 = vsel %vm697, %v7856, 0.0
  %v7967 = vadd.f32 %v7965, %v7966
  %v7968 = vsel %vm697, %v7857, 0.0
  %v7969 = vadd.f32 %v7967, %v7968
  %v7970 = vsel %vm697, %v7858, 0.0
  %v7971 = vadd.f32 %v7969, %v7970
  %v7972 = vsel %vm697, %v7859, 0.0
  %v7973 = vadd.f32 %v7971, %v7972
  %v7974 = vsel %vm697, %v7860, 0.0
  %v7975 = vadd.f32 %v7973, %v7974
  %v7976 = vsel %vm697, %v7861, 0.0
  %v7977 = vadd.f32 %v7975, %v7976
  %v7978 = vsel %vm697, %v7862, 0.0
  %v7979 = vadd.f32 %v7977, %v7978
  %v7980 = vsel %vm697, %v7863, 0.0
  %v7981 = vadd.f32 %v7979, %v7980
  %v7982 = vsel %vm697, %v7864, 0.0
  %v7983 = vadd.f32 %v7981, %v7982
  %v7984 = vsel %vm697, %v7865, 0.0
  %v7985 = vadd.f32 %v7983, %v7984
  %v7986 = vsel %vm697, %v7866, 0.0
  %v7987 = vadd.f32 %v7985, %v7986
  %v7988 = vsel %vm697, %v7867, 0.0
  %v7989 = vadd.f32 %v7987, %v7988
  %v7990 = vsel %vm697, %v7868, 0.0
  %v7991 = vadd.f32 %v7989, %v7990
  %v7992 = vsel %vm697, %v7869, 0.0
  %v7993 = vadd.f32 %v7991, %v7992
  %v7994 = vsel %vm697, %v7870, 0.0
  %v7995 = vadd.f32 %v7993, %v7994
  %v7996 = vsel %vm697, %v7871, 0.0
  %v7997 = vadd.f32 %v7995, %v7996
  %v7998 = vsel %vm697, %v7872, 0.0
  %v7999 = vadd.f32 %v7997, %v7998
  %v8000 = vsel %vm697, %v7873, 0.0
  %v8001 = vadd.f32 %v7999, %v8000
  %v8002 = vsel %vm697, %v7874, 0.0
  %v8003 = vadd.f32 %v8001, %v8002
  %v8004 = vrot.slane %v8003, 4
  %v8005 = vadd.f32 %v8003, %v8004
  %v8006 = vrot.slane %v8005, 2
  %v8007 = vadd.f32 %v8005, %v8006
  %v8008 = vrot.slane %v8007, 1
  %v8009 = vadd.f32 %v8007, %v8008
  %v8010 = vmul.f32 %v8009, %v831
  %v8011 = vmul.f32 %v7811, %v7811
  %v8012 = vmul.f32 %v7812, %v7812
  %v8013 = vmul.f32 %v7813, %v7813
  %v8014 = vmul.f32 %v7814, %v7814
  %v8015 = vmul.f32 %v7815, %v7815
  %v8016 = vmul.f32 %v7816, %v7816
  %v8017 = vmul.f32 %v7817, %v7817
  %v8018 = vmul.f32 %v7818, %v7818
  %v8019 = vmul.f32 %v7819, %v7819
  %v8020 = vmul.f32 %v7820, %v7820
  %v8021 = vmul.f32 %v7821, %v7821
  %v8022 = vmul.f32 %v7822, %v7822
  %v8023 = vmul.f32 %v7823, %v7823
  %v8024 = vmul.f32 %v7824, %v7824
  %v8025 = vmul.f32 %v7825, %v7825
  %v8026 = vmul.f32 %v7826, %v7826
  %v8027 = vmul.f32 %v7827, %v7827
  %v8028 = vmul.f32 %v7828, %v7828
  %v8029 = vmul.f32 %v7829, %v7829
  %v8030 = vmul.f32 %v7830, %v7830
  %v8031 = vmul.f32 %v7831, %v7831
  %v8032 = vmul.f32 %v7832, %v7832
  %v8033 = vmul.f32 %v7833, %v7833
  %v8034 = vmul.f32 %v7834, %v7834
  %v8035 = vmul.f32 %v7835, %v7835
  %v8036 = vmul.f32 %v7836, %v7836
  %v8037 = vmul.f32 %v7837, %v7837
  %v8038 = vmul.f32 %v7838, %v7838
  %v8039 = vmul.f32 %v7839, %v7839
  %v8040 = vmul.f32 %v7840, %v7840
  %v8041 = vmul.f32 %v7841, %v7841
  %v8042 = vmul.f32 %v7842, %v7842
  %v8043 = vmul.f32 %v7843, %v7843
  %v8044 = vmul.f32 %v7844, %v7844
  %v8045 = vmul.f32 %v7845, %v7845
  %v8046 = vmul.f32 %v7846, %v7846
  %v8047 = vmul.f32 %v7847, %v7847
  %v8048 = vmul.f32 %v7848, %v7848
  %v8049 = vmul.f32 %v7849, %v7849
  %v8050 = vmul.f32 %v7850, %v7850
  %v8051 = vmul.f32 %v7851, %v7851
  %v8052 = vmul.f32 %v7852, %v7852
  %v8053 = vmul.f32 %v7853, %v7853
  %v8054 = vmul.f32 %v7854, %v7854
  %v8055 = vmul.f32 %v7855, %v7855
  %v8056 = vmul.f32 %v7856, %v7856
  %v8057 = vmul.f32 %v7857, %v7857
  %v8058 = vmul.f32 %v7858, %v7858
  %v8059 = vmul.f32 %v7859, %v7859
  %v8060 = vmul.f32 %v7860, %v7860
  %v8061 = vmul.f32 %v7861, %v7861
  %v8062 = vmul.f32 %v7862, %v7862
  %v8063 = vmul.f32 %v7863, %v7863
  %v8064 = vmul.f32 %v7864, %v7864
  %v8065 = vmul.f32 %v7865, %v7865
  %v8066 = vmul.f32 %v7866, %v7866
  %v8067 = vmul.f32 %v7867, %v7867
  %v8068 = vmul.f32 %v7868, %v7868
  %v8069 = vmul.f32 %v7869, %v7869
  %v8070 = vmul.f32 %v7870, %v7870
  %v8071 = vmul.f32 %v7871, %v7871
  %v8072 = vmul.f32 %v7872, %v7872
  %v8073 = vmul.f32 %v7873, %v7873
  %v8074 = vmul.f32 %v7874, %v7874
  %v8075 = vsel %vm697, %v8011, 0.0
  %v8076 = vsel %vm697, %v8012, 0.0
  %v8077 = vadd.f32 %v8075, %v8076
  %v8078 = vsel %vm697, %v8013, 0.0
  %v8079 = vadd.f32 %v8077, %v8078
  %v8080 = vsel %vm697, %v8014, 0.0
  %v8081 = vadd.f32 %v8079, %v8080
  %v8082 = vsel %vm697, %v8015, 0.0
  %v8083 = vadd.f32 %v8081, %v8082
  %v8084 = vsel %vm697, %v8016, 0.0
  %v8085 = vadd.f32 %v8083, %v8084
  %v8086 = vsel %vm697, %v8017, 0.0
  %v8087 = vadd.f32 %v8085, %v8086
  %v8088 = vsel %vm697, %v8018, 0.0
  %v8089 = vadd.f32 %v8087, %v8088
  %v8090 = vsel %vm697, %v8019, 0.0
  %v8091 = vadd.f32 %v8089, %v8090
  %v8092 = vsel %vm697, %v8020, 0.0
  %v8093 = vadd.f32 %v8091, %v8092
  %v8094 = vsel %vm697, %v8021, 0.0
  %v8095 = vadd.f32 %v8093, %v8094
  %v8096 = vsel %vm697, %v8022, 0.0
  %v8097 = vadd.f32 %v8095, %v8096
  %v8098 = vsel %vm697, %v8023, 0.0
  %v8099 = vadd.f32 %v8097, %v8098
  %v8100 = vsel %vm697, %v8024, 0.0
  %v8101 = vadd.f32 %v8099, %v8100
  %v8102 = vsel %vm697, %v8025, 0.0
  %v8103 = vadd.f32 %v8101, %v8102
  %v8104 = vsel %vm697, %v8026, 0.0
  %v8105 = vadd.f32 %v8103, %v8104
  %v8106 = vsel %vm697, %v8027, 0.0
  %v8107 = vadd.f32 %v8105, %v8106
  %v8108 = vsel %vm697, %v8028, 0.0
  %v8109 = vadd.f32 %v8107, %v8108
  %v8110 = vsel %vm697, %v8029, 0.0
  %v8111 = vadd.f32 %v8109, %v8110
  %v8112 = vsel %vm697, %v8030, 0.0
  %v8113 = vadd.f32 %v8111, %v8112
  %v8114 = vsel %vm697, %v8031, 0.0
  %v8115 = vadd.f32 %v8113, %v8114
  %v8116 = vsel %vm697, %v8032, 0.0
  %v8117 = vadd.f32 %v8115, %v8116
  %v8118 = vsel %vm697, %v8033, 0.0
  %v8119 = vadd.f32 %v8117, %v8118
  %v8120 = vsel %vm697, %v8034, 0.0
  %v8121 = vadd.f32 %v8119, %v8120
  %v8122 = vsel %vm697, %v8035, 0.0
  %v8123 = vadd.f32 %v8121, %v8122
  %v8124 = vsel %vm697, %v8036, 0.0
  %v8125 = vadd.f32 %v8123, %v8124
  %v8126 = vsel %vm697, %v8037, 0.0
  %v8127 = vadd.f32 %v8125, %v8126
  %v8128 = vsel %vm697, %v8038, 0.0
  %v8129 = vadd.f32 %v8127, %v8128
  %v8130 = vsel %vm697, %v8039, 0.0
  %v8131 = vadd.f32 %v8129, %v8130
  %v8132 = vsel %vm697, %v8040, 0.0
  %v8133 = vadd.f32 %v8131, %v8132
  %v8134 = vsel %vm697, %v8041, 0.0
  %v8135 = vadd.f32 %v8133, %v8134
  %v8136 = vsel %vm697, %v8042, 0.0
  %v8137 = vadd.f32 %v8135, %v8136
  %v8138 = vsel %vm697, %v8043, 0.0
  %v8139 = vadd.f32 %v8137, %v8138
  %v8140 = vsel %vm697, %v8044, 0.0
  %v8141 = vadd.f32 %v8139, %v8140
  %v8142 = vsel %vm697, %v8045, 0.0
  %v8143 = vadd.f32 %v8141, %v8142
  %v8144 = vsel %vm697, %v8046, 0.0
  %v8145 = vadd.f32 %v8143, %v8144
  %v8146 = vsel %vm697, %v8047, 0.0
  %v8147 = vadd.f32 %v8145, %v8146
  %v8148 = vsel %vm697, %v8048, 0.0
  %v8149 = vadd.f32 %v8147, %v8148
  %v8150 = vsel %vm697, %v8049, 0.0
  %v8151 = vadd.f32 %v8149, %v8150
  %v8152 = vsel %vm697, %v8050, 0.0
  %v8153 = vadd.f32 %v8151, %v8152
  %v8154 = vsel %vm697, %v8051, 0.0
  %v8155 = vadd.f32 %v8153, %v8154
  %v8156 = vsel %vm697, %v8052, 0.0
  %v8157 = vadd.f32 %v8155, %v8156
  %v8158 = vsel %vm697, %v8053, 0.0
  %v8159 = vadd.f32 %v8157, %v8158
  %v8160 = vsel %vm697, %v8054, 0.0
  %v8161 = vadd.f32 %v8159, %v8160
  %v8162 = vsel %vm697, %v8055, 0.0
  %v8163 = vadd.f32 %v8161, %v8162
  %v8164 = vsel %vm697, %v8056, 0.0
  %v8165 = vadd.f32 %v8163, %v8164
  %v8166 = vsel %vm697, %v8057, 0.0
  %v8167 = vadd.f32 %v8165, %v8166
  %v8168 = vsel %vm697, %v8058, 0.0
  %v8169 = vadd.f32 %v8167, %v8168
  %v8170 = vsel %vm697, %v8059, 0.0
  %v8171 = vadd.f32 %v8169, %v8170
  %v8172 = vsel %vm697, %v8060, 0.0
  %v8173 = vadd.f32 %v8171, %v8172
  %v8174 = vsel %vm697, %v8061, 0.0
  %v8175 = vadd.f32 %v8173, %v8174
  %v8176 = vsel %vm697, %v8062, 0.0
  %v8177 = vadd.f32 %v8175, %v8176
  %v8178 = vsel %vm697, %v8063, 0.0
  %v8179 = vadd.f32 %v8177, %v8178
  %v8180 = vsel %vm697, %v8064, 0.0
  %v8181 = vadd.f32 %v8179, %v8180
  %v8182 = vsel %vm697, %v8065, 0.0
  %v8183 = vadd.f32 %v8181, %v8182
  %v8184 = vsel %vm697, %v8066, 0.0
  %v8185 = vadd.f32 %v8183, %v8184
  %v8186 = vsel %vm697, %v8067, 0.0
  %v8187 = vadd.f32 %v8185, %v8186
  %v8188 = vsel %vm697, %v8068, 0.0
  %v8189 = vadd.f32 %v8187, %v8188
  %v8190 = vsel %vm697, %v8069, 0.0
  %v8191 = vadd.f32 %v8189, %v8190
  %v8192 = vsel %vm697, %v8070, 0.0
  %v8193 = vadd.f32 %v8191, %v8192
  %v8194 = vsel %vm697, %v8071, 0.0
  %v8195 = vadd.f32 %v8193, %v8194
  %v8196 = vsel %vm697, %v8072, 0.0
  %v8197 = vadd.f32 %v8195, %v8196
  %v8198 = vsel %vm697, %v8073, 0.0
  %v8199 = vadd.f32 %v8197, %v8198
  %v8200 = vsel %vm697, %v8074, 0.0
  %v8201 = vadd.f32 %v8199, %v8200
  %v8202 = vrot.slane %v8201, 4
  %v8203 = vadd.f32 %v8201, %v8202
  %v8204 = vrot.slane %v8203, 2
  %v8205 = vadd.f32 %v8203, %v8204
  %v8206 = vrot.slane %v8205, 1
  %v8207 = vadd.f32 %v8205, %v8206
  %v8208 = vmul.f32 %v8207, %v831
  %v8209 = vmul.f32 %v8010, %v8010
  %v8210 = vsub.f32 %v8208, %v8209
  %v8211 = vsub.f32 %v7811, %v8010
  %v8212 = vsub.f32 %v7812, %v8010
  %v8213 = vsub.f32 %v7813, %v8010
  %v8214 = vsub.f32 %v7814, %v8010
  %v8215 = vsub.f32 %v7815, %v8010
  %v8216 = vsub.f32 %v7816, %v8010
  %v8217 = vsub.f32 %v7817, %v8010
  %v8218 = vsub.f32 %v7818, %v8010
  %v8219 = vsub.f32 %v7819, %v8010
  %v8220 = vsub.f32 %v7820, %v8010
  %v8221 = vsub.f32 %v7821, %v8010
  %v8222 = vsub.f32 %v7822, %v8010
  %v8223 = vsub.f32 %v7823, %v8010
  %v8224 = vsub.f32 %v7824, %v8010
  %v8225 = vsub.f32 %v7825, %v8010
  %v8226 = vsub.f32 %v7826, %v8010
  %v8227 = vsub.f32 %v7827, %v8010
  %v8228 = vsub.f32 %v7828, %v8010
  %v8229 = vsub.f32 %v7829, %v8010
  %v8230 = vsub.f32 %v7830, %v8010
  %v8231 = vsub.f32 %v7831, %v8010
  %v8232 = vsub.f32 %v7832, %v8010
  %v8233 = vsub.f32 %v7833, %v8010
  %v8234 = vsub.f32 %v7834, %v8010
  %v8235 = vsub.f32 %v7835, %v8010
  %v8236 = vsub.f32 %v7836, %v8010
  %v8237 = vsub.f32 %v7837, %v8010
  %v8238 = vsub.f32 %v7838, %v8010
  %v8239 = vsub.f32 %v7839, %v8010
  %v8240 = vsub.f32 %v7840, %v8010
  %v8241 = vsub.f32 %v7841, %v8010
  %v8242 = vsub.f32 %v7842, %v8010
  %v8243 = vsub.f32 %v7843, %v8010
  %v8244 = vsub.f32 %v7844, %v8010
  %v8245 = vsub.f32 %v7845, %v8010
  %v8246 = vsub.f32 %v7846, %v8010
  %v8247 = vsub.f32 %v7847, %v8010
  %v8248 = vsub.f32 %v7848, %v8010
  %v8249 = vsub.f32 %v7849, %v8010
  %v8250 = vsub.f32 %v7850, %v8010
  %v8251 = vsub.f32 %v7851, %v8010
  %v8252 = vsub.f32 %v7852, %v8010
  %v8253 = vsub.f32 %v7853, %v8010
  %v8254 = vsub.f32 %v7854, %v8010
  %v8255 = vsub.f32 %v7855, %v8010
  %v8256 = vsub.f32 %v7856, %v8010
  %v8257 = vsub.f32 %v7857, %v8010
  %v8258 = vsub.f32 %v7858, %v8010
  %v8259 = vsub.f32 %v7859, %v8010
  %v8260 = vsub.f32 %v7860, %v8010
  %v8261 = vsub.f32 %v7861, %v8010
  %v8262 = vsub.f32 %v7862, %v8010
  %v8263 = vsub.f32 %v7863, %v8010
  %v8264 = vsub.f32 %v7864, %v8010
  %v8265 = vsub.f32 %v7865, %v8010
  %v8266 = vsub.f32 %v7866, %v8010
  %v8267 = vsub.f32 %v7867, %v8010
  %v8268 = vsub.f32 %v7868, %v8010
  %v8269 = vsub.f32 %v7869, %v8010
  %v8270 = vsub.f32 %v7870, %v8010
  %v8271 = vsub.f32 %v7871, %v8010
  %v8272 = vsub.f32 %v7872, %v8010
  %v8273 = vsub.f32 %v7873, %v8010
  %v8274 = vsub.f32 %v7874, %v8010
  %v8275 = vadd.f32 %v8210, 1e-05
  %v8276 = vrsqrt.pop %v8275
  %v8277 = vmul.f32 %v8211, %v8276
  %v8278 = vmul.f32 %v8212, %v8276
  %v8279 = vmul.f32 %v8213, %v8276
  %v8280 = vmul.f32 %v8214, %v8276
  %v8281 = vmul.f32 %v8215, %v8276
  %v8282 = vmul.f32 %v8216, %v8276
  %v8283 = vmul.f32 %v8217, %v8276
  %v8284 = vmul.f32 %v8218, %v8276
  %v8285 = vmul.f32 %v8219, %v8276
  %v8286 = vmul.f32 %v8220, %v8276
  %v8287 = vmul.f32 %v8221, %v8276
  %v8288 = vmul.f32 %v8222, %v8276
  %v8289 = vmul.f32 %v8223, %v8276
  %v8290 = vmul.f32 %v8224, %v8276
  %v8291 = vmul.f32 %v8225, %v8276
  %v8292 = vmul.f32 %v8226, %v8276
  %v8293 = vmul.f32 %v8227, %v8276
  %v8294 = vmul.f32 %v8228, %v8276
  %v8295 = vmul.f32 %v8229, %v8276
  %v8296 = vmul.f32 %v8230, %v8276
  %v8297 = vmul.f32 %v8231, %v8276
  %v8298 = vmul.f32 %v8232, %v8276
  %v8299 = vmul.f32 %v8233, %v8276
  %v8300 = vmul.f32 %v8234, %v8276
  %v8301 = vmul.f32 %v8235, %v8276
  %v8302 = vmul.f32 %v8236, %v8276
  %v8303 = vmul.f32 %v8237, %v8276
  %v8304 = vmul.f32 %v8238, %v8276
  %v8305 = vmul.f32 %v8239, %v8276
  %v8306 = vmul.f32 %v8240, %v8276
  %v8307 = vmul.f32 %v8241, %v8276
  %v8308 = vmul.f32 %v8242, %v8276
  %v8309 = vmul.f32 %v8243, %v8276
  %v8310 = vmul.f32 %v8244, %v8276
  %v8311 = vmul.f32 %v8245, %v8276
  %v8312 = vmul.f32 %v8246, %v8276
  %v8313 = vmul.f32 %v8247, %v8276
  %v8314 = vmul.f32 %v8248, %v8276
  %v8315 = vmul.f32 %v8249, %v8276
  %v8316 = vmul.f32 %v8250, %v8276
  %v8317 = vmul.f32 %v8251, %v8276
  %v8318 = vmul.f32 %v8252, %v8276
  %v8319 = vmul.f32 %v8253, %v8276
  %v8320 = vmul.f32 %v8254, %v8276
  %v8321 = vmul.f32 %v8255, %v8276
  %v8322 = vmul.f32 %v8256, %v8276
  %v8323 = vmul.f32 %v8257, %v8276
  %v8324 = vmul.f32 %v8258, %v8276
  %v8325 = vmul.f32 %v8259, %v8276
  %v8326 = vmul.f32 %v8260, %v8276
  %v8327 = vmul.f32 %v8261, %v8276
  %v8328 = vmul.f32 %v8262, %v8276
  %v8329 = vmul.f32 %v8263, %v8276
  %v8330 = vmul.f32 %v8264, %v8276
  %v8331 = vmul.f32 %v8265, %v8276
  %v8332 = vmul.f32 %v8266, %v8276
  %v8333 = vmul.f32 %v8267, %v8276
  %v8334 = vmul.f32 %v8268, %v8276
  %v8335 = vmul.f32 %v8269, %v8276
  %v8336 = vmul.f32 %v8270, %v8276
  %v8337 = vmul.f32 %v8271, %v8276
  %v8338 = vmul.f32 %v8272, %v8276
  %v8339 = vmul.f32 %v8273, %v8276
  %v8340 = vmul.f32 %v8274, %v8276
  %v8342 = vlaneseq
  %v8343 = vshrl.u32 %v8342, 7
  %v8344 = vsub.s32 0, %v8343
  %v8345 = vrot.slane %v7875, %v8344
  %v8347 = vmul.f32 %v8277, %v8345
  %v8348 = vmul.f32 %v8278, %v8345
  %v8349 = vmul.f32 %v8279, %v8345
  %v8350 = vmul.f32 %v8280, %v8345
  %v8351 = vmul.f32 %v8281, %v8345
  %v8352 = vmul.f32 %v8282, %v8345
  %v8353 = vmul.f32 %v8283, %v8345
  %v8354 = vmul.f32 %v8284, %v8345
  %v8355 = vmul.f32 %v8285, %v8345
  %v8356 = vmul.f32 %v8286, %v8345
  %v8357 = vmul.f32 %v8287, %v8345
  %v8358 = vmul.f32 %v8288, %v8345
  %v8359 = vmul.f32 %v8289, %v8345
  %v8360 = vmul.f32 %v8290, %v8345
  %v8361 = vmul.f32 %v8291, %v8345
  %v8362 = vmul.f32 %v8292, %v8345
  %v8363 = vmul.f32 %v8293, %v8345
  %v8364 = vmul.f32 %v8294, %v8345
  %v8365 = vmul.f32 %v8295, %v8345
  %v8366 = vmul.f32 %v8296, %v8345
  %v8367 = vmul.f32 %v8297, %v8345
  %v8368 = vmul.f32 %v8298, %v8345
  %v8369 = vmul.f32 %v8299, %v8345
  %v8370 = vmul.f32 %v8300, %v8345
  %v8371 = vmul.f32 %v8301, %v8345
  %v8372 = vmul.f32 %v8302, %v8345
  %v8373 = vmul.f32 %v8303, %v8345
  %v8374 = vmul.f32 %v8304, %v8345
  %v8375 = vmul.f32 %v8305, %v8345
  %v8376 = vmul.f32 %v8306, %v8345
  %v8377 = vmul.f32 %v8307, %v8345
  %v8378 = vmul.f32 %v8308, %v8345
  %v8379 = vmul.f32 %v8309, %v8345
  %v8380 = vmul.f32 %v8310, %v8345
  %v8381 = vmul.f32 %v8311, %v8345
  %v8382 = vmul.f32 %v8312, %v8345
  %v8383 = vmul.f32 %v8313, %v8345
  %v8384 = vmul.f32 %v8314, %v8345
  %v8385 = vmul.f32 %v8315, %v8345
  %v8386 = vmul.f32 %v8316, %v8345
  %v8387 = vmul.f32 %v8317, %v8345
  %v8388 = vmul.f32 %v8318, %v8345
  %v8389 = vmul.f32 %v8319, %v8345
  %v8390 = vmul.f32 %v8320, %v8345
  %v8391 = vmul.f32 %v8321, %v8345
  %v8392 = vmul.f32 %v8322, %v8345
  %v8393 = vmul.f32 %v8323, %v8345
  %v8394 = vmul.f32 %v8324, %v8345
  %v8395 = vmul.f32 %v8325, %v8345
  %v8396 = vmul.f32 %v8326, %v8345
  %v8397 = vmul.f32 %v8327, %v8345
  %v8398 = vmul.f32 %v8328, %v8345
  %v8399 = vmul.f32 %v8329, %v8345
  %v8400 = vmul.f32 %v8330, %v8345
  %v8401 = vmul.f32 %v8331, %v8345
  %v8402 = vmul.f32 %v8332, %v8345
  %v8403 = vmul.f32 %v8333, %v8345
  %v8404 = vmul.f32 %v8334, %v8345
  %v8405 = vmul.f32 %v8335, %v8345
  %v8406 = vmul.f32 %v8336, %v8345
  %v8407 = vmul.f32 %v8337, %v8345
  %v8408 = vmul.f32 %v8338, %v8345
  %v8409 = vmul.f32 %v8339, %v8345
  %v8410 = vmul.f32 %v8340, %v8345
  %v8412 = vlaneseq
  %v8413 = vshrl.u32 %v8412, 7
  %v8414 = vsub.s32 0, %v8413
  %v8415 = vrot.slane %v7876, %v8414
  %v8417 = vadd.f32 %v8347, %v8415
  %v8418 = vadd.f32 %v8348, %v8415
  %v8419 = vadd.f32 %v8349, %v8415
  %v8420 = vadd.f32 %v8350, %v8415
  %v8421 = vadd.f32 %v8351, %v8415
  %v8422 = vadd.f32 %v8352, %v8415
  %v8423 = vadd.f32 %v8353, %v8415
  %v8424 = vadd.f32 %v8354, %v8415
  %v8425 = vadd.f32 %v8355, %v8415
  %v8426 = vadd.f32 %v8356, %v8415
  %v8427 = vadd.f32 %v8357, %v8415
  %v8428 = vadd.f32 %v8358, %v8415
  %v8429 = vadd.f32 %v8359, %v8415
  %v8430 = vadd.f32 %v8360, %v8415
  %v8431 = vadd.f32 %v8361, %v8415
  %v8432 = vadd.f32 %v8362, %v8415
  %v8433 = vadd.f32 %v8363, %v8415
  %v8434 = vadd.f32 %v8364, %v8415
  %v8435 = vadd.f32 %v8365, %v8415
  %v8436 = vadd.f32 %v8366, %v8415
  %v8437 = vadd.f32 %v8367, %v8415
  %v8438 = vadd.f32 %v8368, %v8415
  %v8439 = vadd.f32 %v8369, %v8415
  %v8440 = vadd.f32 %v8370, %v8415
  %v8441 = vadd.f32 %v8371, %v8415
  %v8442 = vadd.f32 %v8372, %v8415
  %v8443 = vadd.f32 %v8373, %v8415
  %v8444 = vadd.f32 %v8374, %v8415
  %v8445 = vadd.f32 %v8375, %v8415
  %v8446 = vadd.f32 %v8376, %v8415
  %v8447 = vadd.f32 %v8377, %v8415
  %v8448 = vadd.f32 %v8378, %v8415
  %v8449 = vadd.f32 %v8379, %v8415
  %v8450 = vadd.f32 %v8380, %v8415
  %v8451 = vadd.f32 %v8381, %v8415
  %v8452 = vadd.f32 %v8382, %v8415
  %v8453 = vadd.f32 %v8383, %v8415
  %v8454 = vadd.f32 %v8384, %v8415
  %v8455 = vadd.f32 %v8385, %v8415
  %v8456 = vadd.f32 %v8386, %v8415
  %v8457 = vadd.f32 %v8387, %v8415
  %v8458 = vadd.f32 %v8388, %v8415
  %v8459 = vadd.f32 %v8389, %v8415
  %v8460 = vadd.f32 %v8390, %v8415
  %v8461 = vadd.f32 %v8391, %v8415
  %v8462 = vadd.f32 %v8392, %v8415
  %v8463 = vadd.f32 %v8393, %v8415
  %v8464 = vadd.f32 %v8394, %v8415
  %v8465 = vadd.f32 %v8395, %v8415
  %v8466 = vadd.f32 %v8396, %v8415
  %v8467 = vadd.f32 %v8397, %v8415
  %v8468 = vadd.f32 %v8398, %v8415
  %v8469 = vadd.f32 %v8399, %v8415
  %v8470 = vadd.f32 %v8400, %v8415
  %v8471 = vadd.f32 %v8401, %v8415
  %v8472 = vadd.f32 %v8402, %v8415
  %v8473 = vadd.f32 %v8403, %v8415
  %v8474 = vadd.f32 %v8404, %v8415
  %v8475 = vadd.f32 %v8405, %v8415
  %v8476 = vadd.f32 %v8406, %v8415
  %v8477 = vadd.f32 %v8407, %v8415
  %v8478 = vadd.f32 %v8408, %v8415
  %v8479 = vadd.f32 %v8409, %v8415
  %v8480 = vadd.f32 %v8410, %v8415
  %v8481 = vmax.f32 %v8417, 0.0
  %v8482 = vmax.f32 %v8418, 0.0
  %v8483 = vmax.f32 %v8419, 0.0
  %v8484 = vmax.f32 %v8420, 0.0
  %v8485 = vmax.f32 %v8421, 0.0
  %v8486 = vmax.f32 %v8422, 0.0
  %v8487 = vmax.f32 %v8423, 0.0
  %v8488 = vmax.f32 %v8424, 0.0
  %v8489 = vmax.f32 %v8425, 0.0
  %v8490 = vmax.f32 %v8426, 0.0
  %v8491 = vmax.f32 %v8427, 0.0
  %v8492 = vmax.f32 %v8428, 0.0
  %v8493 = vmax.f32 %v8429, 0.0
  %v8494 = vmax.f32 %v8430, 0.0
  %v8495 = vmax.f32 %v8431, 0.0
  %v8496 = vmax.f32 %v8432, 0.0
  %v8497 = vmax.f32 %v8433, 0.0
  %v8498 = vmax.f32 %v8434, 0.0
  %v8499 = vmax.f32 %v8435, 0.0
  %v8500 = vmax.f32 %v8436, 0.0
  %v8501 = vmax.f32 %v8437, 0.0
  %v8502 = vmax.f32 %v8438, 0.0
  %v8503 = vmax.f32 %v8439, 0.0
  %v8504 = vmax.f32 %v8440, 0.0
  %v8505 = vmax.f32 %v8441, 0.0
  %v8506 = vmax.f32 %v8442, 0.0
  %v8507 = vmax.f32 %v8443, 0.0
  %v8508 = vmax.f32 %v8444, 0.0
  %v8509 = vmax.f32 %v8445, 0.0
  %v8510 = vmax.f32 %v8446, 0.0
  %v8511 = vmax.f32 %v8447, 0.0
  %v8512 = vmax.f32 %v8448, 0.0
  %v8513 = vmax.f32 %v8449, 0.0
  %v8514 = vmax.f32 %v8450, 0.0
  %v8515 = vmax.f32 %v8451, 0.0
  %v8516 = vmax.f32 %v8452, 0.0
  %v8517 = vmax.f32 %v8453, 0.0
  %v8518 = vmax.f32 %v8454, 0.0
  %v8519 = vmax.f32 %v8455, 0.0
  %v8520 = vmax.f32 %v8456, 0.0
  %v8521 = vmax.f32 %v8457, 0.0
  %v8522 = vmax.f32 %v8458, 0.0
  %v8523 = vmax.f32 %v8459, 0.0
  %v8524 = vmax.f32 %v8460, 0.0
  %v8525 = vmax.f32 %v8461, 0.0
  %v8526 = vmax.f32 %v8462, 0.0
  %v8527 = vmax.f32 %v8463, 0.0
  %v8528 = vmax.f32 %v8464, 0.0
  %v8529 = vmax.f32 %v8465, 0.0
  %v8530 = vmax.f32 %v8466, 0.0
  %v8531 = vmax.f32 %v8467, 0.0
  %v8532 = vmax.f32 %v8468, 0.0
  %v8533 = vmax.f32 %v8469, 0.0
  %v8534 = vmax.f32 %v8470, 0.0
  %v8535 = vmax.f32 %v8471, 0.0
  %v8536 = vmax.f32 %v8472, 0.0
  %v8537 = vmax.f32 %v8473, 0.0
  %v8538 = vmax.f32 %v8474, 0.0
  %v8539 = vmax.f32 %v8475, 0.0
  %v8540 = vmax.f32 %v8476, 0.0
  %v8541 = vmax.f32 %v8477, 0.0
  %v8542 = vmax.f32 %v8478, 0.0
  %v8543 = vmax.f32 %v8479, 0.0
  %v8544 = vmax.f32 %v8480, 0.0
  %v8545 = vld [vmem:[%s9] sm:$0xf]
  %v8546 = vld [vmem:[%s10] sm:$0x1]
  %v8548 = vlaneseq
  %v8549 = vshrl.u32 %v8548, 7
  %v8550 = vsub.s32 0, %v8549
  %v8551 = vrot.slane %v8546, %v8550
  %v8554 = vsel %vm697, %v8481, 0
  %v8557 = vsel %vm697, %v8482, 0
  %v8560 = vsel %vm697, %v8483, 0
  %v8563 = vsel %vm697, %v8484, 0
  %v8566 = vsel %vm697, %v8485, 0
  %v8569 = vsel %vm697, %v8486, 0
  %v8572 = vsel %vm697, %v8487, 0
  %v8575 = vsel %vm697, %v8488, 0
  %v8578 = vsel %vm697, %v8489, 0
  %v8581 = vsel %vm697, %v8490, 0
  %v8584 = vsel %vm697, %v8491, 0
  %v8587 = vsel %vm697, %v8492, 0
  %v8590 = vsel %vm697, %v8493, 0
  %v8593 = vsel %vm697, %v8494, 0
  %v8596 = vsel %vm697, %v8495, 0
  %v8599 = vsel %vm697, %v8496, 0
  %v8602 = vsel %vm697, %v8497, 0
  %v8605 = vsel %vm697, %v8498, 0
  %v8608 = vsel %vm697, %v8499, 0
  %v8611 = vsel %vm697, %v8500, 0
  %v8614 = vsel %vm697, %v8501, 0
  %v8617 = vsel %vm697, %v8502, 0
  %v8620 = vsel %vm697, %v8503, 0
  %v8623 = vsel %vm697, %v8504, 0
  %v8626 = vsel %vm697, %v8505, 0
  %v8629 = vsel %vm697, %v8506, 0
  %v8632 = vsel %vm697, %v8507, 0
  %v8635 = vsel %vm697, %v8508, 0
  %v8638 = vsel %vm697, %v8509, 0
  %v8641 = vsel %vm697, %v8510, 0
  %v8644 = vsel %vm697, %v8511, 0
  %v8647 = vsel %vm697, %v8512, 0
  %v8650 = vsel %vm697, %v8513, 0
  %v8653 = vsel %vm697, %v8514, 0
  %v8656 = vsel %vm697, %v8515, 0
  %v8659 = vsel %vm697, %v8516, 0
  %v8662 = vsel %vm697, %v8517, 0
  %v8665 = vsel %vm697, %v8518, 0
  %v8668 = vsel %vm697, %v8519, 0
  %v8671 = vsel %vm697, %v8520, 0
  %v8674 = vsel %vm697, %v8521, 0
  %v8677 = vsel %vm697, %v8522, 0
  %v8680 = vsel %vm697, %v8523, 0
  %v8683 = vsel %vm697, %v8524, 0
  %v8686 = vsel %vm697, %v8525, 0
  %v8689 = vsel %vm697, %v8526, 0
  %v8692 = vsel %vm697, %v8527, 0
  %v8695 = vsel %vm697, %v8528, 0
  %v8698 = vsel %vm697, %v8529, 0
  %v8701 = vsel %vm697, %v8530, 0
  %v8704 = vsel %vm697, %v8531, 0
  %v8707 = vsel %vm697, %v8532, 0
  %v8710 = vsel %vm697, %v8533, 0
  %v8713 = vsel %vm697, %v8534, 0
  %v8716 = vsel %vm697, %v8535, 0
  %v8719 = vsel %vm697, %v8536, 0
  %v8722 = vsel %vm697, %v8537, 0
  %v8725 = vsel %vm697, %v8538, 0
  %v8728 = vsel %vm697, %v8539, 0
  %v8731 = vsel %vm697, %v8540, 0
  %v8734 = vsel %vm697, %v8541, 0
  %v8737 = vsel %vm697, %v8542, 0
  %v8740 = vsel %vm697, %v8543, 0
  %v8743 = vsel %vm697, %v8544, 0
  %v8746 = vsel %vm1864, %v8545, 0
  %8748 = vmatprep.subr.mxu0 0.0
  %8749 = vmatpush1.msra.mxu0 0.0
  %8750 = vmatprep.subr.mxu0 0.0
  %8751 = vmatpush1.msra.mxu0 0.0
  %8752 = vmatprep.subr.mxu0 0.0
  %8753 = vmatpush1.msra.mxu0 0.0
  %8754 = vmatprep.subr.mxu0 0.0
  %8755 = vmatpush1.msra.mxu0 0.0
  %8756 = vmatprep.subr.mxu0 0.0
  %8757 = vmatpush1.msra.mxu0 0.0
  %8758 = vmatprep.subr.mxu0 0.0
  %8759 = vmatpush1.msra.mxu0 0.0
  %8760 = vmatprep.subr.mxu0 0.0
  %8761 = vmatpush1.msra.mxu0 0.0
  %8762 = vmatprep.subr.mxu0 0.0
  %8763 = vmatpush1.msra.mxu0 0.0
  %8764 = vmatprep.subr.mxu0 0.0
  %8765 = vmatpush1.msra.mxu0 0.0
  %8766 = vmatprep.subr.mxu0 0.0
  %8767 = vmatpush1.msra.mxu0 0.0
  %8768 = vmatprep.subr.mxu0 0.0
  %8769 = vmatpush1.msra.mxu0 0.0
  %8770 = vmatprep.subr.mxu0 0.0
  %8771 = vmatpush1.msra.mxu0 0.0
  %8772 = vmatprep.subr.mxu0 0.0
  %8773 = vmatpush1.msra.mxu0 0.0
  %8774 = vmatprep.subr.mxu0 0.0
  %8775 = vmatpush1.msra.mxu0 0.0
  %8776 = vmatprep.subr.mxu0 0.0
  %8777 = vmatpush1.msra.mxu0 0.0
  %8778 = vmatprep.subr.mxu0 0.0
  %8779 = vmatpush1.msra.mxu0 %v8746
  %8780 = vmatprep.subr.mxu0 0.0
  %8781 = vmatpush2.msra.mxu0 0.0
  %8782 = vmatprep.subr.mxu0 0.0
  %8783 = vmatpush2.msra.mxu0 0.0
  %8784 = vmatprep.subr.mxu0 0.0
  %8785 = vmatpush2.msra.mxu0 0.0
  %8786 = vmatprep.subr.mxu0 0.0
  %8787 = vmatpush2.msra.mxu0 0.0
  %8788 = vmatprep.subr.mxu0 0.0
  %8789 = vmatpush2.msra.mxu0 0.0
  %8790 = vmatprep.subr.mxu0 0.0
  %8791 = vmatpush2.msra.mxu0 0.0
  %8792 = vmatprep.subr.mxu0 0.0
  %8793 = vmatpush2.msra.mxu0 0.0
  %8794 = vmatprep.subr.mxu0 0.0
  %8795 = vmatpush2.msra.mxu0 0.0
  %8796 = vmatprep.subr.mxu0 0.0
  %8797 = vmatpush2.msra.mxu0 0.0
  %8798 = vmatprep.subr.mxu0 0.0
  %8799 = vmatpush2.msra.mxu0 0.0
  %8800 = vmatprep.subr.mxu0 0.0
  %8801 = vmatpush2.msra.mxu0 0.0
  %8802 = vmatprep.subr.mxu0 0.0
  %8803 = vmatpush2.msra.mxu0 0.0
  %8804 = vmatprep.subr.mxu0 0.0
  %8805 = vmatpush2.msra.mxu0 0.0
  %8806 = vmatprep.subr.mxu0 0.0
  %8807 = vmatpush2.msra.mxu0 0.0
  %8808 = vmatprep.subr.mxu0 0.0
  %8809 = vmatpush2.msra.mxu0 0.0
  %8810 = vmatprep.subr.mxu0 0.0
  %8811 = vmatpush2.msra.mxu0 0.0
  %8812 = vmatprep.mubr.f32.mxu0 0.0
  %8813 = vmatmul.mubr.f32.gmra.mxu0 %v8554
  %v8814 = vpop.f32.mrf.mxu0
  %v8815 = vadd.f32 %v8551, %v8814
  %v8816 = vpop.f32.mrf.mxu0
  %8817 = vmatprep.mubr.f32.mxu0 0.0
  %8818 = vmatmul.mubr.f32.gmra.mxu0 %v8557
  %v8819 = vpop.f32.mrf.mxu0
  %v8820 = vadd.f32 %v8551, %v8819
  %v8821 = vpop.f32.mrf.mxu0
  %8822 = vmatprep.mubr.f32.mxu0 0.0
  %8823 = vmatmul.mubr.f32.gmra.mxu0 %v8560
  %v8824 = vpop.f32.mrf.mxu0
  %v8825 = vadd.f32 %v8551, %v8824
  %v8826 = vpop.f32.mrf.mxu0
  %8827 = vmatprep.mubr.f32.mxu0 0.0
  %8828 = vmatmul.mubr.f32.gmra.mxu0 %v8563
  %v8829 = vpop.f32.mrf.mxu0
  %v8830 = vadd.f32 %v8551, %v8829
  %v8831 = vpop.f32.mrf.mxu0
  %8832 = vmatprep.mubr.f32.mxu0 0.0
  %8833 = vmatmul.mubr.f32.gmra.mxu0 %v8566
  %v8834 = vpop.f32.mrf.mxu0
  %v8835 = vadd.f32 %v8551, %v8834
  %v8836 = vpop.f32.mrf.mxu0
  %8837 = vmatprep.mubr.f32.mxu0 0.0
  %8838 = vmatmul.mubr.f32.gmra.mxu0 %v8569
  %v8839 = vpop.f32.mrf.mxu0
  %v8840 = vadd.f32 %v8551, %v8839
  %v8841 = vpop.f32.mrf.mxu0
  %8842 = vmatprep.mubr.f32.mxu0 0.0
  %8843 = vmatmul.mubr.f32.gmra.mxu0 %v8572
  %v8844 = vpop.f32.mrf.mxu0
  %v8845 = vadd.f32 %v8551, %v8844
  %v8846 = vpop.f32.mrf.mxu0
  %8847 = vmatprep.mubr.f32.mxu0 0.0
  %8848 = vmatmul.mubr.f32.gmra.mxu0 %v8575
  %v8849 = vpop.f32.mrf.mxu0
  %v8850 = vadd.f32 %v8551, %v8849
  %v8851 = vpop.f32.mrf.mxu0
  %8852 = vmatprep.mubr.f32.mxu0 0.0
  %8853 = vmatmul.mubr.f32.gmra.mxu0 %v8578
  %v8854 = vpop.f32.mrf.mxu0
  %v8855 = vadd.f32 %v8551, %v8854
  %v8856 = vpop.f32.mrf.mxu0
  %8857 = vmatprep.mubr.f32.mxu0 0.0
  %8858 = vmatmul.mubr.f32.gmra.mxu0 %v8581
  %v8859 = vpop.f32.mrf.mxu0
  %v8860 = vadd.f32 %v8551, %v8859
  %v8861 = vpop.f32.mrf.mxu0
  %8862 = vmatprep.mubr.f32.mxu0 0.0
  %8863 = vmatmul.mubr.f32.gmra.mxu0 %v8584
  %v8864 = vpop.f32.mrf.mxu0
  %v8865 = vadd.f32 %v8551, %v8864
  %v8866 = vpop.f32.mrf.mxu0
  %8867 = vmatprep.mubr.f32.mxu0 0.0
  %8868 = vmatmul.mubr.f32.gmra.mxu0 %v8587
  %v8869 = vpop.f32.mrf.mxu0
  %v8870 = vadd.f32 %v8551, %v8869
  %v8871 = vpop.f32.mrf.mxu0
  %8872 = vmatprep.mubr.f32.mxu0 0.0
  %8873 = vmatmul.mubr.f32.gmra.mxu0 %v8590
  %v8874 = vpop.f32.mrf.mxu0
  %v8875 = vadd.f32 %v8551, %v8874
  %v8876 = vpop.f32.mrf.mxu0
  %8877 = vmatprep.mubr.f32.mxu0 0.0
  %8878 = vmatmul.mubr.f32.gmra.mxu0 %v8593
  %v8879 = vpop.f32.mrf.mxu0
  %v8880 = vadd.f32 %v8551, %v8879
  %v8881 = vpop.f32.mrf.mxu0
  %8882 = vmatprep.mubr.f32.mxu0 0.0
  %8883 = vmatmul.mubr.f32.gmra.mxu0 %v8596
  %v8884 = vpop.f32.mrf.mxu0
  %v8885 = vadd.f32 %v8551, %v8884
  %v8886 = vpop.f32.mrf.mxu0
  %8887 = vmatprep.mubr.f32.mxu0 0.0
  %8888 = vmatmul.mubr.f32.gmra.mxu0 %v8599
  %v8889 = vpop.f32.mrf.mxu0
  %v8890 = vadd.f32 %v8551, %v8889
  %v8891 = vpop.f32.mrf.mxu0
  %8892 = vmatprep.mubr.f32.mxu0 0.0
  %8893 = vmatmul.mubr.f32.gmra.mxu0 %v8602
  %v8894 = vpop.f32.mrf.mxu0
  %v8895 = vadd.f32 %v8551, %v8894
  %v8896 = vpop.f32.mrf.mxu0
  %8897 = vmatprep.mubr.f32.mxu0 0.0
  %8898 = vmatmul.mubr.f32.gmra.mxu0 %v8605
  %v8899 = vpop.f32.mrf.mxu0
  %v8900 = vadd.f32 %v8551, %v8899
  %v8901 = vpop.f32.mrf.mxu0
  %8902 = vmatprep.mubr.f32.mxu0 0.0
  %8903 = vmatmul.mubr.f32.gmra.mxu0 %v8608
  %v8904 = vpop.f32.mrf.mxu0
  %v8905 = vadd.f32 %v8551, %v8904
  %v8906 = vpop.f32.mrf.mxu0
  %8907 = vmatprep.mubr.f32.mxu0 0.0
  %8908 = vmatmul.mubr.f32.gmra.mxu0 %v8611
  %v8909 = vpop.f32.mrf.mxu0
  %v8910 = vadd.f32 %v8551, %v8909
  %v8911 = vpop.f32.mrf.mxu0
  %8912 = vmatprep.mubr.f32.mxu0 0.0
  %8913 = vmatmul.mubr.f32.gmra.mxu0 %v8614
  %v8914 = vpop.f32.mrf.mxu0
  %v8915 = vadd.f32 %v8551, %v8914
  %v8916 = vpop.f32.mrf.mxu0
  %8917 = vmatprep.mubr.f32.mxu0 0.0
  %8918 = vmatmul.mubr.f32.gmra.mxu0 %v8617
  %v8919 = vpop.f32.mrf.mxu0
  %v8920 = vadd.f32 %v8551, %v8919
  %v8921 = vpop.f32.mrf.mxu0
  %8922 = vmatprep.mubr.f32.mxu0 0.0
  %8923 = vmatmul.mubr.f32.gmra.mxu0 %v8620
  %v8924 = vpop.f32.mrf.mxu0
  %v8925 = vadd.f32 %v8551, %v8924
  %v8926 = vpop.f32.mrf.mxu0
  %8927 = vmatprep.mubr.f32.mxu0 0.0
  %8928 = vmatmul.mubr.f32.gmra.mxu0 %v8623
  %v8929 = vpop.f32.mrf.mxu0
  %v8930 = vadd.f32 %v8551, %v8929
  %v8931 = vpop.f32.mrf.mxu0
  %8932 = vmatprep.mubr.f32.mxu0 0.0
  %8933 = vmatmul.mubr.f32.gmra.mxu0 %v8626
  %v8934 = vpop.f32.mrf.mxu0
  %v8935 = vadd.f32 %v8551, %v8934
  %v8936 = vpop.f32.mrf.mxu0
  %8937 = vmatprep.mubr.f32.mxu0 0.0
  %8938 = vmatmul.mubr.f32.gmra.mxu0 %v8629
  %v8939 = vpop.f32.mrf.mxu0
  %v8940 = vadd.f32 %v8551, %v8939
  %v8941 = vpop.f32.mrf.mxu0
  %8942 = vmatprep.mubr.f32.mxu0 0.0
  %8943 = vmatmul.mubr.f32.gmra.mxu0 %v8632
  %v8944 = vpop.f32.mrf.mxu0
  %v8945 = vadd.f32 %v8551, %v8944
  %v8946 = vpop.f32.mrf.mxu0
  %8947 = vmatprep.mubr.f32.mxu0 0.0
  %8948 = vmatmul.mubr.f32.gmra.mxu0 %v8635
  %v8949 = vpop.f32.mrf.mxu0
  %v8950 = vadd.f32 %v8551, %v8949
  %v8951 = vpop.f32.mrf.mxu0
  %8952 = vmatprep.mubr.f32.mxu0 0.0
  %8953 = vmatmul.mubr.f32.gmra.mxu0 %v8638
  %v8954 = vpop.f32.mrf.mxu0
  %v8955 = vadd.f32 %v8551, %v8954
  %v8956 = vpop.f32.mrf.mxu0
  %8957 = vmatprep.mubr.f32.mxu0 0.0
  %8958 = vmatmul.mubr.f32.gmra.mxu0 %v8641
  %v8959 = vpop.f32.mrf.mxu0
  %v8960 = vadd.f32 %v8551, %v8959
  %v8961 = vpop.f32.mrf.mxu0
  %8962 = vmatprep.mubr.f32.mxu0 0.0
  %8963 = vmatmul.mubr.f32.gmra.mxu0 %v8644
  %v8964 = vpop.f32.mrf.mxu0
  %v8965 = vadd.f32 %v8551, %v8964
  %v8966 = vpop.f32.mrf.mxu0
  %8967 = vmatprep.mubr.f32.mxu0 0.0
  %8968 = vmatmul.mubr.f32.gmra.mxu0 %v8647
  %v8969 = vpop.f32.mrf.mxu0
  %v8970 = vadd.f32 %v8551, %v8969
  %v8971 = vpop.f32.mrf.mxu0
  %8972 = vmatprep.mubr.f32.mxu0 0.0
  %8973 = vmatmul.mubr.f32.gmra.mxu0 %v8650
  %v8974 = vpop.f32.mrf.mxu0
  %v8975 = vadd.f32 %v8551, %v8974
  %v8976 = vpop.f32.mrf.mxu0
  %8977 = vmatprep.mubr.f32.mxu0 0.0
  %8978 = vmatmul.mubr.f32.gmra.mxu0 %v8653
  %v8979 = vpop.f32.mrf.mxu0
  %v8980 = vadd.f32 %v8551, %v8979
  %v8981 = vpop.f32.mrf.mxu0
  %8982 = vmatprep.mubr.f32.mxu0 0.0
  %8983 = vmatmul.mubr.f32.gmra.mxu0 %v8656
  %v8984 = vpop.f32.mrf.mxu0
  %v8985 = vadd.f32 %v8551, %v8984
  %v8986 = vpop.f32.mrf.mxu0
  %8987 = vmatprep.mubr.f32.mxu0 0.0
  %8988 = vmatmul.mubr.f32.gmra.mxu0 %v8659
  %v8989 = vpop.f32.mrf.mxu0
  %v8990 = vadd.f32 %v8551, %v8989
  %v8991 = vpop.f32.mrf.mxu0
  %8992 = vmatprep.mubr.f32.mxu0 0.0
  %8993 = vmatmul.mubr.f32.gmra.mxu0 %v8662
  %v8994 = vpop.f32.mrf.mxu0
  %v8995 = vadd.f32 %v8551, %v8994
  %v8996 = vpop.f32.mrf.mxu0
  %8997 = vmatprep.mubr.f32.mxu0 0.0
  %8998 = vmatmul.mubr.f32.gmra.mxu0 %v8665
  %v8999 = vpop.f32.mrf.mxu0
  %v9000 = vadd.f32 %v8551, %v8999
  %v9001 = vpop.f32.mrf.mxu0
  %9002 = vmatprep.mubr.f32.mxu0 0.0
  %9003 = vmatmul.mubr.f32.gmra.mxu0 %v8668
  %v9004 = vpop.f32.mrf.mxu0
  %v9005 = vadd.f32 %v8551, %v9004
  %v9006 = vpop.f32.mrf.mxu0
  %9007 = vmatprep.mubr.f32.mxu0 0.0
  %9008 = vmatmul.mubr.f32.gmra.mxu0 %v8671
  %v9009 = vpop.f32.mrf.mxu0
  %v9010 = vadd.f32 %v8551, %v9009
  %v9011 = vpop.f32.mrf.mxu0
  %9012 = vmatprep.mubr.f32.mxu0 0.0
  %9013 = vmatmul.mubr.f32.gmra.mxu0 %v8674
  %v9014 = vpop.f32.mrf.mxu0
  %v9015 = vadd.f32 %v8551, %v9014
  %v9016 = vpop.f32.mrf.mxu0
  %9017 = vmatprep.mubr.f32.mxu0 0.0
  %9018 = vmatmul.mubr.f32.gmra.mxu0 %v8677
  %v9019 = vpop.f32.mrf.mxu0
  %v9020 = vadd.f32 %v8551, %v9019
  %v9021 = vpop.f32.mrf.mxu0
  %9022 = vmatprep.mubr.f32.mxu0 0.0
  %9023 = vmatmul.mubr.f32.gmra.mxu0 %v8680
  %v9024 = vpop.f32.mrf.mxu0
  %v9025 = vadd.f32 %v8551, %v9024
  %v9026 = vpop.f32.mrf.mxu0
  %9027 = vmatprep.mubr.f32.mxu0 0.0
  %9028 = vmatmul.mubr.f32.gmra.mxu0 %v8683
  %v9029 = vpop.f32.mrf.mxu0
  %v9030 = vadd.f32 %v8551, %v9029
  %v9031 = vpop.f32.mrf.mxu0
  %9032 = vmatprep.mubr.f32.mxu0 0.0
  %9033 = vmatmul.mubr.f32.gmra.mxu0 %v8686
  %v9034 = vpop.f32.mrf.mxu0
  %v9035 = vadd.f32 %v8551, %v9034
  %v9036 = vpop.f32.mrf.mxu0
  %9037 = vmatprep.mubr.f32.mxu0 0.0
  %9038 = vmatmul.mubr.f32.gmra.mxu0 %v8689
  %v9039 = vpop.f32.mrf.mxu0
  %v9040 = vadd.f32 %v8551, %v9039
  %v9041 = vpop.f32.mrf.mxu0
  %9042 = vmatprep.mubr.f32.mxu0 0.0
  %9043 = vmatmul.mubr.f32.gmra.mxu0 %v8692
  %v9044 = vpop.f32.mrf.mxu0
  %v9045 = vadd.f32 %v8551, %v9044
  %v9046 = vpop.f32.mrf.mxu0
  %9047 = vmatprep.mubr.f32.mxu0 0.0
  %9048 = vmatmul.mubr.f32.gmra.mxu0 %v8695
  %v9049 = vpop.f32.mrf.mxu0
  %v9050 = vadd.f32 %v8551, %v9049
  %v9051 = vpop.f32.mrf.mxu0
  %9052 = vmatprep.mubr.f32.mxu0 0.0
  %9053 = vmatmul.mubr.f32.gmra.mxu0 %v8698
  %v9054 = vpop.f32.mrf.mxu0
  %v9055 = vadd.f32 %v8551, %v9054
  %v9056 = vpop.f32.mrf.mxu0
  %9057 = vmatprep.mubr.f32.mxu0 0.0
  %9058 = vmatmul.mubr.f32.gmra.mxu0 %v8701
  %v9059 = vpop.f32.mrf.mxu0
  %v9060 = vadd.f32 %v8551, %v9059
  %v9061 = vpop.f32.mrf.mxu0
  %9062 = vmatprep.mubr.f32.mxu0 0.0
  %9063 = vmatmul.mubr.f32.gmra.mxu0 %v8704
  %v9064 = vpop.f32.mrf.mxu0
  %v9065 = vadd.f32 %v8551, %v9064
  %v9066 = vpop.f32.mrf.mxu0
  %9067 = vmatprep.mubr.f32.mxu0 0.0
  %9068 = vmatmul.mubr.f32.gmra.mxu0 %v8707
  %v9069 = vpop.f32.mrf.mxu0
  %v9070 = vadd.f32 %v8551, %v9069
  %v9071 = vpop.f32.mrf.mxu0
  %9072 = vmatprep.mubr.f32.mxu0 0.0
  %9073 = vmatmul.mubr.f32.gmra.mxu0 %v8710
  %v9074 = vpop.f32.mrf.mxu0
  %v9075 = vadd.f32 %v8551, %v9074
  %v9076 = vpop.f32.mrf.mxu0
  %9077 = vmatprep.mubr.f32.mxu0 0.0
  %9078 = vmatmul.mubr.f32.gmra.mxu0 %v8713
  %v9079 = vpop.f32.mrf.mxu0
  %v9080 = vadd.f32 %v8551, %v9079
  %v9081 = vpop.f32.mrf.mxu0
  %9082 = vmatprep.mubr.f32.mxu0 0.0
  %9083 = vmatmul.mubr.f32.gmra.mxu0 %v8716
  %v9084 = vpop.f32.mrf.mxu0
  %v9085 = vadd.f32 %v8551, %v9084
  %v9086 = vpop.f32.mrf.mxu0
  %9087 = vmatprep.mubr.f32.mxu0 0.0
  %9088 = vmatmul.mubr.f32.gmra.mxu0 %v8719
  %v9089 = vpop.f32.mrf.mxu0
  %v9090 = vadd.f32 %v8551, %v9089
  %v9091 = vpop.f32.mrf.mxu0
  %9092 = vmatprep.mubr.f32.mxu0 0.0
  %9093 = vmatmul.mubr.f32.gmra.mxu0 %v8722
  %v9094 = vpop.f32.mrf.mxu0
  %v9095 = vadd.f32 %v8551, %v9094
  %v9096 = vpop.f32.mrf.mxu0
  %9097 = vmatprep.mubr.f32.mxu0 0.0
  %9098 = vmatmul.mubr.f32.gmra.mxu0 %v8725
  %v9099 = vpop.f32.mrf.mxu0
  %v9100 = vadd.f32 %v8551, %v9099
  %v9101 = vpop.f32.mrf.mxu0
  %9102 = vmatprep.mubr.f32.mxu0 0.0
  %9103 = vmatmul.mubr.f32.gmra.mxu0 %v8728
  %v9104 = vpop.f32.mrf.mxu0
  %v9105 = vadd.f32 %v8551, %v9104
  %v9106 = vpop.f32.mrf.mxu0
  %9107 = vmatprep.mubr.f32.mxu0 0.0
  %9108 = vmatmul.mubr.f32.gmra.mxu0 %v8731
  %v9109 = vpop.f32.mrf.mxu0
  %v9110 = vadd.f32 %v8551, %v9109
  %v9111 = vpop.f32.mrf.mxu0
  %9112 = vmatprep.mubr.f32.mxu0 0.0
  %9113 = vmatmul.mubr.f32.gmra.mxu0 %v8734
  %v9114 = vpop.f32.mrf.mxu0
  %v9115 = vadd.f32 %v8551, %v9114
  %v9116 = vpop.f32.mrf.mxu0
  %9117 = vmatprep.mubr.f32.mxu0 0.0
  %9118 = vmatmul.mubr.f32.gmra.mxu0 %v8737
  %v9119 = vpop.f32.mrf.mxu0
  %v9120 = vadd.f32 %v8551, %v9119
  %v9121 = vpop.f32.mrf.mxu0
  %9122 = vmatprep.mubr.f32.mxu0 0.0
  %9123 = vmatmul.mubr.f32.gmra.mxu0 %v8740
  %v9124 = vpop.f32.mrf.mxu0
  %v9125 = vadd.f32 %v8551, %v9124
  %v9126 = vpop.f32.mrf.mxu0
  %9127 = vmatprep.mubr.f32.mxu0 0.0
  %9128 = vmatmul.mubr.f32.gmra.mxu0 %v8743
  %v9129 = vpop.f32.mrf.mxu0
  %v9130 = vadd.f32 %v8551, %v9129
  %v9131 = vpop.f32.mrf.mxu0
  %9132 = vdwg.mxu0
  %v9133 = vld [vmem:[%s11] sm:$0x1]
  %v9134 = vld [vmem:[%s12] sm:$0x1]
  %v9135 = vsel %vm117, %v8815, 0.0
  %v9136 = vsel %vm117, %v8820, 0.0
  %v9137 = vadd.f32 %v9135, %v9136
  %v9138 = vsel %vm117, %v8825, 0.0
  %v9139 = vadd.f32 %v9137, %v9138
  %v9140 = vsel %vm117, %v8830, 0.0
  %v9141 = vadd.f32 %v9139, %v9140
  %v9142 = vsel %vm117, %v8835, 0.0
  %v9143 = vadd.f32 %v9141, %v9142
  %v9144 = vsel %vm117, %v8840, 0.0
  %v9145 = vadd.f32 %v9143, %v9144
  %v9146 = vsel %vm117, %v8845, 0.0
  %v9147 = vadd.f32 %v9145, %v9146
  %v9148 = vsel %vm117, %v8850, 0.0
  %v9149 = vadd.f32 %v9147, %v9148
  %v9150 = vsel %vm117, %v8855, 0.0
  %v9151 = vadd.f32 %v9149, %v9150
  %v9152 = vsel %vm117, %v8860, 0.0
  %v9153 = vadd.f32 %v9151, %v9152
  %v9154 = vsel %vm117, %v8865, 0.0
  %v9155 = vadd.f32 %v9153, %v9154
  %v9156 = vsel %vm117, %v8870, 0.0
  %v9157 = vadd.f32 %v9155, %v9156
  %v9158 = vsel %vm117, %v8875, 0.0
  %v9159 = vadd.f32 %v9157, %v9158
  %v9160 = vsel %vm117, %v8880, 0.0
  %v9161 = vadd.f32 %v9159, %v9160
  %v9162 = vsel %vm117, %v8885, 0.0
  %v9163 = vadd.f32 %v9161, %v9162
  %v9164 = vsel %vm117, %v8890, 0.0
  %v9165 = vadd.f32 %v9163, %v9164
  %v9166 = vsel %vm117, %v8895, 0.0
  %v9167 = vadd.f32 %v9165, %v9166
  %v9168 = vsel %vm117, %v8900, 0.0
  %v9169 = vadd.f32 %v9167, %v9168
  %v9170 = vsel %vm117, %v8905, 0.0
  %v9171 = vadd.f32 %v9169, %v9170
  %v9172 = vsel %vm117, %v8910, 0.0
  %v9173 = vadd.f32 %v9171, %v9172
  %v9174 = vsel %vm117, %v8915, 0.0
  %v9175 = vadd.f32 %v9173, %v9174
  %v9176 = vsel %vm117, %v8920, 0.0
  %v9177 = vadd.f32 %v9175, %v9176
  %v9178 = vsel %vm117, %v8925, 0.0
  %v9179 = vadd.f32 %v9177, %v9178
  %v9180 = vsel %vm117, %v8930, 0.0
  %v9181 = vadd.f32 %v9179, %v9180
  %v9182 = vsel %vm117, %v8935, 0.0
  %v9183 = vadd.f32 %v9181, %v9182
  %v9184 = vsel %vm117, %v8940, 0.0
  %v9185 = vadd.f32 %v9183, %v9184
  %v9186 = vsel %vm117, %v8945, 0.0
  %v9187 = vadd.f32 %v9185, %v9186
  %v9188 = vsel %vm117, %v8950, 0.0
  %v9189 = vadd.f32 %v9187, %v9188
  %v9190 = vsel %vm117, %v8955, 0.0
  %v9191 = vadd.f32 %v9189, %v9190
  %v9192 = vsel %vm117, %v8960, 0.0
  %v9193 = vadd.f32 %v9191, %v9192
  %v9194 = vsel %vm117, %v8965, 0.0
  %v9195 = vadd.f32 %v9193, %v9194
  %v9196 = vsel %vm117, %v8970, 0.0
  %v9197 = vadd.f32 %v9195, %v9196
  %v9198 = vsel %vm117, %v8975, 0.0
  %v9199 = vadd.f32 %v9197, %v9198
  %v9200 = vsel %vm117, %v8980, 0.0
  %v9201 = vadd.f32 %v9199, %v9200
  %v9202 = vsel %vm117, %v8985, 0.0
  %v9203 = vadd.f32 %v9201, %v9202
  %v9204 = vsel %vm117, %v8990, 0.0
  %v9205 = vadd.f32 %v9203, %v9204
  %v9206 = vsel %vm117, %v8995, 0.0
  %v9207 = vadd.f32 %v9205, %v9206
  %v9208 = vsel %vm117, %v9000, 0.0
  %v9209 = vadd.f32 %v9207, %v9208
  %v9210 = vsel %vm117, %v9005, 0.0
  %v9211 = vadd.f32 %v9209, %v9210
  %v9212 = vsel %vm117, %v9010, 0.0
  %v9213 = vadd.f32 %v9211, %v9212
  %v9214 = vsel %vm117, %v9015, 0.0
  %v9215 = vadd.f32 %v9213, %v9214
  %v9216 = vsel %vm117, %v9020, 0.0
  %v9217 = vadd.f32 %v9215, %v9216
  %v9218 = vsel %vm117, %v9025, 0.0
  %v9219 = vadd.f32 %v9217, %v9218
  %v9220 = vsel %vm117, %v9030, 0.0
  %v9221 = vadd.f32 %v9219, %v9220
  %v9222 = vsel %vm117, %v9035, 0.0
  %v9223 = vadd.f32 %v9221, %v9222
  %v9224 = vsel %vm117, %v9040, 0.0
  %v9225 = vadd.f32 %v9223, %v9224
  %v9226 = vsel %vm117, %v9045, 0.0
  %v9227 = vadd.f32 %v9225, %v9226
  %v9228 = vsel %vm117, %v9050, 0.0
  %v9229 = vadd.f32 %v9227, %v9228
  %v9230 = vsel %vm117, %v9055, 0.0
  %v9231 = vadd.f32 %v9229, %v9230
  %v9232 = vsel %vm117, %v9060, 0.0
  %v9233 = vadd.f32 %v9231, %v9232
  %v9234 = vsel %vm117, %v9065, 0.0
  %v9235 = vadd.f32 %v9233, %v9234
  %v9236 = vsel %vm117, %v9070, 0.0
  %v9237 = vadd.f32 %v9235, %v9236
  %v9238 = vsel %vm117, %v9075, 0.0
  %v9239 = vadd.f32 %v9237, %v9238
  %v9240 = vsel %vm117, %v9080, 0.0
  %v9241 = vadd.f32 %v9239, %v9240
  %v9242 = vsel %vm117, %v9085, 0.0
  %v9243 = vadd.f32 %v9241, %v9242
  %v9244 = vsel %vm117, %v9090, 0.0
  %v9245 = vadd.f32 %v9243, %v9244
  %v9246 = vsel %vm117, %v9095, 0.0
  %v9247 = vadd.f32 %v9245, %v9246
  %v9248 = vsel %vm117, %v9100, 0.0
  %v9249 = vadd.f32 %v9247, %v9248
  %v9250 = vsel %vm117, %v9105, 0.0
  %v9251 = vadd.f32 %v9249, %v9250
  %v9252 = vsel %vm117, %v9110, 0.0
  %v9253 = vadd.f32 %v9251, %v9252
  %v9254 = vsel %vm117, %v9115, 0.0
  %v9255 = vadd.f32 %v9253, %v9254
  %v9256 = vsel %vm117, %v9120, 0.0
  %v9257 = vadd.f32 %v9255, %v9256
  %v9258 = vsel %vm117, %v9125, 0.0
  %v9259 = vadd.f32 %v9257, %v9258
  %v9260 = vsel %vm117, %v9130, 0.0
  %v9261 = vadd.f32 %v9259, %v9260
  %v9262 = vrot.slane %v9261, 4
  %v9263 = vadd.f32 %v9261, %v9262
  %v9264 = vrot.slane %v9263, 2
  %v9265 = vadd.f32 %v9263, %v9264
  %v9266 = vrot.slane %v9265, 1
  %v9267 = vadd.f32 %v9265, %v9266
  %v9268 = vmul.f32 %v9267, %v831
  %v9269 = vmul.f32 %v8815, %v8815
  %v9270 = vmul.f32 %v8820, %v8820
  %v9271 = vmul.f32 %v8825, %v8825
  %v9272 = vmul.f32 %v8830, %v8830
  %v9273 = vmul.f32 %v8835, %v8835
  %v9274 = vmul.f32 %v8840, %v8840
  %v9275 = vmul.f32 %v8845, %v8845
  %v9276 = vmul.f32 %v8850, %v8850
  %v9277 = vmul.f32 %v8855, %v8855
  %v9278 = vmul.f32 %v8860, %v8860
  %v9279 = vmul.f32 %v8865, %v8865
  %v9280 = vmul.f32 %v8870, %v8870
  %v9281 = vmul.f32 %v8875, %v8875
  %v9282 = vmul.f32 %v8880, %v8880
  %v9283 = vmul.f32 %v8885, %v8885
  %v9284 = vmul.f32 %v8890, %v8890
  %v9285 = vmul.f32 %v8895, %v8895
  %v9286 = vmul.f32 %v8900, %v8900
  %v9287 = vmul.f32 %v8905, %v8905
  %v9288 = vmul.f32 %v8910, %v8910
  %v9289 = vmul.f32 %v8915, %v8915
  %v9290 = vmul.f32 %v8920, %v8920
  %v9291 = vmul.f32 %v8925, %v8925
  %v9292 = vmul.f32 %v8930, %v8930
  %v9293 = vmul.f32 %v8935, %v8935
  %v9294 = vmul.f32 %v8940, %v8940
  %v9295 = vmul.f32 %v8945, %v8945
  %v9296 = vmul.f32 %v8950, %v8950
  %v9297 = vmul.f32 %v8955, %v8955
  %v9298 = vmul.f32 %v8960, %v8960
  %v9299 = vmul.f32 %v8965, %v8965
  %v9300 = vmul.f32 %v8970, %v8970
  %v9301 = vmul.f32 %v8975, %v8975
  %v9302 = vmul.f32 %v8980, %v8980
  %v9303 = vmul.f32 %v8985, %v8985
  %v9304 = vmul.f32 %v8990, %v8990
  %v9305 = vmul.f32 %v8995, %v8995
  %v9306 = vmul.f32 %v9000, %v9000
  %v9307 = vmul.f32 %v9005, %v9005
  %v9308 = vmul.f32 %v9010, %v9010
  %v9309 = vmul.f32 %v9015, %v9015
  %v9310 = vmul.f32 %v9020, %v9020
  %v9311 = vmul.f32 %v9025, %v9025
  %v9312 = vmul.f32 %v9030, %v9030
  %v9313 = vmul.f32 %v9035, %v9035
  %v9314 = vmul.f32 %v9040, %v9040
  %v9315 = vmul.f32 %v9045, %v9045
  %v9316 = vmul.f32 %v9050, %v9050
  %v9317 = vmul.f32 %v9055, %v9055
  %v9318 = vmul.f32 %v9060, %v9060
  %v9319 = vmul.f32 %v9065, %v9065
  %v9320 = vmul.f32 %v9070, %v9070
  %v9321 = vmul.f32 %v9075, %v9075
  %v9322 = vmul.f32 %v9080, %v9080
  %v9323 = vmul.f32 %v9085, %v9085
  %v9324 = vmul.f32 %v9090, %v9090
  %v9325 = vmul.f32 %v9095, %v9095
  %v9326 = vmul.f32 %v9100, %v9100
  %v9327 = vmul.f32 %v9105, %v9105
  %v9328 = vmul.f32 %v9110, %v9110
  %v9329 = vmul.f32 %v9115, %v9115
  %v9330 = vmul.f32 %v9120, %v9120
  %v9331 = vmul.f32 %v9125, %v9125
  %v9332 = vmul.f32 %v9130, %v9130
  %v9333 = vsel %vm117, %v9269, 0.0
  %v9334 = vsel %vm117, %v9270, 0.0
  %v9335 = vadd.f32 %v9333, %v9334
  %v9336 = vsel %vm117, %v9271, 0.0
  %v9337 = vadd.f32 %v9335, %v9336
  %v9338 = vsel %vm117, %v9272, 0.0
  %v9339 = vadd.f32 %v9337, %v9338
  %v9340 = vsel %vm117, %v9273, 0.0
  %v9341 = vadd.f32 %v9339, %v9340
  %v9342 = vsel %vm117, %v9274, 0.0
  %v9343 = vadd.f32 %v9341, %v9342
  %v9344 = vsel %vm117, %v9275, 0.0
  %v9345 = vadd.f32 %v9343, %v9344
  %v9346 = vsel %vm117, %v9276, 0.0
  %v9347 = vadd.f32 %v9345, %v9346
  %v9348 = vsel %vm117, %v9277, 0.0
  %v9349 = vadd.f32 %v9347, %v9348
  %v9350 = vsel %vm117, %v9278, 0.0
  %v9351 = vadd.f32 %v9349, %v9350
  %v9352 = vsel %vm117, %v9279, 0.0
  %v9353 = vadd.f32 %v9351, %v9352
  %v9354 = vsel %vm117, %v9280, 0.0
  %v9355 = vadd.f32 %v9353, %v9354
  %v9356 = vsel %vm117, %v9281, 0.0
  %v9357 = vadd.f32 %v9355, %v9356
  %v9358 = vsel %vm117, %v9282, 0.0
  %v9359 = vadd.f32 %v9357, %v9358
  %v9360 = vsel %vm117, %v9283, 0.0
  %v9361 = vadd.f32 %v9359, %v9360
  %v9362 = vsel %vm117, %v9284, 0.0
  %v9363 = vadd.f32 %v9361, %v9362
  %v9364 = vsel %vm117, %v9285, 0.0
  %v9365 = vadd.f32 %v9363, %v9364
  %v9366 = vsel %vm117, %v9286, 0.0
  %v9367 = vadd.f32 %v9365, %v9366
  %v9368 = vsel %vm117, %v9287, 0.0
  %v9369 = vadd.f32 %v9367, %v9368
  %v9370 = vsel %vm117, %v9288, 0.0
  %v9371 = vadd.f32 %v9369, %v9370
  %v9372 = vsel %vm117, %v9289, 0.0
  %v9373 = vadd.f32 %v9371, %v9372
  %v9374 = vsel %vm117, %v9290, 0.0
  %v9375 = vadd.f32 %v9373, %v9374
  %v9376 = vsel %vm117, %v9291, 0.0
  %v9377 = vadd.f32 %v9375, %v9376
  %v9378 = vsel %vm117, %v9292, 0.0
  %v9379 = vadd.f32 %v9377, %v9378
  %v9380 = vsel %vm117, %v9293, 0.0
  %v9381 = vadd.f32 %v9379, %v9380
  %v9382 = vsel %vm117, %v9294, 0.0
  %v9383 = vadd.f32 %v9381, %v9382
  %v9384 = vsel %vm117, %v9295, 0.0
  %v9385 = vadd.f32 %v9383, %v9384
  %v9386 = vsel %vm117, %v9296, 0.0
  %v9387 = vadd.f32 %v9385, %v9386
  %v9388 = vsel %vm117, %v9297, 0.0
  %v9389 = vadd.f32 %v9387, %v9388
  %v9390 = vsel %vm117, %v9298, 0.0
  %v9391 = vadd.f32 %v9389, %v9390
  %v9392 = vsel %vm117, %v9299, 0.0
  %v9393 = vadd.f32 %v9391, %v9392
  %v9394 = vsel %vm117, %v9300, 0.0
  %v9395 = vadd.f32 %v9393, %v9394
  %v9396 = vsel %vm117, %v9301, 0.0
  %v9397 = vadd.f32 %v9395, %v9396
  %v9398 = vsel %vm117, %v9302, 0.0
  %v9399 = vadd.f32 %v9397, %v9398
  %v9400 = vsel %vm117, %v9303, 0.0
  %v9401 = vadd.f32 %v9399, %v9400
  %v9402 = vsel %vm117, %v9304, 0.0
  %v9403 = vadd.f32 %v9401, %v9402
  %v9404 = vsel %vm117, %v9305, 0.0
  %v9405 = vadd.f32 %v9403, %v9404
  %v9406 = vsel %vm117, %v9306, 0.0
  %v9407 = vadd.f32 %v9405, %v9406
  %v9408 = vsel %vm117, %v9307, 0.0
  %v9409 = vadd.f32 %v9407, %v9408
  %v9410 = vsel %vm117, %v9308, 0.0
  %v9411 = vadd.f32 %v9409, %v9410
  %v9412 = vsel %vm117, %v9309, 0.0
  %v9413 = vadd.f32 %v9411, %v9412
  %v9414 = vsel %vm117, %v9310, 0.0
  %v9415 = vadd.f32 %v9413, %v9414
  %v9416 = vsel %vm117, %v9311, 0.0
  %v9417 = vadd.f32 %v9415, %v9416
  %v9418 = vsel %vm117, %v9312, 0.0
  %v9419 = vadd.f32 %v9417, %v9418
  %v9420 = vsel %vm117, %v9313, 0.0
  %v9421 = vadd.f32 %v9419, %v9420
  %v9422 = vsel %vm117, %v9314, 0.0
  %v9423 = vadd.f32 %v9421, %v9422
  %v9424 = vsel %vm117, %v9315, 0.0
  %v9425 = vadd.f32 %v9423, %v9424
  %v9426 = vsel %vm117, %v9316, 0.0
  %v9427 = vadd.f32 %v9425, %v9426
  %v9428 = vsel %vm117, %v9317, 0.0
  %v9429 = vadd.f32 %v9427, %v9428
  %v9430 = vsel %vm117, %v9318, 0.0
  %v9431 = vadd.f32 %v9429, %v9430
  %v9432 = vsel %vm117, %v9319, 0.0
  %v9433 = vadd.f32 %v9431, %v9432
  %v9434 = vsel %vm117, %v9320, 0.0
  %v9435 = vadd.f32 %v9433, %v9434
  %v9436 = vsel %vm117, %v9321, 0.0
  %v9437 = vadd.f32 %v9435, %v9436
  %v9438 = vsel %vm117, %v9322, 0.0
  %v9439 = vadd.f32 %v9437, %v9438
  %v9440 = vsel %vm117, %v9323, 0.0
  %v9441 = vadd.f32 %v9439, %v9440
  %v9442 = vsel %vm117, %v9324, 0.0
  %v9443 = vadd.f32 %v9441, %v9442
  %v9444 = vsel %vm117, %v9325, 0.0
  %v9445 = vadd.f32 %v9443, %v9444
  %v9446 = vsel %vm117, %v9326, 0.0
  %v9447 = vadd.f32 %v9445, %v9446
  %v9448 = vsel %vm117, %v9327, 0.0
  %v9449 = vadd.f32 %v9447, %v9448
  %v9450 = vsel %vm117, %v9328, 0.0
  %v9451 = vadd.f32 %v9449, %v9450
  %v9452 = vsel %vm117, %v9329, 0.0
  %v9453 = vadd.f32 %v9451, %v9452
  %v9454 = vsel %vm117, %v9330, 0.0
  %v9455 = vadd.f32 %v9453, %v9454
  %v9456 = vsel %vm117, %v9331, 0.0
  %v9457 = vadd.f32 %v9455, %v9456
  %v9458 = vsel %vm117, %v9332, 0.0
  %v9459 = vadd.f32 %v9457, %v9458
  %v9460 = vrot.slane %v9459, 4
  %v9461 = vadd.f32 %v9459, %v9460
  %v9462 = vrot.slane %v9461, 2
  %v9463 = vadd.f32 %v9461, %v9462
  %v9464 = vrot.slane %v9463, 1
  %v9465 = vadd.f32 %v9463, %v9464
  %v9466 = vmul.f32 %v9465, %v831
  %v9467 = vmul.f32 %v9268, %v9268
  %v9468 = vsub.f32 %v9466, %v9467
  %v9469 = vsub.f32 %v8815, %v9268
  %v9470 = vsub.f32 %v8820, %v9268
  %v9471 = vsub.f32 %v8825, %v9268
  %v9472 = vsub.f32 %v8830, %v9268
  %v9473 = vsub.f32 %v8835, %v9268
  %v9474 = vsub.f32 %v8840, %v9268
  %v9475 = vsub.f32 %v8845, %v9268
  %v9476 = vsub.f32 %v8850, %v9268
  %v9477 = vsub.f32 %v8855, %v9268
  %v9478 = vsub.f32 %v8860, %v9268
  %v9479 = vsub.f32 %v8865, %v9268
  %v9480 = vsub.f32 %v8870, %v9268
  %v9481 = vsub.f32 %v8875, %v9268
  %v9482 = vsub.f32 %v8880, %v9268
  %v9483 = vsub.f32 %v8885, %v9268
  %v9484 = vsub.f32 %v8890, %v9268
  %v9485 = vsub.f32 %v8895, %v9268
  %v9486 = vsub.f32 %v8900, %v9268
  %v9487 = vsub.f32 %v8905, %v9268
  %v9488 = vsub.f32 %v8910, %v9268
  %v9489 = vsub.f32 %v8915, %v9268
  %v9490 = vsub.f32 %v8920, %v9268
  %v9491 = vsub.f32 %v8925, %v9268
  %v9492 = vsub.f32 %v8930, %v9268
  %v9493 = vsub.f32 %v8935, %v9268
  %v9494 = vsub.f32 %v8940, %v9268
  %v9495 = vsub.f32 %v8945, %v9268
  %v9496 = vsub.f32 %v8950, %v9268
  %v9497 = vsub.f32 %v8955, %v9268
  %v9498 = vsub.f32 %v8960, %v9268
  %v9499 = vsub.f32 %v8965, %v9268
  %v9500 = vsub.f32 %v8970, %v9268
  %v9501 = vsub.f32 %v8975, %v9268
  %v9502 = vsub.f32 %v8980, %v9268
  %v9503 = vsub.f32 %v8985, %v9268
  %v9504 = vsub.f32 %v8990, %v9268
  %v9505 = vsub.f32 %v8995, %v9268
  %v9506 = vsub.f32 %v9000, %v9268
  %v9507 = vsub.f32 %v9005, %v9268
  %v9508 = vsub.f32 %v9010, %v9268
  %v9509 = vsub.f32 %v9015, %v9268
  %v9510 = vsub.f32 %v9020, %v9268
  %v9511 = vsub.f32 %v9025, %v9268
  %v9512 = vsub.f32 %v9030, %v9268
  %v9513 = vsub.f32 %v9035, %v9268
  %v9514 = vsub.f32 %v9040, %v9268
  %v9515 = vsub.f32 %v9045, %v9268
  %v9516 = vsub.f32 %v9050, %v9268
  %v9517 = vsub.f32 %v9055, %v9268
  %v9518 = vsub.f32 %v9060, %v9268
  %v9519 = vsub.f32 %v9065, %v9268
  %v9520 = vsub.f32 %v9070, %v9268
  %v9521 = vsub.f32 %v9075, %v9268
  %v9522 = vsub.f32 %v9080, %v9268
  %v9523 = vsub.f32 %v9085, %v9268
  %v9524 = vsub.f32 %v9090, %v9268
  %v9525 = vsub.f32 %v9095, %v9268
  %v9526 = vsub.f32 %v9100, %v9268
  %v9527 = vsub.f32 %v9105, %v9268
  %v9528 = vsub.f32 %v9110, %v9268
  %v9529 = vsub.f32 %v9115, %v9268
  %v9530 = vsub.f32 %v9120, %v9268
  %v9531 = vsub.f32 %v9125, %v9268
  %v9532 = vsub.f32 %v9130, %v9268
  %v9533 = vadd.f32 %v9468, 1e-05
  %v9534 = vrsqrt.pop %v9533
  %v9535 = vmul.f32 %v9469, %v9534
  %v9536 = vmul.f32 %v9470, %v9534
  %v9537 = vmul.f32 %v9471, %v9534
  %v9538 = vmul.f32 %v9472, %v9534
  %v9539 = vmul.f32 %v9473, %v9534
  %v9540 = vmul.f32 %v9474, %v9534
  %v9541 = vmul.f32 %v9475, %v9534
  %v9542 = vmul.f32 %v9476, %v9534
  %v9543 = vmul.f32 %v9477, %v9534
  %v9544 = vmul.f32 %v9478, %v9534
  %v9545 = vmul.f32 %v9479, %v9534
  %v9546 = vmul.f32 %v9480, %v9534
  %v9547 = vmul.f32 %v9481, %v9534
  %v9548 = vmul.f32 %v9482, %v9534
  %v9549 = vmul.f32 %v9483, %v9534
  %v9550 = vmul.f32 %v9484, %v9534
  %v9551 = vmul.f32 %v9485, %v9534
  %v9552 = vmul.f32 %v9486, %v9534
  %v9553 = vmul.f32 %v9487, %v9534
  %v9554 = vmul.f32 %v9488, %v9534
  %v9555 = vmul.f32 %v9489, %v9534
  %v9556 = vmul.f32 %v9490, %v9534
  %v9557 = vmul.f32 %v9491, %v9534
  %v9558 = vmul.f32 %v9492, %v9534
  %v9559 = vmul.f32 %v9493, %v9534
  %v9560 = vmul.f32 %v9494, %v9534
  %v9561 = vmul.f32 %v9495, %v9534
  %v9562 = vmul.f32 %v9496, %v9534
  %v9563 = vmul.f32 %v9497, %v9534
  %v9564 = vmul.f32 %v9498, %v9534
  %v9565 = vmul.f32 %v9499, %v9534
  %v9566 = vmul.f32 %v9500, %v9534
  %v9567 = vmul.f32 %v9501, %v9534
  %v9568 = vmul.f32 %v9502, %v9534
  %v9569 = vmul.f32 %v9503, %v9534
  %v9570 = vmul.f32 %v9504, %v9534
  %v9571 = vmul.f32 %v9505, %v9534
  %v9572 = vmul.f32 %v9506, %v9534
  %v9573 = vmul.f32 %v9507, %v9534
  %v9574 = vmul.f32 %v9508, %v9534
  %v9575 = vmul.f32 %v9509, %v9534
  %v9576 = vmul.f32 %v9510, %v9534
  %v9577 = vmul.f32 %v9511, %v9534
  %v9578 = vmul.f32 %v9512, %v9534
  %v9579 = vmul.f32 %v9513, %v9534
  %v9580 = vmul.f32 %v9514, %v9534
  %v9581 = vmul.f32 %v9515, %v9534
  %v9582 = vmul.f32 %v9516, %v9534
  %v9583 = vmul.f32 %v9517, %v9534
  %v9584 = vmul.f32 %v9518, %v9534
  %v9585 = vmul.f32 %v9519, %v9534
  %v9586 = vmul.f32 %v9520, %v9534
  %v9587 = vmul.f32 %v9521, %v9534
  %v9588 = vmul.f32 %v9522, %v9534
  %v9589 = vmul.f32 %v9523, %v9534
  %v9590 = vmul.f32 %v9524, %v9534
  %v9591 = vmul.f32 %v9525, %v9534
  %v9592 = vmul.f32 %v9526, %v9534
  %v9593 = vmul.f32 %v9527, %v9534
  %v9594 = vmul.f32 %v9528, %v9534
  %v9595 = vmul.f32 %v9529, %v9534
  %v9596 = vmul.f32 %v9530, %v9534
  %v9597 = vmul.f32 %v9531, %v9534
  %v9598 = vmul.f32 %v9532, %v9534
  %v9600 = vlaneseq
  %v9601 = vshrl.u32 %v9600, 7
  %v9602 = vsub.s32 0, %v9601
  %v9603 = vrot.slane %v9133, %v9602
  %v9605 = vmul.f32 %v9535, %v9603
  %v9606 = vmul.f32 %v9536, %v9603
  %v9607 = vmul.f32 %v9537, %v9603
  %v9608 = vmul.f32 %v9538, %v9603
  %v9609 = vmul.f32 %v9539, %v9603
  %v9610 = vmul.f32 %v9540, %v9603
  %v9611 = vmul.f32 %v9541, %v9603
  %v9612 = vmul.f32 %v9542, %v9603
  %v9613 = vmul.f32 %v9543, %v9603
  %v9614 = vmul.f32 %v9544, %v9603
  %v9615 = vmul.f32 %v9545, %v9603
  %v9616 = vmul.f32 %v9546, %v9603
  %v9617 = vmul.f32 %v9547, %v9603
  %v9618 = vmul.f32 %v9548, %v9603
  %v9619 = vmul.f32 %v9549, %v9603
  %v9620 = vmul.f32 %v9550, %v9603
  %v9621 = vmul.f32 %v9551, %v9603
  %v9622 = vmul.f32 %v9552, %v9603
  %v9623 = vmul.f32 %v9553, %v9603
  %v9624 = vmul.f32 %v9554, %v9603
  %v9625 = vmul.f32 %v9555, %v9603
  %v9626 = vmul.f32 %v9556, %v9603
  %v9627 = vmul.f32 %v9557, %v9603
  %v9628 = vmul.f32 %v9558, %v9603
  %v9629 = vmul.f32 %v9559, %v9603
  %v9630 = vmul.f32 %v9560, %v9603
  %v9631 = vmul.f32 %v9561, %v9603
  %v9632 = vmul.f32 %v9562, %v9603
  %v9633 = vmul.f32 %v9563, %v9603
  %v9634 = vmul.f32 %v9564, %v9603
  %v9635 = vmul.f32 %v9565, %v9603
  %v9636 = vmul.f32 %v9566, %v9603
  %v9637 = vmul.f32 %v9567, %v9603
  %v9638 = vmul.f32 %v9568, %v9603
  %v9639 = vmul.f32 %v9569, %v9603
  %v9640 = vmul.f32 %v9570, %v9603
  %v9641 = vmul.f32 %v9571, %v9603
  %v9642 = vmul.f32 %v9572, %v9603
  %v9643 = vmul.f32 %v9573, %v9603
  %v9644 = vmul.f32 %v9574, %v9603
  %v9645 = vmul.f32 %v9575, %v9603
  %v9646 = vmul.f32 %v9576, %v9603
  %v9647 = vmul.f32 %v9577, %v9603
  %v9648 = vmul.f32 %v9578, %v9603
  %v9649 = vmul.f32 %v9579, %v9603
  %v9650 = vmul.f32 %v9580, %v9603
  %v9651 = vmul.f32 %v9581, %v9603
  %v9652 = vmul.f32 %v9582, %v9603
  %v9653 = vmul.f32 %v9583, %v9603
  %v9654 = vmul.f32 %v9584, %v9603
  %v9655 = vmul.f32 %v9585, %v9603
  %v9656 = vmul.f32 %v9586, %v9603
  %v9657 = vmul.f32 %v9587, %v9603
  %v9658 = vmul.f32 %v9588, %v9603
  %v9659 = vmul.f32 %v9589, %v9603
  %v9660 = vmul.f32 %v9590, %v9603
  %v9661 = vmul.f32 %v9591, %v9603
  %v9662 = vmul.f32 %v9592, %v9603
  %v9663 = vmul.f32 %v9593, %v9603
  %v9664 = vmul.f32 %v9594, %v9603
  %v9665 = vmul.f32 %v9595, %v9603
  %v9666 = vmul.f32 %v9596, %v9603
  %v9667 = vmul.f32 %v9597, %v9603
  %v9668 = vmul.f32 %v9598, %v9603
  %v9670 = vlaneseq
  %v9671 = vshrl.u32 %v9670, 7
  %v9672 = vsub.s32 0, %v9671
  %v9673 = vrot.slane %v9134, %v9672
  %v9675 = vadd.f32 %v9605, %v9673
  %v9676 = vadd.f32 %v9606, %v9673
  %v9677 = vadd.f32 %v9607, %v9673
  %v9678 = vadd.f32 %v9608, %v9673
  %v9679 = vadd.f32 %v9609, %v9673
  %v9680 = vadd.f32 %v9610, %v9673
  %v9681 = vadd.f32 %v9611, %v9673
  %v9682 = vadd.f32 %v9612, %v9673
  %v9683 = vadd.f32 %v9613, %v9673
  %v9684 = vadd.f32 %v9614, %v9673
  %v9685 = vadd.f32 %v9615, %v9673
  %v9686 = vadd.f32 %v9616, %v9673
  %v9687 = vadd.f32 %v9617, %v9673
  %v9688 = vadd.f32 %v9618, %v9673
  %v9689 = vadd.f32 %v9619, %v9673
  %v9690 = vadd.f32 %v9620, %v9673
  %v9691 = vadd.f32 %v9621, %v9673
  %v9692 = vadd.f32 %v9622, %v9673
  %v9693 = vadd.f32 %v9623, %v9673
  %v9694 = vadd.f32 %v9624, %v9673
  %v9695 = vadd.f32 %v9625, %v9673
  %v9696 = vadd.f32 %v9626, %v9673
  %v9697 = vadd.f32 %v9627, %v9673
  %v9698 = vadd.f32 %v9628, %v9673
  %v9699 = vadd.f32 %v9629, %v9673
  %v9700 = vadd.f32 %v9630, %v9673
  %v9701 = vadd.f32 %v9631, %v9673
  %v9702 = vadd.f32 %v9632, %v9673
  %v9703 = vadd.f32 %v9633, %v9673
  %v9704 = vadd.f32 %v9634, %v9673
  %v9705 = vadd.f32 %v9635, %v9673
  %v9706 = vadd.f32 %v9636, %v9673
  %v9707 = vadd.f32 %v9637, %v9673
  %v9708 = vadd.f32 %v9638, %v9673
  %v9709 = vadd.f32 %v9639, %v9673
  %v9710 = vadd.f32 %v9640, %v9673
  %v9711 = vadd.f32 %v9641, %v9673
  %v9712 = vadd.f32 %v9642, %v9673
  %v9713 = vadd.f32 %v9643, %v9673
  %v9714 = vadd.f32 %v9644, %v9673
  %v9715 = vadd.f32 %v9645, %v9673
  %v9716 = vadd.f32 %v9646, %v9673
  %v9717 = vadd.f32 %v9647, %v9673
  %v9718 = vadd.f32 %v9648, %v9673
  %v9719 = vadd.f32 %v9649, %v9673
  %v9720 = vadd.f32 %v9650, %v9673
  %v9721 = vadd.f32 %v9651, %v9673
  %v9722 = vadd.f32 %v9652, %v9673
  %v9723 = vadd.f32 %v9653, %v9673
  %v9724 = vadd.f32 %v9654, %v9673
  %v9725 = vadd.f32 %v9655, %v9673
  %v9726 = vadd.f32 %v9656, %v9673
  %v9727 = vadd.f32 %v9657, %v9673
  %v9728 = vadd.f32 %v9658, %v9673
  %v9729 = vadd.f32 %v9659, %v9673
  %v9730 = vadd.f32 %v9660, %v9673
  %v9731 = vadd.f32 %v9661, %v9673
  %v9732 = vadd.f32 %v9662, %v9673
  %v9733 = vadd.f32 %v9663, %v9673
  %v9734 = vadd.f32 %v9664, %v9673
  %v9735 = vadd.f32 %v9665, %v9673
  %v9736 = vadd.f32 %v9666, %v9673
  %v9737 = vadd.f32 %v9667, %v9673
  %v9738 = vadd.f32 %v9668, %v9673
  %v9739 = vadd.f32 %v9675, %v44
  %v9740 = vadd.f32 %v9676, %v45
  %v9741 = vadd.f32 %v9677, %v46
  %v9742 = vadd.f32 %v9678, %v47
  %v9743 = vadd.f32 %v9679, %v48
  %v9744 = vadd.f32 %v9680, %v49
  %v9745 = vadd.f32 %v9681, %v50
  %v9746 = vadd.f32 %v9682, %v51
  %v9747 = vadd.f32 %v9683, %v52
  %v9748 = vadd.f32 %v9684, %v53
  %v9749 = vadd.f32 %v9685, %v54
  %v9750 = vadd.f32 %v9686, %v55
  %v9751 = vadd.f32 %v9687, %v56
  %v9752 = vadd.f32 %v9688, %v57
  %v9753 = vadd.f32 %v9689, %v58
  %v9754 = vadd.f32 %v9690, %v59
  %v9755 = vadd.f32 %v9691, %v60
  %v9756 = vadd.f32 %v9692, %v61
  %v9757 = vadd.f32 %v9693, %v62
  %v9758 = vadd.f32 %v9694, %v63
  %v9759 = vadd.f32 %v9695, %v64
  %v9760 = vadd.f32 %v9696, %v65
  %v9761 = vadd.f32 %v9697, %v66
  %v9762 = vadd.f32 %v9698, %v67
  %v9763 = vadd.f32 %v9699, %v68
  %v9764 = vadd.f32 %v9700, %v69
  %v9765 = vadd.f32 %v9701, %v70
  %v9766 = vadd.f32 %v9702, %v71
  %v9767 = vadd.f32 %v9703, %v72
  %v9768 = vadd.f32 %v9704, %v73
  %v9769 = vadd.f32 %v9705, %v74
  %v9770 = vadd.f32 %v9706, %v75
  %v9771 = vadd.f32 %v9707, %v76
  %v9772 = vadd.f32 %v9708, %v77
  %v9773 = vadd.f32 %v9709, %v78
  %v9774 = vadd.f32 %v9710, %v79
  %v9775 = vadd.f32 %v9711, %v80
  %v9776 = vadd.f32 %v9712, %v81
  %v9777 = vadd.f32 %v9713, %v82
  %v9778 = vadd.f32 %v9714, %v83
  %v9779 = vadd.f32 %v9715, %v84
  %v9780 = vadd.f32 %v9716, %v85
  %v9781 = vadd.f32 %v9717, %v86
  %v9782 = vadd.f32 %v9718, %v87
  %v9783 = vadd.f32 %v9719, %v88
  %v9784 = vadd.f32 %v9720, %v89
  %v9785 = vadd.f32 %v9721, %v90
  %v9786 = vadd.f32 %v9722, %v91
  %v9787 = vadd.f32 %v9723, %v92
  %v9788 = vadd.f32 %v9724, %v93
  %v9789 = vadd.f32 %v9725, %v94
  %v9790 = vadd.f32 %v9726, %v95
  %v9791 = vadd.f32 %v9727, %v96
  %v9792 = vadd.f32 %v9728, %v97
  %v9793 = vadd.f32 %v9729, %v98
  %v9794 = vadd.f32 %v9730, %v99
  %v9795 = vadd.f32 %v9731, %v100
  %v9796 = vadd.f32 %v9732, %v101
  %v9797 = vadd.f32 %v9733, %v102
  %v9798 = vadd.f32 %v9734, %v103
  %v9799 = vadd.f32 %v9735, %v104
  %v9800 = vadd.f32 %v9736, %v105
  %v9801 = vadd.f32 %v9737, %v106
  %v9802 = vadd.f32 %v9738, %v107
  %v9803 = vmax.f32 %v9739, 0.0
  %v9804 = vmax.f32 %v9740, 0.0
  %v9805 = vmax.f32 %v9741, 0.0
  %v9806 = vmax.f32 %v9742, 0.0
  %v9807 = vmax.f32 %v9743, 0.0
  %v9808 = vmax.f32 %v9744, 0.0
  %v9809 = vmax.f32 %v9745, 0.0
  %v9810 = vmax.f32 %v9746, 0.0
  %v9811 = vmax.f32 %v9747, 0.0
  %v9812 = vmax.f32 %v9748, 0.0
  %v9813 = vmax.f32 %v9749, 0.0
  %v9814 = vmax.f32 %v9750, 0.0
  %v9815 = vmax.f32 %v9751, 0.0
  %v9816 = vmax.f32 %v9752, 0.0
  %v9817 = vmax.f32 %v9753, 0.0
  %v9818 = vmax.f32 %v9754, 0.0
  %v9819 = vmax.f32 %v9755, 0.0
  %v9820 = vmax.f32 %v9756, 0.0
  %v9821 = vmax.f32 %v9757, 0.0
  %v9822 = vmax.f32 %v9758, 0.0
  %v9823 = vmax.f32 %v9759, 0.0
  %v9824 = vmax.f32 %v9760, 0.0
  %v9825 = vmax.f32 %v9761, 0.0
  %v9826 = vmax.f32 %v9762, 0.0
  %v9827 = vmax.f32 %v9763, 0.0
  %v9828 = vmax.f32 %v9764, 0.0
  %v9829 = vmax.f32 %v9765, 0.0
  %v9830 = vmax.f32 %v9766, 0.0
  %v9831 = vmax.f32 %v9767, 0.0
  %v9832 = vmax.f32 %v9768, 0.0
  %v9833 = vmax.f32 %v9769, 0.0
  %v9834 = vmax.f32 %v9770, 0.0
  %v9835 = vmax.f32 %v9771, 0.0
  %v9836 = vmax.f32 %v9772, 0.0
  %v9837 = vmax.f32 %v9773, 0.0
  %v9838 = vmax.f32 %v9774, 0.0
  %v9839 = vmax.f32 %v9775, 0.0
  %v9840 = vmax.f32 %v9776, 0.0
  %v9841 = vmax.f32 %v9777, 0.0
  %v9842 = vmax.f32 %v9778, 0.0
  %v9843 = vmax.f32 %v9779, 0.0
  %v9844 = vmax.f32 %v9780, 0.0
  %v9845 = vmax.f32 %v9781, 0.0
  %v9846 = vmax.f32 %v9782, 0.0
  %v9847 = vmax.f32 %v9783, 0.0
  %v9848 = vmax.f32 %v9784, 0.0
  %v9849 = vmax.f32 %v9785, 0.0
  %v9850 = vmax.f32 %v9786, 0.0
  %v9851 = vmax.f32 %v9787, 0.0
  %v9852 = vmax.f32 %v9788, 0.0
  %v9853 = vmax.f32 %v9789, 0.0
  %v9854 = vmax.f32 %v9790, 0.0
  %v9855 = vmax.f32 %v9791, 0.0
  %v9856 = vmax.f32 %v9792, 0.0
  %v9857 = vmax.f32 %v9793, 0.0
  %v9858 = vmax.f32 %v9794, 0.0
  %v9859 = vmax.f32 %v9795, 0.0
  %v9860 = vmax.f32 %v9796, 0.0
  %v9861 = vmax.f32 %v9797, 0.0
  %v9862 = vmax.f32 %v9798, 0.0
  %v9863 = vmax.f32 %v9799, 0.0
  %v9864 = vmax.f32 %v9800, 0.0
  %v9865 = vmax.f32 %v9801, 0.0
  %v9866 = vmax.f32 %v9802, 0.0
  %9867 = vst.msk [vmem:[%s13] sm:$0xff] %vm117, %v9803
  %9868 = vst.msk [vmem:[%s13 + $0x8] sm:$0xff] %vm117, %v9804
  %9869 = vst.msk [vmem:[%s13 + $0x10] sm:$0xff] %vm117, %v9805
  %9870 = vst.msk [vmem:[%s13 + $0x18] sm:$0xff] %vm117, %v9806
  %9871 = vst.msk [vmem:[%s13 + $0x20] sm:$0xff] %vm117, %v9807
  %9872 = vst.msk [vmem:[%s13 + $0x28] sm:$0xff] %vm117, %v9808
  %9873 = vst.msk [vmem:[%s13 + $0x30] sm:$0xff] %vm117, %v9809
  %9874 = vst.msk [vmem:[%s13 + $0x38] sm:$0xff] %vm117, %v9810
  %9875 = vst.msk [vmem:[%s13 + $0x40] sm:$0xff] %vm117, %v9811
  %9876 = vst.msk [vmem:[%s13 + $0x48] sm:$0xff] %vm117, %v9812
  %9877 = vst.msk [vmem:[%s13 + $0x50] sm:$0xff] %vm117, %v9813
  %9878 = vst.msk [vmem:[%s13 + $0x58] sm:$0xff] %vm117, %v9814
  %9879 = vst.msk [vmem:[%s13 + $0x60] sm:$0xff] %vm117, %v9815
  %9880 = vst.msk [vmem:[%s13 + $0x68] sm:$0xff] %vm117, %v9816
  %9881 = vst.msk [vmem:[%s13 + $0x70] sm:$0xff] %vm117, %v9817
  %9882 = vst.msk [vmem:[%s13 + $0x78] sm:$0xff] %vm117, %v9818
  %9883 = vst.msk [vmem:[%s13 + $0x80] sm:$0xff] %vm117, %v9819
  %9884 = vst.msk [vmem:[%s13 + $0x88] sm:$0xff] %vm117, %v9820
  %9885 = vst.msk [vmem:[%s13 + $0x90] sm:$0xff] %vm117, %v9821
  %9886 = vst.msk [vmem:[%s13 + $0x98] sm:$0xff] %vm117, %v9822
  %9887 = vst.msk [vmem:[%s13 + $0xa0] sm:$0xff] %vm117, %v9823
  %9888 = vst.msk [vmem:[%s13 + $0xa8] sm:$0xff] %vm117, %v9824
  %9889 = vst.msk [vmem:[%s13 + $0xb0] sm:$0xff] %vm117, %v9825
  %9890 = vst.msk [vmem:[%s13 + $0xb8] sm:$0xff] %vm117, %v9826
  %9891 = vst.msk [vmem:[%s13 + $0xc0] sm:$0xff] %vm117, %v9827
  %9892 = vst.msk [vmem:[%s13 + $0xc8] sm:$0xff] %vm117, %v9828
  %9893 = vst.msk [vmem:[%s13 + $0xd0] sm:$0xff] %vm117, %v9829
  %9894 = vst.msk [vmem:[%s13 + $0xd8] sm:$0xff] %vm117, %v9830
  %9895 = vst.msk [vmem:[%s13 + $0xe0] sm:$0xff] %vm117, %v9831
  %9896 = vst.msk [vmem:[%s13 + $0xe8] sm:$0xff] %vm117, %v9832
  %9897 = vst.msk [vmem:[%s13 + $0xf0] sm:$0xff] %vm117, %v9833
  %9898 = vst.msk [vmem:[%s13 + $0xf8] sm:$0xff] %vm117, %v9834
  %9899 = vst.msk [vmem:[%s13 + $0x100] sm:$0xff] %vm117, %v9835
  %9900 = vst.msk [vmem:[%s13 + $0x108] sm:$0xff] %vm117, %v9836
  %9901 = vst.msk [vmem:[%s13 + $0x110] sm:$0xff] %vm117, %v9837
  %9902 = vst.msk [vmem:[%s13 + $0x118] sm:$0xff] %vm117, %v9838
  %9903 = vst.msk [vmem:[%s13 + $0x120] sm:$0xff] %vm117, %v9839
  %9904 = vst.msk [vmem:[%s13 + $0x128] sm:$0xff] %vm117, %v9840
  %9905 = vst.msk [vmem:[%s13 + $0x130] sm:$0xff] %vm117, %v9841
  %9906 = vst.msk [vmem:[%s13 + $0x138] sm:$0xff] %vm117, %v9842
  %9907 = vst.msk [vmem:[%s13 + $0x140] sm:$0xff] %vm117, %v9843
  %9908 = vst.msk [vmem:[%s13 + $0x148] sm:$0xff] %vm117, %v9844
  %9909 = vst.msk [vmem:[%s13 + $0x150] sm:$0xff] %vm117, %v9845
  %9910 = vst.msk [vmem:[%s13 + $0x158] sm:$0xff] %vm117, %v9846
  %9911 = vst.msk [vmem:[%s13 + $0x160] sm:$0xff] %vm117, %v9847
  %9912 = vst.msk [vmem:[%s13 + $0x168] sm:$0xff] %vm117, %v9848
  %9913 = vst.msk [vmem:[%s13 + $0x170] sm:$0xff] %vm117, %v9849
  %9914 = vst.msk [vmem:[%s13 + $0x178] sm:$0xff] %vm117, %v9850
  %9915 = vst.msk [vmem:[%s13 + $0x180] sm:$0xff] %vm117, %v9851
  %9916 = vst.msk [vmem:[%s13 + $0x188] sm:$0xff] %vm117, %v9852
  %9917 = vst.msk [vmem:[%s13 + $0x190] sm:$0xff] %vm117, %v9853
  %9918 = vst.msk [vmem:[%s13 + $0x198] sm:$0xff] %vm117, %v9854
  %9919 = vst.msk [vmem:[%s13 + $0x1a0] sm:$0xff] %vm117, %v9855
  %9920 = vst.msk [vmem:[%s13 + $0x1a8] sm:$0xff] %vm117, %v9856
  %9921 = vst.msk [vmem:[%s13 + $0x1b0] sm:$0xff] %vm117, %v9857
  %9922 = vst.msk [vmem:[%s13 + $0x1b8] sm:$0xff] %vm117, %v9858
  %9923 = vst.msk [vmem:[%s13 + $0x1c0] sm:$0xff] %vm117, %v9859
  %9924 = vst.msk [vmem:[%s13 + $0x1c8] sm:$0xff] %vm117, %v9860
  %9925 = vst.msk [vmem:[%s13 + $0x1d0] sm:$0xff] %vm117, %v9861
  %9926 = vst.msk [vmem:[%s13 + $0x1d8] sm:$0xff] %vm117, %v9862
  %9927 = vst.msk [vmem:[%s13 + $0x1e0] sm:$0xff] %vm117, %v9863
  %9928 = vst.msk [vmem:[%s13 + $0x1e8] sm:$0xff] %vm117, %v9864
  %9929 = vst.msk [vmem:[%s13 + $0x1f0] sm:$0xff] %vm117, %v9865
  %9930 = vst.msk [vmem:[%s13 + $0x1f8] sm:$0xff] %vm117, %v9866
  // Predicated region
  $region54: #{tpu_custom_call.1} parent=0 // pred_check
    _
  $region55: #{tpu_custom_call.1} parent=0 // pred_check_branch
    %9932 = sbr.rel (0) target = $region57
  $region56: #{tpu_custom_call.1} parent=0 // pred_region
    _
  $region57: #{tpu_custom_call.1} parent=0 // pred_fallthru
    _
  // Predicated region
  $region58: #{tpu_custom_call.1} parent=0 // pred_check
    _
  $region59: #{tpu_custom_call.1} parent=0 // pred_check_branch
    %9934 = sbr.rel (0) target = $region61
  $region60: #{tpu_custom_call.1} parent=0 // pred_region
    _
  $region61: #{tpu_custom_call.1} parent=0 // pred_fallthru
    _

</llo_original>
